<compile_context>
chip_gen: v6e
topology: v6e:2x2x1
jax: 0.10.0
libtpu: 0.0.40
codegen_flags: <defaults>
</compile_context>

<pallas_src>
import functools

import jax
import jax.numpy as jnp
from jax.experimental import pallas as pl
from jax.experimental.pallas import tpu as pltpu


# --------------------------------------------------------------------------- layer 1
def _dense_matmul_kernel(x_ref, w_ref, o_ref):
    o_ref[...] = jnp.dot(x_ref[...], w_ref[...],
                         preferred_element_type=jnp.float32).astype(o_ref.dtype)


def dense_matmul(x, w, out_dtype=jnp.bfloat16):
    """x: (M, K) bf16, w: (K, N) bf16 -> (M, N). Single-block MXU matmul (layer 1)."""
    M, K = x.shape
    _, N = w.shape
    return pl.pallas_call(
        _dense_matmul_kernel,
        out_shape=jax.ShapeDtypeStruct((M, N), out_dtype),
        grid_spec=pltpu.PrefetchScalarGridSpec(
            num_scalar_prefetch=0,
            grid=(1,),
            in_specs=[pl.BlockSpec((M, K), lambda i: (0, 0)),
                      pl.BlockSpec((K, N), lambda i: (0, 0))],
            out_specs=pl.BlockSpec((M, N), lambda i: (0, 0))),
    )(x, w)


# ----------------------------------------------------------- fused deconv (k=4,s=2,p=1)
def _deconv_kernel(xp_ref, w_ref, o_ref, st_ref, s_acc, ss_acc,
                   *, H, W, Co, apply_tanh):
    """One image per grid step.  All 4 output phases, no HBM im2col.

    xp_ref : (1, H+2, W+2, Ci) bf16   zero-padded input activation
    w_ref  : (16, Ci, Co)      bf16   tap weights, index = ph*8 + pw*4 + rh*2 + rw
    o_ref  : (1, H, 2, W, 2*Co)       phase-interleaved conv output
    st_ref : (1, 2, Co)        f32    per-image BN partials (sum, sum of squares)
    s_acc, ss_acc : (1, Co)    f32    VMEM scratch accumulators

    out[2m+ph, 2n+pw, co] = sum_{rh,rw,ci} xp[m+ph+rh, n+pw+rw, ci]
                                           * w[ci, co, 3-ph-2rh, 3-pw-2rw]
    """
    s_acc[...] = jnp.zeros_like(s_acc)
    ss_acc[...] = jnp.zeros_like(ss_acc)

    def row_body(m, carry):
        for ph in range(2):                      # output-row phase
            for pw in range(2):                  # output-col phase
                acc = jnp.zeros((W, Co), jnp.float32)
                for rh in range(2):              # the 2x2 taps of this phase
                    for rw in range(2):
                        p = ph * 8 + pw * 4 + rh * 2 + rw
                        lhs = xp_ref[0, m + ph + rh, pw + rw:pw + rw + W, :]
                        acc = acc + jnp.dot(lhs, w_ref[p],
                                            preferred_element_type=jnp.float32)
                s_acc[...] += jnp.sum(acc, axis=0, keepdims=True)
                ss_acc[...] += jnp.sum(acc * acc, axis=0, keepdims=True)
                if apply_tanh:
                    acc = jnp.tanh(acc)
                o_ref[0, m, ph, :, pw * Co:(pw + 1) * Co] = acc.astype(o_ref.dtype)
        return carry

    jax.lax.fori_loop(0, H, row_body, 0)
    st_ref[0, 0:1, :] = s_acc[...]
    st_ref[0, 1:2, :] = ss_acc[...]


def deconv4x4_s2p1(x_nhwc, w_packed, *, apply_tanh=False, out_dtype=jnp.bfloat16):
    """Fused ConvTranspose2d(k=4, stride=2, pad=1).

    x_nhwc: (N, H, W, Ci); w_packed: (16, Ci, Co) tap matrices (see _pack_deconv_weight).
    Returns (conv, partial_stats):
      conv  : (N, H, 2, W, 2*Co)  == (N, 2H, 2W, Co) after a contiguous reshape
      stats : (N, 2, Co) f32 per-image (sum, sumsq) for BatchNorm batch statistics.
    """
    N, H, W, Ci = x_nhwc.shape
    Co = w_packed.shape[-1]
    xp = jnp.pad(x_nhwc.astype(jnp.bfloat16), ((0, 0), (1, 1), (1, 1), (0, 0)))
    kern = functools.partial(_deconv_kernel, H=H, W=W, Co=Co, apply_tanh=apply_tanh)
    conv, part = pl.pallas_call(
        kern,
        out_shape=(jax.ShapeDtypeStruct((N, H, 2, W, 2 * Co), out_dtype),
                   jax.ShapeDtypeStruct((N, 2, Co), jnp.float32)),
        grid_spec=pltpu.PrefetchScalarGridSpec(
            num_scalar_prefetch=0,
            grid=(N,),
            in_specs=[pl.BlockSpec((1, H + 2, W + 2, Ci), lambda n: (n, 0, 0, 0)),
                      pl.BlockSpec((16, Ci, Co), lambda n: (0, 0, 0))],
            out_specs=[pl.BlockSpec((1, H, 2, W, 2 * Co), lambda n: (n, 0, 0, 0, 0)),
                       pl.BlockSpec((1, 2, Co), lambda n: (n, 0, 0))],
            scratch_shapes=[pltpu.VMEM((1, Co), jnp.float32),
                            pltpu.VMEM((1, Co), jnp.float32)]),
        compiler_params=pltpu.CompilerParams(
            dimension_semantics=("parallel",)),
        cost_estimate=pl.CostEstimate(
            flops=32 * N * H * W * Ci * Co,
            transcendentals=4 * N * H * W * Co if apply_tanh else 0,
            bytes_accessed=xp.size * 2 + w_packed.size * 2
                           + N * H * W * 4 * Co * jnp.dtype(out_dtype).itemsize),
    )(xp, w_packed)
    return conv, part


# ---------------------------------------------------------- BatchNorm (train-mode stats)
def _bn_from_acts_kernel(y_ref, g_ref, b_ref, o_ref, *, count, eps):
    """Full-activation stats (only used for the tiny layer-1 output)."""
    y = y_ref[...].astype(jnp.float32)
    mean = jnp.sum(y, axis=0, keepdims=True) * (1.0 / count)
    var = jnp.sum(y * y, axis=0, keepdims=True) * (1.0 / count) - mean * mean
    inv = jax.lax.rsqrt(jnp.maximum(var, 0.0) + eps)
    scale = g_ref[...] * inv
    shift = b_ref[...] - mean * scale
    o_ref[0:1, :] = scale
    o_ref[1:2, :] = shift


def bn_from_acts(y, gamma_row, beta_row, *, count, eps=1e-5):
    """y: (M, C).  Returns folded (scale, shift), each (1, C) f32."""
    M, C = y.shape
    kern = functools.partial(_bn_from_acts_kernel, count=float(count), eps=eps)
    stats = pl.pallas_call(
        kern,
        out_shape=jax.ShapeDtypeStruct((2, C), jnp.float32),
        grid_spec=pltpu.PrefetchScalarGridSpec(
            num_scalar_prefetch=0, grid=(1,),
            in_specs=[pl.BlockSpec((M, C), lambda i: (0, 0)),
                      pl.BlockSpec((1, C), lambda i: (0, 0)),
                      pl.BlockSpec((1, C), lambda i: (0, 0))],
            out_specs=pl.BlockSpec((2, C), lambda i: (0, 0))),
    )(y, gamma_row, beta_row)
    return stats[0:1, :], stats[1:2, :]


def _bn_finalize_kernel(p_ref, g_ref, b_ref, o_ref, *, count, eps):
    """Combine per-image (sum, sumsq) partials from the deconv epilogue."""
    q = jnp.sum(p_ref[...], axis=0)          # (2, C)
    mean = q[0:1, :] * (1.0 / count)
    var = q[1:2, :] * (1.0 / count) - mean * mean
    inv = jax.lax.rsqrt(jnp.maximum(var, 0.0) + eps)
    scale = g_ref[...] * inv
    shift = b_ref[...] - mean * scale
    o_ref[0:1, :] = scale
    o_ref[1:2, :] = shift


def bn_finalize(part, gamma_row, beta_row, *, count, eps=1e-5):
    """part: (N, 2, C) f32 partial sums.  Returns folded (scale, shift), each (1, C)."""
    N, _, C = part.shape
    kern = functools.partial(_bn_finalize_kernel, count=float(count), eps=eps)
    stats = pl.pallas_call(
        kern,
        out_shape=jax.ShapeDtypeStruct((2, C), jnp.float32),
        grid_spec=pltpu.PrefetchScalarGridSpec(
            num_scalar_prefetch=0, grid=(1,),
            in_specs=[pl.BlockSpec((N, 2, C), lambda i: (0, 0, 0)),
                      pl.BlockSpec((1, C), lambda i: (0, 0)),
                      pl.BlockSpec((1, C), lambda i: (0, 0))],
            out_specs=pl.BlockSpec((2, C), lambda i: (0, 0))),
    )(part, gamma_row, beta_row)
    return stats[0:1, :], stats[1:2, :]


# --------------------------------------------- lane-dense fused affine + ReLU (bf16 out)
def _affine_relu_kernel(y_ref, sc_ref, sh_ref, o_ref):
    y = y_ref[...].astype(jnp.float32)          # keep VPU math in f32 (v5e-safe)
    o_ref[...] = jnp.maximum(y * sc_ref[...] + sh_ref[...], 0.0).astype(o_ref.dtype)


def _row_tile(rows, lane_bytes):
    """Largest row tile (<=512, ~2 MiB block) that tiles `rows` legally."""
    cap = max(8, min(512, (2 * 1024 * 1024) // max(lane_bytes, 1)))
    if rows <= cap:
        return rows
    t = 8
    while t * 2 <= cap and rows % (t * 2) == 0:
        t *= 2
    return t if rows % t == 0 else rows


def affine_relu(y_rows, scale_row, shift_row, out_dtype=jnp.bfloat16):
    """y_rows: (R, L); scale/shift: (1, L); returns relu(y*scale+shift) in out_dtype."""
    R, L = y_rows.shape
    tr = _row_tile(R, L * y_rows.dtype.itemsize)
    return pl.pallas_call(
        _affine_relu_kernel,
        out_shape=jax.ShapeDtypeStruct((R, L), out_dtype),
        grid_spec=pltpu.PrefetchScalarGridSpec(
            num_scalar_prefetch=0,
            grid=(R // tr,),
            in_specs=[pl.BlockSpec((tr, L), lambda i: (i, 0)),
                      pl.BlockSpec((1, L), lambda i: (0, 0)),
                      pl.BlockSpec((1, L), lambda i: (0, 0))],
            out_specs=pl.BlockSpec((tr, L), lambda i: (i, 0))),
        compiler_params=pltpu.CompilerParams(
            dimension_semantics=("parallel",)),
    )(y_rows, scale_row, shift_row)


# ------------------------------------------------------------------------ parameters
def init_generator_params(key, nz, ngf, nc):
    """Raw parameters in the PyTorch layout: w (Ci, Co, 4, 4); BN gamma/beta (C,)."""
    ks = jax.random.split(key, 13)
    std = 0.02  # DCGAN-style conv init
    p = {
        "w1": jax.random.normal(ks[0], (nz, ngf * 8, 4, 4), jnp.float32) * std,
        "w2": jax.random.normal(ks[1], (ngf * 8, ngf * 4, 4, 4), jnp.float32) * std,
        "w3": jax.random.normal(ks[2], (ngf * 4, ngf * 2, 4, 4), jnp.float32) * std,
        "w4": jax.random.normal(ks[3], (ngf * 2, ngf, 4, 4), jnp.float32) * std,
        "w5": jax.random.normal(ks[4], (ngf, nc, 4, 4), jnp.float32) * std,
    }
    for j, c in zip(range(1, 5), (ngf * 8, ngf * 4, ngf * 2, ngf)):
        # DCGAN-like BN init (weight ~ N(1, .), small bias) so the scale/shift
        # folding path is actually exercised by the numeric check below.
        p[f"g{j}"] = 1.0 + 0.1 * jax.random.normal(ks[4 + j], (c,), jnp.float32)
        p[f"b{j}"] = 0.1 * jax.random.normal(ks[8 + j], (c,), jnp.float32)
    return p


def _pack_deconv_weight(w):
    """(Ci, Co, 4, 4) -> (16, Ci, Co) bf16 tap matrices, index = ph*8 + pw*4 + rh*2 + rw."""
    w_t = jnp.transpose(w, (2, 3, 0, 1))        # (kh, kw, Ci, Co)
    taps = [w_t[3 - ph - 2 * rh, 3 - pw - 2 * rw]
            for ph in (0, 1) for pw in (0, 1) for rh in (0, 1) for rw in (0, 1)]
    return jnp.stack(taps, axis=0).astype(jnp.bfloat16)


def pack_generator_params(raw):
    """One-time transform: prepack/cast all weight matrices (review: do this at init)."""
    nz = raw["w1"].shape[0]
    c1 = raw["w1"].shape[1]
    packed = {"w1m": jnp.transpose(raw["w1"], (0, 2, 3, 1))
                        .reshape(nz, 16 * c1).astype(jnp.bfloat16)}
    for i in (2, 3, 4, 5):
        packed[f"w{i}p"] = _pack_deconv_weight(raw[f"w{i}"])
    for i in (1, 2, 3, 4):
        c = raw[f"g{i}"].shape[0]
        packed[f"g{i}"] = raw[f"g{i}"].reshape(1, c)
        packed[f"b{i}"] = raw[f"b{i}"].reshape(1, c)
    return packed


# ------------------------------------------------------------------------ Generator
def generator_forward(x_nchw, params):
    """x_nchw: (N, nz, 1, 1) f32 -> (N, nc, 64, 64) f32, matching the PyTorch Generator."""
    # TODO(synk): BatchNorm running_mean/running_var buffers are not tracked
    # (train-mode batch statistics only), matching forward numerics but not the buffers.
    N = x_nchw.shape[0]
    c1 = params["g1"].shape[-1]

    # Layer 1: ConvTranspose(nz, 8*ngf, 4, 1, 0) on a 1x1 input == a dense matmul.
    x = x_nchw.reshape(N, -1).astype(jnp.bfloat16)
    h = dense_matmul(x, params["w1m"], out_dtype=jnp.bfloat16)       # (N, 16*c1)
    sc, sh = bn_from_acts(h.reshape(N * 16, c1), params["g1"], params["b1"],
                          count=N * 16)
    h = affine_relu(h.reshape(N * 4, 4 * c1),
                    jnp.tile(sc, (1, 4)), jnp.tile(sh, (1, 4)))
    h = h.reshape(N, 4, 4, c1)                                       # NHWC bf16

    # Layers 2-4: fused deconv (+BN partials) -> finalize -> lane-dense affine+ReLU.
    for i in (2, 3, 4):
        co = params[f"g{i}"].shape[-1]
        conv, part = deconv4x4_s2p1(h, params[f"w{i}p"],
                                    apply_tanh=False, out_dtype=jnp.bfloat16)
        _, H, _, W, _ = conv.shape
        sc, sh = bn_finalize(part, params[f"g{i}"], params[f"b{i}"],
                             count=N * 2 * H * 2 * W)
        rows = affine_relu(conv.reshape(N * 2 * H, 2 * W * co),
                           jnp.tile(sc, (1, 2 * W)), jnp.tile(sh, (1, 2 * W)))
        h = rows.reshape(N, 2 * H, 2 * W, co)

    # Layer 5: deconv with fused tanh, no BN.
    conv, _ = deconv4x4_s2p1(h, params["w5p"], apply_tanh=True, out_dtype=jnp.float32)
    _, H, _, W, twoc = conv.shape
    out = conv.reshape(N, 2 * H, 2 * W, twoc // 2)
    return jnp.transpose(out, (0, 3, 1, 2))                          # back to NCHW f32


# ----------------------------------------------------------------- pure-JAX reference
def reference_forward(x_nchw, raw):
    eps = 1e-5
    N = x_nchw.shape[0]

    def bn_relu(y, g, b):  # train-mode batch statistics, biased variance
        mean = jnp.mean(y, axis=(0, 1, 2), keepdims=True)
        var = jnp.var(y, axis=(0, 1, 2), keepdims=True)
        return jnp.maximum((y - mean) * jax.lax.rsqrt(var + eps) * g + b, 0.0)

    def deconv(x, w):  # ConvTranspose2d(k=4, s=2, p=1), x NHWC, w (Ci, Co, 4, 4)
        n, hh, ww, _ = x.shape
        co = w.shape[1]
        y = jnp.einsum("nhwc,cdkl->nhwkld", x, w)              # (N,H,W,4,4,Co)
        out = jnp.zeros((n, 2 * hh + 2, 2 * ww + 2, co), jnp.float32)
        for kh in range(4):
            for kw in range(4):
                out = out.at[:, kh:kh + 2 * hh:2, kw:kw + 2 * ww:2, :].add(
                    y[:, :, :, kh, kw, :])
        return out[:, 1:1 + 2 * hh, 1:1 + 2 * ww, :]

    x = x_nchw.reshape(N, -1)
    h = jnp.einsum("ni,iokl->nklo", x, raw["w1"])              # (N, 4, 4, 8*ngf)
    h = bn_relu(h, raw["g1"], raw["b1"])
    for i in (2, 3, 4):
        h = bn_relu(deconv(h, raw[f"w{i}"]), raw[f"g{i}"], raw[f"b{i}"])
    h = jnp.tanh(deconv(h, raw["w5"]))
    return jnp.transpose(h, (0, 3, 1, 2))


if __name__ == "__main__":
    nz, ngf, nc, batch = 8, 8, 3, 2
    key = jax.random.PRNGKey(0)
    k_x, k_p = jax.random.split(key)

    x = jax.random.normal(k_x, (batch, nz, 1, 1), jnp.float32)
    raw_params = init_generator_params(k_p, nz, ngf, nc)
    params = pack_generator_params(raw_params)

    fwd = jax.jit(generator_forward)
    out = jax.block_until_ready(fwd(x, params))
    assert out.shape == (batch, nc, 64, 64), out.shape
    assert bool(jnp.all(jnp.isfinite(out)))

    # Sanity check against a pure-JAX f32 reference (bf16 MXU/intermediates => loose tol).
    ref = reference_forward(x, raw_params)
    err = jnp.abs(out - ref)
    max_err = float(jnp.max(err))
    mean_err = float(jnp.mean(err))
    assert max_err < 0.25 and mean_err < 0.03, (max_err, mean_err)

    print("KERNEL_OK")
</pallas_src>

<mosaic_0001>
module attributes {stable_mosaic.version = 11 : i64} {
  func.func @_dense_matmul_kernel(%arg0: i32, %arg1: memref<2x8xbf16, #tpu.memory_space<vmem>>, %arg2: memref<8x1024xbf16, #tpu.memory_space<vmem>>, %arg3: memref<2x1024xbf16, #tpu.memory_space<vmem>>) attributes {dimension_semantics = [#tpu.dimension_semantics<arbitrary>], iteration_bounds = array<i64: 1>, scalar_prefetch = 0 : i64, scratch_operands = 0 : i64, tpu.core_type = #tpu.core_type<tc>, window_params = [{pipeline_mode = #tpu.pipeline_mode<synchronous>, transform_indices = @transform_0, window_bounds = array<i64: 2, 8>}, {pipeline_mode = #tpu.pipeline_mode<synchronous>, transform_indices = @transform_1, window_bounds = array<i64: 8, 1024>}, {pipeline_mode = #tpu.pipeline_mode<synchronous>, transform_indices = @transform_2, window_bounds = array<i64: 2, 1024>}]} {
    %c0 = arith.constant 0 : index
    %c0_0 = arith.constant 0 : index
    %0 = vector.load %arg1[%c0, %c0_0] : memref<2x8xbf16, #tpu.memory_space<vmem>>, vector<2x8xbf16>
    %c0_1 = arith.constant 0 : index
    %c0_2 = arith.constant 0 : index
    %1 = vector.load %arg2[%c0_1, %c0_2] : memref<8x1024xbf16, #tpu.memory_space<vmem>>, vector<8x1024xbf16>
    %cst = arith.constant dense<0.000000e+00> : vector<2x1024xf32>
    %2 = tpu.matmul %0, %1, %cst {dimension_numbers = #tpu.dot_dimension_numbers<[1], [0], [0], [1], [0, 0, 1, 1], [], []>} : vector<2x8xbf16>, vector<8x1024xbf16>, vector<2x1024xf32> -> vector<2x1024xf32>
    %3 = arith.truncf %2 : vector<2x1024xf32> to vector<2x1024xbf16>
    %c0_3 = arith.constant 0 : index
    %c0_4 = arith.constant 0 : index
    %4 = vector.load %arg3[%c0_3, %c0_4] : memref<2x1024xbf16, #tpu.memory_space<vmem>>, vector<2x1024xbf16>
    tpu.vector_store %arg3[%c0_3, %c0_4], %3 {strides = array<i32>} : memref<2x1024xbf16, #tpu.memory_space<vmem>>, vector<2x1024xbf16>,
    return
  }
  func.func @transform_0(%arg0: i32) -> (i32, i32) {
    %c0_i32 = arith.constant 0 : i32
    %c0_i32_0 = arith.constant 0 : i32
    %c0_i32_1 = arith.constant 0 : i32
    return %c0_i32, %c0_i32_0 : i32, i32
  }
  func.func @transform_1(%arg0: i32) -> (i32, i32) {
    %c0_i32 = arith.constant 0 : i32
    %c0_i32_0 = arith.constant 0 : i32
    %c0_i32_1 = arith.constant 0 : i32
    return %c0_i32, %c0_i32_0 : i32, i32
  }
  func.func @transform_2(%arg0: i32) -> (i32, i32) {
    %c0_i32 = arith.constant 0 : i32
    %c0_i32_0 = arith.constant 0 : i32
    %c0_i32_1 = arith.constant 0 : i32
    return %c0_i32, %c0_i32_0 : i32, i32
  }
}

module attributes {stable_mosaic.version = 11 : i64} {
  func.func @_bn_from_acts_kernel(%arg0: i32, %arg1: memref<32x64xbf16, #tpu.memory_space<vmem>>, %arg2: memref<1x64xf32, #tpu.memory_space<vmem>>, %arg3: memref<1x64xf32, #tpu.memory_space<vmem>>, %arg4: memref<2x64xf32, #tpu.memory_space<vmem>>) attributes {dimension_semantics = [#tpu.dimension_semantics<arbitrary>], iteration_bounds = array<i64: 1>, scalar_prefetch = 0 : i64, scratch_operands = 0 : i64, tpu.core_type = #tpu.core_type<tc>, window_params = [{pipeline_mode = #tpu.pipeline_mode<synchronous>, transform_indices = @transform_0, window_bounds = array<i64: 32, 64>}, {pipeline_mode = #tpu.pipeline_mode<synchronous>, transform_indices = @transform_1, window_bounds = array<i64: 1, 64>}, {pipeline_mode = #tpu.pipeline_mode<synchronous>, transform_indices = @transform_2, window_bounds = array<i64: 1, 64>}, {pipeline_mode = #tpu.pipeline_mode<synchronous>, transform_indices = @transform_3, window_bounds = array<i64: 2, 64>}]} {
    %c0 = arith.constant 0 : index
    %c0_0 = arith.constant 0 : index
    %0 = vector.load %arg1[%c0, %c0_0] : memref<32x64xbf16, #tpu.memory_space<vmem>>, vector<32x64xbf16>
    %1 = arith.extf %0 : vector<32x64xbf16> to vector<32x64xf32>
    %cst = arith.constant dense<0.000000e+00> : vector<64xf32>
    %2 = vector.multi_reduction <add>, %1, %cst [0] : vector<32x64xf32> to vector<64xf32>
    %3 = vector.shape_cast %2 : vector<64xf32> to vector<1x64xf32>
    %cst_1 = arith.constant 3.125000e-02 : f32
    %4 = vector.broadcast %cst_1 : f32 to vector<1x64xf32>
    %5 = arith.mulf %3, %4 : vector<1x64xf32>
    %6 = arith.mulf %1, %1 : vector<32x64xf32>
    %cst_2 = arith.constant dense<0.000000e+00> : vector<64xf32>
    %7 = vector.multi_reduction <add>, %6, %cst_2 [0] : vector<32x64xf32> to vector<64xf32>
    %8 = vector.shape_cast %7 : vector<64xf32> to vector<1x64xf32>
    %cst_3 = arith.constant 3.125000e-02 : f32
    %9 = vector.broadcast %cst_3 : f32 to vector<1x64xf32>
    %10 = arith.mulf %8, %9 : vector<1x64xf32>
    %11 = arith.mulf %5, %5 : vector<1x64xf32>
    %12 = arith.subf %10, %11 : vector<1x64xf32>
    %cst_4 = arith.constant 0.000000e+00 : f32
    %13 = vector.broadcast %cst_4 : f32 to vector<1x64xf32>
    %14 = arith.maximumf %12, %13 : vector<1x64xf32>
    %cst_5 = arith.constant 9.99999974E-6 : f32
    %15 = vector.broadcast %cst_5 : f32 to vector<1x64xf32>
    %16 = arith.addf %14, %15 : vector<1x64xf32>
    %17 = math.rsqrt %16 : vector<1x64xf32>
    %c0_6 = arith.constant 0 : index
    %c0_7 = arith.constant 0 : index
    %18 = vector.load %arg2[%c0_6, %c0_7] : memref<1x64xf32, #tpu.memory_space<vmem>>, vector<1x64xf32>
    %19 = arith.mulf %18, %17 : vector<1x64xf32>
    %c0_8 = arith.constant 0 : index
    %c0_9 = arith.constant 0 : index
    %20 = vector.load %arg3[%c0_8, %c0_9] : memref<1x64xf32, #tpu.memory_space<vmem>>, vector<1x64xf32>
    %21 = arith.mulf %5, %19 : vector<1x64xf32>
    %22 = arith.subf %20, %21 : vector<1x64xf32>
    %c0_10 = arith.constant 0 : index
    %c0_11 = arith.constant 0 : index
    %23 = vector.load %arg4[%c0_10, %c0_11] : memref<2x64xf32, #tpu.memory_space<vmem>>, vector<1x64xf32>
    tpu.vector_store %arg4[%c0_10, %c0_11], %19 {strides = array<i32>} : memref<2x64xf32, #tpu.memory_space<vmem>>, vector<1x64xf32>,
    %c1 = arith.constant 1 : index
    %c0_12 = arith.constant 0 : index
    %24 = vector.load %arg4[%c1, %c0_12] : memref<2x64xf32, #tpu.memory_space<vmem>>, vector<1x64xf32>
    tpu.vector_store %arg4[%c1, %c0_12], %22 {strides = array<i32>} : memref<2x64xf32, #tpu.memory_space<vmem>>, vector<1x64xf32>,
    return
  }
  func.func @transform_0(%arg0: i32) -> (i32, i32) {
    %c0_i32 = arith.constant 0 : i32
    %c0_i32_0 = arith.constant 0 : i32
    %c0_i32_1 = arith.constant 0 : i32
    return %c0_i32, %c0_i32_0 : i32, i32
  }
  func.func @transform_1(%arg0: i32) -> (i32, i32) {
    %c0_i32 = arith.constant 0 : i32
    %c0_i32_0 = arith.constant 0 : i32
    %c0_i32_1 = arith.constant 0 : i32
    return %c0_i32, %c0_i32_0 : i32, i32
  }
  func.func @transform_2(%arg0: i32) -> (i32, i32) {
    %c0_i32 = arith.constant 0 : i32
    %c0_i32_0 = arith.constant 0 : i32
    %c0_i32_1 = arith.constant 0 : i32
    return %c0_i32, %c0_i32_0 : i32, i32
  }
  func.func @transform_3(%arg0: i32) -> (i32, i32) {
    %c0_i32 = arith.constant 0 : i32
    %c0_i32_0 = arith.constant 0 : i32
    %c0_i32_1 = arith.constant 0 : i32
    return %c0_i32, %c0_i32_0 : i32, i32
  }
}

module attributes {stable_mosaic.version = 11 : i64} {
  func.func @_affine_relu_kernel(%arg0: i32, %arg1: memref<8x256xbf16, #tpu.memory_space<vmem>>, %arg2: memref<1x256xf32, #tpu.memory_space<vmem>>, %arg3: memref<1x256xf32, #tpu.memory_space<vmem>>, %arg4: memref<8x256xbf16, #tpu.memory_space<vmem>>) attributes {dimension_semantics = [#tpu.dimension_semantics<parallel>], iteration_bounds = array<i64: 1>, scalar_prefetch = 0 : i64, scratch_operands = 0 : i64, tpu.core_type = #tpu.core_type<tc>, window_params = [{transform_indices = @transform_0, window_bounds = array<i64: 8, 256>}, {pipeline_mode = #tpu.pipeline_mode<synchronous>, transform_indices = @transform_1, window_bounds = array<i64: 1, 256>}, {pipeline_mode = #tpu.pipeline_mode<synchronous>, transform_indices = @transform_2, window_bounds = array<i64: 1, 256>}, {transform_indices = @transform_3, window_bounds = array<i64: 8, 256>}]} {
    %c0 = arith.constant 0 : index
    %c0_0 = arith.constant 0 : index
    %0 = vector.load %arg1[%c0, %c0_0] : memref<8x256xbf16, #tpu.memory_space<vmem>>, vector<8x256xbf16>
    %1 = arith.extf %0 : vector<8x256xbf16> to vector<8x256xf32>
    %c0_1 = arith.constant 0 : index
    %c0_2 = arith.constant 0 : index
    %2 = vector.load %arg2[%c0_1, %c0_2] : memref<1x256xf32, #tpu.memory_space<vmem>>, vector<1x256xf32>
    %3 = vector.broadcast %2 : vector<1x256xf32> to vector<8x256xf32>
    %4 = arith.mulf %1, %3 : vector<8x256xf32>
    %c0_3 = arith.constant 0 : index
    %c0_4 = arith.constant 0 : index
    %5 = vector.load %arg3[%c0_3, %c0_4] : memref<1x256xf32, #tpu.memory_space<vmem>>, vector<1x256xf32>
    %6 = vector.broadcast %5 : vector<1x256xf32> to vector<8x256xf32>
    %7 = arith.addf %4, %6 : vector<8x256xf32>
    %cst = arith.constant 0.000000e+00 : f32
    %8 = vector.broadcast %cst : f32 to vector<8x256xf32>
    %9 = arith.maximumf %7, %8 : vector<8x256xf32>
    %10 = arith.truncf %9 : vector<8x256xf32> to vector<8x256xbf16>
    %c0_5 = arith.constant 0 : index
    %c0_6 = arith.constant 0 : index
    %11 = vector.load %arg4[%c0_5, %c0_6] : memref<8x256xbf16, #tpu.memory_space<vmem>>, vector<8x256xbf16>
    tpu.vector_store %arg4[%c0_5, %c0_6], %10 {strides = array<i32>} : memref<8x256xbf16, #tpu.memory_space<vmem>>, vector<8x256xbf16>,
    return
  }
  func.func @transform_0(%arg0: i32) -> (i32, i32) {
    %c0_i32 = arith.constant 0 : i32
    %c0_i32_0 = arith.constant 0 : i32
    return %arg0, %c0_i32 : i32, i32
  }
  func.func @transform_1(%arg0: i32) -> (i32, i32) {
    %c0_i32 = arith.constant 0 : i32
    %c0_i32_0 = arith.constant 0 : i32
    %c0_i32_1 = arith.constant 0 : i32
    return %c0_i32, %c0_i32_0 : i32, i32
  }
  func.func @transform_2(%arg0: i32) -> (i32, i32) {
    %c0_i32 = arith.constant 0 : i32
    %c0_i32_0 = arith.constant 0 : i32
    %c0_i32_1 = arith.constant 0 : i32
    return %c0_i32, %c0_i32_0 : i32, i32
  }
  func.func @transform_3(%arg0: i32) -> (i32, i32) {
    %c0_i32 = arith.constant 0 : i32
    %c0_i32_0 = arith.constant 0 : i32
    return %arg0, %c0_i32 : i32, i32
  }
}

module attributes {stable_mosaic.version = 11 : i64} {
  func.func @_deconv_kernel(%arg0: i32, %arg1: memref<1x6x6x64xbf16, #tpu.memory_space<vmem>>, %arg2: memref<16x64x32xbf16, #tpu.memory_space<vmem>>, %arg3: memref<1x4x2x4x64xbf16, #tpu.memory_space<vmem>>, %arg4: memref<1x2x32xf32, #tpu.memory_space<vmem>>, %arg5: memref<1x32xf32, #tpu.memory_space<vmem>>, %arg6: memref<1x32xf32, #tpu.memory_space<vmem>>) attributes {dimension_semantics = [#tpu.dimension_semantics<parallel>], iteration_bounds = array<i64: 2>, scalar_prefetch = 0 : i64, scratch_operands = 2 : i64, tpu.core_type = #tpu.core_type<tc>, window_params = [{transform_indices = @transform_0, window_bounds = array<i64: 1, 6, 6, 64>}, {pipeline_mode = #tpu.pipeline_mode<synchronous>, transform_indices = @transform_1, window_bounds = array<i64: 16, 64, 32>}, {transform_indices = @transform_2, window_bounds = array<i64: 1, 4, 2, 4, 64>}, {transform_indices = @transform_3, window_bounds = array<i64: 1, 2, 32>}]} {
    %cst = arith.constant 0.000000e+00 : f32
    %0 = vector.broadcast %cst : f32 to vector<1x32xf32>
    %c0 = arith.constant 0 : index
    %c0_0 = arith.constant 0 : index
    %1 = vector.load %arg5[%c0, %c0_0] : memref<1x32xf32, #tpu.memory_space<vmem>>, vector<1x32xf32>
    tpu.vector_store %arg5[%c0, %c0_0], %0 {strides = array<i32>} : memref<1x32xf32, #tpu.memory_space<vmem>>, vector<1x32xf32>,
    %cst_1 = arith.constant 0.000000e+00 : f32
    %2 = vector.broadcast %cst_1 : f32 to vector<1x32xf32>
    %c0_2 = arith.constant 0 : index
    %c0_3 = arith.constant 0 : index
    %3 = vector.load %arg6[%c0_2, %c0_3] : memref<1x32xf32, #tpu.memory_space<vmem>>, vector<1x32xf32>
    tpu.vector_store %arg6[%c0_2, %c0_3], %2 {strides = array<i32>} : memref<1x32xf32, #tpu.memory_space<vmem>>, vector<1x32xf32>,
    %c0_i32 = arith.constant 0 : i32
    %c4_i32 = arith.constant 4 : i32
    %4 = arith.addi %c0_i32, %c4_i32 : i32
    %c1_i32 = arith.constant 1 : i32
    scf.for %arg7 = %c0_i32 to %4 step %c1_i32  : i32 {
      %cst_14 = arith.constant 0.000000e+00 : f32
      %13 = vector.broadcast %cst_14 : f32 to vector<4x32xf32>
      %c0_i32_15 = arith.constant 0 : i32
      %14 = arith.addi %arg7, %c0_i32_15 : i32
      %c0_i32_16 = arith.constant 0 : i32
      %15 = arith.addi %14, %c0_i32_16 : i32
      %c0_17 = arith.constant 0 : index
      %16 = arith.index_cast %15 : i32 to index
      %c0_18 = arith.constant 0 : index
      %c0_19 = arith.constant 0 : index
      %17 = vector.load %arg1[%c0_17, %16, %c0_18, %c0_19] : memref<1x6x6x64xbf16, #tpu.memory_space<vmem>>, vector<1x1x4x64xbf16>
      %18 = vector.shape_cast %17 : vector<1x1x4x64xbf16> to vector<4x64xbf16>
      %c0_20 = arith.constant 0 : index
      %c0_21 = arith.constant 0 : index
      %c0_22 = arith.constant 0 : index
      %19 = vector.load %arg2[%c0_20, %c0_21, %c0_22] : memref<16x64x32xbf16, #tpu.memory_space<vmem>>, vector<1x64x32xbf16>
      %20 = vector.shape_cast %19 : vector<1x64x32xbf16> to vector<64x32xbf16>
      %cst_23 = arith.constant dense<0.000000e+00> : vector<4x32xf32>
      %21 = tpu.matmul %18, %20, %cst_23 {dimension_numbers = #tpu.dot_dimension_numbers<[1], [0], [0], [1], [0, 0, 1, 1], [], []>} : vector<4x64xbf16>, vector<64x32xbf16>, vector<4x32xf32> -> vector<4x32xf32>
      %22 = arith.addf %13, %21 : vector<4x32xf32>
      %c0_i32_24 = arith.constant 0 : i32
      %23 = arith.addi %arg7, %c0_i32_24 : i32
      %c0_i32_25 = arith.constant 0 : i32
      %24 = arith.addi %23, %c0_i32_25 : i32
      %c0_26 = arith.constant 0 : index
      %25 = arith.index_cast %24 : i32 to index
      %c1_27 = arith.constant 1 : index
      %c0_28 = arith.constant 0 : index
      %26 = vector.load %arg1[%c0_26, %25, %c1_27, %c0_28] : memref<1x6x6x64xbf16, #tpu.memory_space<vmem>>, vector<1x1x4x64xbf16>
      %27 = vector.shape_cast %26 : vector<1x1x4x64xbf16> to vector<4x64xbf16>
      %c1_29 = arith.constant 1 : index
      %c0_30 = arith.constant 0 : index
      %c0_31 = arith.constant 0 : index
      %28 = vector.load %arg2[%c1_29, %c0_30, %c0_31] : memref<16x64x32xbf16, #tpu.memory_space<vmem>>, vector<1x64x32xbf16>
      %29 = vector.shape_cast %28 : vector<1x64x32xbf16> to vector<64x32xbf16>
      %cst_32 = arith.constant dense<0.000000e+00> : vector<4x32xf32>
      %30 = tpu.matmul %27, %29, %cst_32 {dimension_numbers = #tpu.dot_dimension_numbers<[1], [0], [0], [1], [0, 0, 1, 1], [], []>} : vector<4x64xbf16>, vector<64x32xbf16>, vector<4x32xf32> -> vector<4x32xf32>
      %31 = arith.addf %22, %30 : vector<4x32xf32>
      %c0_i32_33 = arith.constant 0 : i32
      %32 = arith.addi %arg7, %c0_i32_33 : i32
      %c1_i32_34 = arith.constant 1 : i32
      %33 = arith.addi %32, %c1_i32_34 : i32
      %c0_35 = arith.constant 0 : index
      %34 = arith.index_cast %33 : i32 to index
      %c0_36 = arith.constant 0 : index
      %c0_37 = arith.constant 0 : index
      %35 = vector.load %arg1[%c0_35, %34, %c0_36, %c0_37] : memref<1x6x6x64xbf16, #tpu.memory_space<vmem>>, vector<1x1x4x64xbf16>
      %36 = vector.shape_cast %35 : vector<1x1x4x64xbf16> to vector<4x64xbf16>
      %c2 = arith.constant 2 : index
      %c0_38 = arith.constant 0 : index
      %c0_39 = arith.constant 0 : index
      %37 = vector.load %arg2[%c2, %c0_38, %c0_39] : memref<16x64x32xbf16, #tpu.memory_space<vmem>>, vector<1x64x32xbf16>
      %38 = vector.shape_cast %37 : vector<1x64x32xbf16> to vector<64x32xbf16>
      %cst_40 = arith.constant dense<0.000000e+00> : vector<4x32xf32>
      %39 = tpu.matmul %36, %38, %cst_40 {dimension_numbers = #tpu.dot_dimension_numbers<[1], [0], [0], [1], [0, 0, 1, 1], [], []>} : vector<4x64xbf16>, vector<64x32xbf16>, vector<4x32xf32> -> vector<4x32xf32>
      %40 = arith.addf %31, %39 : vector<4x32xf32>
      %c0_i32_41 = arith.constant 0 : i32
      %41 = arith.addi %arg7, %c0_i32_41 : i32
      %c1_i32_42 = arith.constant 1 : i32
      %42 = arith.addi %41, %c1_i32_42 : i32
      %c0_43 = arith.constant 0 : index
      %43 = arith.index_cast %42 : i32 to index
      %c1_44 = arith.constant 1 : index
      %c0_45 = arith.constant 0 : index
      %44 = vector.load %arg1[%c0_43, %43, %c1_44, %c0_45] : memref<1x6x6x64xbf16, #tpu.memory_space<vmem>>, vector<1x1x4x64xbf16>
      %45 = vector.shape_cast %44 : vector<1x1x4x64xbf16> to vector<4x64xbf16>
      %c3 = arith.constant 3 : index
      %c0_46 = arith.constant 0 : index
      %c0_47 = arith.constant 0 : index
      %46 = vector.load %arg2[%c3, %c0_46, %c0_47] : memref<16x64x32xbf16, #tpu.memory_space<vmem>>, vector<1x64x32xbf16>
      %47 = vector.shape_cast %46 : vector<1x64x32xbf16> to vector<64x32xbf16>
      %cst_48 = arith.constant dense<0.000000e+00> : vector<4x32xf32>
      %48 = tpu.matmul %45, %47, %cst_48 {dimension_numbers = #tpu.dot_dimension_numbers<[1], [0], [0], [1], [0, 0, 1, 1], [], []>} : vector<4x64xbf16>, vector<64x32xbf16>, vector<4x32xf32> -> vector<4x32xf32>
      %49 = arith.addf %40, %48 : vector<4x32xf32>
      %c0_49 = arith.constant 0 : index
      %c0_50 = arith.constant 0 : index
      %50 = vector.load %arg5[%c0_49, %c0_50] : memref<1x32xf32, #tpu.memory_space<vmem>>, vector<1x32xf32>
      %cst_51 = arith.constant dense<0.000000e+00> : vector<32xf32>
      %51 = vector.multi_reduction <add>, %49, %cst_51 [0] : vector<4x32xf32> to vector<32xf32>
      %52 = vector.shape_cast %51 : vector<32xf32> to vector<1x32xf32>
      %53 = arith.addf %50, %52 : vector<1x32xf32>
      %c0_52 = arith.constant 0 : index
      %c0_53 = arith.constant 0 : index
      %54 = vector.load %arg5[%c0_52, %c0_53] : memref<1x32xf32, #tpu.memory_space<vmem>>, vector<1x32xf32>
      tpu.vector_store %arg5[%c0_52, %c0_53], %53 {strides = array<i32>} : memref<1x32xf32, #tpu.memory_space<vmem>>, vector<1x32xf32>,
      %c0_54 = arith.constant 0 : index
      %c0_55 = arith.constant 0 : index
      %55 = vector.load %arg6[%c0_54, %c0_55] : memref<1x32xf32, #tpu.memory_space<vmem>>, vector<1x32xf32>
      %56 = arith.mulf %49, %49 : vector<4x32xf32>
      %cst_56 = arith.constant dense<0.000000e+00> : vector<32xf32>
      %57 = vector.multi_reduction <add>, %56, %cst_56 [0] : vector<4x32xf32> to vector<32xf32>
      %58 = vector.shape_cast %57 : vector<32xf32> to vector<1x32xf32>
      %59 = arith.addf %55, %58 : vector<1x32xf32>
      %c0_57 = arith.constant 0 : index
      %c0_58 = arith.constant 0 : index
      %60 = vector.load %arg6[%c0_57, %c0_58] : memref<1x32xf32, #tpu.memory_space<vmem>>, vector<1x32xf32>
      tpu.vector_store %arg6[%c0_57, %c0_58], %59 {strides = array<i32>} : memref<1x32xf32, #tpu.memory_space<vmem>>, vector<1x32xf32>,
      %61 = arith.truncf %49 : vector<4x32xf32> to vector<4x32xbf16>
      %c0_59 = arith.constant 0 : index
      %62 = arith.index_cast %arg7 : i32 to index
      %c0_60 = arith.constant 0 : index
      %c0_61 = arith.constant 0 : index
      %c0_62 = arith.constant 0 : index
      %63 = vector.load %arg3[%c0_59, %62, %c0_60, %c0_61, %c0_62] : memref<1x4x2x4x64xbf16, #tpu.memory_space<vmem>>, vector<1x1x1x4x32xbf16>
      %64 = vector.shape_cast %63 : vector<1x1x1x4x32xbf16> to vector<4x32xbf16>
      %65 = vector.shape_cast %61 : vector<4x32xbf16> to vector<1x1x1x4x32xbf16>
      tpu.vector_store %arg3[%c0_59, %62, %c0_60, %c0_61, %c0_62], %65 {strides = array<i32>} : memref<1x4x2x4x64xbf16, #tpu.memory_space<vmem>>, vector<1x1x1x4x32xbf16>,
      %cst_63 = arith.constant 0.000000e+00 : f32
      %66 = vector.broadcast %cst_63 : f32 to vector<4x32xf32>
      %c0_i32_64 = arith.constant 0 : i32
      %67 = arith.addi %arg7, %c0_i32_64 : i32
      %c0_i32_65 = arith.constant 0 : i32
      %68 = arith.addi %67, %c0_i32_65 : i32
      %c0_66 = arith.constant 0 : index
      %69 = arith.index_cast %68 : i32 to index
      %c1_67 = arith.constant 1 : index
      %c0_68 = arith.constant 0 : index
      %70 = vector.load %arg1[%c0_66, %69, %c1_67, %c0_68] : memref<1x6x6x64xbf16, #tpu.memory_space<vmem>>, vector<1x1x4x64xbf16>
      %71 = vector.shape_cast %70 : vector<1x1x4x64xbf16> to vector<4x64xbf16>
      %c4 = arith.constant 4 : index
      %c0_69 = arith.constant 0 : index
      %c0_70 = arith.constant 0 : index
      %72 = vector.load %arg2[%c4, %c0_69, %c0_70] : memref<16x64x32xbf16, #tpu.memory_space<vmem>>, vector<1x64x32xbf16>
      %73 = vector.shape_cast %72 : vector<1x64x32xbf16> to vector<64x32xbf16>
      %cst_71 = arith.constant dense<0.000000e+00> : vector<4x32xf32>
      %74 = tpu.matmul %71, %73, %cst_71 {dimension_numbers = #tpu.dot_dimension_numbers<[1], [0], [0], [1], [0, 0, 1, 1], [], []>} : vector<4x64xbf16>, vector<64x32xbf16>, vector<4x32xf32> -> vector<4x32xf32>
      %75 = arith.addf %66, %74 : vector<4x32xf32>
      %c0_i32_72 = arith.constant 0 : i32
      %76 = arith.addi %arg7, %c0_i32_72 : i32
      %c0_i32_73 = arith.constant 0 : i32
      %77 = arith.addi %76, %c0_i32_73 : i32
      %c0_74 = arith.constant 0 : index
      %78 = arith.index_cast %77 : i32 to index
      %c2_75 = arith.constant 2 : index
      %c0_76 = arith.constant 0 : index
      %79 = vector.load %arg1[%c0_74, %78, %c2_75, %c0_76] : memref<1x6x6x64xbf16, #tpu.memory_space<vmem>>, vector<1x1x4x64xbf16>
      %80 = vector.shape_cast %79 : vector<1x1x4x64xbf16> to vector<4x64xbf16>
      %c5 = arith.constant 5 : index
      %c0_77 = arith.constant 0 : index
      %c0_78 = arith.constant 0 : index
      %81 = vector.load %arg2[%c5, %c0_77, %c0_78] : memref<16x64x32xbf16, #tpu.memory_space<vmem>>, vector<1x64x32xbf16>
      %82 = vector.shape_cast %81 : vector<1x64x32xbf16> to vector<64x32xbf16>
      %cst_79 = arith.constant dense<0.000000e+00> : vector<4x32xf32>
      %83 = tpu.matmul %80, %82, %cst_79 {dimension_numbers = #tpu.dot_dimension_numbers<[1], [0], [0], [1], [0, 0, 1, 1], [], []>} : vector<4x64xbf16>, vector<64x32xbf16>, vector<4x32xf32> -> vector<4x32xf32>
      %84 = arith.addf %75, %83 : vector<4x32xf32>
      %c0_i32_80 = arith.constant 0 : i32
      %85 = arith.addi %arg7, %c0_i32_80 : i32
      %c1_i32_81 = arith.constant 1 : i32
      %86 = arith.addi %85, %c1_i32_81 : i32
      %c0_82 = arith.constant 0 : index
      %87 = arith.index_cast %86 : i32 to index
      %c1_83 = arith.constant 1 : index
      %c0_84 = arith.constant 0 : index
      %88 = vector.load %arg1[%c0_82, %87, %c1_83, %c0_84] : memref<1x6x6x64xbf16, #tpu.memory_space<vmem>>, vector<1x1x4x64xbf16>
      %89 = vector.shape_cast %88 : vector<1x1x4x64xbf16> to vector<4x64xbf16>
      %c6 = arith.constant 6 : index
      %c0_85 = arith.constant 0 : index
      %c0_86 = arith.constant 0 : index
      %90 = vector.load %arg2[%c6, %c0_85, %c0_86] : memref<16x64x32xbf16, #tpu.memory_space<vmem>>, vector<1x64x32xbf16>
      %91 = vector.shape_cast %90 : vector<1x64x32xbf16> to vector<64x32xbf16>
      %cst_87 = arith.constant dense<0.000000e+00> : vector<4x32xf32>
      %92 = tpu.matmul %89, %91, %cst_87 {dimension_numbers = #tpu.dot_dimension_numbers<[1], [0], [0], [1], [0, 0, 1, 1], [], []>} : vector<4x64xbf16>, vector<64x32xbf16>, vector<4x32xf32> -> vector<4x32xf32>
      %93 = arith.addf %84, %92 : vector<4x32xf32>
      %c0_i32_88 = arith.constant 0 : i32
      %94 = arith.addi %arg7, %c0_i32_88 : i32
      %c1_i32_89 = arith.constant 1 : i32
      %95 = arith.addi %94, %c1_i32_89 : i32
      %c0_90 = arith.constant 0 : index
      %96 = arith.index_cast %95 : i32 to index
      %c2_91 = arith.constant 2 : index
      %c0_92 = arith.constant 0 : index
      %97 = vector.load %arg1[%c0_90, %96, %c2_91, %c0_92] : memref<1x6x6x64xbf16, #tpu.memory_space<vmem>>, vector<1x1x4x64xbf16>
      %98 = vector.shape_cast %97 : vector<1x1x4x64xbf16> to vector<4x64xbf16>
      %c7 = arith.constant 7 : index
      %c0_93 = arith.constant 0 : index
      %c0_94 = arith.constant 0 : index
      %99 = vector.load %arg2[%c7, %c0_93, %c0_94] : memref<16x64x32xbf16, #tpu.memory_space<vmem>>, vector<1x64x32xbf16>
      %100 = vector.shape_cast %99 : vector<1x64x32xbf16> to vector<64x32xbf16>
      %cst_95 = arith.constant dense<0.000000e+00> : vector<4x32xf32>
      %101 = tpu.matmul %98, %100, %cst_95 {dimension_numbers = #tpu.dot_dimension_numbers<[1], [0], [0], [1], [0, 0, 1, 1], [], []>} : vector<4x64xbf16>, vector<64x32xbf16>, vector<4x32xf32> -> vector<4x32xf32>
      %102 = arith.addf %93, %101 : vector<4x32xf32>
      %c0_96 = arith.constant 0 : index
      %c0_97 = arith.constant 0 : index
      %103 = vector.load %arg5[%c0_96, %c0_97] : memref<1x32xf32, #tpu.memory_space<vmem>>, vector<1x32xf32>
      %cst_98 = arith.constant dense<0.000000e+00> : vector<32xf32>
      %104 = vector.multi_reduction <add>, %102, %cst_98 [0] : vector<4x32xf32> to vector<32xf32>
      %105 = vector.shape_cast %104 : vector<32xf32> to vector<1x32xf32>
      %106 = arith.addf %103, %105 : vector<1x32xf32>
      %c0_99 = arith.constant 0 : index
      %c0_100 = arith.constant 0 : index
      %107 = vector.load %arg5[%c0_99, %c0_100] : memref<1x32xf32, #tpu.memory_space<vmem>>, vector<1x32xf32>
      tpu.vector_store %arg5[%c0_99, %c0_100], %106 {strides = array<i32>} : memref<1x32xf32, #tpu.memory_space<vmem>>, vector<1x32xf32>,
      %c0_101 = arith.constant 0 : index
      %c0_102 = arith.constant 0 : index
      %108 = vector.load %arg6[%c0_101, %c0_102] : memref<1x32xf32, #tpu.memory_space<vmem>>, vector<1x32xf32>
      %109 = arith.mulf %102, %102 : vector<4x32xf32>
      %cst_103 = arith.constant dense<0.000000e+00> : vector<32xf32>
      %110 = vector.multi_reduction <add>, %109, %cst_103 [0] : vector<4x32xf32> to vector<32xf32>
      %111 = vector.shape_cast %110 : vector<32xf32> to vector<1x32xf32>
      %112 = arith.addf %108, %111 : vector<1x32xf32>
      %c0_104 = arith.constant 0 : index
      %c0_105 = arith.constant 0 : index
      %113 = vector.load %arg6[%c0_104, %c0_105] : memref<1x32xf32, #tpu.memory_space<vmem>>, vector<1x32xf32>
      tpu.vector_store %arg6[%c0_104, %c0_105], %112 {strides = array<i32>} : memref<1x32xf32, #tpu.memory_space<vmem>>, vector<1x32xf32>,
      %114 = arith.truncf %102 : vector<4x32xf32> to vector<4x32xbf16>
      %c0_106 = arith.constant 0 : index
      %115 = arith.index_cast %arg7 : i32 to index
      %c0_107 = arith.constant 0 : index
      %c0_108 = arith.constant 0 : index
      %c32 = arith.constant 32 : index
      %116 = vector.load %arg3[%c0_106, %115, %c0_107, %c0_108, %c32] : memref<1x4x2x4x64xbf16, #tpu.memory_space<vmem>>, vector<1x1x1x4x32xbf16>
      %117 = vector.shape_cast %116 : vector<1x1x1x4x32xbf16> to vector<4x32xbf16>
      %118 = vector.shape_cast %114 : vector<4x32xbf16> to vector<1x1x1x4x32xbf16>
      tpu.vector_store %arg3[%c0_106, %115, %c0_107, %c0_108, %c32], %118 {strides = array<i32>} : memref<1x4x2x4x64xbf16, #tpu.memory_space<vmem>>, vector<1x1x1x4x32xbf16>,
      %cst_109 = arith.constant 0.000000e+00 : f32
      %119 = vector.broadcast %cst_109 : f32 to vector<4x32xf32>
      %c1_i32_110 = arith.constant 1 : i32
      %120 = arith.addi %arg7, %c1_i32_110 : i32
      %c0_i32_111 = arith.constant 0 : i32
      %121 = arith.addi %120, %c0_i32_111 : i32
      %c0_112 = arith.constant 0 : index
      %122 = arith.index_cast %121 : i32 to index
      %c0_113 = arith.constant 0 : index
      %c0_114 = arith.constant 0 : index
      %123 = vector.load %arg1[%c0_112, %122, %c0_113, %c0_114] : memref<1x6x6x64xbf16, #tpu.memory_space<vmem>>, vector<1x1x4x64xbf16>
      %124 = vector.shape_cast %123 : vector<1x1x4x64xbf16> to vector<4x64xbf16>
      %c8 = arith.constant 8 : index
      %c0_115 = arith.constant 0 : index
      %c0_116 = arith.constant 0 : index
      %125 = vector.load %arg2[%c8, %c0_115, %c0_116] : memref<16x64x32xbf16, #tpu.memory_space<vmem>>, vector<1x64x32xbf16>
      %126 = vector.shape_cast %125 : vector<1x64x32xbf16> to vector<64x32xbf16>
      %cst_117 = arith.constant dense<0.000000e+00> : vector<4x32xf32>
      %127 = tpu.matmul %124, %126, %cst_117 {dimension_numbers = #tpu.dot_dimension_numbers<[1], [0], [0], [1], [0, 0, 1, 1], [], []>} : vector<4x64xbf16>, vector<64x32xbf16>, vector<4x32xf32> -> vector<4x32xf32>
      %128 = arith.addf %119, %127 : vector<4x32xf32>
      %c1_i32_118 = arith.constant 1 : i32
      %129 = arith.addi %arg7, %c1_i32_118 : i32
      %c0_i32_119 = arith.constant 0 : i32
      %130 = arith.addi %129, %c0_i32_119 : i32
      %c0_120 = arith.constant 0 : index
      %131 = arith.index_cast %130 : i32 to index
      %c1_121 = arith.constant 1 : index
      %c0_122 = arith.constant 0 : index
      %132 = vector.load %arg1[%c0_120, %131, %c1_121, %c0_122] : memref<1x6x6x64xbf16, #tpu.memory_space<vmem>>, vector<1x1x4x64xbf16>
      %133 = vector.shape_cast %132 : vector<1x1x4x64xbf16> to vector<4x64xbf16>
      %c9 = arith.constant 9 : index
      %c0_123 = arith.constant 0 : index
      %c0_124 = arith.constant 0 : index
      %134 = vector.load %arg2[%c9, %c0_123, %c0_124] : memref<16x64x32xbf16, #tpu.memory_space<vmem>>, vector<1x64x32xbf16>
      %135 = vector.shape_cast %134 : vector<1x64x32xbf16> to vector<64x32xbf16>
      %cst_125 = arith.constant dense<0.000000e+00> : vector<4x32xf32>
      %136 = tpu.matmul %133, %135, %cst_125 {dimension_numbers = #tpu.dot_dimension_numbers<[1], [0], [0], [1], [0, 0, 1, 1], [], []>} : vector<4x64xbf16>, vector<64x32xbf16>, vector<4x32xf32> -> vector<4x32xf32>
      %137 = arith.addf %128, %136 : vector<4x32xf32>
      %c1_i32_126 = arith.constant 1 : i32
      %138 = arith.addi %arg7, %c1_i32_126 : i32
      %c1_i32_127 = arith.constant 1 : i32
      %139 = arith.addi %138, %c1_i32_127 : i32
      %c0_128 = arith.constant 0 : index
      %140 = arith.index_cast %139 : i32 to index
      %c0_129 = arith.constant 0 : index
      %c0_130 = arith.constant 0 : index
      %141 = vector.load %arg1[%c0_128, %140, %c0_129, %c0_130] : memref<1x6x6x64xbf16, #tpu.memory_space<vmem>>, vector<1x1x4x64xbf16>
      %142 = vector.shape_cast %141 : vector<1x1x4x64xbf16> to vector<4x64xbf16>
      %c10 = arith.constant 10 : index
      %c0_131 = arith.constant 0 : index
      %c0_132 = arith.constant 0 : index
      %143 = vector.load %arg2[%c10, %c0_131, %c0_132] : memref<16x64x32xbf16, #tpu.memory_space<vmem>>, vector<1x64x32xbf16>
      %144 = vector.shape_cast %143 : vector<1x64x32xbf16> to vector<64x32xbf16>
      %cst_133 = arith.constant dense<0.000000e+00> : vector<4x32xf32>
      %145 = tpu.matmul %142, %144, %cst_133 {dimension_numbers = #tpu.dot_dimension_numbers<[1], [0], [0], [1], [0, 0, 1, 1], [], []>} : vector<4x64xbf16>, vector<64x32xbf16>, vector<4x32xf32> -> vector<4x32xf32>
      %146 = arith.addf %137, %145 : vector<4x32xf32>
      %c1_i32_134 = arith.constant 1 : i32
      %147 = arith.addi %arg7, %c1_i32_134 : i32
      %c1_i32_135 = arith.constant 1 : i32
      %148 = arith.addi %147, %c1_i32_135 : i32
      %c0_136 = arith.constant 0 : index
      %149 = arith.index_cast %148 : i32 to index
      %c1_137 = arith.constant 1 : index
      %c0_138 = arith.constant 0 : index
      %150 = vector.load %arg1[%c0_136, %149, %c1_137, %c0_138] : memref<1x6x6x64xbf16, #tpu.memory_space<vmem>>, vector<1x1x4x64xbf16>
      %151 = vector.shape_cast %150 : vector<1x1x4x64xbf16> to vector<4x64xbf16>
      %c11 = arith.constant 11 : index
      %c0_139 = arith.constant 0 : index
      %c0_140 = arith.constant 0 : index
      %152 = vector.load %arg2[%c11, %c0_139, %c0_140] : memref<16x64x32xbf16, #tpu.memory_space<vmem>>, vector<1x64x32xbf16>
      %153 = vector.shape_cast %152 : vector<1x64x32xbf16> to vector<64x32xbf16>
      %cst_141 = arith.constant dense<0.000000e+00> : vector<4x32xf32>
      %154 = tpu.matmul %151, %153, %cst_141 {dimension_numbers = #tpu.dot_dimension_numbers<[1], [0], [0], [1], [0, 0, 1, 1], [], []>} : vector<4x64xbf16>, vector<64x32xbf16>, vector<4x32xf32> -> vector<4x32xf32>
      %155 = arith.addf %146, %154 : vector<4x32xf32>
      %c0_142 = arith.constant 0 : index
      %c0_143 = arith.constant 0 : index
      %156 = vector.load %arg5[%c0_142, %c0_143] : memref<1x32xf32, #tpu.memory_space<vmem>>, vector<1x32xf32>
      %cst_144 = arith.constant dense<0.000000e+00> : vector<32xf32>
      %157 = vector.multi_reduction <add>, %155, %cst_144 [0] : vector<4x32xf32> to vector<32xf32>
      %158 = vector.shape_cast %157 : vector<32xf32> to vector<1x32xf32>
      %159 = arith.addf %156, %158 : vector<1x32xf32>
      %c0_145 = arith.constant 0 : index
      %c0_146 = arith.constant 0 : index
      %160 = vector.load %arg5[%c0_145, %c0_146] : memref<1x32xf32, #tpu.memory_space<vmem>>, vector<1x32xf32>
      tpu.vector_store %arg5[%c0_145, %c0_146], %159 {strides = array<i32>} : memref<1x32xf32, #tpu.memory_space<vmem>>, vector<1x32xf32>,
      %c0_147 = arith.constant 0 : index
      %c0_148 = arith.constant 0 : index
      %161 = vector.load %arg6[%c0_147, %c0_148] : memref<1x32xf32, #tpu.memory_space<vmem>>, vector<1x32xf32>
      %162 = arith.mulf %155, %155 : vector<4x32xf32>
      %cst_149 = arith.constant dense<0.000000e+00> : vector<32xf32>
      %163 = vector.multi_reduction <add>, %162, %cst_149 [0] : vector<4x32xf32> to vector<32xf32>
      %164 = vector.shape_cast %163 : vector<32xf32> to vector<1x32xf32>
      %165 = arith.addf %161, %164 : vector<1x32xf32>
      %c0_150 = arith.constant 0 : index
      %c0_151 = arith.constant 0 : index
      %166 = vector.load %arg6[%c0_150, %c0_151] : memref<1x32xf32, #tpu.memory_space<vmem>>, vector<1x32xf32>
      tpu.vector_store %arg6[%c0_150, %c0_151], %165 {strides = array<i32>} : memref<1x32xf32, #tpu.memory_space<vmem>>, vector<1x32xf32>,
      %167 = arith.truncf %155 : vector<4x32xf32> to vector<4x32xbf16>
      %c0_152 = arith.constant 0 : index
      %168 = arith.index_cast %arg7 : i32 to index
      %c1_153 = arith.constant 1 : index
      %c0_154 = arith.constant 0 : index
      %c0_155 = arith.constant 0 : index
      %169 = vector.load %arg3[%c0_152, %168, %c1_153, %c0_154, %c0_155] : memref<1x4x2x4x64xbf16, #tpu.memory_space<vmem>>, vector<1x1x1x4x32xbf16>
      %170 = vector.shape_cast %169 : vector<1x1x1x4x32xbf16> to vector<4x32xbf16>
      %171 = vector.shape_cast %167 : vector<4x32xbf16> to vector<1x1x1x4x32xbf16>
      tpu.vector_store %arg3[%c0_152, %168, %c1_153, %c0_154, %c0_155], %171 {strides = array<i32>} : memref<1x4x2x4x64xbf16, #tpu.memory_space<vmem>>, vector<1x1x1x4x32xbf16>,
      %cst_156 = arith.constant 0.000000e+00 : f32
      %172 = vector.broadcast %cst_156 : f32 to vector<4x32xf32>
      %c1_i32_157 = arith.constant 1 : i32
      %173 = arith.addi %arg7, %c1_i32_157 : i32
      %c0_i32_158 = arith.constant 0 : i32
      %174 = arith.addi %173, %c0_i32_158 : i32
      %c0_159 = arith.constant 0 : index
      %175 = arith.index_cast %174 : i32 to index
      %c1_160 = arith.constant 1 : index
      %c0_161 = arith.constant 0 : index
      %176 = vector.load %arg1[%c0_159, %175, %c1_160, %c0_161] : memref<1x6x6x64xbf16, #tpu.memory_space<vmem>>, vector<1x1x4x64xbf16>
      %177 = vector.shape_cast %176 : vector<1x1x4x64xbf16> to vector<4x64xbf16>
      %c12 = arith.constant 12 : index
      %c0_162 = arith.constant 0 : index
      %c0_163 = arith.constant 0 : index
      %178 = vector.load %arg2[%c12, %c0_162, %c0_163] : memref<16x64x32xbf16, #tpu.memory_space<vmem>>, vector<1x64x32xbf16>
      %179 = vector.shape_cast %178 : vector<1x64x32xbf16> to vector<64x32xbf16>
      %cst_164 = arith.constant dense<0.000000e+00> : vector<4x32xf32>
      %180 = tpu.matmul %177, %179, %cst_164 {dimension_numbers = #tpu.dot_dimension_numbers<[1], [0], [0], [1], [0, 0, 1, 1], [], []>} : vector<4x64xbf16>, vector<64x32xbf16>, vector<4x32xf32> -> vector<4x32xf32>
      %181 = arith.addf %172, %180 : vector<4x32xf32>
      %c1_i32_165 = arith.constant 1 : i32
      %182 = arith.addi %arg7, %c1_i32_165 : i32
      %c0_i32_166 = arith.constant 0 : i32
      %183 = arith.addi %182, %c0_i32_166 : i32
      %c0_167 = arith.constant 0 : index
      %184 = arith.index_cast %183 : i32 to index
      %c2_168 = arith.constant 2 : index
      %c0_169 = arith.constant 0 : index
      %185 = vector.load %arg1[%c0_167, %184, %c2_168, %c0_169] : memref<1x6x6x64xbf16, #tpu.memory_space<vmem>>, vector<1x1x4x64xbf16>
      %186 = vector.shape_cast %185 : vector<1x1x4x64xbf16> to vector<4x64xbf16>
      %c13 = arith.constant 13 : index
      %c0_170 = arith.constant 0 : index
      %c0_171 = arith.constant 0 : index
      %187 = vector.load %arg2[%c13, %c0_170, %c0_171] : memref<16x64x32xbf16, #tpu.memory_space<vmem>>, vector<1x64x32xbf16>
      %188 = vector.shape_cast %187 : vector<1x64x32xbf16> to vector<64x32xbf16>
      %cst_172 = arith.constant dense<0.000000e+00> : vector<4x32xf32>
      %189 = tpu.matmul %186, %188, %cst_172 {dimension_numbers = #tpu.dot_dimension_numbers<[1], [0], [0], [1], [0, 0, 1, 1], [], []>} : vector<4x64xbf16>, vector<64x32xbf16>, vector<4x32xf32> -> vector<4x32xf32>
      %190 = arith.addf %181, %189 : vector<4x32xf32>
      %c1_i32_173 = arith.constant 1 : i32
      %191 = arith.addi %arg7, %c1_i32_173 : i32
      %c1_i32_174 = arith.constant 1 : i32
      %192 = arith.addi %191, %c1_i32_174 : i32
      %c0_175 = arith.constant 0 : index
      %193 = arith.index_cast %192 : i32 to index
      %c1_176 = arith.constant 1 : index
      %c0_177 = arith.constant 0 : index
      %194 = vector.load %arg1[%c0_175, %193, %c1_176, %c0_177] : memref<1x6x6x64xbf16, #tpu.memory_space<vmem>>, vector<1x1x4x64xbf16>
      %195 = vector.shape_cast %194 : vector<1x1x4x64xbf16> to vector<4x64xbf16>
      %c14 = arith.constant 14 : index
      %c0_178 = arith.constant 0 : index
      %c0_179 = arith.constant 0 : index
      %196 = vector.load %arg2[%c14, %c0_178, %c0_179] : memref<16x64x32xbf16, #tpu.memory_space<vmem>>, vector<1x64x32xbf16>
      %197 = vector.shape_cast %196 : vector<1x64x32xbf16> to vector<64x32xbf16>
      %cst_180 = arith.constant dense<0.000000e+00> : vector<4x32xf32>
      %198 = tpu.matmul %195, %197, %cst_180 {dimension_numbers = #tpu.dot_dimension_numbers<[1], [0], [0], [1], [0, 0, 1, 1], [], []>} : vector<4x64xbf16>, vector<64x32xbf16>, vector<4x32xf32> -> vector<4x32xf32>
      %199 = arith.addf %190, %198 : vector<4x32xf32>
      %c1_i32_181 = arith.constant 1 : i32
      %200 = arith.addi %arg7, %c1_i32_181 : i32
      %c1_i32_182 = arith.constant 1 : i32
      %201 = arith.addi %200, %c1_i32_182 : i32
      %c0_183 = arith.constant 0 : index
      %202 = arith.index_cast %201 : i32 to index
      %c2_184 = arith.constant 2 : index
      %c0_185 = arith.constant 0 : index
      %203 = vector.load %arg1[%c0_183, %202, %c2_184, %c0_185] : memref<1x6x6x64xbf16, #tpu.memory_space<vmem>>, vector<1x1x4x64xbf16>
      %204 = vector.shape_cast %203 : vector<1x1x4x64xbf16> to vector<4x64xbf16>
      %c15 = arith.constant 15 : index
      %c0_186 = arith.constant 0 : index
      %c0_187 = arith.constant 0 : index
      %205 = vector.load %arg2[%c15, %c0_186, %c0_187] : memref<16x64x32xbf16, #tpu.memory_space<vmem>>, vector<1x64x32xbf16>
      %206 = vector.shape_cast %205 : vector<1x64x32xbf16> to vector<64x32xbf16>
      %cst_188 = arith.constant dense<0.000000e+00> : vector<4x32xf32>
      %207 = tpu.matmul %204, %206, %cst_188 {dimension_numbers = #tpu.dot_dimension_numbers<[1], [0], [0], [1], [0, 0, 1, 1], [], []>} : vector<4x64xbf16>, vector<64x32xbf16>, vector<4x32xf32> -> vector<4x32xf32>
      %208 = arith.addf %199, %207 : vector<4x32xf32>
      %c0_189 = arith.constant 0 : index
      %c0_190 = arith.constant 0 : index
      %209 = vector.load %arg5[%c0_189, %c0_190] : memref<1x32xf32, #tpu.memory_space<vmem>>, vector<1x32xf32>
      %cst_191 = arith.constant dense<0.000000e+00> : vector<32xf32>
      %210 = vector.multi_reduction <add>, %208, %cst_191 [0] : vector<4x32xf32> to vector<32xf32>
      %211 = vector.shape_cast %210 : vector<32xf32> to vector<1x32xf32>
      %212 = arith.addf %209, %211 : vector<1x32xf32>
      %c0_192 = arith.constant 0 : index
      %c0_193 = arith.constant 0 : index
      %213 = vector.load %arg5[%c0_192, %c0_193] : memref<1x32xf32, #tpu.memory_space<vmem>>, vector<1x32xf32>
      tpu.vector_store %arg5[%c0_192, %c0_193], %212 {strides = array<i32>} : memref<1x32xf32, #tpu.memory_space<vmem>>, vector<1x32xf32>,
      %c0_194 = arith.constant 0 : index
      %c0_195 = arith.constant 0 : index
      %214 = vector.load %arg6[%c0_194, %c0_195] : memref<1x32xf32, #tpu.memory_space<vmem>>, vector<1x32xf32>
      %215 = arith.mulf %208, %208 : vector<4x32xf32>
      %cst_196 = arith.constant dense<0.000000e+00> : vector<32xf32>
      %216 = vector.multi_reduction <add>, %215, %cst_196 [0] : vector<4x32xf32> to vector<32xf32>
      %217 = vector.shape_cast %216 : vector<32xf32> to vector<1x32xf32>
      %218 = arith.addf %214, %217 : vector<1x32xf32>
      %c0_197 = arith.constant 0 : index
      %c0_198 = arith.constant 0 : index
      %219 = vector.load %arg6[%c0_197, %c0_198] : memref<1x32xf32, #tpu.memory_space<vmem>>, vector<1x32xf32>
      tpu.vector_store %arg6[%c0_197, %c0_198], %218 {strides = array<i32>} : memref<1x32xf32, #tpu.memory_space<vmem>>, vector<1x32xf32>,
      %220 = arith.truncf %208 : vector<4x32xf32> to vector<4x32xbf16>
      %c0_199 = arith.constant 0 : index
      %221 = arith.index_cast %arg7 : i32 to index
      %c1_200 = arith.constant 1 : index
      %c0_201 = arith.constant 0 : index
      %c32_202 = arith.constant 32 : index
      %222 = vector.load %arg3[%c0_199, %221, %c1_200, %c0_201, %c32_202] : memref<1x4x2x4x64xbf16, #tpu.memory_space<vmem>>, vector<1x1x1x4x32xbf16>
      %223 = vector.shape_cast %222 : vector<1x1x1x4x32xbf16> to vector<4x32xbf16>
      %224 = vector.shape_cast %220 : vector<4x32xbf16> to vector<1x1x1x4x32xbf16>
      tpu.vector_store %arg3[%c0_199, %221, %c1_200, %c0_201, %c32_202], %224 {strides = array<i32>} : memref<1x4x2x4x64xbf16, #tpu.memory_space<vmem>>, vector<1x1x1x4x32xbf16>,
    }
    %c4_i32_4 = arith.constant 4 : i32
    %c0_5 = arith.constant 0 : index
    %c0_6 = arith.constant 0 : index
    %5 = vector.load %arg5[%c0_5, %c0_6] : memref<1x32xf32, #tpu.memory_space<vmem>>, vector<1x32xf32>
    %c0_7 = arith.constant 0 : index
    %c0_8 = arith.constant 0 : index
    %c0_9 = arith.constant 0 : index
    %6 = vector.load %arg4[%c0_7, %c0_8, %c0_9] : memref<1x2x32xf32, #tpu.memory_space<vmem>>, vector<1x1x32xf32>
    %7 = vector.shape_cast %6 : vector<1x1x32xf32> to vector<1x32xf32>
    %8 = vector.shape_cast %5 : vector<1x32xf32> to vector<1x1x32xf32>
    tpu.vector_store %arg4[%c0_7, %c0_8, %c0_9], %8 {strides = array<i32>} : memref<1x2x32xf32, #tpu.memory_space<vmem>>, vector<1x1x32xf32>,
    %c0_10 = arith.constant 0 : index
    %c0_11 = arith.constant 0 : index
    %9 = vector.load %arg6[%c0_10, %c0_11] : memref<1x32xf32, #tpu.memory_space<vmem>>, vector<1x32xf32>
    %c0_12 = arith.constant 0 : index
    %c1 = arith.constant 1 : index
    %c0_13 = arith.constant 0 : index
    %10 = vector.load %arg4[%c0_12, %c1, %c0_13] : memref<1x2x32xf32, #tpu.memory_space<vmem>>, vector<1x1x32xf32>
    %11 = vector.shape_cast %10 : vector<1x1x32xf32> to vector<1x32xf32>
    %12 = vector.shape_cast %9 : vector<1x32xf32> to vector<1x1x32xf32>
    tpu.vector_store %arg4[%c0_12, %c1, %c0_13], %12 {strides = array<i32>} : memref<1x2x32xf32, #tpu.memory_space<vmem>>, vector<1x1x32xf32>,
    return
  }
  func.func @transform_0(%arg0: i32) -> (i32, i32, i32, i32) {
    %c0_i32 = arith.constant 0 : i32
    %c0_i32_0 = arith.constant 0 : i32
    %c0_i32_1 = arith.constant 0 : i32
    %c0_i32_2 = arith.constant 0 : i32
    return %arg0, %c0_i32, %c0_i32_0, %c0_i32_1 : i32, i32, i32, i32
  }
  func.func @transform_1(%arg0: i32) -> (i32, i32, i32) {
    %c0_i32 = arith.constant 0 : i32
    %c0_i32_0 = arith.constant 0 : i32
    %c0_i32_1 = arith.constant 0 : i32
    %c0_i32_2 = arith.constant 0 : i32
    return %c0_i32, %c0_i32_0, %c0_i32_1 : i32, i32, i32
  }
  func.func @transform_2(%arg0: i32) -> (i32, i32, i32, i32, i32) {
    %c0_i32 = arith.constant 0 : i32
    %c0_i32_0 = arith.constant 0 : i32
    %c0_i32_1 = arith.constant 0 : i32
    %c0_i32_2 = arith.constant 0 : i32
    %c0_i32_3 = arith.constant 0 : i32
    return %arg0, %c0_i32, %c0_i32_0, %c0_i32_1, %c0_i32_2 : i32, i32, i32, i32, i32
  }
  func.func @transform_3(%arg0: i32) -> (i32, i32, i32) {
    %c0_i32 = arith.constant 0 : i32
    %c0_i32_0 = arith.constant 0 : i32
    %c0_i32_1 = arith.constant 0 : i32
    return %arg0, %c0_i32, %c0_i32_0 : i32, i32, i32
  }
}

module attributes {stable_mosaic.version = 11 : i64} {
  func.func @_affine_relu_kernel(%arg0: i32, %arg1: memref<16x256xbf16, #tpu.memory_space<vmem>>, %arg2: memref<1x256xf32, #tpu.memory_space<vmem>>, %arg3: memref<1x256xf32, #tpu.memory_space<vmem>>, %arg4: memref<16x256xbf16, #tpu.memory_space<vmem>>) attributes {dimension_semantics = [#tpu.dimension_semantics<parallel>], iteration_bounds = array<i64: 1>, scalar_prefetch = 0 : i64, scratch_operands = 0 : i64, tpu.core_type = #tpu.core_type<tc>, window_params = [{transform_indices = @transform_0, window_bounds = array<i64: 16, 256>}, {pipeline_mode = #tpu.pipeline_mode<synchronous>, transform_indices = @transform_1, window_bounds = array<i64: 1, 256>}, {pipeline_mode = #tpu.pipeline_mode<synchronous>, transform_indices = @transform_2, window_bounds = array<i64: 1, 256>}, {transform_indices = @transform_3, window_bounds = array<i64: 16, 256>}]} {
    %c0 = arith.constant 0 : index
    %c0_0 = arith.constant 0 : index
    %0 = vector.load %arg1[%c0, %c0_0] : memref<16x256xbf16, #tpu.memory_space<vmem>>, vector<16x256xbf16>
    %1 = arith.extf %0 : vector<16x256xbf16> to vector<16x256xf32>
    %c0_1 = arith.constant 0 : index
    %c0_2 = arith.constant 0 : index
    %2 = vector.load %arg2[%c0_1, %c0_2] : memref<1x256xf32, #tpu.memory_space<vmem>>, vector<1x256xf32>
    %3 = vector.broadcast %2 : vector<1x256xf32> to vector<16x256xf32>
    %4 = arith.mulf %1, %3 : vector<16x256xf32>
    %c0_3 = arith.constant 0 : index
    %c0_4 = arith.constant 0 : index
    %5 = vector.load %arg3[%c0_3, %c0_4] : memref<1x256xf32, #tpu.memory_space<vmem>>, vector<1x256xf32>
    %6 = vector.broadcast %5 : vector<1x256xf32> to vector<16x256xf32>
    %7 = arith.addf %4, %6 : vector<16x256xf32>
    %cst = arith.constant 0.000000e+00 : f32
    %8 = vector.broadcast %cst : f32 to vector<16x256xf32>
    %9 = arith.maximumf %7, %8 : vector<16x256xf32>
    %10 = arith.truncf %9 : vector<16x256xf32> to vector<16x256xbf16>
    %c0_5 = arith.constant 0 : index
    %c0_6 = arith.constant 0 : index
    %11 = vector.load %arg4[%c0_5, %c0_6] : memref<16x256xbf16, #tpu.memory_space<vmem>>, vector<16x256xbf16>
    tpu.vector_store %arg4[%c0_5, %c0_6], %10 {strides = array<i32>} : memref<16x256xbf16, #tpu.memory_space<vmem>>, vector<16x256xbf16>,
    return
  }
  func.func @transform_0(%arg0: i32) -> (i32, i32) {
    %c0_i32 = arith.constant 0 : i32
    %c0_i32_0 = arith.constant 0 : i32
    return %arg0, %c0_i32 : i32, i32
  }
  func.func @transform_1(%arg0: i32) -> (i32, i32) {
    %c0_i32 = arith.constant 0 : i32
    %c0_i32_0 = arith.constant 0 : i32
    %c0_i32_1 = arith.constant 0 : i32
    return %c0_i32, %c0_i32_0 : i32, i32
  }
  func.func @transform_2(%arg0: i32) -> (i32, i32) {
    %c0_i32 = arith.constant 0 : i32
    %c0_i32_0 = arith.constant 0 : i32
    %c0_i32_1 = arith.constant 0 : i32
    return %c0_i32, %c0_i32_0 : i32, i32
  }
  func.func @transform_3(%arg0: i32) -> (i32, i32) {
    %c0_i32 = arith.constant 0 : i32
    %c0_i32_0 = arith.constant 0 : i32
    return %arg0, %c0_i32 : i32, i32
  }
}

module attributes {stable_mosaic.version = 11 : i64} {
  func.func @_bn_finalize_kernel(%arg0: i32, %arg1: memref<2x2x32xf32, #tpu.memory_space<vmem>>, %arg2: memref<1x32xf32, #tpu.memory_space<vmem>>, %arg3: memref<1x32xf32, #tpu.memory_space<vmem>>, %arg4: memref<2x32xf32, #tpu.memory_space<vmem>>) attributes {dimension_semantics = [#tpu.dimension_semantics<arbitrary>], iteration_bounds = array<i64: 1>, scalar_prefetch = 0 : i64, scratch_operands = 0 : i64, tpu.core_type = #tpu.core_type<tc>, window_params = [{pipeline_mode = #tpu.pipeline_mode<synchronous>, transform_indices = @transform_0, window_bounds = array<i64: 2, 2, 32>}, {pipeline_mode = #tpu.pipeline_mode<synchronous>, transform_indices = @transform_1, window_bounds = array<i64: 1, 32>}, {pipeline_mode = #tpu.pipeline_mode<synchronous>, transform_indices = @transform_2, window_bounds = array<i64: 1, 32>}, {pipeline_mode = #tpu.pipeline_mode<synchronous>, transform_indices = @transform_3, window_bounds = array<i64: 2, 32>}]} {
    %c0 = arith.constant 0 : index
    %c0_0 = arith.constant 0 : index
    %c0_1 = arith.constant 0 : index
    %0 = vector.load %arg1[%c0, %c0_0, %c0_1] : memref<2x2x32xf32, #tpu.memory_space<vmem>>, vector<2x2x32xf32>
    %cst = arith.constant dense<0.000000e+00> : vector<2x32xf32>
    %1 = vector.multi_reduction <add>, %0, %cst [0] : vector<2x2x32xf32> to vector<2x32xf32>
    %2 = vector.extract_strided_slice %1 {offsets = [0, 0], sizes = [1, 32], strides = [1, 1]} : vector<2x32xf32> to vector<1x32xf32>
    %cst_2 = arith.constant 7.812500e-03 : f32
    %3 = vector.broadcast %cst_2 : f32 to vector<1x32xf32>
    %4 = arith.mulf %2, %3 : vector<1x32xf32>
    %5 = vector.extract_strided_slice %1 {offsets = [1, 0], sizes = [1, 32], strides = [1, 1]} : vector<2x32xf32> to vector<1x32xf32>
    %cst_3 = arith.constant 7.812500e-03 : f32
    %6 = vector.broadcast %cst_3 : f32 to vector<1x32xf32>
    %7 = arith.mulf %5, %6 : vector<1x32xf32>
    %8 = arith.mulf %4, %4 : vector<1x32xf32>
    %9 = arith.subf %7, %8 : vector<1x32xf32>
    %cst_4 = arith.constant 0.000000e+00 : f32
    %10 = vector.broadcast %cst_4 : f32 to vector<1x32xf32>
    %11 = arith.maximumf %9, %10 : vector<1x32xf32>
    %cst_5 = arith.constant 9.99999974E-6 : f32
    %12 = vector.broadcast %cst_5 : f32 to vector<1x32xf32>
    %13 = arith.addf %11, %12 : vector<1x32xf32>
    %14 = math.rsqrt %13 : vector<1x32xf32>
    %c0_6 = arith.constant 0 : index
    %c0_7 = arith.constant 0 : index
    %15 = vector.load %arg2[%c0_6, %c0_7] : memref<1x32xf32, #tpu.memory_space<vmem>>, vector<1x32xf32>
    %16 = arith.mulf %15, %14 : vector<1x32xf32>
    %c0_8 = arith.constant 0 : index
    %c0_9 = arith.constant 0 : index
    %17 = vector.load %arg3[%c0_8, %c0_9] : memref<1x32xf32, #tpu.memory_space<vmem>>, vector<1x32xf32>
    %18 = arith.mulf %4, %16 : vector<1x32xf32>
    %19 = arith.subf %17, %18 : vector<1x32xf32>
    %c0_10 = arith.constant 0 : index
    %c0_11 = arith.constant 0 : index
    %20 = vector.load %arg4[%c0_10, %c0_11] : memref<2x32xf32, #tpu.memory_space<vmem>>, vector<1x32xf32>
    tpu.vector_store %arg4[%c0_10, %c0_11], %16 {strides = array<i32>} : memref<2x32xf32, #tpu.memory_space<vmem>>, vector<1x32xf32>,
    %c1 = arith.constant 1 : index
    %c0_12 = arith.constant 0 : index
    %21 = vector.load %arg4[%c1, %c0_12] : memref<2x32xf32, #tpu.memory_space<vmem>>, vector<1x32xf32>
    tpu.vector_store %arg4[%c1, %c0_12], %19 {strides = array<i32>} : memref<2x32xf32, #tpu.memory_space<vmem>>, vector<1x32xf32>,
    return
  }
  func.func @transform_0(%arg0: i32) -> (i32, i32, i32) {
    %c0_i32 = arith.constant 0 : i32
    %c0_i32_0 = arith.constant 0 : i32
    %c0_i32_1 = arith.constant 0 : i32
    %c0_i32_2 = arith.constant 0 : i32
    return %c0_i32, %c0_i32_0, %c0_i32_1 : i32, i32, i32
  }
  func.func @transform_1(%arg0: i32) -> (i32, i32) {
    %c0_i32 = arith.constant 0 : i32
    %c0_i32_0 = arith.constant 0 : i32
    %c0_i32_1 = arith.constant 0 : i32
    return %c0_i32, %c0_i32_0 : i32, i32
  }
  func.func @transform_2(%arg0: i32) -> (i32, i32) {
    %c0_i32 = arith.constant 0 : i32
    %c0_i32_0 = arith.constant 0 : i32
    %c0_i32_1 = arith.constant 0 : i32
    return %c0_i32, %c0_i32_0 : i32, i32
  }
  func.func @transform_3(%arg0: i32) -> (i32, i32) {
    %c0_i32 = arith.constant 0 : i32
    %c0_i32_0 = arith.constant 0 : i32
    %c0_i32_1 = arith.constant 0 : i32
    return %c0_i32, %c0_i32_0 : i32, i32
  }
}

module attributes {stable_mosaic.version = 11 : i64} {
  func.func @_deconv_kernel(%arg0: i32, %arg1: memref<1x10x10x32xbf16, #tpu.memory_space<vmem>>, %arg2: memref<16x32x16xbf16, #tpu.memory_space<vmem>>, %arg3: memref<1x8x2x8x32xbf16, #tpu.memory_space<vmem>>, %arg4: memref<1x2x16xf32, #tpu.memory_space<vmem>>, %arg5: memref<1x16xf32, #tpu.memory_space<vmem>>, %arg6: memref<1x16xf32, #tpu.memory_space<vmem>>) attributes {dimension_semantics = [#tpu.dimension_semantics<parallel>], iteration_bounds = array<i64: 2>, scalar_prefetch = 0 : i64, scratch_operands = 2 : i64, tpu.core_type = #tpu.core_type<tc>, window_params = [{transform_indices = @transform_0, window_bounds = array<i64: 1, 10, 10, 32>}, {pipeline_mode = #tpu.pipeline_mode<synchronous>, transform_indices = @transform_1, window_bounds = array<i64: 16, 32, 16>}, {transform_indices = @transform_2, window_bounds = array<i64: 1, 8, 2, 8, 32>}, {transform_indices = @transform_3, window_bounds = array<i64: 1, 2, 16>}]} {
    %cst = arith.constant 0.000000e+00 : f32
    %0 = vector.broadcast %cst : f32 to vector<1x16xf32>
    %c0 = arith.constant 0 : index
    %c0_0 = arith.constant 0 : index
    %1 = vector.load %arg5[%c0, %c0_0] : memref<1x16xf32, #tpu.memory_space<vmem>>, vector<1x16xf32>
    tpu.vector_store %arg5[%c0, %c0_0], %0 {strides = array<i32>} : memref<1x16xf32, #tpu.memory_space<vmem>>, vector<1x16xf32>,
    %cst_1 = arith.constant 0.000000e+00 : f32
    %2 = vector.broadcast %cst_1 : f32 to vector<1x16xf32>
    %c0_2 = arith.constant 0 : index
    %c0_3 = arith.constant 0 : index
    %3 = vector.load %arg6[%c0_2, %c0_3] : memref<1x16xf32, #tpu.memory_space<vmem>>, vector<1x16xf32>
    tpu.vector_store %arg6[%c0_2, %c0_3], %2 {strides = array<i32>} : memref<1x16xf32, #tpu.memory_space<vmem>>, vector<1x16xf32>,
    %c0_i32 = arith.constant 0 : i32
    %c8_i32 = arith.constant 8 : i32
    %4 = arith.addi %c0_i32, %c8_i32 : i32
    %c1_i32 = arith.constant 1 : i32
    scf.for %arg7 = %c0_i32 to %4 step %c1_i32  : i32 {
      %cst_14 = arith.constant 0.000000e+00 : f32
      %13 = vector.broadcast %cst_14 : f32 to vector<8x16xf32>
      %c0_i32_15 = arith.constant 0 : i32
      %14 = arith.addi %arg7, %c0_i32_15 : i32
      %c0_i32_16 = arith.constant 0 : i32
      %15 = arith.addi %14, %c0_i32_16 : i32
      %c0_17 = arith.constant 0 : index
      %16 = arith.index_cast %15 : i32 to index
      %c0_18 = arith.constant 0 : index
      %c0_19 = arith.constant 0 : index
      %17 = vector.load %arg1[%c0_17, %16, %c0_18, %c0_19] : memref<1x10x10x32xbf16, #tpu.memory_space<vmem>>, vector<1x1x8x32xbf16>
      %18 = vector.shape_cast %17 : vector<1x1x8x32xbf16> to vector<8x32xbf16>
      %c0_20 = arith.constant 0 : index
      %c0_21 = arith.constant 0 : index
      %c0_22 = arith.constant 0 : index
      %19 = vector.load %arg2[%c0_20, %c0_21, %c0_22] : memref<16x32x16xbf16, #tpu.memory_space<vmem>>, vector<1x32x16xbf16>
      %20 = vector.shape_cast %19 : vector<1x32x16xbf16> to vector<32x16xbf16>
      %cst_23 = arith.constant dense<0.000000e+00> : vector<8x16xf32>
      %21 = tpu.matmul %18, %20, %cst_23 {dimension_numbers = #tpu.dot_dimension_numbers<[1], [0], [0], [1], [0, 0, 1, 1], [], []>} : vector<8x32xbf16>, vector<32x16xbf16>, vector<8x16xf32> -> vector<8x16xf32>
      %22 = arith.addf %13, %21 : vector<8x16xf32>
      %c0_i32_24 = arith.constant 0 : i32
      %23 = arith.addi %arg7, %c0_i32_24 : i32
      %c0_i32_25 = arith.constant 0 : i32
      %24 = arith.addi %23, %c0_i32_25 : i32
      %c0_26 = arith.constant 0 : index
      %25 = arith.index_cast %24 : i32 to index
      %c1_27 = arith.constant 1 : index
      %c0_28 = arith.constant 0 : index
      %26 = vector.load %arg1[%c0_26, %25, %c1_27, %c0_28] : memref<1x10x10x32xbf16, #tpu.memory_space<vmem>>, vector<1x1x8x32xbf16>
      %27 = vector.shape_cast %26 : vector<1x1x8x32xbf16> to vector<8x32xbf16>
      %c1_29 = arith.constant 1 : index
      %c0_30 = arith.constant 0 : index
      %c0_31 = arith.constant 0 : index
      %28 = vector.load %arg2[%c1_29, %c0_30, %c0_31] : memref<16x32x16xbf16, #tpu.memory_space<vmem>>, vector<1x32x16xbf16>
      %29 = vector.shape_cast %28 : vector<1x32x16xbf16> to vector<32x16xbf16>
      %cst_32 = arith.constant dense<0.000000e+00> : vector<8x16xf32>
      %30 = tpu.matmul %27, %29, %cst_32 {dimension_numbers = #tpu.dot_dimension_numbers<[1], [0], [0], [1], [0, 0, 1, 1], [], []>} : vector<8x32xbf16>, vector<32x16xbf16>, vector<8x16xf32> -> vector<8x16xf32>
      %31 = arith.addf %22, %30 : vector<8x16xf32>
      %c0_i32_33 = arith.constant 0 : i32
      %32 = arith.addi %arg7, %c0_i32_33 : i32
      %c1_i32_34 = arith.constant 1 : i32
      %33 = arith.addi %32, %c1_i32_34 : i32
      %c0_35 = arith.constant 0 : index
      %34 = arith.index_cast %33 : i32 to index
      %c0_36 = arith.constant 0 : index
      %c0_37 = arith.constant 0 : index
      %35 = vector.load %arg1[%c0_35, %34, %c0_36, %c0_37] : memref<1x10x10x32xbf16, #tpu.memory_space<vmem>>, vector<1x1x8x32xbf16>
      %36 = vector.shape_cast %35 : vector<1x1x8x32xbf16> to vector<8x32xbf16>
      %c2 = arith.constant 2 : index
      %c0_38 = arith.constant 0 : index
      %c0_39 = arith.constant 0 : index
      %37 = vector.load %arg2[%c2, %c0_38, %c0_39] : memref<16x32x16xbf16, #tpu.memory_space<vmem>>, vector<1x32x16xbf16>
      %38 = vector.shape_cast %37 : vector<1x32x16xbf16> to vector<32x16xbf16>
      %cst_40 = arith.constant dense<0.000000e+00> : vector<8x16xf32>
      %39 = tpu.matmul %36, %38, %cst_40 {dimension_numbers = #tpu.dot_dimension_numbers<[1], [0], [0], [1], [0, 0, 1, 1], [], []>} : vector<8x32xbf16>, vector<32x16xbf16>, vector<8x16xf32> -> vector<8x16xf32>
      %40 = arith.addf %31, %39 : vector<8x16xf32>
      %c0_i32_41 = arith.constant 0 : i32
      %41 = arith.addi %arg7, %c0_i32_41 : i32
      %c1_i32_42 = arith.constant 1 : i32
      %42 = arith.addi %41, %c1_i32_42 : i32
      %c0_43 = arith.constant 0 : index
      %43 = arith.index_cast %42 : i32 to index
      %c1_44 = arith.constant 1 : index
      %c0_45 = arith.constant 0 : index
      %44 = vector.load %arg1[%c0_43, %43, %c1_44, %c0_45] : memref<1x10x10x32xbf16, #tpu.memory_space<vmem>>, vector<1x1x8x32xbf16>
      %45 = vector.shape_cast %44 : vector<1x1x8x32xbf16> to vector<8x32xbf16>
      %c3 = arith.constant 3 : index
      %c0_46 = arith.constant 0 : index
      %c0_47 = arith.constant 0 : index
      %46 = vector.load %arg2[%c3, %c0_46, %c0_47] : memref<16x32x16xbf16, #tpu.memory_space<vmem>>, vector<1x32x16xbf16>
      %47 = vector.shape_cast %46 : vector<1x32x16xbf16> to vector<32x16xbf16>
      %cst_48 = arith.constant dense<0.000000e+00> : vector<8x16xf32>
      %48 = tpu.matmul %45, %47, %cst_48 {dimension_numbers = #tpu.dot_dimension_numbers<[1], [0], [0], [1], [0, 0, 1, 1], [], []>} : vector<8x32xbf16>, vector<32x16xbf16>, vector<8x16xf32> -> vector<8x16xf32>
      %49 = arith.addf %40, %48 : vector<8x16xf32>
      %c0_49 = arith.constant 0 : index
      %c0_50 = arith.constant 0 : index
      %50 = vector.load %arg5[%c0_49, %c0_50] : memref<1x16xf32, #tpu.memory_space<vmem>>, vector<1x16xf32>
      %cst_51 = arith.constant dense<0.000000e+00> : vector<16xf32>
      %51 = vector.multi_reduction <add>, %49, %cst_51 [0] : vector<8x16xf32> to vector<16xf32>
      %52 = vector.shape_cast %51 : vector<16xf32> to vector<1x16xf32>
      %53 = arith.addf %50, %52 : vector<1x16xf32>
      %c0_52 = arith.constant 0 : index
      %c0_53 = arith.constant 0 : index
      %54 = vector.load %arg5[%c0_52, %c0_53] : memref<1x16xf32, #tpu.memory_space<vmem>>, vector<1x16xf32>
      tpu.vector_store %arg5[%c0_52, %c0_53], %53 {strides = array<i32>} : memref<1x16xf32, #tpu.memory_space<vmem>>, vector<1x16xf32>,
      %c0_54 = arith.constant 0 : index
      %c0_55 = arith.constant 0 : index
      %55 = vector.load %arg6[%c0_54, %c0_55] : memref<1x16xf32, #tpu.memory_space<vmem>>, vector<1x16xf32>
      %56 = arith.mulf %49, %49 : vector<8x16xf32>
      %cst_56 = arith.constant dense<0.000000e+00> : vector<16xf32>
      %57 = vector.multi_reduction <add>, %56, %cst_56 [0] : vector<8x16xf32> to vector<16xf32>
      %58 = vector.shape_cast %57 : vector<16xf32> to vector<1x16xf32>
      %59 = arith.addf %55, %58 : vector<1x16xf32>
      %c0_57 = arith.constant 0 : index
      %c0_58 = arith.constant 0 : index
      %60 = vector.load %arg6[%c0_57, %c0_58] : memref<1x16xf32, #tpu.memory_space<vmem>>, vector<1x16xf32>
      tpu.vector_store %arg6[%c0_57, %c0_58], %59 {strides = array<i32>} : memref<1x16xf32, #tpu.memory_space<vmem>>, vector<1x16xf32>,
      %61 = arith.truncf %49 : vector<8x16xf32> to vector<8x16xbf16>
      %c0_59 = arith.constant 0 : index
      %62 = arith.index_cast %arg7 : i32 to index
      %c0_60 = arith.constant 0 : index
      %c0_61 = arith.constant 0 : index
      %c0_62 = arith.constant 0 : index
      %63 = vector.load %arg3[%c0_59, %62, %c0_60, %c0_61, %c0_62] : memref<1x8x2x8x32xbf16, #tpu.memory_space<vmem>>, vector<1x1x1x8x16xbf16>
      %64 = vector.shape_cast %63 : vector<1x1x1x8x16xbf16> to vector<8x16xbf16>
      %65 = vector.shape_cast %61 : vector<8x16xbf16> to vector<1x1x1x8x16xbf16>
      tpu.vector_store %arg3[%c0_59, %62, %c0_60, %c0_61, %c0_62], %65 {strides = array<i32>} : memref<1x8x2x8x32xbf16, #tpu.memory_space<vmem>>, vector<1x1x1x8x16xbf16>,
      %cst_63 = arith.constant 0.000000e+00 : f32
      %66 = vector.broadcast %cst_63 : f32 to vector<8x16xf32>
      %c0_i32_64 = arith.constant 0 : i32
      %67 = arith.addi %arg7, %c0_i32_64 : i32
      %c0_i32_65 = arith.constant 0 : i32
      %68 = arith.addi %67, %c0_i32_65 : i32
      %c0_66 = arith.constant 0 : index
      %69 = arith.index_cast %68 : i32 to index
      %c1_67 = arith.constant 1 : index
      %c0_68 = arith.constant 0 : index
      %70 = vector.load %arg1[%c0_66, %69, %c1_67, %c0_68] : memref<1x10x10x32xbf16, #tpu.memory_space<vmem>>, vector<1x1x8x32xbf16>
      %71 = vector.shape_cast %70 : vector<1x1x8x32xbf16> to vector<8x32xbf16>
      %c4 = arith.constant 4 : index
      %c0_69 = arith.constant 0 : index
      %c0_70 = arith.constant 0 : index
      %72 = vector.load %arg2[%c4, %c0_69, %c0_70] : memref<16x32x16xbf16, #tpu.memory_space<vmem>>, vector<1x32x16xbf16>
      %73 = vector.shape_cast %72 : vector<1x32x16xbf16> to vector<32x16xbf16>
      %cst_71 = arith.constant dense<0.000000e+00> : vector<8x16xf32>
      %74 = tpu.matmul %71, %73, %cst_71 {dimension_numbers = #tpu.dot_dimension_numbers<[1], [0], [0], [1], [0, 0, 1, 1], [], []>} : vector<8x32xbf16>, vector<32x16xbf16>, vector<8x16xf32> -> vector<8x16xf32>
      %75 = arith.addf %66, %74 : vector<8x16xf32>
      %c0_i32_72 = arith.constant 0 : i32
      %76 = arith.addi %arg7, %c0_i32_72 : i32
      %c0_i32_73 = arith.constant 0 : i32
      %77 = arith.addi %76, %c0_i32_73 : i32
      %c0_74 = arith.constant 0 : index
      %78 = arith.index_cast %77 : i32 to index
      %c2_75 = arith.constant 2 : index
      %c0_76 = arith.constant 0 : index
      %79 = vector.load %arg1[%c0_74, %78, %c2_75, %c0_76] : memref<1x10x10x32xbf16, #tpu.memory_space<vmem>>, vector<1x1x8x32xbf16>
      %80 = vector.shape_cast %79 : vector<1x1x8x32xbf16> to vector<8x32xbf16>
      %c5 = arith.constant 5 : index
      %c0_77 = arith.constant 0 : index
      %c0_78 = arith.constant 0 : index
      %81 = vector.load %arg2[%c5, %c0_77, %c0_78] : memref<16x32x16xbf16, #tpu.memory_space<vmem>>, vector<1x32x16xbf16>
      %82 = vector.shape_cast %81 : vector<1x32x16xbf16> to vector<32x16xbf16>
      %cst_79 = arith.constant dense<0.000000e+00> : vector<8x16xf32>
      %83 = tpu.matmul %80, %82, %cst_79 {dimension_numbers = #tpu.dot_dimension_numbers<[1], [0], [0], [1], [0, 0, 1, 1], [], []>} : vector<8x32xbf16>, vector<32x16xbf16>, vector<8x16xf32> -> vector<8x16xf32>
      %84 = arith.addf %75, %83 : vector<8x16xf32>
      %c0_i32_80 = arith.constant 0 : i32
      %85 = arith.addi %arg7, %c0_i32_80 : i32
      %c1_i32_81 = arith.constant 1 : i32
      %86 = arith.addi %85, %c1_i32_81 : i32
      %c0_82 = arith.constant 0 : index
      %87 = arith.index_cast %86 : i32 to index
      %c1_83 = arith.constant 1 : index
      %c0_84 = arith.constant 0 : index
      %88 = vector.load %arg1[%c0_82, %87, %c1_83, %c0_84] : memref<1x10x10x32xbf16, #tpu.memory_space<vmem>>, vector<1x1x8x32xbf16>
      %89 = vector.shape_cast %88 : vector<1x1x8x32xbf16> to vector<8x32xbf16>
      %c6 = arith.constant 6 : index
      %c0_85 = arith.constant 0 : index
      %c0_86 = arith.constant 0 : index
      %90 = vector.load %arg2[%c6, %c0_85, %c0_86] : memref<16x32x16xbf16, #tpu.memory_space<vmem>>, vector<1x32x16xbf16>
      %91 = vector.shape_cast %90 : vector<1x32x16xbf16> to vector<32x16xbf16>
      %cst_87 = arith.constant dense<0.000000e+00> : vector<8x16xf32>
      %92 = tpu.matmul %89, %91, %cst_87 {dimension_numbers = #tpu.dot_dimension_numbers<[1], [0], [0], [1], [0, 0, 1, 1], [], []>} : vector<8x32xbf16>, vector<32x16xbf16>, vector<8x16xf32> -> vector<8x16xf32>
      %93 = arith.addf %84, %92 : vector<8x16xf32>
      %c0_i32_88 = arith.constant 0 : i32
      %94 = arith.addi %arg7, %c0_i32_88 : i32
      %c1_i32_89 = arith.constant 1 : i32
      %95 = arith.addi %94, %c1_i32_89 : i32
      %c0_90 = arith.constant 0 : index
      %96 = arith.index_cast %95 : i32 to index
      %c2_91 = arith.constant 2 : index
      %c0_92 = arith.constant 0 : index
      %97 = vector.load %arg1[%c0_90, %96, %c2_91, %c0_92] : memref<1x10x10x32xbf16, #tpu.memory_space<vmem>>, vector<1x1x8x32xbf16>
      %98 = vector.shape_cast %97 : vector<1x1x8x32xbf16> to vector<8x32xbf16>
      %c7 = arith.constant 7 : index
      %c0_93 = arith.constant 0 : index
      %c0_94 = arith.constant 0 : index
      %99 = vector.load %arg2[%c7, %c0_93, %c0_94] : memref<16x32x16xbf16, #tpu.memory_space<vmem>>, vector<1x32x16xbf16>
      %100 = vector.shape_cast %99 : vector<1x32x16xbf16> to vector<32x16xbf16>
      %cst_95 = arith.constant dense<0.000000e+00> : vector<8x16xf32>
      %101 = tpu.matmul %98, %100, %cst_95 {dimension_numbers = #tpu.dot_dimension_numbers<[1], [0], [0], [1], [0, 0, 1, 1], [], []>} : vector<8x32xbf16>, vector<32x16xbf16>, vector<8x16xf32> -> vector<8x16xf32>
      %102 = arith.addf %93, %101 : vector<8x16xf32>
      %c0_96 = arith.constant 0 : index
      %c0_97 = arith.constant 0 : index
      %103 = vector.load %arg5[%c0_96, %c0_97] : memref<1x16xf32, #tpu.memory_space<vmem>>, vector<1x16xf32>
      %cst_98 = arith.constant dense<0.000000e+00> : vector<16xf32>
      %104 = vector.multi_reduction <add>, %102, %cst_98 [0] : vector<8x16xf32> to vector<16xf32>
      %105 = vector.shape_cast %104 : vector<16xf32> to vector<1x16xf32>
      %106 = arith.addf %103, %105 : vector<1x16xf32>
      %c0_99 = arith.constant 0 : index
      %c0_100 = arith.constant 0 : index
      %107 = vector.load %arg5[%c0_99, %c0_100] : memref<1x16xf32, #tpu.memory_space<vmem>>, vector<1x16xf32>
      tpu.vector_store %arg5[%c0_99, %c0_100], %106 {strides = array<i32>} : memref<1x16xf32, #tpu.memory_space<vmem>>, vector<1x16xf32>,
      %c0_101 = arith.constant 0 : index
      %c0_102 = arith.constant 0 : index
      %108 = vector.load %arg6[%c0_101, %c0_102] : memref<1x16xf32, #tpu.memory_space<vmem>>, vector<1x16xf32>
      %109 = arith.mulf %102, %102 : vector<8x16xf32>
      %cst_103 = arith.constant dense<0.000000e+00> : vector<16xf32>
      %110 = vector.multi_reduction <add>, %109, %cst_103 [0] : vector<8x16xf32> to vector<16xf32>
      %111 = vector.shape_cast %110 : vector<16xf32> to vector<1x16xf32>
      %112 = arith.addf %108, %111 : vector<1x16xf32>
      %c0_104 = arith.constant 0 : index
      %c0_105 = arith.constant 0 : index
      %113 = vector.load %arg6[%c0_104, %c0_105] : memref<1x16xf32, #tpu.memory_space<vmem>>, vector<1x16xf32>
      tpu.vector_store %arg6[%c0_104, %c0_105], %112 {strides = array<i32>} : memref<1x16xf32, #tpu.memory_space<vmem>>, vector<1x16xf32>,
      %114 = arith.truncf %102 : vector<8x16xf32> to vector<8x16xbf16>
      %c0_106 = arith.constant 0 : index
      %115 = arith.index_cast %arg7 : i32 to index
      %c0_107 = arith.constant 0 : index
      %c0_108 = arith.constant 0 : index
      %c16 = arith.constant 16 : index
      %116 = vector.load %arg3[%c0_106, %115, %c0_107, %c0_108, %c16] : memref<1x8x2x8x32xbf16, #tpu.memory_space<vmem>>, vector<1x1x1x8x16xbf16>
      %117 = vector.shape_cast %116 : vector<1x1x1x8x16xbf16> to vector<8x16xbf16>
      %118 = vector.shape_cast %114 : vector<8x16xbf16> to vector<1x1x1x8x16xbf16>
      tpu.vector_store %arg3[%c0_106, %115, %c0_107, %c0_108, %c16], %118 {strides = array<i32>} : memref<1x8x2x8x32xbf16, #tpu.memory_space<vmem>>, vector<1x1x1x8x16xbf16>,
      %cst_109 = arith.constant 0.000000e+00 : f32
      %119 = vector.broadcast %cst_109 : f32 to vector<8x16xf32>
      %c1_i32_110 = arith.constant 1 : i32
      %120 = arith.addi %arg7, %c1_i32_110 : i32
      %c0_i32_111 = arith.constant 0 : i32
      %121 = arith.addi %120, %c0_i32_111 : i32
      %c0_112 = arith.constant 0 : index
      %122 = arith.index_cast %121 : i32 to index
      %c0_113 = arith.constant 0 : index
      %c0_114 = arith.constant 0 : index
      %123 = vector.load %arg1[%c0_112, %122, %c0_113, %c0_114] : memref<1x10x10x32xbf16, #tpu.memory_space<vmem>>, vector<1x1x8x32xbf16>
      %124 = vector.shape_cast %123 : vector<1x1x8x32xbf16> to vector<8x32xbf16>
      %c8 = arith.constant 8 : index
      %c0_115 = arith.constant 0 : index
      %c0_116 = arith.constant 0 : index
      %125 = vector.load %arg2[%c8, %c0_115, %c0_116] : memref<16x32x16xbf16, #tpu.memory_space<vmem>>, vector<1x32x16xbf16>
      %126 = vector.shape_cast %125 : vector<1x32x16xbf16> to vector<32x16xbf16>
      %cst_117 = arith.constant dense<0.000000e+00> : vector<8x16xf32>
      %127 = tpu.matmul %124, %126, %cst_117 {dimension_numbers = #tpu.dot_dimension_numbers<[1], [0], [0], [1], [0, 0, 1, 1], [], []>} : vector<8x32xbf16>, vector<32x16xbf16>, vector<8x16xf32> -> vector<8x16xf32>
      %128 = arith.addf %119, %127 : vector<8x16xf32>
      %c1_i32_118 = arith.constant 1 : i32
      %129 = arith.addi %arg7, %c1_i32_118 : i32
      %c0_i32_119 = arith.constant 0 : i32
      %130 = arith.addi %129, %c0_i32_119 : i32
      %c0_120 = arith.constant 0 : index
      %131 = arith.index_cast %130 : i32 to index
      %c1_121 = arith.constant 1 : index
      %c0_122 = arith.constant 0 : index
      %132 = vector.load %arg1[%c0_120, %131, %c1_121, %c0_122] : memref<1x10x10x32xbf16, #tpu.memory_space<vmem>>, vector<1x1x8x32xbf16>
      %133 = vector.shape_cast %132 : vector<1x1x8x32xbf16> to vector<8x32xbf16>
      %c9 = arith.constant 9 : index
      %c0_123 = arith.constant 0 : index
      %c0_124 = arith.constant 0 : index
      %134 = vector.load %arg2[%c9, %c0_123, %c0_124] : memref<16x32x16xbf16, #tpu.memory_space<vmem>>, vector<1x32x16xbf16>
      %135 = vector.shape_cast %134 : vector<1x32x16xbf16> to vector<32x16xbf16>
      %cst_125 = arith.constant dense<0.000000e+00> : vector<8x16xf32>
      %136 = tpu.matmul %133, %135, %cst_125 {dimension_numbers = #tpu.dot_dimension_numbers<[1], [0], [0], [1], [0, 0, 1, 1], [], []>} : vector<8x32xbf16>, vector<32x16xbf16>, vector<8x16xf32> -> vector<8x16xf32>
      %137 = arith.addf %128, %136 : vector<8x16xf32>
      %c1_i32_126 = arith.constant 1 : i32
      %138 = arith.addi %arg7, %c1_i32_126 : i32
      %c1_i32_127 = arith.constant 1 : i32
      %139 = arith.addi %138, %c1_i32_127 : i32
      %c0_128 = arith.constant 0 : index
      %140 = arith.index_cast %139 : i32 to index
      %c0_129 = arith.constant 0 : index
      %c0_130 = arith.constant 0 : index
      %141 = vector.load %arg1[%c0_128, %140, %c0_129, %c0_130] : memref<1x10x10x32xbf16, #tpu.memory_space<vmem>>, vector<1x1x8x32xbf16>
      %142 = vector.shape_cast %141 : vector<1x1x8x32xbf16> to vector<8x32xbf16>
      %c10 = arith.constant 10 : index
      %c0_131 = arith.constant 0 : index
      %c0_132 = arith.constant 0 : index
      %143 = vector.load %arg2[%c10, %c0_131, %c0_132] : memref<16x32x16xbf16, #tpu.memory_space<vmem>>, vector<1x32x16xbf16>
      %144 = vector.shape_cast %143 : vector<1x32x16xbf16> to vector<32x16xbf16>
      %cst_133 = arith.constant dense<0.000000e+00> : vector<8x16xf32>
      %145 = tpu.matmul %142, %144, %cst_133 {dimension_numbers = #tpu.dot_dimension_numbers<[1], [0], [0], [1], [0, 0, 1, 1], [], []>} : vector<8x32xbf16>, vector<32x16xbf16>, vector<8x16xf32> -> vector<8x16xf32>
      %146 = arith.addf %137, %145 : vector<8x16xf32>
      %c1_i32_134 = arith.constant 1 : i32
      %147 = arith.addi %arg7, %c1_i32_134 : i32
      %c1_i32_135 = arith.constant 1 : i32
      %148 = arith.addi %147, %c1_i32_135 : i32
      %c0_136 = arith.constant 0 : index
      %149 = arith.index_cast %148 : i32 to index
      %c1_137 = arith.constant 1 : index
      %c0_138 = arith.constant 0 : index
      %150 = vector.load %arg1[%c0_136, %149, %c1_137, %c0_138] : memref<1x10x10x32xbf16, #tpu.memory_space<vmem>>, vector<1x1x8x32xbf16>
      %151 = vector.shape_cast %150 : vector<1x1x8x32xbf16> to vector<8x32xbf16>
      %c11 = arith.constant 11 : index
      %c0_139 = arith.constant 0 : index
      %c0_140 = arith.constant 0 : index
      %152 = vector.load %arg2[%c11, %c0_139, %c0_140] : memref<16x32x16xbf16, #tpu.memory_space<vmem>>, vector<1x32x16xbf16>
      %153 = vector.shape_cast %152 : vector<1x32x16xbf16> to vector<32x16xbf16>
      %cst_141 = arith.constant dense<0.000000e+00> : vector<8x16xf32>
      %154 = tpu.matmul %151, %153, %cst_141 {dimension_numbers = #tpu.dot_dimension_numbers<[1], [0], [0], [1], [0, 0, 1, 1], [], []>} : vector<8x32xbf16>, vector<32x16xbf16>, vector<8x16xf32> -> vector<8x16xf32>
      %155 = arith.addf %146, %154 : vector<8x16xf32>
      %c0_142 = arith.constant 0 : index
      %c0_143 = arith.constant 0 : index
      %156 = vector.load %arg5[%c0_142, %c0_143] : memref<1x16xf32, #tpu.memory_space<vmem>>, vector<1x16xf32>
      %cst_144 = arith.constant dense<0.000000e+00> : vector<16xf32>
      %157 = vector.multi_reduction <add>, %155, %cst_144 [0] : vector<8x16xf32> to vector<16xf32>
      %158 = vector.shape_cast %157 : vector<16xf32> to vector<1x16xf32>
      %159 = arith.addf %156, %158 : vector<1x16xf32>
      %c0_145 = arith.constant 0 : index
      %c0_146 = arith.constant 0 : index
      %160 = vector.load %arg5[%c0_145, %c0_146] : memref<1x16xf32, #tpu.memory_space<vmem>>, vector<1x16xf32>
      tpu.vector_store %arg5[%c0_145, %c0_146], %159 {strides = array<i32>} : memref<1x16xf32, #tpu.memory_space<vmem>>, vector<1x16xf32>,
      %c0_147 = arith.constant 0 : index
      %c0_148 = arith.constant 0 : index
      %161 = vector.load %arg6[%c0_147, %c0_148] : memref<1x16xf32, #tpu.memory_space<vmem>>, vector<1x16xf32>
      %162 = arith.mulf %155, %155 : vector<8x16xf32>
      %cst_149 = arith.constant dense<0.000000e+00> : vector<16xf32>
      %163 = vector.multi_reduction <add>, %162, %cst_149 [0] : vector<8x16xf32> to vector<16xf32>
      %164 = vector.shape_cast %163 : vector<16xf32> to vector<1x16xf32>
      %165 = arith.addf %161, %164 : vector<1x16xf32>
      %c0_150 = arith.constant 0 : index
      %c0_151 = arith.constant 0 : index
      %166 = vector.load %arg6[%c0_150, %c0_151] : memref<1x16xf32, #tpu.memory_space<vmem>>, vector<1x16xf32>
      tpu.vector_store %arg6[%c0_150, %c0_151], %165 {strides = array<i32>} : memref<1x16xf32, #tpu.memory_space<vmem>>, vector<1x16xf32>,
      %167 = arith.truncf %155 : vector<8x16xf32> to vector<8x16xbf16>
      %c0_152 = arith.constant 0 : index
      %168 = arith.index_cast %arg7 : i32 to index
      %c1_153 = arith.constant 1 : index
      %c0_154 = arith.constant 0 : index
      %c0_155 = arith.constant 0 : index
      %169 = vector.load %arg3[%c0_152, %168, %c1_153, %c0_154, %c0_155] : memref<1x8x2x8x32xbf16, #tpu.memory_space<vmem>>, vector<1x1x1x8x16xbf16>
      %170 = vector.shape_cast %169 : vector<1x1x1x8x16xbf16> to vector<8x16xbf16>
      %171 = vector.shape_cast %167 : vector<8x16xbf16> to vector<1x1x1x8x16xbf16>
      tpu.vector_store %arg3[%c0_152, %168, %c1_153, %c0_154, %c0_155], %171 {strides = array<i32>} : memref<1x8x2x8x32xbf16, #tpu.memory_space<vmem>>, vector<1x1x1x8x16xbf16>,
      %cst_156 = arith.constant 0.000000e+00 : f32
      %172 = vector.broadcast %cst_156 : f32 to vector<8x16xf32>
      %c1_i32_157 = arith.constant 1 : i32
      %173 = arith.addi %arg7, %c1_i32_157 : i32
      %c0_i32_158 = arith.constant 0 : i32
      %174 = arith.addi %173, %c0_i32_158 : i32
      %c0_159 = arith.constant 0 : index
      %175 = arith.index_cast %174 : i32 to index
      %c1_160 = arith.constant 1 : index
      %c0_161 = arith.constant 0 : index
      %176 = vector.load %arg1[%c0_159, %175, %c1_160, %c0_161] : memref<1x10x10x32xbf16, #tpu.memory_space<vmem>>, vector<1x1x8x32xbf16>
      %177 = vector.shape_cast %176 : vector<1x1x8x32xbf16> to vector<8x32xbf16>
      %c12 = arith.constant 12 : index
      %c0_162 = arith.constant 0 : index
      %c0_163 = arith.constant 0 : index
      %178 = vector.load %arg2[%c12, %c0_162, %c0_163] : memref<16x32x16xbf16, #tpu.memory_space<vmem>>, vector<1x32x16xbf16>
      %179 = vector.shape_cast %178 : vector<1x32x16xbf16> to vector<32x16xbf16>
      %cst_164 = arith.constant dense<0.000000e+00> : vector<8x16xf32>
      %180 = tpu.matmul %177, %179, %cst_164 {dimension_numbers = #tpu.dot_dimension_numbers<[1], [0], [0], [1], [0, 0, 1, 1], [], []>} : vector<8x32xbf16>, vector<32x16xbf16>, vector<8x16xf32> -> vector<8x16xf32>
      %181 = arith.addf %172, %180 : vector<8x16xf32>
      %c1_i32_165 = arith.constant 1 : i32
      %182 = arith.addi %arg7, %c1_i32_165 : i32
      %c0_i32_166 = arith.constant 0 : i32
      %183 = arith.addi %182, %c0_i32_166 : i32
      %c0_167 = arith.constant 0 : index
      %184 = arith.index_cast %183 : i32 to index
      %c2_168 = arith.constant 2 : index
      %c0_169 = arith.constant 0 : index
      %185 = vector.load %arg1[%c0_167, %184, %c2_168, %c0_169] : memref<1x10x10x32xbf16, #tpu.memory_space<vmem>>, vector<1x1x8x32xbf16>
      %186 = vector.shape_cast %185 : vector<1x1x8x32xbf16> to vector<8x32xbf16>
      %c13 = arith.constant 13 : index
      %c0_170 = arith.constant 0 : index
      %c0_171 = arith.constant 0 : index
      %187 = vector.load %arg2[%c13, %c0_170, %c0_171] : memref<16x32x16xbf16, #tpu.memory_space<vmem>>, vector<1x32x16xbf16>
      %188 = vector.shape_cast %187 : vector<1x32x16xbf16> to vector<32x16xbf16>
      %cst_172 = arith.constant dense<0.000000e+00> : vector<8x16xf32>
      %189 = tpu.matmul %186, %188, %cst_172 {dimension_numbers = #tpu.dot_dimension_numbers<[1], [0], [0], [1], [0, 0, 1, 1], [], []>} : vector<8x32xbf16>, vector<32x16xbf16>, vector<8x16xf32> -> vector<8x16xf32>
      %190 = arith.addf %181, %189 : vector<8x16xf32>
      %c1_i32_173 = arith.constant 1 : i32
      %191 = arith.addi %arg7, %c1_i32_173 : i32
      %c1_i32_174 = arith.constant 1 : i32
      %192 = arith.addi %191, %c1_i32_174 : i32
      %c0_175 = arith.constant 0 : index
      %193 = arith.index_cast %192 : i32 to index
      %c1_176 = arith.constant 1 : index
      %c0_177 = arith.constant 0 : index
      %194 = vector.load %arg1[%c0_175, %193, %c1_176, %c0_177] : memref<1x10x10x32xbf16, #tpu.memory_space<vmem>>, vector<1x1x8x32xbf16>
      %195 = vector.shape_cast %194 : vector<1x1x8x32xbf16> to vector<8x32xbf16>
      %c14 = arith.constant 14 : index
      %c0_178 = arith.constant 0 : index
      %c0_179 = arith.constant 0 : index
      %196 = vector.load %arg2[%c14, %c0_178, %c0_179] : memref<16x32x16xbf16, #tpu.memory_space<vmem>>, vector<1x32x16xbf16>
      %197 = vector.shape_cast %196 : vector<1x32x16xbf16> to vector<32x16xbf16>
      %cst_180 = arith.constant dense<0.000000e+00> : vector<8x16xf32>
      %198 = tpu.matmul %195, %197, %cst_180 {dimension_numbers = #tpu.dot_dimension_numbers<[1], [0], [0], [1], [0, 0, 1, 1], [], []>} : vector<8x32xbf16>, vector<32x16xbf16>, vector<8x16xf32> -> vector<8x16xf32>
      %199 = arith.addf %190, %198 : vector<8x16xf32>
      %c1_i32_181 = arith.constant 1 : i32
      %200 = arith.addi %arg7, %c1_i32_181 : i32
      %c1_i32_182 = arith.constant 1 : i32
      %201 = arith.addi %200, %c1_i32_182 : i32
      %c0_183 = arith.constant 0 : index
      %202 = arith.index_cast %201 : i32 to index
      %c2_184 = arith.constant 2 : index
      %c0_185 = arith.constant 0 : index
      %203 = vector.load %arg1[%c0_183, %202, %c2_184, %c0_185] : memref<1x10x10x32xbf16, #tpu.memory_space<vmem>>, vector<1x1x8x32xbf16>
      %204 = vector.shape_cast %203 : vector<1x1x8x32xbf16> to vector<8x32xbf16>
      %c15 = arith.constant 15 : index
      %c0_186 = arith.constant 0 : index
      %c0_187 = arith.constant 0 : index
      %205 = vector.load %arg2[%c15, %c0_186, %c0_187] : memref<16x32x16xbf16, #tpu.memory_space<vmem>>, vector<1x32x16xbf16>
      %206 = vector.shape_cast %205 : vector<1x32x16xbf16> to vector<32x16xbf16>
      %cst_188 = arith.constant dense<0.000000e+00> : vector<8x16xf32>
      %207 = tpu.matmul %204, %206, %cst_188 {dimension_numbers = #tpu.dot_dimension_numbers<[1], [0], [0], [1], [0, 0, 1, 1], [], []>} : vector<8x32xbf16>, vector<32x16xbf16>, vector<8x16xf32> -> vector<8x16xf32>
      %208 = arith.addf %199, %207 : vector<8x16xf32>
      %c0_189 = arith.constant 0 : index
      %c0_190 = arith.constant 0 : index
      %209 = vector.load %arg5[%c0_189, %c0_190] : memref<1x16xf32, #tpu.memory_space<vmem>>, vector<1x16xf32>
      %cst_191 = arith.constant dense<0.000000e+00> : vector<16xf32>
      %210 = vector.multi_reduction <add>, %208, %cst_191 [0] : vector<8x16xf32> to vector<16xf32>
      %211 = vector.shape_cast %210 : vector<16xf32> to vector<1x16xf32>
      %212 = arith.addf %209, %211 : vector<1x16xf32>
      %c0_192 = arith.constant 0 : index
      %c0_193 = arith.constant 0 : index
      %213 = vector.load %arg5[%c0_192, %c0_193] : memref<1x16xf32, #tpu.memory_space<vmem>>, vector<1x16xf32>
      tpu.vector_store %arg5[%c0_192, %c0_193], %212 {strides = array<i32>} : memref<1x16xf32, #tpu.memory_space<vmem>>, vector<1x16xf32>,
      %c0_194 = arith.constant 0 : index
      %c0_195 = arith.constant 0 : index
      %214 = vector.load %arg6[%c0_194, %c0_195] : memref<1x16xf32, #tpu.memory_space<vmem>>, vector<1x16xf32>
      %215 = arith.mulf %208, %208 : vector<8x16xf32>
      %cst_196 = arith.constant dense<0.000000e+00> : vector<16xf32>
      %216 = vector.multi_reduction <add>, %215, %cst_196 [0] : vector<8x16xf32> to vector<16xf32>
      %217 = vector.shape_cast %216 : vector<16xf32> to vector<1x16xf32>
      %218 = arith.addf %214, %217 : vector<1x16xf32>
      %c0_197 = arith.constant 0 : index
      %c0_198 = arith.constant 0 : index
      %219 = vector.load %arg6[%c0_197, %c0_198] : memref<1x16xf32, #tpu.memory_space<vmem>>, vector<1x16xf32>
      tpu.vector_store %arg6[%c0_197, %c0_198], %218 {strides = array<i32>} : memref<1x16xf32, #tpu.memory_space<vmem>>, vector<1x16xf32>,
      %220 = arith.truncf %208 : vector<8x16xf32> to vector<8x16xbf16>
      %c0_199 = arith.constant 0 : index
      %221 = arith.index_cast %arg7 : i32 to index
      %c1_200 = arith.constant 1 : index
      %c0_201 = arith.constant 0 : index
      %c16_202 = arith.constant 16 : index
      %222 = vector.load %arg3[%c0_199, %221, %c1_200, %c0_201, %c16_202] : memref<1x8x2x8x32xbf16, #tpu.memory_space<vmem>>, vector<1x1x1x8x16xbf16>
      %223 = vector.shape_cast %222 : vector<1x1x1x8x16xbf16> to vector<8x16xbf16>
      %224 = vector.shape_cast %220 : vector<8x16xbf16> to vector<1x1x1x8x16xbf16>
      tpu.vector_store %arg3[%c0_199, %221, %c1_200, %c0_201, %c16_202], %224 {strides = array<i32>} : memref<1x8x2x8x32xbf16, #tpu.memory_space<vmem>>, vector<1x1x1x8x16xbf16>,
    }
    %c8_i32_4 = arith.constant 8 : i32
    %c0_5 = arith.constant 0 : index
    %c0_6 = arith.constant 0 : index
    %5 = vector.load %arg5[%c0_5, %c0_6] : memref<1x16xf32, #tpu.memory_space<vmem>>, vector<1x16xf32>
    %c0_7 = arith.constant 0 : index
    %c0_8 = arith.constant 0 : index
    %c0_9 = arith.constant 0 : index
    %6 = vector.load %arg4[%c0_7, %c0_8, %c0_9] : memref<1x2x16xf32, #tpu.memory_space<vmem>>, vector<1x1x16xf32>
    %7 = vector.shape_cast %6 : vector<1x1x16xf32> to vector<1x16xf32>
    %8 = vector.shape_cast %5 : vector<1x16xf32> to vector<1x1x16xf32>
    tpu.vector_store %arg4[%c0_7, %c0_8, %c0_9], %8 {strides = array<i32>} : memref<1x2x16xf32, #tpu.memory_space<vmem>>, vector<1x1x16xf32>,
    %c0_10 = arith.constant 0 : index
    %c0_11 = arith.constant 0 : index
    %9 = vector.load %arg6[%c0_10, %c0_11] : memref<1x16xf32, #tpu.memory_space<vmem>>, vector<1x16xf32>
    %c0_12 = arith.constant 0 : index
    %c1 = arith.constant 1 : index
    %c0_13 = arith.constant 0 : index
    %10 = vector.load %arg4[%c0_12, %c1, %c0_13] : memref<1x2x16xf32, #tpu.memory_space<vmem>>, vector<1x1x16xf32>
    %11 = vector.shape_cast %10 : vector<1x1x16xf32> to vector<1x16xf32>
    %12 = vector.shape_cast %9 : vector<1x16xf32> to vector<1x1x16xf32>
    tpu.vector_store %arg4[%c0_12, %c1, %c0_13], %12 {strides = array<i32>} : memref<1x2x16xf32, #tpu.memory_space<vmem>>, vector<1x1x16xf32>,
    return
  }
  func.func @transform_0(%arg0: i32) -> (i32, i32, i32, i32) {
    %c0_i32 = arith.constant 0 : i32
    %c0_i32_0 = arith.constant 0 : i32
    %c0_i32_1 = arith.constant 0 : i32
    %c0_i32_2 = arith.constant 0 : i32
    return %arg0, %c0_i32, %c0_i32_0, %c0_i32_1 : i32, i32, i32, i32
  }
  func.func @transform_1(%arg0: i32) -> (i32, i32, i32) {
    %c0_i32 = arith.constant 0 : i32
    %c0_i32_0 = arith.constant 0 : i32
    %c0_i32_1 = arith.constant 0 : i32
    %c0_i32_2 = arith.constant 0 : i32
    return %c0_i32, %c0_i32_0, %c0_i32_1 : i32, i32, i32
  }
  func.func @transform_2(%arg0: i32) -> (i32, i32, i32, i32, i32) {
    %c0_i32 = arith.constant 0 : i32
    %c0_i32_0 = arith.constant 0 : i32
    %c0_i32_1 = arith.constant 0 : i32
    %c0_i32_2 = arith.constant 0 : i32
    %c0_i32_3 = arith.constant 0 : i32
    return %arg0, %c0_i32, %c0_i32_0, %c0_i32_1, %c0_i32_2 : i32, i32, i32, i32, i32
  }
  func.func @transform_3(%arg0: i32) -> (i32, i32, i32) {
    %c0_i32 = arith.constant 0 : i32
    %c0_i32_0 = arith.constant 0 : i32
    %c0_i32_1 = arith.constant 0 : i32
    return %arg0, %c0_i32, %c0_i32_0 : i32, i32, i32
  }
}

module attributes {stable_mosaic.version = 11 : i64} {
  func.func @_bn_finalize_kernel(%arg0: i32, %arg1: memref<2x2x16xf32, #tpu.memory_space<vmem>>, %arg2: memref<1x16xf32, #tpu.memory_space<vmem>>, %arg3: memref<1x16xf32, #tpu.memory_space<vmem>>, %arg4: memref<2x16xf32, #tpu.memory_space<vmem>>) attributes {dimension_semantics = [#tpu.dimension_semantics<arbitrary>], iteration_bounds = array<i64: 1>, scalar_prefetch = 0 : i64, scratch_operands = 0 : i64, tpu.core_type = #tpu.core_type<tc>, window_params = [{pipeline_mode = #tpu.pipeline_mode<synchronous>, transform_indices = @transform_0, window_bounds = array<i64: 2, 2, 16>}, {pipeline_mode = #tpu.pipeline_mode<synchronous>, transform_indices = @transform_1, window_bounds = array<i64: 1, 16>}, {pipeline_mode = #tpu.pipeline_mode<synchronous>, transform_indices = @transform_2, window_bounds = array<i64: 1, 16>}, {pipeline_mode = #tpu.pipeline_mode<synchronous>, transform_indices = @transform_3, window_bounds = array<i64: 2, 16>}]} {
    %c0 = arith.constant 0 : index
    %c0_0 = arith.constant 0 : index
    %c0_1 = arith.constant 0 : index
    %0 = vector.load %arg1[%c0, %c0_0, %c0_1] : memref<2x2x16xf32, #tpu.memory_space<vmem>>, vector<2x2x16xf32>
    %cst = arith.constant dense<0.000000e+00> : vector<2x16xf32>
    %1 = vector.multi_reduction <add>, %0, %cst [0] : vector<2x2x16xf32> to vector<2x16xf32>
    %2 = vector.extract_strided_slice %1 {offsets = [0, 0], sizes = [1, 16], strides = [1, 1]} : vector<2x16xf32> to vector<1x16xf32>
    %cst_2 = arith.constant 0.001953125 : f32
    %3 = vector.broadcast %cst_2 : f32 to vector<1x16xf32>
    %4 = arith.mulf %2, %3 : vector<1x16xf32>
    %5 = vector.extract_strided_slice %1 {offsets = [1, 0], sizes = [1, 16], strides = [1, 1]} : vector<2x16xf32> to vector<1x16xf32>
    %cst_3 = arith.constant 0.001953125 : f32
    %6 = vector.broadcast %cst_3 : f32 to vector<1x16xf32>
    %7 = arith.mulf %5, %6 : vector<1x16xf32>
    %8 = arith.mulf %4, %4 : vector<1x16xf32>
    %9 = arith.subf %7, %8 : vector<1x16xf32>
    %cst_4 = arith.constant 0.000000e+00 : f32
    %10 = vector.broadcast %cst_4 : f32 to vector<1x16xf32>
    %11 = arith.maximumf %9, %10 : vector<1x16xf32>
    %cst_5 = arith.constant 9.99999974E-6 : f32
    %12 = vector.broadcast %cst_5 : f32 to vector<1x16xf32>
    %13 = arith.addf %11, %12 : vector<1x16xf32>
    %14 = math.rsqrt %13 : vector<1x16xf32>
    %c0_6 = arith.constant 0 : index
    %c0_7 = arith.constant 0 : index
    %15 = vector.load %arg2[%c0_6, %c0_7] : memref<1x16xf32, #tpu.memory_space<vmem>>, vector<1x16xf32>
    %16 = arith.mulf %15, %14 : vector<1x16xf32>
    %c0_8 = arith.constant 0 : index
    %c0_9 = arith.constant 0 : index
    %17 = vector.load %arg3[%c0_8, %c0_9] : memref<1x16xf32, #tpu.memory_space<vmem>>, vector<1x16xf32>
    %18 = arith.mulf %4, %16 : vector<1x16xf32>
    %19 = arith.subf %17, %18 : vector<1x16xf32>
    %c0_10 = arith.constant 0 : index
    %c0_11 = arith.constant 0 : index
    %20 = vector.load %arg4[%c0_10, %c0_11] : memref<2x16xf32, #tpu.memory_space<vmem>>, vector<1x16xf32>
    tpu.vector_store %arg4[%c0_10, %c0_11], %16 {strides = array<i32>} : memref<2x16xf32, #tpu.memory_space<vmem>>, vector<1x16xf32>,
    %c1 = arith.constant 1 : index
    %c0_12 = arith.constant 0 : index
    %21 = vector.load %arg4[%c1, %c0_12] : memref<2x16xf32, #tpu.memory_space<vmem>>, vector<1x16xf32>
    tpu.vector_store %arg4[%c1, %c0_12], %19 {strides = array<i32>} : memref<2x16xf32, #tpu.memory_space<vmem>>, vector<1x16xf32>,
    return
  }
  func.func @transform_0(%arg0: i32) -> (i32, i32, i32) {
    %c0_i32 = arith.constant 0 : i32
    %c0_i32_0 = arith.constant 0 : i32
    %c0_i32_1 = arith.constant 0 : i32
    %c0_i32_2 = arith.constant 0 : i32
    return %c0_i32, %c0_i32_0, %c0_i32_1 : i32, i32, i32
  }
  func.func @transform_1(%arg0: i32) -> (i32, i32) {
    %c0_i32 = arith.constant 0 : i32
    %c0_i32_0 = arith.constant 0 : i32
    %c0_i32_1 = arith.constant 0 : i32
    return %c0_i32, %c0_i32_0 : i32, i32
  }
  func.func @transform_2(%arg0: i32) -> (i32, i32) {
    %c0_i32 = arith.constant 0 : i32
    %c0_i32_0 = arith.constant 0 : i32
    %c0_i32_1 = arith.constant 0 : i32
    return %c0_i32, %c0_i32_0 : i32, i32
  }
  func.func @transform_3(%arg0: i32) -> (i32, i32) {
    %c0_i32 = arith.constant 0 : i32
    %c0_i32_0 = arith.constant 0 : i32
    %c0_i32_1 = arith.constant 0 : i32
    return %c0_i32, %c0_i32_0 : i32, i32
  }
}

module attributes {stable_mosaic.version = 11 : i64} {
  func.func @_affine_relu_kernel(%arg0: i32, %arg1: memref<32x256xbf16, #tpu.memory_space<vmem>>, %arg2: memref<1x256xf32, #tpu.memory_space<vmem>>, %arg3: memref<1x256xf32, #tpu.memory_space<vmem>>, %arg4: memref<32x256xbf16, #tpu.memory_space<vmem>>) attributes {dimension_semantics = [#tpu.dimension_semantics<parallel>], iteration_bounds = array<i64: 1>, scalar_prefetch = 0 : i64, scratch_operands = 0 : i64, tpu.core_type = #tpu.core_type<tc>, window_params = [{transform_indices = @transform_0, window_bounds = array<i64: 32, 256>}, {pipeline_mode = #tpu.pipeline_mode<synchronous>, transform_indices = @transform_1, window_bounds = array<i64: 1, 256>}, {pipeline_mode = #tpu.pipeline_mode<synchronous>, transform_indices = @transform_2, window_bounds = array<i64: 1, 256>}, {transform_indices = @transform_3, window_bounds = array<i64: 32, 256>}]} {
    %c0 = arith.constant 0 : index
    %c0_0 = arith.constant 0 : index
    %0 = vector.load %arg1[%c0, %c0_0] : memref<32x256xbf16, #tpu.memory_space<vmem>>, vector<32x256xbf16>
    %1 = arith.extf %0 : vector<32x256xbf16> to vector<32x256xf32>
    %c0_1 = arith.constant 0 : index
    %c0_2 = arith.constant 0 : index
    %2 = vector.load %arg2[%c0_1, %c0_2] : memref<1x256xf32, #tpu.memory_space<vmem>>, vector<1x256xf32>
    %3 = vector.broadcast %2 : vector<1x256xf32> to vector<32x256xf32>
    %4 = arith.mulf %1, %3 : vector<32x256xf32>
    %c0_3 = arith.constant 0 : index
    %c0_4 = arith.constant 0 : index
    %5 = vector.load %arg3[%c0_3, %c0_4] : memref<1x256xf32, #tpu.memory_space<vmem>>, vector<1x256xf32>
    %6 = vector.broadcast %5 : vector<1x256xf32> to vector<32x256xf32>
    %7 = arith.addf %4, %6 : vector<32x256xf32>
    %cst = arith.constant 0.000000e+00 : f32
    %8 = vector.broadcast %cst : f32 to vector<32x256xf32>
    %9 = arith.maximumf %7, %8 : vector<32x256xf32>
    %10 = arith.truncf %9 : vector<32x256xf32> to vector<32x256xbf16>
    %c0_5 = arith.constant 0 : index
    %c0_6 = arith.constant 0 : index
    %11 = vector.load %arg4[%c0_5, %c0_6] : memref<32x256xbf16, #tpu.memory_space<vmem>>, vector<32x256xbf16>
    tpu.vector_store %arg4[%c0_5, %c0_6], %10 {strides = array<i32>} : memref<32x256xbf16, #tpu.memory_space<vmem>>, vector<32x256xbf16>,
    return
  }
  func.func @transform_0(%arg0: i32) -> (i32, i32) {
    %c0_i32 = arith.constant 0 : i32
    %c0_i32_0 = arith.constant 0 : i32
    return %arg0, %c0_i32 : i32, i32
  }
  func.func @transform_1(%arg0: i32) -> (i32, i32) {
    %c0_i32 = arith.constant 0 : i32
    %c0_i32_0 = arith.constant 0 : i32
    %c0_i32_1 = arith.constant 0 : i32
    return %c0_i32, %c0_i32_0 : i32, i32
  }
  func.func @transform_2(%arg0: i32) -> (i32, i32) {
    %c0_i32 = arith.constant 0 : i32
    %c0_i32_0 = arith.constant 0 : i32
    %c0_i32_1 = arith.constant 0 : i32
    return %c0_i32, %c0_i32_0 : i32, i32
  }
  func.func @transform_3(%arg0: i32) -> (i32, i32) {
    %c0_i32 = arith.constant 0 : i32
    %c0_i32_0 = arith.constant 0 : i32
    return %arg0, %c0_i32 : i32, i32
  }
}

module attributes {stable_mosaic.version = 11 : i64} {
  func.func @_bn_finalize_kernel(%arg0: i32, %arg1: memref<2x2x8xf32, #tpu.memory_space<vmem>>, %arg2: memref<1x8xf32, #tpu.memory_space<vmem>>, %arg3: memref<1x8xf32, #tpu.memory_space<vmem>>, %arg4: memref<2x8xf32, #tpu.memory_space<vmem>>) attributes {dimension_semantics = [#tpu.dimension_semantics<arbitrary>], iteration_bounds = array<i64: 1>, scalar_prefetch = 0 : i64, scratch_operands = 0 : i64, tpu.core_type = #tpu.core_type<tc>, window_params = [{pipeline_mode = #tpu.pipeline_mode<synchronous>, transform_indices = @transform_0, window_bounds = array<i64: 2, 2, 8>}, {pipeline_mode = #tpu.pipeline_mode<synchronous>, transform_indices = @transform_1, window_bounds = array<i64: 1, 8>}, {pipeline_mode = #tpu.pipeline_mode<synchronous>, transform_indices = @transform_2, window_bounds = array<i64: 1, 8>}, {pipeline_mode = #tpu.pipeline_mode<synchronous>, transform_indices = @transform_3, window_bounds = array<i64: 2, 8>}]} {
    %c0 = arith.constant 0 : index
    %c0_0 = arith.constant 0 : index
    %c0_1 = arith.constant 0 : index
    %0 = vector.load %arg1[%c0, %c0_0, %c0_1] : memref<2x2x8xf32, #tpu.memory_space<vmem>>, vector<2x2x8xf32>
    %cst = arith.constant dense<0.000000e+00> : vector<2x8xf32>
    %1 = vector.multi_reduction <add>, %0, %cst [0] : vector<2x2x8xf32> to vector<2x8xf32>
    %2 = vector.extract_strided_slice %1 {offsets = [0, 0], sizes = [1, 8], strides = [1, 1]} : vector<2x8xf32> to vector<1x8xf32>
    %cst_2 = arith.constant 4.8828125E-4 : f32
    %3 = vector.broadcast %cst_2 : f32 to vector<1x8xf32>
    %4 = arith.mulf %2, %3 : vector<1x8xf32>
    %5 = vector.extract_strided_slice %1 {offsets = [1, 0], sizes = [1, 8], strides = [1, 1]} : vector<2x8xf32> to vector<1x8xf32>
    %cst_3 = arith.constant 4.8828125E-4 : f32
    %6 = vector.broadcast %cst_3 : f32 to vector<1x8xf32>
    %7 = arith.mulf %5, %6 : vector<1x8xf32>
    %8 = arith.mulf %4, %4 : vector<1x8xf32>
    %9 = arith.subf %7, %8 : vector<1x8xf32>
    %cst_4 = arith.constant 0.000000e+00 : f32
    %10 = vector.broadcast %cst_4 : f32 to vector<1x8xf32>
    %11 = arith.maximumf %9, %10 : vector<1x8xf32>
    %cst_5 = arith.constant 9.99999974E-6 : f32
    %12 = vector.broadcast %cst_5 : f32 to vector<1x8xf32>
    %13 = arith.addf %11, %12 : vector<1x8xf32>
    %14 = math.rsqrt %13 : vector<1x8xf32>
    %c0_6 = arith.constant 0 : index
    %c0_7 = arith.constant 0 : index
    %15 = vector.load %arg2[%c0_6, %c0_7] : memref<1x8xf32, #tpu.memory_space<vmem>>, vector<1x8xf32>
    %16 = arith.mulf %15, %14 : vector<1x8xf32>
    %c0_8 = arith.constant 0 : index
    %c0_9 = arith.constant 0 : index
    %17 = vector.load %arg3[%c0_8, %c0_9] : memref<1x8xf32, #tpu.memory_space<vmem>>, vector<1x8xf32>
    %18 = arith.mulf %4, %16 : vector<1x8xf32>
    %19 = arith.subf %17, %18 : vector<1x8xf32>
    %c0_10 = arith.constant 0 : index
    %c0_11 = arith.constant 0 : index
    %20 = vector.load %arg4[%c0_10, %c0_11] : memref<2x8xf32, #tpu.memory_space<vmem>>, vector<1x8xf32>
    tpu.vector_store %arg4[%c0_10, %c0_11], %16 {strides = array<i32>} : memref<2x8xf32, #tpu.memory_space<vmem>>, vector<1x8xf32>,
    %c1 = arith.constant 1 : index
    %c0_12 = arith.constant 0 : index
    %21 = vector.load %arg4[%c1, %c0_12] : memref<2x8xf32, #tpu.memory_space<vmem>>, vector<1x8xf32>
    tpu.vector_store %arg4[%c1, %c0_12], %19 {strides = array<i32>} : memref<2x8xf32, #tpu.memory_space<vmem>>, vector<1x8xf32>,
    return
  }
  func.func @transform_0(%arg0: i32) -> (i32, i32, i32) {
    %c0_i32 = arith.constant 0 : i32
    %c0_i32_0 = arith.constant 0 : i32
    %c0_i32_1 = arith.constant 0 : i32
    %c0_i32_2 = arith.constant 0 : i32
    return %c0_i32, %c0_i32_0, %c0_i32_1 : i32, i32, i32
  }
  func.func @transform_1(%arg0: i32) -> (i32, i32) {
    %c0_i32 = arith.constant 0 : i32
    %c0_i32_0 = arith.constant 0 : i32
    %c0_i32_1 = arith.constant 0 : i32
    return %c0_i32, %c0_i32_0 : i32, i32
  }
  func.func @transform_2(%arg0: i32) -> (i32, i32) {
    %c0_i32 = arith.constant 0 : i32
    %c0_i32_0 = arith.constant 0 : i32
    %c0_i32_1 = arith.constant 0 : i32
    return %c0_i32, %c0_i32_0 : i32, i32
  }
  func.func @transform_3(%arg0: i32) -> (i32, i32) {
    %c0_i32 = arith.constant 0 : i32
    %c0_i32_0 = arith.constant 0 : i32
    %c0_i32_1 = arith.constant 0 : i32
    return %c0_i32, %c0_i32_0 : i32, i32
  }
}

module attributes {stable_mosaic.version = 11 : i64} {
  func.func @_deconv_kernel(%arg0: i32, %arg1: memref<1x18x18x16xbf16, #tpu.memory_space<vmem>>, %arg2: memref<16x16x8xbf16, #tpu.memory_space<vmem>>, %arg3: memref<1x16x2x16x16xbf16, #tpu.memory_space<vmem>>, %arg4: memref<1x2x8xf32, #tpu.memory_space<vmem>>, %arg5: memref<1x8xf32, #tpu.memory_space<vmem>>, %arg6: memref<1x8xf32, #tpu.memory_space<vmem>>) attributes {dimension_semantics = [#tpu.dimension_semantics<parallel>], iteration_bounds = array<i64: 2>, scalar_prefetch = 0 : i64, scratch_operands = 2 : i64, tpu.core_type = #tpu.core_type<tc>, window_params = [{transform_indices = @transform_0, window_bounds = array<i64: 1, 18, 18, 16>}, {pipeline_mode = #tpu.pipeline_mode<synchronous>, transform_indices = @transform_1, window_bounds = array<i64: 16, 16, 8>}, {transform_indices = @transform_2, window_bounds = array<i64: 1, 16, 2, 16, 16>}, {transform_indices = @transform_3, window_bounds = array<i64: 1, 2, 8>}]} {
    %cst = arith.constant 0.000000e+00 : f32
    %0 = vector.broadcast %cst : f32 to vector<1x8xf32>
    %c0 = arith.constant 0 : index
    %c0_0 = arith.constant 0 : index
    %1 = vector.load %arg5[%c0, %c0_0] : memref<1x8xf32, #tpu.memory_space<vmem>>, vector<1x8xf32>
    tpu.vector_store %arg5[%c0, %c0_0], %0 {strides = array<i32>} : memref<1x8xf32, #tpu.memory_space<vmem>>, vector<1x8xf32>,
    %cst_1 = arith.constant 0.000000e+00 : f32
    %2 = vector.broadcast %cst_1 : f32 to vector<1x8xf32>
    %c0_2 = arith.constant 0 : index
    %c0_3 = arith.constant 0 : index
    %3 = vector.load %arg6[%c0_2, %c0_3] : memref<1x8xf32, #tpu.memory_space<vmem>>, vector<1x8xf32>
    tpu.vector_store %arg6[%c0_2, %c0_3], %2 {strides = array<i32>} : memref<1x8xf32, #tpu.memory_space<vmem>>, vector<1x8xf32>,
    %c0_i32 = arith.constant 0 : i32
    %c16_i32 = arith.constant 16 : i32
    %4 = arith.addi %c0_i32, %c16_i32 : i32
    %c1_i32 = arith.constant 1 : i32
    scf.for %arg7 = %c0_i32 to %4 step %c1_i32  : i32 {
      %cst_14 = arith.constant 0.000000e+00 : f32
      %13 = vector.broadcast %cst_14 : f32 to vector<16x8xf32>
      %c0_i32_15 = arith.constant 0 : i32
      %14 = arith.addi %arg7, %c0_i32_15 : i32
      %c0_i32_16 = arith.constant 0 : i32
      %15 = arith.addi %14, %c0_i32_16 : i32
      %c0_17 = arith.constant 0 : index
      %16 = arith.index_cast %15 : i32 to index
      %c0_18 = arith.constant 0 : index
      %c0_19 = arith.constant 0 : index
      %17 = vector.load %arg1[%c0_17, %16, %c0_18, %c0_19] : memref<1x18x18x16xbf16, #tpu.memory_space<vmem>>, vector<1x1x16x16xbf16>
      %18 = vector.shape_cast %17 : vector<1x1x16x16xbf16> to vector<16x16xbf16>
      %c0_20 = arith.constant 0 : index
      %c0_21 = arith.constant 0 : index
      %c0_22 = arith.constant 0 : index
      %19 = vector.load %arg2[%c0_20, %c0_21, %c0_22] : memref<16x16x8xbf16, #tpu.memory_space<vmem>>, vector<1x16x8xbf16>
      %20 = vector.shape_cast %19 : vector<1x16x8xbf16> to vector<16x8xbf16>
      %cst_23 = arith.constant dense<0.000000e+00> : vector<16x8xf32>
      %21 = tpu.matmul %18, %20, %cst_23 {dimension_numbers = #tpu.dot_dimension_numbers<[1], [0], [0], [1], [0, 0, 1, 1], [], []>} : vector<16x16xbf16>, vector<16x8xbf16>, vector<16x8xf32> -> vector<16x8xf32>
      %22 = arith.addf %13, %21 : vector<16x8xf32>
      %c0_i32_24 = arith.constant 0 : i32
      %23 = arith.addi %arg7, %c0_i32_24 : i32
      %c0_i32_25 = arith.constant 0 : i32
      %24 = arith.addi %23, %c0_i32_25 : i32
      %c0_26 = arith.constant 0 : index
      %25 = arith.index_cast %24 : i32 to index
      %c1_27 = arith.constant 1 : index
      %c0_28 = arith.constant 0 : index
      %26 = vector.load %arg1[%c0_26, %25, %c1_27, %c0_28] : memref<1x18x18x16xbf16, #tpu.memory_space<vmem>>, vector<1x1x16x16xbf16>
      %27 = vector.shape_cast %26 : vector<1x1x16x16xbf16> to vector<16x16xbf16>
      %c1_29 = arith.constant 1 : index
      %c0_30 = arith.constant 0 : index
      %c0_31 = arith.constant 0 : index
      %28 = vector.load %arg2[%c1_29, %c0_30, %c0_31] : memref<16x16x8xbf16, #tpu.memory_space<vmem>>, vector<1x16x8xbf16>
      %29 = vector.shape_cast %28 : vector<1x16x8xbf16> to vector<16x8xbf16>
      %cst_32 = arith.constant dense<0.000000e+00> : vector<16x8xf32>
      %30 = tpu.matmul %27, %29, %cst_32 {dimension_numbers = #tpu.dot_dimension_numbers<[1], [0], [0], [1], [0, 0, 1, 1], [], []>} : vector<16x16xbf16>, vector<16x8xbf16>, vector<16x8xf32> -> vector<16x8xf32>
      %31 = arith.addf %22, %30 : vector<16x8xf32>
      %c0_i32_33 = arith.constant 0 : i32
      %32 = arith.addi %arg7, %c0_i32_33 : i32
      %c1_i32_34 = arith.constant 1 : i32
      %33 = arith.addi %32, %c1_i32_34 : i32
      %c0_35 = arith.constant 0 : index
      %34 = arith.index_cast %33 : i32 to index
      %c0_36 = arith.constant 0 : index
      %c0_37 = arith.constant 0 : index
      %35 = vector.load %arg1[%c0_35, %34, %c0_36, %c0_37] : memref<1x18x18x16xbf16, #tpu.memory_space<vmem>>, vector<1x1x16x16xbf16>
      %36 = vector.shape_cast %35 : vector<1x1x16x16xbf16> to vector<16x16xbf16>
      %c2 = arith.constant 2 : index
      %c0_38 = arith.constant 0 : index
      %c0_39 = arith.constant 0 : index
      %37 = vector.load %arg2[%c2, %c0_38, %c0_39] : memref<16x16x8xbf16, #tpu.memory_space<vmem>>, vector<1x16x8xbf16>
      %38 = vector.shape_cast %37 : vector<1x16x8xbf16> to vector<16x8xbf16>
      %cst_40 = arith.constant dense<0.000000e+00> : vector<16x8xf32>
      %39 = tpu.matmul %36, %38, %cst_40 {dimension_numbers = #tpu.dot_dimension_numbers<[1], [0], [0], [1], [0, 0, 1, 1], [], []>} : vector<16x16xbf16>, vector<16x8xbf16>, vector<16x8xf32> -> vector<16x8xf32>
      %40 = arith.addf %31, %39 : vector<16x8xf32>
      %c0_i32_41 = arith.constant 0 : i32
      %41 = arith.addi %arg7, %c0_i32_41 : i32
      %c1_i32_42 = arith.constant 1 : i32
      %42 = arith.addi %41, %c1_i32_42 : i32
      %c0_43 = arith.constant 0 : index
      %43 = arith.index_cast %42 : i32 to index
      %c1_44 = arith.constant 1 : index
      %c0_45 = arith.constant 0 : index
      %44 = vector.load %arg1[%c0_43, %43, %c1_44, %c0_45] : memref<1x18x18x16xbf16, #tpu.memory_space<vmem>>, vector<1x1x16x16xbf16>
      %45 = vector.shape_cast %44 : vector<1x1x16x16xbf16> to vector<16x16xbf16>
      %c3 = arith.constant 3 : index
      %c0_46 = arith.constant 0 : index
      %c0_47 = arith.constant 0 : index
      %46 = vector.load %arg2[%c3, %c0_46, %c0_47] : memref<16x16x8xbf16, #tpu.memory_space<vmem>>, vector<1x16x8xbf16>
      %47 = vector.shape_cast %46 : vector<1x16x8xbf16> to vector<16x8xbf16>
      %cst_48 = arith.constant dense<0.000000e+00> : vector<16x8xf32>
      %48 = tpu.matmul %45, %47, %cst_48 {dimension_numbers = #tpu.dot_dimension_numbers<[1], [0], [0], [1], [0, 0, 1, 1], [], []>} : vector<16x16xbf16>, vector<16x8xbf16>, vector<16x8xf32> -> vector<16x8xf32>
      %49 = arith.addf %40, %48 : vector<16x8xf32>
      %c0_49 = arith.constant 0 : index
      %c0_50 = arith.constant 0 : index
      %50 = vector.load %arg5[%c0_49, %c0_50] : memref<1x8xf32, #tpu.memory_space<vmem>>, vector<1x8xf32>
      %cst_51 = arith.constant dense<0.000000e+00> : vector<8xf32>
      %51 = vector.multi_reduction <add>, %49, %cst_51 [0] : vector<16x8xf32> to vector<8xf32>
      %52 = vector.shape_cast %51 : vector<8xf32> to vector<1x8xf32>
      %53 = arith.addf %50, %52 : vector<1x8xf32>
      %c0_52 = arith.constant 0 : index
      %c0_53 = arith.constant 0 : index
      %54 = vector.load %arg5[%c0_52, %c0_53] : memref<1x8xf32, #tpu.memory_space<vmem>>, vector<1x8xf32>
      tpu.vector_store %arg5[%c0_52, %c0_53], %53 {strides = array<i32>} : memref<1x8xf32, #tpu.memory_space<vmem>>, vector<1x8xf32>,
      %c0_54 = arith.constant 0 : index
      %c0_55 = arith.constant 0 : index
      %55 = vector.load %arg6[%c0_54, %c0_55] : memref<1x8xf32, #tpu.memory_space<vmem>>, vector<1x8xf32>
      %56 = arith.mulf %49, %49 : vector<16x8xf32>
      %cst_56 = arith.constant dense<0.000000e+00> : vector<8xf32>
      %57 = vector.multi_reduction <add>, %56, %cst_56 [0] : vector<16x8xf32> to vector<8xf32>
      %58 = vector.shape_cast %57 : vector<8xf32> to vector<1x8xf32>
      %59 = arith.addf %55, %58 : vector<1x8xf32>
      %c0_57 = arith.constant 0 : index
      %c0_58 = arith.constant 0 : index
      %60 = vector.load %arg6[%c0_57, %c0_58] : memref<1x8xf32, #tpu.memory_space<vmem>>, vector<1x8xf32>
      tpu.vector_store %arg6[%c0_57, %c0_58], %59 {strides = array<i32>} : memref<1x8xf32, #tpu.memory_space<vmem>>, vector<1x8xf32>,
      %61 = arith.truncf %49 : vector<16x8xf32> to vector<16x8xbf16>
      %c0_59 = arith.constant 0 : index
      %62 = arith.index_cast %arg7 : i32 to index
      %c0_60 = arith.constant 0 : index
      %c0_61 = arith.constant 0 : index
      %c0_62 = arith.constant 0 : index
      %63 = vector.load %arg3[%c0_59, %62, %c0_60, %c0_61, %c0_62] : memref<1x16x2x16x16xbf16, #tpu.memory_space<vmem>>, vector<1x1x1x16x8xbf16>
      %64 = vector.shape_cast %63 : vector<1x1x1x16x8xbf16> to vector<16x8xbf16>
      %65 = vector.shape_cast %61 : vector<16x8xbf16> to vector<1x1x1x16x8xbf16>
      tpu.vector_store %arg3[%c0_59, %62, %c0_60, %c0_61, %c0_62], %65 {strides = array<i32>} : memref<1x16x2x16x16xbf16, #tpu.memory_space<vmem>>, vector<1x1x1x16x8xbf16>,
      %cst_63 = arith.constant 0.000000e+00 : f32
      %66 = vector.broadcast %cst_63 : f32 to vector<16x8xf32>
      %c0_i32_64 = arith.constant 0 : i32
      %67 = arith.addi %arg7, %c0_i32_64 : i32
      %c0_i32_65 = arith.constant 0 : i32
      %68 = arith.addi %67, %c0_i32_65 : i32
      %c0_66 = arith.constant 0 : index
      %69 = arith.index_cast %68 : i32 to index
      %c1_67 = arith.constant 1 : index
      %c0_68 = arith.constant 0 : index
      %70 = vector.load %arg1[%c0_66, %69, %c1_67, %c0_68] : memref<1x18x18x16xbf16, #tpu.memory_space<vmem>>, vector<1x1x16x16xbf16>
      %71 = vector.shape_cast %70 : vector<1x1x16x16xbf16> to vector<16x16xbf16>
      %c4 = arith.constant 4 : index
      %c0_69 = arith.constant 0 : index
      %c0_70 = arith.constant 0 : index
      %72 = vector.load %arg2[%c4, %c0_69, %c0_70] : memref<16x16x8xbf16, #tpu.memory_space<vmem>>, vector<1x16x8xbf16>
      %73 = vector.shape_cast %72 : vector<1x16x8xbf16> to vector<16x8xbf16>
      %cst_71 = arith.constant dense<0.000000e+00> : vector<16x8xf32>
      %74 = tpu.matmul %71, %73, %cst_71 {dimension_numbers = #tpu.dot_dimension_numbers<[1], [0], [0], [1], [0, 0, 1, 1], [], []>} : vector<16x16xbf16>, vector<16x8xbf16>, vector<16x8xf32> -> vector<16x8xf32>
      %75 = arith.addf %66, %74 : vector<16x8xf32>
      %c0_i32_72 = arith.constant 0 : i32
      %76 = arith.addi %arg7, %c0_i32_72 : i32
      %c0_i32_73 = arith.constant 0 : i32
      %77 = arith.addi %76, %c0_i32_73 : i32
      %c0_74 = arith.constant 0 : index
      %78 = arith.index_cast %77 : i32 to index
      %c2_75 = arith.constant 2 : index
      %c0_76 = arith.constant 0 : index
      %79 = vector.load %arg1[%c0_74, %78, %c2_75, %c0_76] : memref<1x18x18x16xbf16, #tpu.memory_space<vmem>>, vector<1x1x16x16xbf16>
      %80 = vector.shape_cast %79 : vector<1x1x16x16xbf16> to vector<16x16xbf16>
      %c5 = arith.constant 5 : index
      %c0_77 = arith.constant 0 : index
      %c0_78 = arith.constant 0 : index
      %81 = vector.load %arg2[%c5, %c0_77, %c0_78] : memref<16x16x8xbf16, #tpu.memory_space<vmem>>, vector<1x16x8xbf16>
      %82 = vector.shape_cast %81 : vector<1x16x8xbf16> to vector<16x8xbf16>
      %cst_79 = arith.constant dense<0.000000e+00> : vector<16x8xf32>
      %83 = tpu.matmul %80, %82, %cst_79 {dimension_numbers = #tpu.dot_dimension_numbers<[1], [0], [0], [1], [0, 0, 1, 1], [], []>} : vector<16x16xbf16>, vector<16x8xbf16>, vector<16x8xf32> -> vector<16x8xf32>
      %84 = arith.addf %75, %83 : vector<16x8xf32>
      %c0_i32_80 = arith.constant 0 : i32
      %85 = arith.addi %arg7, %c0_i32_80 : i32
      %c1_i32_81 = arith.constant 1 : i32
      %86 = arith.addi %85, %c1_i32_81 : i32
      %c0_82 = arith.constant 0 : index
      %87 = arith.index_cast %86 : i32 to index
      %c1_83 = arith.constant 1 : index
      %c0_84 = arith.constant 0 : index
      %88 = vector.load %arg1[%c0_82, %87, %c1_83, %c0_84] : memref<1x18x18x16xbf16, #tpu.memory_space<vmem>>, vector<1x1x16x16xbf16>
      %89 = vector.shape_cast %88 : vector<1x1x16x16xbf16> to vector<16x16xbf16>
      %c6 = arith.constant 6 : index
      %c0_85 = arith.constant 0 : index
      %c0_86 = arith.constant 0 : index
      %90 = vector.load %arg2[%c6, %c0_85, %c0_86] : memref<16x16x8xbf16, #tpu.memory_space<vmem>>, vector<1x16x8xbf16>
      %91 = vector.shape_cast %90 : vector<1x16x8xbf16> to vector<16x8xbf16>
      %cst_87 = arith.constant dense<0.000000e+00> : vector<16x8xf32>
      %92 = tpu.matmul %89, %91, %cst_87 {dimension_numbers = #tpu.dot_dimension_numbers<[1], [0], [0], [1], [0, 0, 1, 1], [], []>} : vector<16x16xbf16>, vector<16x8xbf16>, vector<16x8xf32> -> vector<16x8xf32>
      %93 = arith.addf %84, %92 : vector<16x8xf32>
      %c0_i32_88 = arith.constant 0 : i32
      %94 = arith.addi %arg7, %c0_i32_88 : i32
      %c1_i32_89 = arith.constant 1 : i32
      %95 = arith.addi %94, %c1_i32_89 : i32
      %c0_90 = arith.constant 0 : index
      %96 = arith.index_cast %95 : i32 to index
      %c2_91 = arith.constant 2 : index
      %c0_92 = arith.constant 0 : index
      %97 = vector.load %arg1[%c0_90, %96, %c2_91, %c0_92] : memref<1x18x18x16xbf16, #tpu.memory_space<vmem>>, vector<1x1x16x16xbf16>
      %98 = vector.shape_cast %97 : vector<1x1x16x16xbf16> to vector<16x16xbf16>
      %c7 = arith.constant 7 : index
      %c0_93 = arith.constant 0 : index
      %c0_94 = arith.constant 0 : index
      %99 = vector.load %arg2[%c7, %c0_93, %c0_94] : memref<16x16x8xbf16, #tpu.memory_space<vmem>>, vector<1x16x8xbf16>
      %100 = vector.shape_cast %99 : vector<1x16x8xbf16> to vector<16x8xbf16>
      %cst_95 = arith.constant dense<0.000000e+00> : vector<16x8xf32>
      %101 = tpu.matmul %98, %100, %cst_95 {dimension_numbers = #tpu.dot_dimension_numbers<[1], [0], [0], [1], [0, 0, 1, 1], [], []>} : vector<16x16xbf16>, vector<16x8xbf16>, vector<16x8xf32> -> vector<16x8xf32>
      %102 = arith.addf %93, %101 : vector<16x8xf32>
      %c0_96 = arith.constant 0 : index
      %c0_97 = arith.constant 0 : index
      %103 = vector.load %arg5[%c0_96, %c0_97] : memref<1x8xf32, #tpu.memory_space<vmem>>, vector<1x8xf32>
      %cst_98 = arith.constant dense<0.000000e+00> : vector<8xf32>
      %104 = vector.multi_reduction <add>, %102, %cst_98 [0] : vector<16x8xf32> to vector<8xf32>
      %105 = vector.shape_cast %104 : vector<8xf32> to vector<1x8xf32>
      %106 = arith.addf %103, %105 : vector<1x8xf32>
      %c0_99 = arith.constant 0 : index
      %c0_100 = arith.constant 0 : index
      %107 = vector.load %arg5[%c0_99, %c0_100] : memref<1x8xf32, #tpu.memory_space<vmem>>, vector<1x8xf32>
      tpu.vector_store %arg5[%c0_99, %c0_100], %106 {strides = array<i32>} : memref<1x8xf32, #tpu.memory_space<vmem>>, vector<1x8xf32>,
      %c0_101 = arith.constant 0 : index
      %c0_102 = arith.constant 0 : index
      %108 = vector.load %arg6[%c0_101, %c0_102] : memref<1x8xf32, #tpu.memory_space<vmem>>, vector<1x8xf32>
      %109 = arith.mulf %102, %102 : vector<16x8xf32>
      %cst_103 = arith.constant dense<0.000000e+00> : vector<8xf32>
      %110 = vector.multi_reduction <add>, %109, %cst_103 [0] : vector<16x8xf32> to vector<8xf32>
      %111 = vector.shape_cast %110 : vector<8xf32> to vector<1x8xf32>
      %112 = arith.addf %108, %111 : vector<1x8xf32>
      %c0_104 = arith.constant 0 : index
      %c0_105 = arith.constant 0 : index
      %113 = vector.load %arg6[%c0_104, %c0_105] : memref<1x8xf32, #tpu.memory_space<vmem>>, vector<1x8xf32>
      tpu.vector_store %arg6[%c0_104, %c0_105], %112 {strides = array<i32>} : memref<1x8xf32, #tpu.memory_space<vmem>>, vector<1x8xf32>,
      %114 = arith.truncf %102 : vector<16x8xf32> to vector<16x8xbf16>
      %c0_106 = arith.constant 0 : index
      %115 = arith.index_cast %arg7 : i32 to index
      %c0_107 = arith.constant 0 : index
      %c0_108 = arith.constant 0 : index
      %c8 = arith.constant 8 : index
      %116 = vector.load %arg3[%c0_106, %115, %c0_107, %c0_108, %c8] : memref<1x16x2x16x16xbf16, #tpu.memory_space<vmem>>, vector<1x1x1x16x8xbf16>
      %117 = vector.shape_cast %116 : vector<1x1x1x16x8xbf16> to vector<16x8xbf16>
      %118 = vector.shape_cast %114 : vector<16x8xbf16> to vector<1x1x1x16x8xbf16>
      tpu.vector_store %arg3[%c0_106, %115, %c0_107, %c0_108, %c8], %118 {strides = array<i32>} : memref<1x16x2x16x16xbf16, #tpu.memory_space<vmem>>, vector<1x1x1x16x8xbf16>,
      %cst_109 = arith.constant 0.000000e+00 : f32
      %119 = vector.broadcast %cst_109 : f32 to vector<16x8xf32>
      %c1_i32_110 = arith.constant 1 : i32
      %120 = arith.addi %arg7, %c1_i32_110 : i32
      %c0_i32_111 = arith.constant 0 : i32
      %121 = arith.addi %120, %c0_i32_111 : i32
      %c0_112 = arith.constant 0 : index
      %122 = arith.index_cast %121 : i32 to index
      %c0_113 = arith.constant 0 : index
      %c0_114 = arith.constant 0 : index
      %123 = vector.load %arg1[%c0_112, %122, %c0_113, %c0_114] : memref<1x18x18x16xbf16, #tpu.memory_space<vmem>>, vector<1x1x16x16xbf16>
      %124 = vector.shape_cast %123 : vector<1x1x16x16xbf16> to vector<16x16xbf16>
      %c8_115 = arith.constant 8 : index
      %c0_116 = arith.constant 0 : index
      %c0_117 = arith.constant 0 : index
      %125 = vector.load %arg2[%c8_115, %c0_116, %c0_117] : memref<16x16x8xbf16, #tpu.memory_space<vmem>>, vector<1x16x8xbf16>
      %126 = vector.shape_cast %125 : vector<1x16x8xbf16> to vector<16x8xbf16>
      %cst_118 = arith.constant dense<0.000000e+00> : vector<16x8xf32>
      %127 = tpu.matmul %124, %126, %cst_118 {dimension_numbers = #tpu.dot_dimension_numbers<[1], [0], [0], [1], [0, 0, 1, 1], [], []>} : vector<16x16xbf16>, vector<16x8xbf16>, vector<16x8xf32> -> vector<16x8xf32>
      %128 = arith.addf %119, %127 : vector<16x8xf32>
      %c1_i32_119 = arith.constant 1 : i32
      %129 = arith.addi %arg7, %c1_i32_119 : i32
      %c0_i32_120 = arith.constant 0 : i32
      %130 = arith.addi %129, %c0_i32_120 : i32
      %c0_121 = arith.constant 0 : index
      %131 = arith.index_cast %130 : i32 to index
      %c1_122 = arith.constant 1 : index
      %c0_123 = arith.constant 0 : index
      %132 = vector.load %arg1[%c0_121, %131, %c1_122, %c0_123] : memref<1x18x18x16xbf16, #tpu.memory_space<vmem>>, vector<1x1x16x16xbf16>
      %133 = vector.shape_cast %132 : vector<1x1x16x16xbf16> to vector<16x16xbf16>
      %c9 = arith.constant 9 : index
      %c0_124 = arith.constant 0 : index
      %c0_125 = arith.constant 0 : index
      %134 = vector.load %arg2[%c9, %c0_124, %c0_125] : memref<16x16x8xbf16, #tpu.memory_space<vmem>>, vector<1x16x8xbf16>
      %135 = vector.shape_cast %134 : vector<1x16x8xbf16> to vector<16x8xbf16>
      %cst_126 = arith.constant dense<0.000000e+00> : vector<16x8xf32>
      %136 = tpu.matmul %133, %135, %cst_126 {dimension_numbers = #tpu.dot_dimension_numbers<[1], [0], [0], [1], [0, 0, 1, 1], [], []>} : vector<16x16xbf16>, vector<16x8xbf16>, vector<16x8xf32> -> vector<16x8xf32>
      %137 = arith.addf %128, %136 : vector<16x8xf32>
      %c1_i32_127 = arith.constant 1 : i32
      %138 = arith.addi %arg7, %c1_i32_127 : i32
      %c1_i32_128 = arith.constant 1 : i32
      %139 = arith.addi %138, %c1_i32_128 : i32
      %c0_129 = arith.constant 0 : index
      %140 = arith.index_cast %139 : i32 to index
      %c0_130 = arith.constant 0 : index
      %c0_131 = arith.constant 0 : index
      %141 = vector.load %arg1[%c0_129, %140, %c0_130, %c0_131] : memref<1x18x18x16xbf16, #tpu.memory_space<vmem>>, vector<1x1x16x16xbf16>
      %142 = vector.shape_cast %141 : vector<1x1x16x16xbf16> to vector<16x16xbf16>
      %c10 = arith.constant 10 : index
      %c0_132 = arith.constant 0 : index
      %c0_133 = arith.constant 0 : index
      %143 = vector.load %arg2[%c10, %c0_132, %c0_133] : memref<16x16x8xbf16, #tpu.memory_space<vmem>>, vector<1x16x8xbf16>
      %144 = vector.shape_cast %143 : vector<1x16x8xbf16> to vector<16x8xbf16>
      %cst_134 = arith.constant dense<0.000000e+00> : vector<16x8xf32>
      %145 = tpu.matmul %142, %144, %cst_134 {dimension_numbers = #tpu.dot_dimension_numbers<[1], [0], [0], [1], [0, 0, 1, 1], [], []>} : vector<16x16xbf16>, vector<16x8xbf16>, vector<16x8xf32> -> vector<16x8xf32>
      %146 = arith.addf %137, %145 : vector<16x8xf32>
      %c1_i32_135 = arith.constant 1 : i32
      %147 = arith.addi %arg7, %c1_i32_135 : i32
      %c1_i32_136 = arith.constant 1 : i32
      %148 = arith.addi %147, %c1_i32_136 : i32
      %c0_137 = arith.constant 0 : index
      %149 = arith.index_cast %148 : i32 to index
      %c1_138 = arith.constant 1 : index
      %c0_139 = arith.constant 0 : index
      %150 = vector.load %arg1[%c0_137, %149, %c1_138, %c0_139] : memref<1x18x18x16xbf16, #tpu.memory_space<vmem>>, vector<1x1x16x16xbf16>
      %151 = vector.shape_cast %150 : vector<1x1x16x16xbf16> to vector<16x16xbf16>
      %c11 = arith.constant 11 : index
      %c0_140 = arith.constant 0 : index
      %c0_141 = arith.constant 0 : index
      %152 = vector.load %arg2[%c11, %c0_140, %c0_141] : memref<16x16x8xbf16, #tpu.memory_space<vmem>>, vector<1x16x8xbf16>
      %153 = vector.shape_cast %152 : vector<1x16x8xbf16> to vector<16x8xbf16>
      %cst_142 = arith.constant dense<0.000000e+00> : vector<16x8xf32>
      %154 = tpu.matmul %151, %153, %cst_142 {dimension_numbers = #tpu.dot_dimension_numbers<[1], [0], [0], [1], [0, 0, 1, 1], [], []>} : vector<16x16xbf16>, vector<16x8xbf16>, vector<16x8xf32> -> vector<16x8xf32>
      %155 = arith.addf %146, %154 : vector<16x8xf32>
      %c0_143 = arith.constant 0 : index
      %c0_144 = arith.constant 0 : index
      %156 = vector.load %arg5[%c0_143, %c0_144] : memref<1x8xf32, #tpu.memory_space<vmem>>, vector<1x8xf32>
      %cst_145 = arith.constant dense<0.000000e+00> : vector<8xf32>
      %157 = vector.multi_reduction <add>, %155, %cst_145 [0] : vector<16x8xf32> to vector<8xf32>
      %158 = vector.shape_cast %157 : vector<8xf32> to vector<1x8xf32>
      %159 = arith.addf %156, %158 : vector<1x8xf32>
      %c0_146 = arith.constant 0 : index
      %c0_147 = arith.constant 0 : index
      %160 = vector.load %arg5[%c0_146, %c0_147] : memref<1x8xf32, #tpu.memory_space<vmem>>, vector<1x8xf32>
      tpu.vector_store %arg5[%c0_146, %c0_147], %159 {strides = array<i32>} : memref<1x8xf32, #tpu.memory_space<vmem>>, vector<1x8xf32>,
      %c0_148 = arith.constant 0 : index
      %c0_149 = arith.constant 0 : index
      %161 = vector.load %arg6[%c0_148, %c0_149] : memref<1x8xf32, #tpu.memory_space<vmem>>, vector<1x8xf32>
      %162 = arith.mulf %155, %155 : vector<16x8xf32>
      %cst_150 = arith.constant dense<0.000000e+00> : vector<8xf32>
      %163 = vector.multi_reduction <add>, %162, %cst_150 [0] : vector<16x8xf32> to vector<8xf32>
      %164 = vector.shape_cast %163 : vector<8xf32> to vector<1x8xf32>
      %165 = arith.addf %161, %164 : vector<1x8xf32>
      %c0_151 = arith.constant 0 : index
      %c0_152 = arith.constant 0 : index
      %166 = vector.load %arg6[%c0_151, %c0_152] : memref<1x8xf32, #tpu.memory_space<vmem>>, vector<1x8xf32>
      tpu.vector_store %arg6[%c0_151, %c0_152], %165 {strides = array<i32>} : memref<1x8xf32, #tpu.memory_space<vmem>>, vector<1x8xf32>,
      %167 = arith.truncf %155 : vector<16x8xf32> to vector<16x8xbf16>
      %c0_153 = arith.constant 0 : index
      %168 = arith.index_cast %arg7 : i32 to index
      %c1_154 = arith.constant 1 : index
      %c0_155 = arith.constant 0 : index
      %c0_156 = arith.constant 0 : index
      %169 = vector.load %arg3[%c0_153, %168, %c1_154, %c0_155, %c0_156] : memref<1x16x2x16x16xbf16, #tpu.memory_space<vmem>>, vector<1x1x1x16x8xbf16>
      %170 = vector.shape_cast %169 : vector<1x1x1x16x8xbf16> to vector<16x8xbf16>
      %171 = vector.shape_cast %167 : vector<16x8xbf16> to vector<1x1x1x16x8xbf16>
      tpu.vector_store %arg3[%c0_153, %168, %c1_154, %c0_155, %c0_156], %171 {strides = array<i32>} : memref<1x16x2x16x16xbf16, #tpu.memory_space<vmem>>, vector<1x1x1x16x8xbf16>,
      %cst_157 = arith.constant 0.000000e+00 : f32
      %172 = vector.broadcast %cst_157 : f32 to vector<16x8xf32>
      %c1_i32_158 = arith.constant 1 : i32
      %173 = arith.addi %arg7, %c1_i32_158 : i32
      %c0_i32_159 = arith.constant 0 : i32
      %174 = arith.addi %173, %c0_i32_159 : i32
      %c0_160 = arith.constant 0 : index
      %175 = arith.index_cast %174 : i32 to index
      %c1_161 = arith.constant 1 : index
      %c0_162 = arith.constant 0 : index
      %176 = vector.load %arg1[%c0_160, %175, %c1_161, %c0_162] : memref<1x18x18x16xbf16, #tpu.memory_space<vmem>>, vector<1x1x16x16xbf16>
      %177 = vector.shape_cast %176 : vector<1x1x16x16xbf16> to vector<16x16xbf16>
      %c12 = arith.constant 12 : index
      %c0_163 = arith.constant 0 : index
      %c0_164 = arith.constant 0 : index
      %178 = vector.load %arg2[%c12, %c0_163, %c0_164] : memref<16x16x8xbf16, #tpu.memory_space<vmem>>, vector<1x16x8xbf16>
      %179 = vector.shape_cast %178 : vector<1x16x8xbf16> to vector<16x8xbf16>
      %cst_165 = arith.constant dense<0.000000e+00> : vector<16x8xf32>
      %180 = tpu.matmul %177, %179, %cst_165 {dimension_numbers = #tpu.dot_dimension_numbers<[1], [0], [0], [1], [0, 0, 1, 1], [], []>} : vector<16x16xbf16>, vector<16x8xbf16>, vector<16x8xf32> -> vector<16x8xf32>
      %181 = arith.addf %172, %180 : vector<16x8xf32>
      %c1_i32_166 = arith.constant 1 : i32
      %182 = arith.addi %arg7, %c1_i32_166 : i32
      %c0_i32_167 = arith.constant 0 : i32
      %183 = arith.addi %182, %c0_i32_167 : i32
      %c0_168 = arith.constant 0 : index
      %184 = arith.index_cast %183 : i32 to index
      %c2_169 = arith.constant 2 : index
      %c0_170 = arith.constant 0 : index
      %185 = vector.load %arg1[%c0_168, %184, %c2_169, %c0_170] : memref<1x18x18x16xbf16, #tpu.memory_space<vmem>>, vector<1x1x16x16xbf16>
      %186 = vector.shape_cast %185 : vector<1x1x16x16xbf16> to vector<16x16xbf16>
      %c13 = arith.constant 13 : index
      %c0_171 = arith.constant 0 : index
      %c0_172 = arith.constant 0 : index
      %187 = vector.load %arg2[%c13, %c0_171, %c0_172] : memref<16x16x8xbf16, #tpu.memory_space<vmem>>, vector<1x16x8xbf16>
      %188 = vector.shape_cast %187 : vector<1x16x8xbf16> to vector<16x8xbf16>
      %cst_173 = arith.constant dense<0.000000e+00> : vector<16x8xf32>
      %189 = tpu.matmul %186, %188, %cst_173 {dimension_numbers = #tpu.dot_dimension_numbers<[1], [0], [0], [1], [0, 0, 1, 1], [], []>} : vector<16x16xbf16>, vector<16x8xbf16>, vector<16x8xf32> -> vector<16x8xf32>
      %190 = arith.addf %181, %189 : vector<16x8xf32>
      %c1_i32_174 = arith.constant 1 : i32
      %191 = arith.addi %arg7, %c1_i32_174 : i32
      %c1_i32_175 = arith.constant 1 : i32
      %192 = arith.addi %191, %c1_i32_175 : i32
      %c0_176 = arith.constant 0 : index
      %193 = arith.index_cast %192 : i32 to index
      %c1_177 = arith.constant 1 : index
      %c0_178 = arith.constant 0 : index
      %194 = vector.load %arg1[%c0_176, %193, %c1_177, %c0_178] : memref<1x18x18x16xbf16, #tpu.memory_space<vmem>>, vector<1x1x16x16xbf16>
      %195 = vector.shape_cast %194 : vector<1x1x16x16xbf16> to vector<16x16xbf16>
      %c14 = arith.constant 14 : index
      %c0_179 = arith.constant 0 : index
      %c0_180 = arith.constant 0 : index
      %196 = vector.load %arg2[%c14, %c0_179, %c0_180] : memref<16x16x8xbf16, #tpu.memory_space<vmem>>, vector<1x16x8xbf16>
      %197 = vector.shape_cast %196 : vector<1x16x8xbf16> to vector<16x8xbf16>
      %cst_181 = arith.constant dense<0.000000e+00> : vector<16x8xf32>
      %198 = tpu.matmul %195, %197, %cst_181 {dimension_numbers = #tpu.dot_dimension_numbers<[1], [0], [0], [1], [0, 0, 1, 1], [], []>} : vector<16x16xbf16>, vector<16x8xbf16>, vector<16x8xf32> -> vector<16x8xf32>
      %199 = arith.addf %190, %198 : vector<16x8xf32>
      %c1_i32_182 = arith.constant 1 : i32
      %200 = arith.addi %arg7, %c1_i32_182 : i32
      %c1_i32_183 = arith.constant 1 : i32
      %201 = arith.addi %200, %c1_i32_183 : i32
      %c0_184 = arith.constant 0 : index
      %202 = arith.index_cast %201 : i32 to index
      %c2_185 = arith.constant 2 : index
      %c0_186 = arith.constant 0 : index
      %203 = vector.load %arg1[%c0_184, %202, %c2_185, %c0_186] : memref<1x18x18x16xbf16, #tpu.memory_space<vmem>>, vector<1x1x16x16xbf16>
      %204 = vector.shape_cast %203 : vector<1x1x16x16xbf16> to vector<16x16xbf16>
      %c15 = arith.constant 15 : index
      %c0_187 = arith.constant 0 : index
      %c0_188 = arith.constant 0 : index
      %205 = vector.load %arg2[%c15, %c0_187, %c0_188] : memref<16x16x8xbf16, #tpu.memory_space<vmem>>, vector<1x16x8xbf16>
      %206 = vector.shape_cast %205 : vector<1x16x8xbf16> to vector<16x8xbf16>
      %cst_189 = arith.constant dense<0.000000e+00> : vector<16x8xf32>
      %207 = tpu.matmul %204, %206, %cst_189 {dimension_numbers = #tpu.dot_dimension_numbers<[1], [0], [0], [1], [0, 0, 1, 1], [], []>} : vector<16x16xbf16>, vector<16x8xbf16>, vector<16x8xf32> -> vector<16x8xf32>
      %208 = arith.addf %199, %207 : vector<16x8xf32>
      %c0_190 = arith.constant 0 : index
      %c0_191 = arith.constant 0 : index
      %209 = vector.load %arg5[%c0_190, %c0_191] : memref<1x8xf32, #tpu.memory_space<vmem>>, vector<1x8xf32>
      %cst_192 = arith.constant dense<0.000000e+00> : vector<8xf32>
      %210 = vector.multi_reduction <add>, %208, %cst_192 [0] : vector<16x8xf32> to vector<8xf32>
      %211 = vector.shape_cast %210 : vector<8xf32> to vector<1x8xf32>
      %212 = arith.addf %209, %211 : vector<1x8xf32>
      %c0_193 = arith.constant 0 : index
      %c0_194 = arith.constant 0 : index
      %213 = vector.load %arg5[%c0_193, %c0_194] : memref<1x8xf32, #tpu.memory_space<vmem>>, vector<1x8xf32>
      tpu.vector_store %arg5[%c0_193, %c0_194], %212 {strides = array<i32>} : memref<1x8xf32, #tpu.memory_space<vmem>>, vector<1x8xf32>,
      %c0_195 = arith.constant 0 : index
      %c0_196 = arith.constant 0 : index
      %214 = vector.load %arg6[%c0_195, %c0_196] : memref<1x8xf32, #tpu.memory_space<vmem>>, vector<1x8xf32>
      %215 = arith.mulf %208, %208 : vector<16x8xf32>
      %cst_197 = arith.constant dense<0.000000e+00> : vector<8xf32>
      %216 = vector.multi_reduction <add>, %215, %cst_197 [0] : vector<16x8xf32> to vector<8xf32>
      %217 = vector.shape_cast %216 : vector<8xf32> to vector<1x8xf32>
      %218 = arith.addf %214, %217 : vector<1x8xf32>
      %c0_198 = arith.constant 0 : index
      %c0_199 = arith.constant 0 : index
      %219 = vector.load %arg6[%c0_198, %c0_199] : memref<1x8xf32, #tpu.memory_space<vmem>>, vector<1x8xf32>
      tpu.vector_store %arg6[%c0_198, %c0_199], %218 {strides = array<i32>} : memref<1x8xf32, #tpu.memory_space<vmem>>, vector<1x8xf32>,
      %220 = arith.truncf %208 : vector<16x8xf32> to vector<16x8xbf16>
      %c0_200 = arith.constant 0 : index
      %221 = arith.index_cast %arg7 : i32 to index
      %c1_201 = arith.constant 1 : index
      %c0_202 = arith.constant 0 : index
      %c8_203 = arith.constant 8 : index
      %222 = vector.load %arg3[%c0_200, %221, %c1_201, %c0_202, %c8_203] : memref<1x16x2x16x16xbf16, #tpu.memory_space<vmem>>, vector<1x1x1x16x8xbf16>
      %223 = vector.shape_cast %222 : vector<1x1x1x16x8xbf16> to vector<16x8xbf16>
      %224 = vector.shape_cast %220 : vector<16x8xbf16> to vector<1x1x1x16x8xbf16>
      tpu.vector_store %arg3[%c0_200, %221, %c1_201, %c0_202, %c8_203], %224 {strides = array<i32>} : memref<1x16x2x16x16xbf16, #tpu.memory_space<vmem>>, vector<1x1x1x16x8xbf16>,
    }
    %c16_i32_4 = arith.constant 16 : i32
    %c0_5 = arith.constant 0 : index
    %c0_6 = arith.constant 0 : index
    %5 = vector.load %arg5[%c0_5, %c0_6] : memref<1x8xf32, #tpu.memory_space<vmem>>, vector<1x8xf32>
    %c0_7 = arith.constant 0 : index
    %c0_8 = arith.constant 0 : index
    %c0_9 = arith.constant 0 : index
    %6 = vector.load %arg4[%c0_7, %c0_8, %c0_9] : memref<1x2x8xf32, #tpu.memory_space<vmem>>, vector<1x1x8xf32>
    %7 = vector.shape_cast %6 : vector<1x1x8xf32> to vector<1x8xf32>
    %8 = vector.shape_cast %5 : vector<1x8xf32> to vector<1x1x8xf32>
    tpu.vector_store %arg4[%c0_7, %c0_8, %c0_9], %8 {strides = array<i32>} : memref<1x2x8xf32, #tpu.memory_space<vmem>>, vector<1x1x8xf32>,
    %c0_10 = arith.constant 0 : index
    %c0_11 = arith.constant 0 : index
    %9 = vector.load %arg6[%c0_10, %c0_11] : memref<1x8xf32, #tpu.memory_space<vmem>>, vector<1x8xf32>
    %c0_12 = arith.constant 0 : index
    %c1 = arith.constant 1 : index
    %c0_13 = arith.constant 0 : index
    %10 = vector.load %arg4[%c0_12, %c1, %c0_13] : memref<1x2x8xf32, #tpu.memory_space<vmem>>, vector<1x1x8xf32>
    %11 = vector.shape_cast %10 : vector<1x1x8xf32> to vector<1x8xf32>
    %12 = vector.shape_cast %9 : vector<1x8xf32> to vector<1x1x8xf32>
    tpu.vector_store %arg4[%c0_12, %c1, %c0_13], %12 {strides = array<i32>} : memref<1x2x8xf32, #tpu.memory_space<vmem>>, vector<1x1x8xf32>,
    return
  }
  func.func @transform_0(%arg0: i32) -> (i32, i32, i32, i32) {
    %c0_i32 = arith.constant 0 : i32
    %c0_i32_0 = arith.constant 0 : i32
    %c0_i32_1 = arith.constant 0 : i32
    %c0_i32_2 = arith.constant 0 : i32
    return %arg0, %c0_i32, %c0_i32_0, %c0_i32_1 : i32, i32, i32, i32
  }
  func.func @transform_1(%arg0: i32) -> (i32, i32, i32) {
    %c0_i32 = arith.constant 0 : i32
    %c0_i32_0 = arith.constant 0 : i32
    %c0_i32_1 = arith.constant 0 : i32
    %c0_i32_2 = arith.constant 0 : i32
    return %c0_i32, %c0_i32_0, %c0_i32_1 : i32, i32, i32
  }
  func.func @transform_2(%arg0: i32) -> (i32, i32, i32, i32, i32) {
    %c0_i32 = arith.constant 0 : i32
    %c0_i32_0 = arith.constant 0 : i32
    %c0_i32_1 = arith.constant 0 : i32
    %c0_i32_2 = arith.constant 0 : i32
    %c0_i32_3 = arith.constant 0 : i32
    return %arg0, %c0_i32, %c0_i32_0, %c0_i32_1, %c0_i32_2 : i32, i32, i32, i32, i32
  }
  func.func @transform_3(%arg0: i32) -> (i32, i32, i32) {
    %c0_i32 = arith.constant 0 : i32
    %c0_i32_0 = arith.constant 0 : i32
    %c0_i32_1 = arith.constant 0 : i32
    return %arg0, %c0_i32, %c0_i32_0 : i32, i32, i32
  }
}

module attributes {stable_mosaic.version = 11 : i64} {
  func.func @_affine_relu_kernel(%arg0: i32, %arg1: memref<64x256xbf16, #tpu.memory_space<vmem>>, %arg2: memref<1x256xf32, #tpu.memory_space<vmem>>, %arg3: memref<1x256xf32, #tpu.memory_space<vmem>>, %arg4: memref<64x256xbf16, #tpu.memory_space<vmem>>) attributes {dimension_semantics = [#tpu.dimension_semantics<parallel>], iteration_bounds = array<i64: 1>, scalar_prefetch = 0 : i64, scratch_operands = 0 : i64, tpu.core_type = #tpu.core_type<tc>, window_params = [{transform_indices = @transform_0, window_bounds = array<i64: 64, 256>}, {pipeline_mode = #tpu.pipeline_mode<synchronous>, transform_indices = @transform_1, window_bounds = array<i64: 1, 256>}, {pipeline_mode = #tpu.pipeline_mode<synchronous>, transform_indices = @transform_2, window_bounds = array<i64: 1, 256>}, {transform_indices = @transform_3, window_bounds = array<i64: 64, 256>}]} {
    %c0 = arith.constant 0 : index
    %c0_0 = arith.constant 0 : index
    %0 = vector.load %arg1[%c0, %c0_0] : memref<64x256xbf16, #tpu.memory_space<vmem>>, vector<64x256xbf16>
    %1 = arith.extf %0 : vector<64x256xbf16> to vector<64x256xf32>
    %c0_1 = arith.constant 0 : index
    %c0_2 = arith.constant 0 : index
    %2 = vector.load %arg2[%c0_1, %c0_2] : memref<1x256xf32, #tpu.memory_space<vmem>>, vector<1x256xf32>
    %3 = vector.broadcast %2 : vector<1x256xf32> to vector<64x256xf32>
    %4 = arith.mulf %1, %3 : vector<64x256xf32>
    %c0_3 = arith.constant 0 : index
    %c0_4 = arith.constant 0 : index
    %5 = vector.load %arg3[%c0_3, %c0_4] : memref<1x256xf32, #tpu.memory_space<vmem>>, vector<1x256xf32>
    %6 = vector.broadcast %5 : vector<1x256xf32> to vector<64x256xf32>
    %7 = arith.addf %4, %6 : vector<64x256xf32>
    %cst = arith.constant 0.000000e+00 : f32
    %8 = vector.broadcast %cst : f32 to vector<64x256xf32>
    %9 = arith.maximumf %7, %8 : vector<64x256xf32>
    %10 = arith.truncf %9 : vector<64x256xf32> to vector<64x256xbf16>
    %c0_5 = arith.constant 0 : index
    %c0_6 = arith.constant 0 : index
    %11 = vector.load %arg4[%c0_5, %c0_6] : memref<64x256xbf16, #tpu.memory_space<vmem>>, vector<64x256xbf16>
    tpu.vector_store %arg4[%c0_5, %c0_6], %10 {strides = array<i32>} : memref<64x256xbf16, #tpu.memory_space<vmem>>, vector<64x256xbf16>,
    return
  }
  func.func @transform_0(%arg0: i32) -> (i32, i32) {
    %c0_i32 = arith.constant 0 : i32
    %c0_i32_0 = arith.constant 0 : i32
    return %arg0, %c0_i32 : i32, i32
  }
  func.func @transform_1(%arg0: i32) -> (i32, i32) {
    %c0_i32 = arith.constant 0 : i32
    %c0_i32_0 = arith.constant 0 : i32
    %c0_i32_1 = arith.constant 0 : i32
    return %c0_i32, %c0_i32_0 : i32, i32
  }
  func.func @transform_2(%arg0: i32) -> (i32, i32) {
    %c0_i32 = arith.constant 0 : i32
    %c0_i32_0 = arith.constant 0 : i32
    %c0_i32_1 = arith.constant 0 : i32
    return %c0_i32, %c0_i32_0 : i32, i32
  }
  func.func @transform_3(%arg0: i32) -> (i32, i32) {
    %c0_i32 = arith.constant 0 : i32
    %c0_i32_0 = arith.constant 0 : i32
    return %arg0, %c0_i32 : i32, i32
  }
}

module attributes {stable_mosaic.version = 11 : i64} {
  func.func @_deconv_kernel(%arg0: i32, %arg1: memref<1x34x34x8xbf16, #tpu.memory_space<vmem>>, %arg2: memref<16x8x3xbf16, #tpu.memory_space<vmem>>, %arg3: memref<1x32x2x32x6xf32, #tpu.memory_space<vmem>>, %arg4: memref<1x2x3xf32, #tpu.memory_space<vmem>>, %arg5: memref<1x3xf32, #tpu.memory_space<vmem>>, %arg6: memref<1x3xf32, #tpu.memory_space<vmem>>) attributes {dimension_semantics = [#tpu.dimension_semantics<parallel>], iteration_bounds = array<i64: 2>, scalar_prefetch = 0 : i64, scratch_operands = 2 : i64, tpu.core_type = #tpu.core_type<tc>, window_params = [{transform_indices = @transform_0, window_bounds = array<i64: 1, 34, 34, 8>}, {pipeline_mode = #tpu.pipeline_mode<synchronous>, transform_indices = @transform_1, window_bounds = array<i64: 16, 8, 3>}, {transform_indices = @transform_2, window_bounds = array<i64: 1, 32, 2, 32, 6>}, {transform_indices = @transform_3, window_bounds = array<i64: 1, 2, 3>}]} {
    %cst = arith.constant 0.000000e+00 : f32
    %0 = vector.broadcast %cst : f32 to vector<1x3xf32>
    %c0 = arith.constant 0 : index
    %c0_0 = arith.constant 0 : index
    %1 = vector.load %arg5[%c0, %c0_0] : memref<1x3xf32, #tpu.memory_space<vmem>>, vector<1x3xf32>
    tpu.vector_store %arg5[%c0, %c0_0], %0 {strides = array<i32>} : memref<1x3xf32, #tpu.memory_space<vmem>>, vector<1x3xf32>,
    %cst_1 = arith.constant 0.000000e+00 : f32
    %2 = vector.broadcast %cst_1 : f32 to vector<1x3xf32>
    %c0_2 = arith.constant 0 : index
    %c0_3 = arith.constant 0 : index
    %3 = vector.load %arg6[%c0_2, %c0_3] : memref<1x3xf32, #tpu.memory_space<vmem>>, vector<1x3xf32>
    tpu.vector_store %arg6[%c0_2, %c0_3], %2 {strides = array<i32>} : memref<1x3xf32, #tpu.memory_space<vmem>>, vector<1x3xf32>,
    %c0_i32 = arith.constant 0 : i32
    %c32_i32 = arith.constant 32 : i32
    %4 = arith.addi %c0_i32, %c32_i32 : i32
    %c1_i32 = arith.constant 1 : i32
    scf.for %arg7 = %c0_i32 to %4 step %c1_i32  : i32 {
      %cst_14 = arith.constant 0.000000e+00 : f32
      %13 = vector.broadcast %cst_14 : f32 to vector<32x3xf32>
      %c0_i32_15 = arith.constant 0 : i32
      %14 = arith.addi %arg7, %c0_i32_15 : i32
      %c0_i32_16 = arith.constant 0 : i32
      %15 = arith.addi %14, %c0_i32_16 : i32
      %c0_17 = arith.constant 0 : index
      %16 = arith.index_cast %15 : i32 to index
      %c0_18 = arith.constant 0 : index
      %c0_19 = arith.constant 0 : index
      %17 = vector.load %arg1[%c0_17, %16, %c0_18, %c0_19] : memref<1x34x34x8xbf16, #tpu.memory_space<vmem>>, vector<1x1x32x8xbf16>
      %18 = vector.shape_cast %17 : vector<1x1x32x8xbf16> to vector<32x8xbf16>
      %c0_20 = arith.constant 0 : index
      %c0_21 = arith.constant 0 : index
      %c0_22 = arith.constant 0 : index
      %19 = vector.load %arg2[%c0_20, %c0_21, %c0_22] : memref<16x8x3xbf16, #tpu.memory_space<vmem>>, vector<1x8x3xbf16>
      %20 = vector.shape_cast %19 : vector<1x8x3xbf16> to vector<8x3xbf16>
      %cst_23 = arith.constant dense<0.000000e+00> : vector<32x3xf32>
      %21 = tpu.matmul %18, %20, %cst_23 {dimension_numbers = #tpu.dot_dimension_numbers<[1], [0], [0], [1], [0, 0, 1, 1], [], []>} : vector<32x8xbf16>, vector<8x3xbf16>, vector<32x3xf32> -> vector<32x3xf32>
      %22 = arith.addf %13, %21 : vector<32x3xf32>
      %c0_i32_24 = arith.constant 0 : i32
      %23 = arith.addi %arg7, %c0_i32_24 : i32
      %c0_i32_25 = arith.constant 0 : i32
      %24 = arith.addi %23, %c0_i32_25 : i32
      %c0_26 = arith.constant 0 : index
      %25 = arith.index_cast %24 : i32 to index
      %c1_27 = arith.constant 1 : index
      %c0_28 = arith.constant 0 : index
      %26 = vector.load %arg1[%c0_26, %25, %c1_27, %c0_28] : memref<1x34x34x8xbf16, #tpu.memory_space<vmem>>, vector<1x1x32x8xbf16>
      %27 = vector.shape_cast %26 : vector<1x1x32x8xbf16> to vector<32x8xbf16>
      %c1_29 = arith.constant 1 : index
      %c0_30 = arith.constant 0 : index
      %c0_31 = arith.constant 0 : index
      %28 = vector.load %arg2[%c1_29, %c0_30, %c0_31] : memref<16x8x3xbf16, #tpu.memory_space<vmem>>, vector<1x8x3xbf16>
      %29 = vector.shape_cast %28 : vector<1x8x3xbf16> to vector<8x3xbf16>
      %cst_32 = arith.constant dense<0.000000e+00> : vector<32x3xf32>
      %30 = tpu.matmul %27, %29, %cst_32 {dimension_numbers = #tpu.dot_dimension_numbers<[1], [0], [0], [1], [0, 0, 1, 1], [], []>} : vector<32x8xbf16>, vector<8x3xbf16>, vector<32x3xf32> -> vector<32x3xf32>
      %31 = arith.addf %22, %30 : vector<32x3xf32>
      %c0_i32_33 = arith.constant 0 : i32
      %32 = arith.addi %arg7, %c0_i32_33 : i32
      %c1_i32_34 = arith.constant 1 : i32
      %33 = arith.addi %32, %c1_i32_34 : i32
      %c0_35 = arith.constant 0 : index
      %34 = arith.index_cast %33 : i32 to index
      %c0_36 = arith.constant 0 : index
      %c0_37 = arith.constant 0 : index
      %35 = vector.load %arg1[%c0_35, %34, %c0_36, %c0_37] : memref<1x34x34x8xbf16, #tpu.memory_space<vmem>>, vector<1x1x32x8xbf16>
      %36 = vector.shape_cast %35 : vector<1x1x32x8xbf16> to vector<32x8xbf16>
      %c2 = arith.constant 2 : index
      %c0_38 = arith.constant 0 : index
      %c0_39 = arith.constant 0 : index
      %37 = vector.load %arg2[%c2, %c0_38, %c0_39] : memref<16x8x3xbf16, #tpu.memory_space<vmem>>, vector<1x8x3xbf16>
      %38 = vector.shape_cast %37 : vector<1x8x3xbf16> to vector<8x3xbf16>
      %cst_40 = arith.constant dense<0.000000e+00> : vector<32x3xf32>
      %39 = tpu.matmul %36, %38, %cst_40 {dimension_numbers = #tpu.dot_dimension_numbers<[1], [0], [0], [1], [0, 0, 1, 1], [], []>} : vector<32x8xbf16>, vector<8x3xbf16>, vector<32x3xf32> -> vector<32x3xf32>
      %40 = arith.addf %31, %39 : vector<32x3xf32>
      %c0_i32_41 = arith.constant 0 : i32
      %41 = arith.addi %arg7, %c0_i32_41 : i32
      %c1_i32_42 = arith.constant 1 : i32
      %42 = arith.addi %41, %c1_i32_42 : i32
      %c0_43 = arith.constant 0 : index
      %43 = arith.index_cast %42 : i32 to index
      %c1_44 = arith.constant 1 : index
      %c0_45 = arith.constant 0 : index
      %44 = vector.load %arg1[%c0_43, %43, %c1_44, %c0_45] : memref<1x34x34x8xbf16, #tpu.memory_space<vmem>>, vector<1x1x32x8xbf16>
      %45 = vector.shape_cast %44 : vector<1x1x32x8xbf16> to vector<32x8xbf16>
      %c3 = arith.constant 3 : index
      %c0_46 = arith.constant 0 : index
      %c0_47 = arith.constant 0 : index
      %46 = vector.load %arg2[%c3, %c0_46, %c0_47] : memref<16x8x3xbf16, #tpu.memory_space<vmem>>, vector<1x8x3xbf16>
      %47 = vector.shape_cast %46 : vector<1x8x3xbf16> to vector<8x3xbf16>
      %cst_48 = arith.constant dense<0.000000e+00> : vector<32x3xf32>
      %48 = tpu.matmul %45, %47, %cst_48 {dimension_numbers = #tpu.dot_dimension_numbers<[1], [0], [0], [1], [0, 0, 1, 1], [], []>} : vector<32x8xbf16>, vector<8x3xbf16>, vector<32x3xf32> -> vector<32x3xf32>
      %49 = arith.addf %40, %48 : vector<32x3xf32>
      %c0_49 = arith.constant 0 : index
      %c0_50 = arith.constant 0 : index
      %50 = vector.load %arg5[%c0_49, %c0_50] : memref<1x3xf32, #tpu.memory_space<vmem>>, vector<1x3xf32>
      %cst_51 = arith.constant dense<0.000000e+00> : vector<3xf32>
      %51 = vector.multi_reduction <add>, %49, %cst_51 [0] : vector<32x3xf32> to vector<3xf32>
      %52 = vector.shape_cast %51 : vector<3xf32> to vector<1x3xf32>
      %53 = arith.addf %50, %52 : vector<1x3xf32>
      %c0_52 = arith.constant 0 : index
      %c0_53 = arith.constant 0 : index
      %54 = vector.load %arg5[%c0_52, %c0_53] : memref<1x3xf32, #tpu.memory_space<vmem>>, vector<1x3xf32>
      tpu.vector_store %arg5[%c0_52, %c0_53], %53 {strides = array<i32>} : memref<1x3xf32, #tpu.memory_space<vmem>>, vector<1x3xf32>,
      %c0_54 = arith.constant 0 : index
      %c0_55 = arith.constant 0 : index
      %55 = vector.load %arg6[%c0_54, %c0_55] : memref<1x3xf32, #tpu.memory_space<vmem>>, vector<1x3xf32>
      %56 = arith.mulf %49, %49 : vector<32x3xf32>
      %cst_56 = arith.constant dense<0.000000e+00> : vector<3xf32>
      %57 = vector.multi_reduction <add>, %56, %cst_56 [0] : vector<32x3xf32> to vector<3xf32>
      %58 = vector.shape_cast %57 : vector<3xf32> to vector<1x3xf32>
      %59 = arith.addf %55, %58 : vector<1x3xf32>
      %c0_57 = arith.constant 0 : index
      %c0_58 = arith.constant 0 : index
      %60 = vector.load %arg6[%c0_57, %c0_58] : memref<1x3xf32, #tpu.memory_space<vmem>>, vector<1x3xf32>
      tpu.vector_store %arg6[%c0_57, %c0_58], %59 {strides = array<i32>} : memref<1x3xf32, #tpu.memory_space<vmem>>, vector<1x3xf32>,
      %61 = math.tanh %49 : vector<32x3xf32>
      %c0_59 = arith.constant 0 : index
      %62 = arith.index_cast %arg7 : i32 to index
      %c0_60 = arith.constant 0 : index
      %c0_61 = arith.constant 0 : index
      %c0_62 = arith.constant 0 : index
      %63 = vector.load %arg3[%c0_59, %62, %c0_60, %c0_61, %c0_62] : memref<1x32x2x32x6xf32, #tpu.memory_space<vmem>>, vector<1x1x1x32x3xf32>
      %64 = vector.shape_cast %63 : vector<1x1x1x32x3xf32> to vector<32x3xf32>
      %65 = vector.shape_cast %61 : vector<32x3xf32> to vector<1x1x1x32x3xf32>
      tpu.vector_store %arg3[%c0_59, %62, %c0_60, %c0_61, %c0_62], %65 {strides = array<i32>} : memref<1x32x2x32x6xf32, #tpu.memory_space<vmem>>, vector<1x1x1x32x3xf32>,
      %cst_63 = arith.constant 0.000000e+00 : f32
      %66 = vector.broadcast %cst_63 : f32 to vector<32x3xf32>
      %c0_i32_64 = arith.constant 0 : i32
      %67 = arith.addi %arg7, %c0_i32_64 : i32
      %c0_i32_65 = arith.constant 0 : i32
      %68 = arith.addi %67, %c0_i32_65 : i32
      %c0_66 = arith.constant 0 : index
      %69 = arith.index_cast %68 : i32 to index
      %c1_67 = arith.constant 1 : index
      %c0_68 = arith.constant 0 : index
      %70 = vector.load %arg1[%c0_66, %69, %c1_67, %c0_68] : memref<1x34x34x8xbf16, #tpu.memory_space<vmem>>, vector<1x1x32x8xbf16>
      %71 = vector.shape_cast %70 : vector<1x1x32x8xbf16> to vector<32x8xbf16>
      %c4 = arith.constant 4 : index
      %c0_69 = arith.constant 0 : index
      %c0_70 = arith.constant 0 : index
      %72 = vector.load %arg2[%c4, %c0_69, %c0_70] : memref<16x8x3xbf16, #tpu.memory_space<vmem>>, vector<1x8x3xbf16>
      %73 = vector.shape_cast %72 : vector<1x8x3xbf16> to vector<8x3xbf16>
      %cst_71 = arith.constant dense<0.000000e+00> : vector<32x3xf32>
      %74 = tpu.matmul %71, %73, %cst_71 {dimension_numbers = #tpu.dot_dimension_numbers<[1], [0], [0], [1], [0, 0, 1, 1], [], []>} : vector<32x8xbf16>, vector<8x3xbf16>, vector<32x3xf32> -> vector<32x3xf32>
      %75 = arith.addf %66, %74 : vector<32x3xf32>
      %c0_i32_72 = arith.constant 0 : i32
      %76 = arith.addi %arg7, %c0_i32_72 : i32
      %c0_i32_73 = arith.constant 0 : i32
      %77 = arith.addi %76, %c0_i32_73 : i32
      %c0_74 = arith.constant 0 : index
      %78 = arith.index_cast %77 : i32 to index
      %c2_75 = arith.constant 2 : index
      %c0_76 = arith.constant 0 : index
      %79 = vector.load %arg1[%c0_74, %78, %c2_75, %c0_76] : memref<1x34x34x8xbf16, #tpu.memory_space<vmem>>, vector<1x1x32x8xbf16>
      %80 = vector.shape_cast %79 : vector<1x1x32x8xbf16> to vector<32x8xbf16>
      %c5 = arith.constant 5 : index
      %c0_77 = arith.constant 0 : index
      %c0_78 = arith.constant 0 : index
      %81 = vector.load %arg2[%c5, %c0_77, %c0_78] : memref<16x8x3xbf16, #tpu.memory_space<vmem>>, vector<1x8x3xbf16>
      %82 = vector.shape_cast %81 : vector<1x8x3xbf16> to vector<8x3xbf16>
      %cst_79 = arith.constant dense<0.000000e+00> : vector<32x3xf32>
      %83 = tpu.matmul %80, %82, %cst_79 {dimension_numbers = #tpu.dot_dimension_numbers<[1], [0], [0], [1], [0, 0, 1, 1], [], []>} : vector<32x8xbf16>, vector<8x3xbf16>, vector<32x3xf32> -> vector<32x3xf32>
      %84 = arith.addf %75, %83 : vector<32x3xf32>
      %c0_i32_80 = arith.constant 0 : i32
      %85 = arith.addi %arg7, %c0_i32_80 : i32
      %c1_i32_81 = arith.constant 1 : i32
      %86 = arith.addi %85, %c1_i32_81 : i32
      %c0_82 = arith.constant 0 : index
      %87 = arith.index_cast %86 : i32 to index
      %c1_83 = arith.constant 1 : index
      %c0_84 = arith.constant 0 : index
      %88 = vector.load %arg1[%c0_82, %87, %c1_83, %c0_84] : memref<1x34x34x8xbf16, #tpu.memory_space<vmem>>, vector<1x1x32x8xbf16>
      %89 = vector.shape_cast %88 : vector<1x1x32x8xbf16> to vector<32x8xbf16>
      %c6 = arith.constant 6 : index
      %c0_85 = arith.constant 0 : index
      %c0_86 = arith.constant 0 : index
      %90 = vector.load %arg2[%c6, %c0_85, %c0_86] : memref<16x8x3xbf16, #tpu.memory_space<vmem>>, vector<1x8x3xbf16>
      %91 = vector.shape_cast %90 : vector<1x8x3xbf16> to vector<8x3xbf16>
      %cst_87 = arith.constant dense<0.000000e+00> : vector<32x3xf32>
      %92 = tpu.matmul %89, %91, %cst_87 {dimension_numbers = #tpu.dot_dimension_numbers<[1], [0], [0], [1], [0, 0, 1, 1], [], []>} : vector<32x8xbf16>, vector<8x3xbf16>, vector<32x3xf32> -> vector<32x3xf32>
      %93 = arith.addf %84, %92 : vector<32x3xf32>
      %c0_i32_88 = arith.constant 0 : i32
      %94 = arith.addi %arg7, %c0_i32_88 : i32
      %c1_i32_89 = arith.constant 1 : i32
      %95 = arith.addi %94, %c1_i32_89 : i32
      %c0_90 = arith.constant 0 : index
      %96 = arith.index_cast %95 : i32 to index
      %c2_91 = arith.constant 2 : index
      %c0_92 = arith.constant 0 : index
      %97 = vector.load %arg1[%c0_90, %96, %c2_91, %c0_92] : memref<1x34x34x8xbf16, #tpu.memory_space<vmem>>, vector<1x1x32x8xbf16>
      %98 = vector.shape_cast %97 : vector<1x1x32x8xbf16> to vector<32x8xbf16>
      %c7 = arith.constant 7 : index
      %c0_93 = arith.constant 0 : index
      %c0_94 = arith.constant 0 : index
      %99 = vector.load %arg2[%c7, %c0_93, %c0_94] : memref<16x8x3xbf16, #tpu.memory_space<vmem>>, vector<1x8x3xbf16>
      %100 = vector.shape_cast %99 : vector<1x8x3xbf16> to vector<8x3xbf16>
      %cst_95 = arith.constant dense<0.000000e+00> : vector<32x3xf32>
      %101 = tpu.matmul %98, %100, %cst_95 {dimension_numbers = #tpu.dot_dimension_numbers<[1], [0], [0], [1], [0, 0, 1, 1], [], []>} : vector<32x8xbf16>, vector<8x3xbf16>, vector<32x3xf32> -> vector<32x3xf32>
      %102 = arith.addf %93, %101 : vector<32x3xf32>
      %c0_96 = arith.constant 0 : index
      %c0_97 = arith.constant 0 : index
      %103 = vector.load %arg5[%c0_96, %c0_97] : memref<1x3xf32, #tpu.memory_space<vmem>>, vector<1x3xf32>
      %cst_98 = arith.constant dense<0.000000e+00> : vector<3xf32>
      %104 = vector.multi_reduction <add>, %102, %cst_98 [0] : vector<32x3xf32> to vector<3xf32>
      %105 = vector.shape_cast %104 : vector<3xf32> to vector<1x3xf32>
      %106 = arith.addf %103, %105 : vector<1x3xf32>
      %c0_99 = arith.constant 0 : index
      %c0_100 = arith.constant 0 : index
      %107 = vector.load %arg5[%c0_99, %c0_100] : memref<1x3xf32, #tpu.memory_space<vmem>>, vector<1x3xf32>
      tpu.vector_store %arg5[%c0_99, %c0_100], %106 {strides = array<i32>} : memref<1x3xf32, #tpu.memory_space<vmem>>, vector<1x3xf32>,
      %c0_101 = arith.constant 0 : index
      %c0_102 = arith.constant 0 : index
      %108 = vector.load %arg6[%c0_101, %c0_102] : memref<1x3xf32, #tpu.memory_space<vmem>>, vector<1x3xf32>
      %109 = arith.mulf %102, %102 : vector<32x3xf32>
      %cst_103 = arith.constant dense<0.000000e+00> : vector<3xf32>
      %110 = vector.multi_reduction <add>, %109, %cst_103 [0] : vector<32x3xf32> to vector<3xf32>
      %111 = vector.shape_cast %110 : vector<3xf32> to vector<1x3xf32>
      %112 = arith.addf %108, %111 : vector<1x3xf32>
      %c0_104 = arith.constant 0 : index
      %c0_105 = arith.constant 0 : index
      %113 = vector.load %arg6[%c0_104, %c0_105] : memref<1x3xf32, #tpu.memory_space<vmem>>, vector<1x3xf32>
      tpu.vector_store %arg6[%c0_104, %c0_105], %112 {strides = array<i32>} : memref<1x3xf32, #tpu.memory_space<vmem>>, vector<1x3xf32>,
      %114 = math.tanh %102 : vector<32x3xf32>
      %c0_106 = arith.constant 0 : index
      %115 = arith.index_cast %arg7 : i32 to index
      %c0_107 = arith.constant 0 : index
      %c0_108 = arith.constant 0 : index
      %c3_109 = arith.constant 3 : index
      %116 = vector.load %arg3[%c0_106, %115, %c0_107, %c0_108, %c3_109] : memref<1x32x2x32x6xf32, #tpu.memory_space<vmem>>, vector<1x1x1x32x3xf32>
      %117 = vector.shape_cast %116 : vector<1x1x1x32x3xf32> to vector<32x3xf32>
      %118 = vector.shape_cast %114 : vector<32x3xf32> to vector<1x1x1x32x3xf32>
      tpu.vector_store %arg3[%c0_106, %115, %c0_107, %c0_108, %c3_109], %118 {strides = array<i32>} : memref<1x32x2x32x6xf32, #tpu.memory_space<vmem>>, vector<1x1x1x32x3xf32>,
      %cst_110 = arith.constant 0.000000e+00 : f32
      %119 = vector.broadcast %cst_110 : f32 to vector<32x3xf32>
      %c1_i32_111 = arith.constant 1 : i32
      %120 = arith.addi %arg7, %c1_i32_111 : i32
      %c0_i32_112 = arith.constant 0 : i32
      %121 = arith.addi %120, %c0_i32_112 : i32
      %c0_113 = arith.constant 0 : index
      %122 = arith.index_cast %121 : i32 to index
      %c0_114 = arith.constant 0 : index
      %c0_115 = arith.constant 0 : index
      %123 = vector.load %arg1[%c0_113, %122, %c0_114, %c0_115] : memref<1x34x34x8xbf16, #tpu.memory_space<vmem>>, vector<1x1x32x8xbf16>
      %124 = vector.shape_cast %123 : vector<1x1x32x8xbf16> to vector<32x8xbf16>
      %c8 = arith.constant 8 : index
      %c0_116 = arith.constant 0 : index
      %c0_117 = arith.constant 0 : index
      %125 = vector.load %arg2[%c8, %c0_116, %c0_117] : memref<16x8x3xbf16, #tpu.memory_space<vmem>>, vector<1x8x3xbf16>
      %126 = vector.shape_cast %125 : vector<1x8x3xbf16> to vector<8x3xbf16>
      %cst_118 = arith.constant dense<0.000000e+00> : vector<32x3xf32>
      %127 = tpu.matmul %124, %126, %cst_118 {dimension_numbers = #tpu.dot_dimension_numbers<[1], [0], [0], [1], [0, 0, 1, 1], [], []>} : vector<32x8xbf16>, vector<8x3xbf16>, vector<32x3xf32> -> vector<32x3xf32>
      %128 = arith.addf %119, %127 : vector<32x3xf32>
      %c1_i32_119 = arith.constant 1 : i32
      %129 = arith.addi %arg7, %c1_i32_119 : i32
      %c0_i32_120 = arith.constant 0 : i32
      %130 = arith.addi %129, %c0_i32_120 : i32
      %c0_121 = arith.constant 0 : index
      %131 = arith.index_cast %130 : i32 to index
      %c1_122 = arith.constant 1 : index
      %c0_123 = arith.constant 0 : index
      %132 = vector.load %arg1[%c0_121, %131, %c1_122, %c0_123] : memref<1x34x34x8xbf16, #tpu.memory_space<vmem>>, vector<1x1x32x8xbf16>
      %133 = vector.shape_cast %132 : vector<1x1x32x8xbf16> to vector<32x8xbf16>
      %c9 = arith.constant 9 : index
      %c0_124 = arith.constant 0 : index
      %c0_125 = arith.constant 0 : index
      %134 = vector.load %arg2[%c9, %c0_124, %c0_125] : memref<16x8x3xbf16, #tpu.memory_space<vmem>>, vector<1x8x3xbf16>
      %135 = vector.shape_cast %134 : vector<1x8x3xbf16> to vector<8x3xbf16>
      %cst_126 = arith.constant dense<0.000000e+00> : vector<32x3xf32>
      %136 = tpu.matmul %133, %135, %cst_126 {dimension_numbers = #tpu.dot_dimension_numbers<[1], [0], [0], [1], [0, 0, 1, 1], [], []>} : vector<32x8xbf16>, vector<8x3xbf16>, vector<32x3xf32> -> vector<32x3xf32>
      %137 = arith.addf %128, %136 : vector<32x3xf32>
      %c1_i32_127 = arith.constant 1 : i32
      %138 = arith.addi %arg7, %c1_i32_127 : i32
      %c1_i32_128 = arith.constant 1 : i32
      %139 = arith.addi %138, %c1_i32_128 : i32
      %c0_129 = arith.constant 0 : index
      %140 = arith.index_cast %139 : i32 to index
      %c0_130 = arith.constant 0 : index
      %c0_131 = arith.constant 0 : index
      %141 = vector.load %arg1[%c0_129, %140, %c0_130, %c0_131] : memref<1x34x34x8xbf16, #tpu.memory_space<vmem>>, vector<1x1x32x8xbf16>
      %142 = vector.shape_cast %141 : vector<1x1x32x8xbf16> to vector<32x8xbf16>
      %c10 = arith.constant 10 : index
      %c0_132 = arith.constant 0 : index
      %c0_133 = arith.constant 0 : index
      %143 = vector.load %arg2[%c10, %c0_132, %c0_133] : memref<16x8x3xbf16, #tpu.memory_space<vmem>>, vector<1x8x3xbf16>
      %144 = vector.shape_cast %143 : vector<1x8x3xbf16> to vector<8x3xbf16>
      %cst_134 = arith.constant dense<0.000000e+00> : vector<32x3xf32>
      %145 = tpu.matmul %142, %144, %cst_134 {dimension_numbers = #tpu.dot_dimension_numbers<[1], [0], [0], [1], [0, 0, 1, 1], [], []>} : vector<32x8xbf16>, vector<8x3xbf16>, vector<32x3xf32> -> vector<32x3xf32>
      %146 = arith.addf %137, %145 : vector<32x3xf32>
      %c1_i32_135 = arith.constant 1 : i32
      %147 = arith.addi %arg7, %c1_i32_135 : i32
      %c1_i32_136 = arith.constant 1 : i32
      %148 = arith.addi %147, %c1_i32_136 : i32
      %c0_137 = arith.constant 0 : index
      %149 = arith.index_cast %148 : i32 to index
      %c1_138 = arith.constant 1 : index
      %c0_139 = arith.constant 0 : index
      %150 = vector.load %arg1[%c0_137, %149, %c1_138, %c0_139] : memref<1x34x34x8xbf16, #tpu.memory_space<vmem>>, vector<1x1x32x8xbf16>
      %151 = vector.shape_cast %150 : vector<1x1x32x8xbf16> to vector<32x8xbf16>
      %c11 = arith.constant 11 : index
      %c0_140 = arith.constant 0 : index
      %c0_141 = arith.constant 0 : index
      %152 = vector.load %arg2[%c11, %c0_140, %c0_141] : memref<16x8x3xbf16, #tpu.memory_space<vmem>>, vector<1x8x3xbf16>
      %153 = vector.shape_cast %152 : vector<1x8x3xbf16> to vector<8x3xbf16>
      %cst_142 = arith.constant dense<0.000000e+00> : vector<32x3xf32>
      %154 = tpu.matmul %151, %153, %cst_142 {dimension_numbers = #tpu.dot_dimension_numbers<[1], [0], [0], [1], [0, 0, 1, 1], [], []>} : vector<32x8xbf16>, vector<8x3xbf16>, vector<32x3xf32> -> vector<32x3xf32>
      %155 = arith.addf %146, %154 : vector<32x3xf32>
      %c0_143 = arith.constant 0 : index
      %c0_144 = arith.constant 0 : index
      %156 = vector.load %arg5[%c0_143, %c0_144] : memref<1x3xf32, #tpu.memory_space<vmem>>, vector<1x3xf32>
      %cst_145 = arith.constant dense<0.000000e+00> : vector<3xf32>
      %157 = vector.multi_reduction <add>, %155, %cst_145 [0] : vector<32x3xf32> to vector<3xf32>
      %158 = vector.shape_cast %157 : vector<3xf32> to vector<1x3xf32>
      %159 = arith.addf %156, %158 : vector<1x3xf32>
      %c0_146 = arith.constant 0 : index
      %c0_147 = arith.constant 0 : index
      %160 = vector.load %arg5[%c0_146, %c0_147] : memref<1x3xf32, #tpu.memory_space<vmem>>, vector<1x3xf32>
      tpu.vector_store %arg5[%c0_146, %c0_147], %159 {strides = array<i32>} : memref<1x3xf32, #tpu.memory_space<vmem>>, vector<1x3xf32>,
      %c0_148 = arith.constant 0 : index
      %c0_149 = arith.constant 0 : index
      %161 = vector.load %arg6[%c0_148, %c0_149] : memref<1x3xf32, #tpu.memory_space<vmem>>, vector<1x3xf32>
      %162 = arith.mulf %155, %155 : vector<32x3xf32>
      %cst_150 = arith.constant dense<0.000000e+00> : vector<3xf32>
      %163 = vector.multi_reduction <add>, %162, %cst_150 [0] : vector<32x3xf32> to vector<3xf32>
      %164 = vector.shape_cast %163 : vector<3xf32> to vector<1x3xf32>
      %165 = arith.addf %161, %164 : vector<1x3xf32>
      %c0_151 = arith.constant 0 : index
      %c0_152 = arith.constant 0 : index
      %166 = vector.load %arg6[%c0_151, %c0_152] : memref<1x3xf32, #tpu.memory_space<vmem>>, vector<1x3xf32>
      tpu.vector_store %arg6[%c0_151, %c0_152], %165 {strides = array<i32>} : memref<1x3xf32, #tpu.memory_space<vmem>>, vector<1x3xf32>,
      %167 = math.tanh %155 : vector<32x3xf32>
      %c0_153 = arith.constant 0 : index
      %168 = arith.index_cast %arg7 : i32 to index
      %c1_154 = arith.constant 1 : index
      %c0_155 = arith.constant 0 : index
      %c0_156 = arith.constant 0 : index
      %169 = vector.load %arg3[%c0_153, %168, %c1_154, %c0_155, %c0_156] : memref<1x32x2x32x6xf32, #tpu.memory_space<vmem>>, vector<1x1x1x32x3xf32>
      %170 = vector.shape_cast %169 : vector<1x1x1x32x3xf32> to vector<32x3xf32>
      %171 = vector.shape_cast %167 : vector<32x3xf32> to vector<1x1x1x32x3xf32>
      tpu.vector_store %arg3[%c0_153, %168, %c1_154, %c0_155, %c0_156], %171 {strides = array<i32>} : memref<1x32x2x32x6xf32, #tpu.memory_space<vmem>>, vector<1x1x1x32x3xf32>,
      %cst_157 = arith.constant 0.000000e+00 : f32
      %172 = vector.broadcast %cst_157 : f32 to vector<32x3xf32>
      %c1_i32_158 = arith.constant 1 : i32
      %173 = arith.addi %arg7, %c1_i32_158 : i32
      %c0_i32_159 = arith.constant 0 : i32
      %174 = arith.addi %173, %c0_i32_159 : i32
      %c0_160 = arith.constant 0 : index
      %175 = arith.index_cast %174 : i32 to index
      %c1_161 = arith.constant 1 : index
      %c0_162 = arith.constant 0 : index
      %176 = vector.load %arg1[%c0_160, %175, %c1_161, %c0_162] : memref<1x34x34x8xbf16, #tpu.memory_space<vmem>>, vector<1x1x32x8xbf16>
      %177 = vector.shape_cast %176 : vector<1x1x32x8xbf16> to vector<32x8xbf16>
      %c12 = arith.constant 12 : index
      %c0_163 = arith.constant 0 : index
      %c0_164 = arith.constant 0 : index
      %178 = vector.load %arg2[%c12, %c0_163, %c0_164] : memref<16x8x3xbf16, #tpu.memory_space<vmem>>, vector<1x8x3xbf16>
      %179 = vector.shape_cast %178 : vector<1x8x3xbf16> to vector<8x3xbf16>
      %cst_165 = arith.constant dense<0.000000e+00> : vector<32x3xf32>
      %180 = tpu.matmul %177, %179, %cst_165 {dimension_numbers = #tpu.dot_dimension_numbers<[1], [0], [0], [1], [0, 0, 1, 1], [], []>} : vector<32x8xbf16>, vector<8x3xbf16>, vector<32x3xf32> -> vector<32x3xf32>
      %181 = arith.addf %172, %180 : vector<32x3xf32>
      %c1_i32_166 = arith.constant 1 : i32
      %182 = arith.addi %arg7, %c1_i32_166 : i32
      %c0_i32_167 = arith.constant 0 : i32
      %183 = arith.addi %182, %c0_i32_167 : i32
      %c0_168 = arith.constant 0 : index
      %184 = arith.index_cast %183 : i32 to index
      %c2_169 = arith.constant 2 : index
      %c0_170 = arith.constant 0 : index
      %185 = vector.load %arg1[%c0_168, %184, %c2_169, %c0_170] : memref<1x34x34x8xbf16, #tpu.memory_space<vmem>>, vector<1x1x32x8xbf16>
      %186 = vector.shape_cast %185 : vector<1x1x32x8xbf16> to vector<32x8xbf16>
      %c13 = arith.constant 13 : index
      %c0_171 = arith.constant 0 : index
      %c0_172 = arith.constant 0 : index
      %187 = vector.load %arg2[%c13, %c0_171, %c0_172] : memref<16x8x3xbf16, #tpu.memory_space<vmem>>, vector<1x8x3xbf16>
      %188 = vector.shape_cast %187 : vector<1x8x3xbf16> to vector<8x3xbf16>
      %cst_173 = arith.constant dense<0.000000e+00> : vector<32x3xf32>
      %189 = tpu.matmul %186, %188, %cst_173 {dimension_numbers = #tpu.dot_dimension_numbers<[1], [0], [0], [1], [0, 0, 1, 1], [], []>} : vector<32x8xbf16>, vector<8x3xbf16>, vector<32x3xf32> -> vector<32x3xf32>
      %190 = arith.addf %181, %189 : vector<32x3xf32>
      %c1_i32_174 = arith.constant 1 : i32
      %191 = arith.addi %arg7, %c1_i32_174 : i32
      %c1_i32_175 = arith.constant 1 : i32
      %192 = arith.addi %191, %c1_i32_175 : i32
      %c0_176 = arith.constant 0 : index
      %193 = arith.index_cast %192 : i32 to index
      %c1_177 = arith.constant 1 : index
      %c0_178 = arith.constant 0 : index
      %194 = vector.load %arg1[%c0_176, %193, %c1_177, %c0_178] : memref<1x34x34x8xbf16, #tpu.memory_space<vmem>>, vector<1x1x32x8xbf16>
      %195 = vector.shape_cast %194 : vector<1x1x32x8xbf16> to vector<32x8xbf16>
      %c14 = arith.constant 14 : index
      %c0_179 = arith.constant 0 : index
      %c0_180 = arith.constant 0 : index
      %196 = vector.load %arg2[%c14, %c0_179, %c0_180] : memref<16x8x3xbf16, #tpu.memory_space<vmem>>, vector<1x8x3xbf16>
      %197 = vector.shape_cast %196 : vector<1x8x3xbf16> to vector<8x3xbf16>
      %cst_181 = arith.constant dense<0.000000e+00> : vector<32x3xf32>
      %198 = tpu.matmul %195, %197, %cst_181 {dimension_numbers = #tpu.dot_dimension_numbers<[1], [0], [0], [1], [0, 0, 1, 1], [], []>} : vector<32x8xbf16>, vector<8x3xbf16>, vector<32x3xf32> -> vector<32x3xf32>
      %199 = arith.addf %190, %198 : vector<32x3xf32>
      %c1_i32_182 = arith.constant 1 : i32
      %200 = arith.addi %arg7, %c1_i32_182 : i32
      %c1_i32_183 = arith.constant 1 : i32
      %201 = arith.addi %200, %c1_i32_183 : i32
      %c0_184 = arith.constant 0 : index
      %202 = arith.index_cast %201 : i32 to index
      %c2_185 = arith.constant 2 : index
      %c0_186 = arith.constant 0 : index
      %203 = vector.load %arg1[%c0_184, %202, %c2_185, %c0_186] : memref<1x34x34x8xbf16, #tpu.memory_space<vmem>>, vector<1x1x32x8xbf16>
      %204 = vector.shape_cast %203 : vector<1x1x32x8xbf16> to vector<32x8xbf16>
      %c15 = arith.constant 15 : index
      %c0_187 = arith.constant 0 : index
      %c0_188 = arith.constant 0 : index
      %205 = vector.load %arg2[%c15, %c0_187, %c0_188] : memref<16x8x3xbf16, #tpu.memory_space<vmem>>, vector<1x8x3xbf16>
      %206 = vector.shape_cast %205 : vector<1x8x3xbf16> to vector<8x3xbf16>
      %cst_189 = arith.constant dense<0.000000e+00> : vector<32x3xf32>
      %207 = tpu.matmul %204, %206, %cst_189 {dimension_numbers = #tpu.dot_dimension_numbers<[1], [0], [0], [1], [0, 0, 1, 1], [], []>} : vector<32x8xbf16>, vector<8x3xbf16>, vector<32x3xf32> -> vector<32x3xf32>
      %208 = arith.addf %199, %207 : vector<32x3xf32>
      %c0_190 = arith.constant 0 : index
      %c0_191 = arith.constant 0 : index
      %209 = vector.load %arg5[%c0_190, %c0_191] : memref<1x3xf32, #tpu.memory_space<vmem>>, vector<1x3xf32>
      %cst_192 = arith.constant dense<0.000000e+00> : vector<3xf32>
      %210 = vector.multi_reduction <add>, %208, %cst_192 [0] : vector<32x3xf32> to vector<3xf32>
      %211 = vector.shape_cast %210 : vector<3xf32> to vector<1x3xf32>
      %212 = arith.addf %209, %211 : vector<1x3xf32>
      %c0_193 = arith.constant 0 : index
      %c0_194 = arith.constant 0 : index
      %213 = vector.load %arg5[%c0_193, %c0_194] : memref<1x3xf32, #tpu.memory_space<vmem>>, vector<1x3xf32>
      tpu.vector_store %arg5[%c0_193, %c0_194], %212 {strides = array<i32>} : memref<1x3xf32, #tpu.memory_space<vmem>>, vector<1x3xf32>,
      %c0_195 = arith.constant 0 : index
      %c0_196 = arith.constant 0 : index
      %214 = vector.load %arg6[%c0_195, %c0_196] : memref<1x3xf32, #tpu.memory_space<vmem>>, vector<1x3xf32>
      %215 = arith.mulf %208, %208 : vector<32x3xf32>
      %cst_197 = arith.constant dense<0.000000e+00> : vector<3xf32>
      %216 = vector.multi_reduction <add>, %215, %cst_197 [0] : vector<32x3xf32> to vector<3xf32>
      %217 = vector.shape_cast %216 : vector<3xf32> to vector<1x3xf32>
      %218 = arith.addf %214, %217 : vector<1x3xf32>
      %c0_198 = arith.constant 0 : index
      %c0_199 = arith.constant 0 : index
      %219 = vector.load %arg6[%c0_198, %c0_199] : memref<1x3xf32, #tpu.memory_space<vmem>>, vector<1x3xf32>
      tpu.vector_store %arg6[%c0_198, %c0_199], %218 {strides = array<i32>} : memref<1x3xf32, #tpu.memory_space<vmem>>, vector<1x3xf32>,
      %220 = math.tanh %208 : vector<32x3xf32>
      %c0_200 = arith.constant 0 : index
      %221 = arith.index_cast %arg7 : i32 to index
      %c1_201 = arith.constant 1 : index
      %c0_202 = arith.constant 0 : index
      %c3_203 = arith.constant 3 : index
      %222 = vector.load %arg3[%c0_200, %221, %c1_201, %c0_202, %c3_203] : memref<1x32x2x32x6xf32, #tpu.memory_space<vmem>>, vector<1x1x1x32x3xf32>
      %223 = vector.shape_cast %222 : vector<1x1x1x32x3xf32> to vector<32x3xf32>
      %224 = vector.shape_cast %220 : vector<32x3xf32> to vector<1x1x1x32x3xf32>
      tpu.vector_store %arg3[%c0_200, %221, %c1_201, %c0_202, %c3_203], %224 {strides = array<i32>} : memref<1x32x2x32x6xf32, #tpu.memory_space<vmem>>, vector<1x1x1x32x3xf32>,
    }
    %c32_i32_4 = arith.constant 32 : i32
    %c0_5 = arith.constant 0 : index
    %c0_6 = arith.constant 0 : index
    %5 = vector.load %arg5[%c0_5, %c0_6] : memref<1x3xf32, #tpu.memory_space<vmem>>, vector<1x3xf32>
    %c0_7 = arith.constant 0 : index
    %c0_8 = arith.constant 0 : index
    %c0_9 = arith.constant 0 : index
    %6 = vector.load %arg4[%c0_7, %c0_8, %c0_9] : memref<1x2x3xf32, #tpu.memory_space<vmem>>, vector<1x1x3xf32>
    %7 = vector.shape_cast %6 : vector<1x1x3xf32> to vector<1x3xf32>
    %8 = vector.shape_cast %5 : vector<1x3xf32> to vector<1x1x3xf32>
    tpu.vector_store %arg4[%c0_7, %c0_8, %c0_9], %8 {strides = array<i32>} : memref<1x2x3xf32, #tpu.memory_space<vmem>>, vector<1x1x3xf32>,
    %c0_10 = arith.constant 0 : index
    %c0_11 = arith.constant 0 : index
    %9 = vector.load %arg6[%c0_10, %c0_11] : memref<1x3xf32, #tpu.memory_space<vmem>>, vector<1x3xf32>
    %c0_12 = arith.constant 0 : index
    %c1 = arith.constant 1 : index
    %c0_13 = arith.constant 0 : index
    %10 = vector.load %arg4[%c0_12, %c1, %c0_13] : memref<1x2x3xf32, #tpu.memory_space<vmem>>, vector<1x1x3xf32>
    %11 = vector.shape_cast %10 : vector<1x1x3xf32> to vector<1x3xf32>
    %12 = vector.shape_cast %9 : vector<1x3xf32> to vector<1x1x3xf32>
    tpu.vector_store %arg4[%c0_12, %c1, %c0_13], %12 {strides = array<i32>} : memref<1x2x3xf32, #tpu.memory_space<vmem>>, vector<1x1x3xf32>,
    return
  }
  func.func @transform_0(%arg0: i32) -> (i32, i32, i32, i32) {
    %c0_i32 = arith.constant 0 : i32
    %c0_i32_0 = arith.constant 0 : i32
    %c0_i32_1 = arith.constant 0 : i32
    %c0_i32_2 = arith.constant 0 : i32
    return %arg0, %c0_i32, %c0_i32_0, %c0_i32_1 : i32, i32, i32, i32
  }
  func.func @transform_1(%arg0: i32) -> (i32, i32, i32) {
    %c0_i32 = arith.constant 0 : i32
    %c0_i32_0 = arith.constant 0 : i32
    %c0_i32_1 = arith.constant 0 : i32
    %c0_i32_2 = arith.constant 0 : i32
    return %c0_i32, %c0_i32_0, %c0_i32_1 : i32, i32, i32
  }
  func.func @transform_2(%arg0: i32) -> (i32, i32, i32, i32, i32) {
    %c0_i32 = arith.constant 0 : i32
    %c0_i32_0 = arith.constant 0 : i32
    %c0_i32_1 = arith.constant 0 : i32
    %c0_i32_2 = arith.constant 0 : i32
    %c0_i32_3 = arith.constant 0 : i32
    return %arg0, %c0_i32, %c0_i32_0, %c0_i32_1, %c0_i32_2 : i32, i32, i32, i32, i32
  }
  func.func @transform_3(%arg0: i32) -> (i32, i32, i32) {
    %c0_i32 = arith.constant 0 : i32
    %c0_i32_0 = arith.constant 0 : i32
    %c0_i32_1 = arith.constant 0 : i32
    return %arg0, %c0_i32, %c0_i32_0 : i32, i32, i32
  }
}

</mosaic_0001>

<llo_original>
// kernel: generator_forward.14
$region0: #{generator_forward.14}
  #allocation0 [shape = 'u32[]', space=smem, size = 0x4, offset = 0x4, fixed_abs, tag = 'smem constant byte address 0x4 - core index']
  #allocation1 [shape = 'u32[144,128]{1,0:T(1,128)}', space=vmem, size = 0x12000, scoped, tag = 'internal scratch']
  %s0 = inlined_call_operand.vmem [shape: bf16[32,64], index: 0, kind: input, shape index: {}]
  %s1 = inlined_call_operand.hbm [shape: f32[1,64], index: 1, kind: input, shape index: {}]
  %s2 = inlined_call_operand.hbm [shape: f32[1,64], index: 2, kind: input, shape index: {}]
  %s3 = inlined_call_operand.vmem [shape: f32[2,64], index: 3, kind: output, shape index: {}]
  %s4 = sld [smem:[#allocation0]]
  $region30: #{generator_forward.14} parent=0
    _
  %s6 = ssub.s32 1, %s4
  %s7 = scalar_select 0, %s6, %s4
  $region1: #{generator_forward.14} parent=0
    #allocation2 [shape = 'u8[512]{0}', space=vmem, size = 0x400, scoped, tag = 'input window, operand 1, single buffered']
    #allocation3 [shape = 's32[1]{0}', space=sflag, size = 0x4, scoped, tag = 'scoped memory for generator_forward.14']
    #allocation4 [shape = 'u8[512]{0}', space=vmem, size = 0x400, scoped, tag = 'input window, operand 2, single buffered']
    #allocation5 [shape = 's32[1]{0}', space=sflag, size = 0x4, scoped, tag = 'scoped memory for generator_forward.14']
    %8 = vsyncpa [#allocation3], 0
    %9 = vsyncpa [#allocation5], 0
    // Predicated region
    $region2: #{generator_forward.14} parent=1 // pred_check
      _
    $region3: #{generator_forward.14} parent=1 // pred_check_branch
      %11 = sbr.rel (0) target = $region5
    $region4: #{generator_forward.14} parent=1 // pred_region
      _
    $region5: #{generator_forward.14} parent=1 // pred_fallthru
      _
    // Predicated region
    $region6: #{generator_forward.14} parent=1 // pred_check
      _
    $region7: #{generator_forward.14} parent=1 // pred_check_branch
      %13 = sbr.rel (0) target = $region9
    $region8: #{generator_forward.14} parent=1 // pred_region
      %s15 = ssub.s32 16, 16
      %16 = vsyncadd [#allocation3], %s15
      %s18 = sshll.u32 [#allocation2], 4
      %s19 = int_to_ptr.vmem [resolvable:$true] %s18
      %21 = dma.hbm_to_vmem [thread:$0]  %s1, 16, %s19, [#allocation3]
    $region9: #{generator_forward.14} parent=1 // pred_fallthru
      _
    // Predicated region
    $region10: #{generator_forward.14} parent=1 // pred_check
      _
    $region11: #{generator_forward.14} parent=1 // pred_check_branch
      %23 = sbr.rel (0) target = $region13
    $region12: #{generator_forward.14} parent=1 // pred_region
      %s25 = ssub.s32 16, 16
      %26 = vsyncadd [#allocation5], %s25
      %s28 = sshll.u32 [#allocation4], 4
      %s29 = int_to_ptr.vmem [resolvable:$true] %s28
      %31 = dma.hbm_to_vmem [thread:$0]  %s2, 16, %s29, [#allocation5]
    $region13: #{generator_forward.14} parent=1 // pred_fallthru
      _
    // Predicated region
    $region14: #{generator_forward.14} parent=1 // pred_check
      _
    $region15: #{generator_forward.14} parent=1 // pred_check_branch
      %33 = sbr.rel (0) target = $region17
    $region16: #{generator_forward.14} parent=1 // pred_region
      %34 = dma.done [#allocation3], 16
    $region17: #{generator_forward.14} parent=1 // pred_fallthru
      _
    // Predicated region
    $region18: #{generator_forward.14} parent=1 // pred_check
      _
    $region19: #{generator_forward.14} parent=1 // pred_check_branch
      %36 = sbr.rel (0) target = $region21
    $region20: #{generator_forward.14} parent=1 // pred_region
      %37 = dma.done [#allocation5], 16
    $region21: #{generator_forward.14} parent=1 // pred_fallthru
      _
    %v38 = vld [vmem:[%s0] sm:$0xf]
    %v39 = vld [vmem:[%s0 + $0x4] sm:$0xf]
    %v40 = vld [vmem:[%s0 + $0x8] sm:$0xf]
    %v41 = vld [vmem:[%s0 + $0xc] sm:$0xf]
    %v42 = vunpack.c.l.bf16 %v38
    %v43 = vunpack.c.l.bf16 %v39
    %v44 = vunpack.c.l.bf16 %v40
    %v45 = vunpack.c.l.bf16 %v41
    %vm46 = vcmask 523264
    %v47 = vsel %vm46, %v42, 0.0
    %v48 = vsel %vm46, %v43, 0.0
    %v49 = vadd.f32 %v47, %v48
    %v50 = vsel %vm46, %v44, 0.0
    %v51 = vadd.f32 %v49, %v50
    %v52 = vsel %vm46, %v45, 0.0
    %v53 = vadd.f32 %v51, %v52
    %v54 = vrot.slane %v53, 4
    %v55 = vadd.f32 %v53, %v54
    %v56 = vrot.slane %v55, 2
    %v57 = vadd.f32 %v55, %v56
    %v58 = vrot.slane %v57, 1
    %v59 = vadd.f32 %v57, %v58
    %v60 = vmul.f32 %v59, 0.03125
    %v61 = vmul.f32 %v42, %v42
    %v62 = vmul.f32 %v43, %v43
    %v63 = vmul.f32 %v44, %v44
    %v64 = vmul.f32 %v45, %v45
    %v65 = vsel %vm46, %v61, 0.0
    %v66 = vsel %vm46, %v62, 0.0
    %v67 = vadd.f32 %v65, %v66
    %v68 = vsel %vm46, %v63, 0.0
    %v69 = vadd.f32 %v67, %v68
    %v70 = vsel %vm46, %v64, 0.0
    %v71 = vadd.f32 %v69, %v70
    %v72 = vrot.slane %v71, 4
    %v73 = vadd.f32 %v71, %v72
    %v74 = vrot.slane %v73, 2
    %v75 = vadd.f32 %v73, %v74
    %v76 = vrot.slane %v75, 1
    %v77 = vadd.f32 %v75, %v76
    %v78 = vmul.f32 %v77, 0.03125
    %v79 = vmul.f32 %v60, %v60
    %v80 = vsub.f32 %v78, %v79
    %v81 = vmax.f32 %v80, 0.0
    %v82 = vadd.f32 %v81, 1e-05
    %v83 = vrsqrt.pop %v82
    %v84 = vld [vmem:[#allocation2] sm:$0x1]
    %v85 = vmul.f32 %v84, %v83
    %v86 = vld [vmem:[#allocation4] sm:$0x1]
    %v87 = vmul.f32 %v60, %v85
    %v88 = vsub.f32 %v86, %v87
    %vm89 = vcmask 516096
    %90 = vst.msk [vmem:[%s3] sm:$0x1] %vm89, %v85
    %91 = vst.msk [vmem:[%s3 + $0x1] sm:$0x1] %vm89, %v88
    // Predicated region
    $region22: #{generator_forward.14} parent=1 // pred_check
      _
    $region23: #{generator_forward.14} parent=1 // pred_check_branch
      %93 = sbr.rel (0) target = $region25
    $region24: #{generator_forward.14} parent=1 // pred_region
      _
    $region25: #{generator_forward.14} parent=1 // pred_fallthru
      _
    // Predicated region
    $region26: #{generator_forward.14} parent=1 // pred_check
      _
    $region27: #{generator_forward.14} parent=1 // pred_check_branch
      %95 = sbr.rel (0) target = $region29
    $region28: #{generator_forward.14} parent=1 // pred_region
      _
    $region29: #{generator_forward.14} parent=1 // pred_fallthru
      _
    %96 = vsyncpa [#allocation3], 1
    %97 = vsyncpa [#allocation5], 1

// kernel: generator_forward.15
$region0: #{generator_forward.15}
  #allocation0 [shape = 'u32[]', space=smem, size = 0x4, offset = 0x4, fixed_abs, tag = 'smem constant byte address 0x4 - core index']
  #allocation1 [shape = 'u32[144,128]{1,0:T(1,128)}', space=vmem, size = 0x12000, scoped, tag = 'internal scratch']
  %s0 = inlined_call_operand.vmem [shape: bf16[8,256], index: 0, kind: input, shape index: {}]
  %s1 = inlined_call_operand.vmem [shape: f32[1,256], index: 1, kind: input, shape index: {}]
  %s2 = inlined_call_operand.vmem [shape: f32[1,256], index: 2, kind: input, shape index: {}]
  %s3 = inlined_call_operand.vmem [shape: bf16[8,256], index: 3, kind: output, shape index: {}]
  %s4 = sld [smem:[#allocation0]]
  $region22: #{generator_forward.15} parent=0
    _
  %s6 = ssub.s32 1, %s4
  %s7 = scalar_select 0, %s6, %s4
  // Predicated region
  $region2: #{generator_forward.15} parent=0 // pred_check
    _
  $region3: #{generator_forward.15} parent=0 // pred_check_branch
    %9 = sbr.rel (0) target = $region5
  $region4: #{generator_forward.15} parent=0 // pred_region
    _
  $region5: #{generator_forward.15} parent=0 // pred_fallthru
    _
  // Predicated region
  $region6: #{generator_forward.15} parent=0 // pred_check
    _
  $region7: #{generator_forward.15} parent=0 // pred_check_branch
    %11 = sbr.rel (0) target = $region9
  $region8: #{generator_forward.15} parent=0 // pred_region
    _
  $region9: #{generator_forward.15} parent=0 // pred_fallthru
    _
  // Predicated region
  $region10: #{generator_forward.15} parent=0 // pred_check
    _
  $region11: #{generator_forward.15} parent=0 // pred_check_branch
    %13 = sbr.rel (0) target = $region13
  $region12: #{generator_forward.15} parent=0 // pred_region
    _
  $region13: #{generator_forward.15} parent=0 // pred_fallthru
    _
  %v14 = vld [vmem:[%s0] sm:$0xff]
  %v15 = vunpack.c.l.bf16 %v14
  %v16 = vunpack.c.h.bf16 %v14
  %v17 = vld [vmem:[%s1] sm:$0x3]
  %v19 = vlaneseq
  %v20 = vshrl.u32 %v19, 7
  %v21 = vsub.s32 0, %v20
  %v22 = vrot.slane %v17, %v21
  %v23 = vlaneseq
  %v24 = vshrl.u32 %v23, 7
  %v25 = vsub.s32 1, %v24
  %v26 = vrot.slane %v17, %v25
  %v29 = vmul.f32 %v15, %v22
  %v30 = vmul.f32 %v16, %v26
  %v31 = vld [vmem:[%s2] sm:$0x3]
  %v33 = vlaneseq
  %v34 = vshrl.u32 %v33, 7
  %v35 = vsub.s32 0, %v34
  %v36 = vrot.slane %v31, %v35
  %v37 = vlaneseq
  %v38 = vshrl.u32 %v37, 7
  %v39 = vsub.s32 1, %v38
  %v40 = vrot.slane %v31, %v39
  %v43 = vadd.f32 %v29, %v36
  %v44 = vadd.f32 %v30, %v40
  %v45 = vmax.f32 %v43, 0.0
  %v46 = vmax.f32 %v44, 0.0
  %v47 = vpack.c.bf16 %v45, %v45
  %v48 = vpack.c.bf16 %v46, %v46
  %v51 = vunpack.c.l.b16 %v47
  %v52 = vunpack.c.l.b16 %v48
  %v53 = vpack.c.b16 %v52, %v51
  %55 = vst [vmem:[%s3] sm:$0xff] %v53
  // Predicated region
  $region14: #{generator_forward.15} parent=0 // pred_check
    _
  $region15: #{generator_forward.15} parent=0 // pred_check_branch
    %57 = sbr.rel (0) target = $region17
  $region16: #{generator_forward.15} parent=0 // pred_region
    _
  $region17: #{generator_forward.15} parent=0 // pred_fallthru
    _
  // Predicated region
  $region18: #{generator_forward.15} parent=0 // pred_check
    _
  $region19: #{generator_forward.15} parent=0 // pred_check_branch
    %59 = sbr.rel (0) target = $region21
  $region20: #{generator_forward.15} parent=0 // pred_region
    _
  $region21: #{generator_forward.15} parent=0 // pred_fallthru
    _

// kernel: generator_forward.13
$region0: #{generator_forward.13}
  #allocation0 [shape = 'u32[]', space=smem, size = 0x4, offset = 0x4, fixed_abs, tag = 'smem constant byte address 0x4 - core index']
  #allocation1 [shape = 'u32[144,128]{1,0:T(1,128)}', space=vmem, size = 0x12000, scoped, tag = 'internal scratch']
  %s0 = inlined_call_operand.vmem [shape: bf16[2,8], index: 0, kind: input, shape index: {}]
  %s1 = inlined_call_operand.hbm [shape: bf16[8,1024], index: 1, kind: input, shape index: {}]
  %s2 = inlined_call_operand.vmem [shape: bf16[2,1024], index: 2, kind: output, shape index: {}]
  %s3 = sld [smem:[#allocation0]]
  $region22: #{generator_forward.13} parent=0
    _
  %s5 = ssub.s32 1, %s3
  %s6 = scalar_select 0, %s5, %s3
  $region1: #{generator_forward.13} parent=0
    #allocation2 [shape = 'u8[16384]{0}', space=vmem, size = 0x4000, scoped, tag = 'input window, operand 1, single buffered']
    #allocation3 [shape = 's32[1]{0}', space=sflag, size = 0x4, scoped, tag = 'scoped memory for generator_forward.13']
    %7 = vsyncpa [#allocation3], 0
    // Predicated region
    $region2: #{generator_forward.13} parent=1 // pred_check
      _
    $region3: #{generator_forward.13} parent=1 // pred_check_branch
      %9 = sbr.rel (0) target = $region5
    $region4: #{generator_forward.13} parent=1 // pred_region
      _
    $region5: #{generator_forward.13} parent=1 // pred_fallthru
      _
    // Predicated region
    $region6: #{generator_forward.13} parent=1 // pred_check
      _
    $region7: #{generator_forward.13} parent=1 // pred_check_branch
      %11 = sbr.rel (0) target = $region9
    $region8: #{generator_forward.13} parent=1 // pred_region
      %s13 = ssub.s32 512, 512
      %14 = vsyncadd [#allocation3], %s13
      %s16 = sshll.u32 [#allocation2], 4
      %s17 = int_to_ptr.vmem [resolvable:$true] %s16
      %19 = dma.hbm_to_vmem [thread:$0]  %s1, 512, %s17, [#allocation3]
    $region9: #{generator_forward.13} parent=1 // pred_fallthru
      _
    // Predicated region
    $region10: #{generator_forward.13} parent=1 // pred_check
      _
    $region11: #{generator_forward.13} parent=1 // pred_check_branch
      %21 = sbr.rel (0) target = $region13
    $region12: #{generator_forward.13} parent=1 // pred_region
      %22 = dma.done [#allocation3], 512
    $region13: #{generator_forward.13} parent=1 // pred_fallthru
      _
    %v24 = vld [vmem:[%s0] sm:$0x1]
    %v25 = vld [vmem:[#allocation2] sm:$0xff]
    %v26 = vld [vmem:[#allocation2 + $0x8] sm:$0xff]
    %v27 = vld [vmem:[#allocation2 + $0x10] sm:$0xff]
    %v28 = vld [vmem:[#allocation2 + $0x18] sm:$0xff]
    %v33 = vunpack.c.l.b16 %v25
    %v34 = vunpack.c.h.b16 %v25
    %v35 = vunpack.c.l.b16 %v26
    %v36 = vunpack.c.h.b16 %v26
    %v37 = vunpack.c.l.b16 %v27
    %v38 = vunpack.c.h.b16 %v27
    %v39 = vunpack.c.l.b16 %v28
    %v40 = vunpack.c.h.b16 %v28
    %v41 = vpack.c.b16 %v33, %v33
    %v42 = vpack.c.b16 %v34, %v34
    %v43 = vpack.c.b16 %v35, %v35
    %v44 = vpack.c.b16 %v36, %v36
    %v45 = vpack.c.b16 %v37, %v37
    %v46 = vpack.c.b16 %v38, %v38
    %v47 = vpack.c.b16 %v39, %v39
    %v48 = vpack.c.b16 %v40, %v40
    %vm49 = vcmask 64512
    %v51 = vsel %vm49, %v24, 0
    %vm53 = vcmask 1043456
    %v55 = vsel %vm53, %v41, 0
    %v58 = vsel %vm53, %v42, 0
    %v61 = vsel %vm53, %v43, 0
    %v64 = vsel %vm53, %v44, 0
    %v67 = vsel %vm53, %v45, 0
    %v70 = vsel %vm53, %v46, 0
    %v73 = vsel %vm53, %v47, 0
    %v76 = vsel %vm53, %v48, 0
    %78 = vmatprep.subr.bf16.mxu0 0
    %79 = vmatpush1.bf16.msra.mxu0 0
    %80 = vmatprep.subr.bf16.mxu0 0
    %81 = vmatpush1.bf16.msra.mxu0 0
    %82 = vmatprep.subr.bf16.mxu0 0
    %83 = vmatpush1.bf16.msra.mxu0 0
    %84 = vmatprep.subr.bf16.mxu0 0
    %85 = vmatpush1.bf16.msra.mxu0 0
    %86 = vmatprep.subr.bf16.mxu0 0
    %87 = vmatpush1.bf16.msra.mxu0 0
    %88 = vmatprep.subr.bf16.mxu0 0
    %89 = vmatpush1.bf16.msra.mxu0 0
    %90 = vmatprep.subr.bf16.mxu0 0
    %91 = vmatpush1.bf16.msra.mxu0 0
    %92 = vmatprep.subr.bf16.mxu0 %v58
    %93 = vmatpush1.bf16.msra.mxu0 %v55
    %94 = vmatprep.subr.bf16.mxu0 0
    %95 = vmatpush2.bf16.msra.mxu0 0
    %96 = vmatprep.subr.bf16.mxu0 0
    %97 = vmatpush2.bf16.msra.mxu0 0
    %98 = vmatprep.subr.bf16.mxu0 0
    %99 = vmatpush2.bf16.msra.mxu0 0
    %100 = vmatprep.subr.bf16.mxu0 0
    %101 = vmatpush2.bf16.msra.mxu0 0
    %102 = vmatprep.subr.bf16.mxu0 0
    %103 = vmatpush2.bf16.msra.mxu0 0
    %104 = vmatprep.subr.bf16.mxu0 0
    %105 = vmatpush2.bf16.msra.mxu0 0
    %106 = vmatprep.subr.bf16.mxu0 0
    %107 = vmatpush2.bf16.msra.mxu0 0
    %108 = vmatprep.subr.bf16.mxu0 0
    %109 = vmatpush2.bf16.msra.mxu0 0
    %110 = vmatprep.mubr.bf16.mxu0 0
    %111 = vmatmul.mubr.bf16.gmra.mxu0 %v51
    %v112 = vpop.f32.mrf.mxu0
    %v113 = vadd.f32 0.0, %v112
    %v114 = vpop.f32.mrf.mxu0
    %v115 = vadd.f32 0.0, %v114
    %v116 = vpop.f32.mrf.mxu0
    %v117 = vpop.f32.mrf.mxu0
    %118 = vdwg.mxu0
    %119 = vmatprep.subr.bf16.mxu0 0
    %120 = vmatpush1.bf16.msra.mxu0 0
    %121 = vmatprep.subr.bf16.mxu0 0
    %122 = vmatpush1.bf16.msra.mxu0 0
    %123 = vmatprep.subr.bf16.mxu0 0
    %124 = vmatpush1.bf16.msra.mxu0 0
    %125 = vmatprep.subr.bf16.mxu0 0
    %126 = vmatpush1.bf16.msra.mxu0 0
    %127 = vmatprep.subr.bf16.mxu0 0
    %128 = vmatpush1.bf16.msra.mxu0 0
    %129 = vmatprep.subr.bf16.mxu0 0
    %130 = vmatpush1.bf16.msra.mxu0 0
    %131 = vmatprep.subr.bf16.mxu0 0
    %132 = vmatpush1.bf16.msra.mxu0 0
    %133 = vmatprep.subr.bf16.mxu0 %v64
    %134 = vmatpush1.bf16.msra.mxu0 %v61
    %135 = vmatprep.subr.bf16.mxu0 0
    %136 = vmatpush2.bf16.msra.mxu0 0
    %137 = vmatprep.subr.bf16.mxu0 0
    %138 = vmatpush2.bf16.msra.mxu0 0
    %139 = vmatprep.subr.bf16.mxu0 0
    %140 = vmatpush2.bf16.msra.mxu0 0
    %141 = vmatprep.subr.bf16.mxu0 0
    %142 = vmatpush2.bf16.msra.mxu0 0
    %143 = vmatprep.subr.bf16.mxu0 0
    %144 = vmatpush2.bf16.msra.mxu0 0
    %145 = vmatprep.subr.bf16.mxu0 0
    %146 = vmatpush2.bf16.msra.mxu0 0
    %147 = vmatprep.subr.bf16.mxu0 0
    %148 = vmatpush2.bf16.msra.mxu0 0
    %149 = vmatprep.subr.bf16.mxu0 0
    %150 = vmatpush2.bf16.msra.mxu0 0
    %151 = vmatprep.mubr.bf16.mxu0 0
    %152 = vmatmul.mubr.bf16.gmra.mxu0 %v51
    %v153 = vpop.f32.mrf.mxu0
    %v154 = vadd.f32 0.0, %v153
    %v155 = vpop.f32.mrf.mxu0
    %v156 = vadd.f32 0.0, %v155
    %v157 = vpop.f32.mrf.mxu0
    %v158 = vpop.f32.mrf.mxu0
    %159 = vdwg.mxu0
    %160 = vmatprep.subr.bf16.mxu0 0
    %161 = vmatpush1.bf16.msra.mxu0 0
    %162 = vmatprep.subr.bf16.mxu0 0
    %163 = vmatpush1.bf16.msra.mxu0 0
    %164 = vmatprep.subr.bf16.mxu0 0
    %165 = vmatpush1.bf16.msra.mxu0 0
    %166 = vmatprep.subr.bf16.mxu0 0
    %167 = vmatpush1.bf16.msra.mxu0 0
    %168 = vmatprep.subr.bf16.mxu0 0
    %169 = vmatpush1.bf16.msra.mxu0 0
    %170 = vmatprep.subr.bf16.mxu0 0
    %171 = vmatpush1.bf16.msra.mxu0 0
    %172 = vmatprep.subr.bf16.mxu0 0
    %173 = vmatpush1.bf16.msra.mxu0 0
    %174 = vmatprep.subr.bf16.mxu0 %v70
    %175 = vmatpush1.bf16.msra.mxu0 %v67
    %176 = vmatprep.subr.bf16.mxu0 0
    %177 = vmatpush2.bf16.msra.mxu0 0
    %178 = vmatprep.subr.bf16.mxu0 0
    %179 = vmatpush2.bf16.msra.mxu0 0
    %180 = vmatprep.subr.bf16.mxu0 0
    %181 = vmatpush2.bf16.msra.mxu0 0
    %182 = vmatprep.subr.bf16.mxu0 0
    %183 = vmatpush2.bf16.msra.mxu0 0
    %184 = vmatprep.subr.bf16.mxu0 0
    %185 = vmatpush2.bf16.msra.mxu0 0
    %186 = vmatprep.subr.bf16.mxu0 0
    %187 = vmatpush2.bf16.msra.mxu0 0
    %188 = vmatprep.subr.bf16.mxu0 0
    %189 = vmatpush2.bf16.msra.mxu0 0
    %190 = vmatprep.subr.bf16.mxu0 0
    %191 = vmatpush2.bf16.msra.mxu0 0
    %192 = vmatprep.mubr.bf16.mxu0 0
    %193 = vmatmul.mubr.bf16.gmra.mxu0 %v51
    %v194 = vpop.f32.mrf.mxu0
    %v195 = vadd.f32 0.0, %v194
    %v196 = vpop.f32.mrf.mxu0
    %v197 = vadd.f32 0.0, %v196
    %v198 = vpop.f32.mrf.mxu0
    %v199 = vpop.f32.mrf.mxu0
    %200 = vdwg.mxu0
    %201 = vmatprep.subr.bf16.mxu0 0
    %202 = vmatpush1.bf16.msra.mxu0 0
    %203 = vmatprep.subr.bf16.mxu0 0
    %204 = vmatpush1.bf16.msra.mxu0 0
    %205 = vmatprep.subr.bf16.mxu0 0
    %206 = vmatpush1.bf16.msra.mxu0 0
    %207 = vmatprep.subr.bf16.mxu0 0
    %208 = vmatpush1.bf16.msra.mxu0 0
    %209 = vmatprep.subr.bf16.mxu0 0
    %210 = vmatpush1.bf16.msra.mxu0 0
    %211 = vmatprep.subr.bf16.mxu0 0
    %212 = vmatpush1.bf16.msra.mxu0 0
    %213 = vmatprep.subr.bf16.mxu0 0
    %214 = vmatpush1.bf16.msra.mxu0 0
    %215 = vmatprep.subr.bf16.mxu0 %v76
    %216 = vmatpush1.bf16.msra.mxu0 %v73
    %217 = vmatprep.subr.bf16.mxu0 0
    %218 = vmatpush2.bf16.msra.mxu0 0
    %219 = vmatprep.subr.bf16.mxu0 0
    %220 = vmatpush2.bf16.msra.mxu0 0
    %221 = vmatprep.subr.bf16.mxu0 0
    %222 = vmatpush2.bf16.msra.mxu0 0
    %223 = vmatprep.subr.bf16.mxu0 0
    %224 = vmatpush2.bf16.msra.mxu0 0
    %225 = vmatprep.subr.bf16.mxu0 0
    %226 = vmatpush2.bf16.msra.mxu0 0
    %227 = vmatprep.subr.bf16.mxu0 0
    %228 = vmatpush2.bf16.msra.mxu0 0
    %229 = vmatprep.subr.bf16.mxu0 0
    %230 = vmatpush2.bf16.msra.mxu0 0
    %231 = vmatprep.subr.bf16.mxu0 0
    %232 = vmatpush2.bf16.msra.mxu0 0
    %233 = vmatprep.mubr.bf16.mxu0 0
    %234 = vmatmul.mubr.bf16.gmra.mxu0 %v51
    %v235 = vpop.f32.mrf.mxu0
    %v236 = vadd.f32 0.0, %v235
    %v237 = vpop.f32.mrf.mxu0
    %v238 = vadd.f32 0.0, %v237
    %v239 = vpop.f32.mrf.mxu0
    %v240 = vpop.f32.mrf.mxu0
    %241 = vdwg.mxu0
    %v242 = vpack.c.bf16 %v113, %v113
    %v243 = vpack.c.bf16 %v115, %v115
    %v244 = vpack.c.bf16 %v154, %v154
    %v245 = vpack.c.bf16 %v156, %v156
    %v246 = vpack.c.bf16 %v195, %v195
    %v247 = vpack.c.bf16 %v197, %v197
    %v248 = vpack.c.bf16 %v236, %v236
    %v249 = vpack.c.bf16 %v238, %v238
    %v258 = vcombine.low %v242, %v243
    %v259 = vcombine.low %v244, %v245
    %v260 = vcombine.low %v246, %v247
    %v261 = vcombine.low %v248, %v249
    %v263 = vunpack.c.l.s4 1966171168
    %v264 = vunpack.c.0.s8 %v263
    %v265 = vlaneseq
    %v266 = vshrl.u32 %v265, 7
    %v267 = vsub.s32 %v264, %v266
    %v268 = vrot.slane %v258, %v267
    %v270 = vunpack.c.l.s4 1966171168
    %v271 = vunpack.c.0.s8 %v270
    %v272 = vlaneseq
    %v273 = vshrl.u32 %v272, 7
    %v274 = vsub.s32 %v271, %v273
    %v275 = vrot.slane %v259, %v274
    %v277 = vunpack.c.l.s4 1966171168
    %v278 = vunpack.c.0.s8 %v277
    %v279 = vlaneseq
    %v280 = vshrl.u32 %v279, 7
    %v281 = vsub.s32 %v278, %v280
    %v282 = vrot.slane %v260, %v281
    %v284 = vunpack.c.l.s4 1966171168
    %v285 = vunpack.c.0.s8 %v284
    %v286 = vlaneseq
    %v287 = vshrl.u32 %v286, 7
    %v288 = vsub.s32 %v285, %v287
    %v289 = vrot.slane %v261, %v288
    %v290 = vcombine.low %v268, %v275
    %v291 = vcombine.low %v282, %v289
    %v293 = vunpack.c.l.s4 1966171168
    %v294 = vunpack.c.0.s8 %v293
    %v295 = vlaneseq
    %v296 = vshrl.u32 %v295, 7
    %v297 = vsub.s32 %v294, %v296
    %v298 = vrot.slane %v290, %v297
    %v300 = vunpack.c.l.s4 1966171168
    %v301 = vunpack.c.0.s8 %v300
    %v302 = vlaneseq
    %v303 = vshrl.u32 %v302, 7
    %v304 = vsub.s32 %v301, %v303
    %v305 = vrot.slane %v291, %v304
    %v306 = vcombine.low %v298, %v305
    %308 = vst [vmem:[%s2] sm:$0xff] %v306
    // Predicated region
    $region14: #{generator_forward.13} parent=1 // pred_check
      _
    $region15: #{generator_forward.13} parent=1 // pred_check_branch
      %310 = sbr.rel (0) target = $region17
    $region16: #{generator_forward.13} parent=1 // pred_region
      _
    $region17: #{generator_forward.13} parent=1 // pred_fallthru
      _
    // Predicated region
    $region18: #{generator_forward.13} parent=1 // pred_check
      _
    $region19: #{generator_forward.13} parent=1 // pred_check_branch
      %312 = sbr.rel (0) target = $region21
    $region20: #{generator_forward.13} parent=1 // pred_region
      _
    $region21: #{generator_forward.13} parent=1 // pred_fallthru
      _
    %313 = vsyncpa [#allocation3], 1

// kernel: generator_forward.18
$region0: #{generator_forward.18}
  #allocation0 [shape = 'u32[]', space=smem, size = 0x4, offset = 0x4, fixed_abs, tag = 'smem constant byte address 0x4 - core index']
  #allocation1 [shape = 'u32[144,128]{1,0:T(1,128)}', space=vmem, size = 0x12000, scoped, tag = 'internal scratch']
  %s0 = inlined_call_operand.vmem [shape: bf16[16,256], index: 0, kind: input, shape index: {}]
  %s1 = inlined_call_operand.vmem [shape: f32[1,256], index: 1, kind: input, shape index: {}]
  %s2 = inlined_call_operand.vmem [shape: f32[1,256], index: 2, kind: input, shape index: {}]
  %s3 = inlined_call_operand.vmem [shape: bf16[16,256], index: 3, kind: output, shape index: {}]
  %s4 = sld [smem:[#allocation0]]
  $region22: #{generator_forward.18} parent=0
    _
  %s6 = ssub.s32 1, %s4
  %s7 = scalar_select 0, %s6, %s4
  // Predicated region
  $region2: #{generator_forward.18} parent=0 // pred_check
    _
  $region3: #{generator_forward.18} parent=0 // pred_check_branch
    %9 = sbr.rel (0) target = $region5
  $region4: #{generator_forward.18} parent=0 // pred_region
    _
  $region5: #{generator_forward.18} parent=0 // pred_fallthru
    _
  // Predicated region
  $region6: #{generator_forward.18} parent=0 // pred_check
    _
  $region7: #{generator_forward.18} parent=0 // pred_check_branch
    %11 = sbr.rel (0) target = $region9
  $region8: #{generator_forward.18} parent=0 // pred_region
    _
  $region9: #{generator_forward.18} parent=0 // pred_fallthru
    _
  // Predicated region
  $region10: #{generator_forward.18} parent=0 // pred_check
    _
  $region11: #{generator_forward.18} parent=0 // pred_check_branch
    %13 = sbr.rel (0) target = $region13
  $region12: #{generator_forward.18} parent=0 // pred_region
    _
  $region13: #{generator_forward.18} parent=0 // pred_fallthru
    _
  %v14 = vld [vmem:[%s0] sm:$0xff]
  %v15 = vld [vmem:[%s0 + $0x8] sm:$0xff]
  %v16 = vunpack.c.l.bf16 %v14
  %v17 = vunpack.c.h.bf16 %v14
  %v18 = vunpack.c.l.bf16 %v15
  %v19 = vunpack.c.h.bf16 %v15
  %v20 = vld [vmem:[%s1] sm:$0x3]
  %v22 = vlaneseq
  %v23 = vshrl.u32 %v22, 7
  %v24 = vsub.s32 0, %v23
  %v25 = vrot.slane %v20, %v24
  %v26 = vlaneseq
  %v27 = vshrl.u32 %v26, 7
  %v28 = vsub.s32 1, %v27
  %v29 = vrot.slane %v20, %v28
  %v32 = vmul.f32 %v16, %v25
  %v33 = vmul.f32 %v17, %v29
  %v34 = vmul.f32 %v18, %v25
  %v35 = vmul.f32 %v19, %v29
  %v36 = vld [vmem:[%s2] sm:$0x3]
  %v38 = vlaneseq
  %v39 = vshrl.u32 %v38, 7
  %v40 = vsub.s32 0, %v39
  %v41 = vrot.slane %v36, %v40
  %v42 = vlaneseq
  %v43 = vshrl.u32 %v42, 7
  %v44 = vsub.s32 1, %v43
  %v45 = vrot.slane %v36, %v44
  %v48 = vadd.f32 %v32, %v41
  %v49 = vadd.f32 %v33, %v45
  %v50 = vadd.f32 %v34, %v41
  %v51 = vadd.f32 %v35, %v45
  %v52 = vmax.f32 %v48, 0.0
  %v53 = vmax.f32 %v49, 0.0
  %v54 = vmax.f32 %v50, 0.0
  %v55 = vmax.f32 %v51, 0.0
  %v56 = vpack.c.bf16 %v54, %v52
  %v57 = vpack.c.bf16 %v55, %v53
  %v60 = vunpack.c.l.b16 %v56
  %v61 = vunpack.c.l.b16 %v57
  %v62 = vunpack.c.h.b16 %v56
  %v63 = vunpack.c.h.b16 %v57
  %v64 = vpack.c.b16 %v61, %v60
  %v65 = vpack.c.b16 %v63, %v62
  %68 = vst [vmem:[%s3] sm:$0xff] %v64
  %69 = vst [vmem:[%s3 + $0x8] sm:$0xff] %v65
  // Predicated region
  $region14: #{generator_forward.18} parent=0 // pred_check
    _
  $region15: #{generator_forward.18} parent=0 // pred_check_branch
    %71 = sbr.rel (0) target = $region17
  $region16: #{generator_forward.18} parent=0 // pred_region
    _
  $region17: #{generator_forward.18} parent=0 // pred_fallthru
    _
  // Predicated region
  $region18: #{generator_forward.18} parent=0 // pred_check
    _
  $region19: #{generator_forward.18} parent=0 // pred_check_branch
    %73 = sbr.rel (0) target = $region21
  $region20: #{generator_forward.18} parent=0 // pred_region
    _
  $region21: #{generator_forward.18} parent=0 // pred_fallthru
    _

// kernel: generator_forward.17
$region0: #{generator_forward.17}
  #allocation0 [shape = 'u32[]', space=smem, size = 0x4, offset = 0x4, fixed_abs, tag = 'smem constant byte address 0x4 - core index']
  #allocation1 [shape = 'u32[144,128]{1,0:T(1,128)}', space=vmem, size = 0x12000, scoped, tag = 'internal scratch']
  %s0 = inlined_call_operand.vmem [shape: f32[2,2,32], index: 0, kind: input, shape index: {}]
  %s1 = inlined_call_operand.hbm [shape: f32[1,32], index: 1, kind: input, shape index: {}]
  %s2 = inlined_call_operand.hbm [shape: f32[1,32], index: 2, kind: input, shape index: {}]
  %s3 = inlined_call_operand.vmem [shape: f32[2,32], index: 3, kind: output, shape index: {}]
  %s4 = sld [smem:[#allocation0]]
  $region30: #{generator_forward.17} parent=0
    _
  %s6 = ssub.s32 1, %s4
  %s7 = scalar_select 0, %s6, %s4
  $region1: #{generator_forward.17} parent=0
    #allocation2 [shape = 'u8[512]{0}', space=vmem, size = 0x400, scoped, tag = 'input window, operand 1, single buffered']
    #allocation3 [shape = 's32[1]{0}', space=sflag, size = 0x4, scoped, tag = 'scoped memory for generator_forward.17']
    #allocation4 [shape = 'u8[512]{0}', space=vmem, size = 0x400, scoped, tag = 'input window, operand 2, single buffered']
    #allocation5 [shape = 's32[1]{0}', space=sflag, size = 0x4, scoped, tag = 'scoped memory for generator_forward.17']
    %8 = vsyncpa [#allocation3], 0
    %9 = vsyncpa [#allocation5], 0
    // Predicated region
    $region2: #{generator_forward.17} parent=1 // pred_check
      _
    $region3: #{generator_forward.17} parent=1 // pred_check_branch
      %11 = sbr.rel (0) target = $region5
    $region4: #{generator_forward.17} parent=1 // pred_region
      _
    $region5: #{generator_forward.17} parent=1 // pred_fallthru
      _
    // Predicated region
    $region6: #{generator_forward.17} parent=1 // pred_check
      _
    $region7: #{generator_forward.17} parent=1 // pred_check_branch
      %13 = sbr.rel (0) target = $region9
    $region8: #{generator_forward.17} parent=1 // pred_region
      %s15 = ssub.s32 16, 16
      %16 = vsyncadd [#allocation3], %s15
      %s18 = sshll.u32 [#allocation2], 4
      %s19 = int_to_ptr.vmem [resolvable:$true] %s18
      %21 = dma.hbm_to_vmem [thread:$0]  %s1, 16, %s19, [#allocation3]
    $region9: #{generator_forward.17} parent=1 // pred_fallthru
      _
    // Predicated region
    $region10: #{generator_forward.17} parent=1 // pred_check
      _
    $region11: #{generator_forward.17} parent=1 // pred_check_branch
      %23 = sbr.rel (0) target = $region13
    $region12: #{generator_forward.17} parent=1 // pred_region
      %s25 = ssub.s32 16, 16
      %26 = vsyncadd [#allocation5], %s25
      %s28 = sshll.u32 [#allocation4], 4
      %s29 = int_to_ptr.vmem [resolvable:$true] %s28
      %31 = dma.hbm_to_vmem [thread:$0]  %s2, 16, %s29, [#allocation5]
    $region13: #{generator_forward.17} parent=1 // pred_fallthru
      _
    // Predicated region
    $region14: #{generator_forward.17} parent=1 // pred_check
      _
    $region15: #{generator_forward.17} parent=1 // pred_check_branch
      %33 = sbr.rel (0) target = $region17
    $region16: #{generator_forward.17} parent=1 // pred_region
      %34 = dma.done [#allocation3], 16
    $region17: #{generator_forward.17} parent=1 // pred_fallthru
      _
    // Predicated region
    $region18: #{generator_forward.17} parent=1 // pred_check
      _
    $region19: #{generator_forward.17} parent=1 // pred_check_branch
      %36 = sbr.rel (0) target = $region21
    $region20: #{generator_forward.17} parent=1 // pred_region
      %37 = dma.done [#allocation5], 16
    $region21: #{generator_forward.17} parent=1 // pred_fallthru
      _
    %v38 = vld [vmem:[%s0] sm:$0x3]
    %v39 = vld [vmem:[%s0 + $0x2] sm:$0x3]
    %vm40 = vcmask 254976
    %v41 = vsel %vm40, %v38, 0.0
    %v42 = vsel %vm40, %v39, 0.0
    %v43 = vadd.f32 %v41, %v42
    %v44 = vmul.f32 %v43, 0.0078125
    %v45 = vmul.f32 %v44, %v44
    %v47 = vrot.slane %v45, 7
    %v49 = vsub.f32 %v44, %v47
    %v50 = vmax.f32 %v49, 0.0
    %v51 = vadd.f32 %v50, 1e-05
    %v52 = vrsqrt.pop %v51
    %v53 = vld [vmem:[#allocation2] sm:$0x1]
    %v56 = vunpack.c.l.s4 1966171168
    %v57 = vunpack.c.0.s8 %v56
    %v58 = vlaneseq
    %v59 = vshrl.u32 %v58, 7
    %v60 = vsub.s32 %v57, %v59
    %v61 = vrot.slane %v52, %v60
    %v62 = vcombine.high %v61, %v61
    %v64 = vunpack.c.l.s4 1966171168
    %v65 = vunpack.c.0.s8 %v64
    %v66 = vlaneseq
    %v67 = vshrl.u32 %v66, 7
    %v68 = vsub.s32 %v65, %v67
    %v69 = vrot.slane %v62, %v68
    %v71 = vmul.f32 %v53, %v69
    %v72 = vld [vmem:[#allocation4] sm:$0x1]
    %v73 = vmul.f32 %v44, %v71
    %v74 = vsub.f32 %v72, %v73
    %vm75 = vcmask 253952
    %76 = vst.msk [vmem:[%s3] sm:$0x1] %vm75, %v71
    %77 = vst.msk [vmem:[%s3 + $0x1] sm:$0x1] %vm75, %v74
    // Predicated region
    $region22: #{generator_forward.17} parent=1 // pred_check
      _
    $region23: #{generator_forward.17} parent=1 // pred_check_branch
      %79 = sbr.rel (0) target = $region25
    $region24: #{generator_forward.17} parent=1 // pred_region
      _
    $region25: #{generator_forward.17} parent=1 // pred_fallthru
      _
    // Predicated region
    $region26: #{generator_forward.17} parent=1 // pred_check
      _
    $region27: #{generator_forward.17} parent=1 // pred_check_branch
      %81 = sbr.rel (0) target = $region29
    $region28: #{generator_forward.17} parent=1 // pred_region
      _
    $region29: #{generator_forward.17} parent=1 // pred_fallthru
      _
    %82 = vsyncpa [#allocation3], 1
    %83 = vsyncpa [#allocation5], 1

// kernel: generator_forward.16
$region0: #{generator_forward.16}
  #allocation0 [shape = 'u32[]', space=smem, size = 0x4, offset = 0x4, fixed_abs, tag = 'smem constant byte address 0x4 - core index']
  #allocation1 [shape = 'u32[144,128]{1,0:T(1,128)}', space=vmem, size = 0x12000, scoped, tag = 'internal scratch']
  #allocation2 [shape = 'f32[1,32]{1,0:T(1,128)}', space=vmem, size = 0x200, scoped, tag = 'scratch operand']
  #allocation3 [shape = 'f32[1,32]{1,0:T(1,128)}', space=vmem, size = 0x200, scoped, tag = 'scratch operand']
  %s0 = inlined_call_operand.vmem [shape: bf16[2,6,6,64], index: 0, kind: input, shape index: {}]
  %s1 = inlined_call_operand.vmem [shape: bf16[16,64,32], index: 1, kind: input, shape index: {}]
  %s2 = inlined_call_operand.vmem [shape: bf16[2,4,2,4,64], index: 2, kind: output, shape index: {0}]
  %s3 = inlined_call_operand.vmem [shape: f32[2,2,32], index: 3, kind: output, shape index: {1}]
  %4 = xla_tuple %s2, %s3
  %s5 = sld [smem:[#allocation0]]
  $region56: #{generator_forward.16} parent=0
    _
  %s7 = ssub.s32 1, %s5
  %s8 = scalar_select 0, %s7, %s5
  loop: start=0, step=1, limit=4
  $region2: #{generator_forward.16} parent=0 // loop_pre_header
    _
  $region3: #{generator_forward.16} parent=0 // loop_header
    %s10 = sphi 0, %s14
    %p11 = scmp.ge.s32.totalorder %s10, 4
    %s20 = sphi 0, %s22
    %s23 = sphi 0, %s20
    %s24 = sphi 0, %s23
    %s40 = sphi 0, %s24
    %s44 = sphi 0, %s44
    %s46 = sphi 0, %s44
    %s47 = sphi 0, %s46
    %s61 = sphi 0, %s47
    %s67 = sphi 0, %s69
    %s70 = sphi 0, %s67
    %s71 = sphi 0, %s70
    %s87 = sphi 0, %s71
    %s93 = sphi 0, %s95
    %s96 = sphi 0, %s93
    %s97 = sphi 0, %s96
    %s113 = sphi 0, %s97
  $region4: #{generator_forward.16} parent=0 // loop_header_branch
    %13 = sbr.rel (%p11) target = $region8
  $region5: #{generator_forward.16} parent=0 // loop_body
    %s15 = ssub.s32 %s10, 1
    %s16 = ssub.s32 %s10, 2
    %s17 = sadd.s32 %s10, 1
    %s18 = ssub.s32 %s10, %s17
    %p19 = scmp.eq.s32.totalorder %s18, 0
    %s21 = sadd.s32 %s20, 1
    %s22 = scalar_select %p19, %s20, %s21
    %p25 = pneg %p19
    %p26 = scmp.eq.s32.totalorder %s10, 1
    %p27 = por %p25, %p26
    %p28 = scmp.ne.s32.totalorder %s20, %s23
    %p29 = scmp.eq.s32.totalorder %s10, 0
    %p30 = por %p28, %p29
    %p31 = scmp.ne.s32.totalorder %s20, %s23
    %p32 = scmp.eq.s32.totalorder %s15, 1
    %p33 = por %p31, %p32
    %p34 = scmp.ne.s32.totalorder %s23, %s24
    %p35 = scmp.eq.s32.totalorder %s15, 0
    %p36 = por %p34, %p35
    %p37 = scmp.ne.s32.totalorder %s23, %s24
    %p38 = scmp.eq.s32.totalorder %s16, 1
    %p39 = por %p37, %p38
    %p41 = scmp.ne.s32.totalorder %s24, %s40
    %p42 = scmp.eq.s32.totalorder %s16, 0
    %p43 = por %p41, %p42
    %s45 = sadd.s32 %s44, 1
    %p48 = scmp.eq.s32.totalorder %s10, 1
    %p49 = scmp.ne.s32.totalorder %s44, %s46
    %p50 = scmp.eq.s32.totalorder %s10, 0
    %p51 = por %p49, %p50
    %p52 = scmp.ne.s32.totalorder %s44, %s46
    %p53 = scmp.eq.s32.totalorder %s15, 1
    %p54 = por %p52, %p53
    %p55 = scmp.ne.s32.totalorder %s46, %s47
    %p56 = scmp.eq.s32.totalorder %s15, 0
    %p57 = por %p55, %p56
    %p58 = scmp.ne.s32.totalorder %s46, %s47
    %p59 = scmp.eq.s32.totalorder %s16, 1
    %p60 = por %p58, %p59
    %p62 = scmp.ne.s32.totalorder %s47, %s61
    %p63 = scmp.eq.s32.totalorder %s16, 0
    %p64 = por %p62, %p63
    %s65 = ssub.s32 %s10, %s17
    %p66 = scmp.eq.s32.totalorder %s65, 0
    %s68 = sadd.s32 %s67, 1
    %s69 = scalar_select %p66, %s67, %s68
    %p72 = pneg %p66
    %p73 = scmp.eq.s32.totalorder %s10, 1
    %p74 = por %p72, %p73
    %p75 = scmp.ne.s32.totalorder %s67, %s70
    %p76 = scmp.eq.s32.totalorder %s10, 0
    %p77 = por %p75, %p76
    %p78 = scmp.ne.s32.totalorder %s67, %s70
    %p79 = scmp.eq.s32.totalorder %s15, 1
    %p80 = por %p78, %p79
    %p81 = scmp.ne.s32.totalorder %s70, %s71
    %p82 = scmp.eq.s32.totalorder %s15, 0
    %p83 = por %p81, %p82
    %p84 = scmp.ne.s32.totalorder %s70, %s71
    %p85 = scmp.eq.s32.totalorder %s16, 1
    %p86 = por %p84, %p85
    %p88 = scmp.ne.s32.totalorder %s71, %s87
    %p89 = scmp.eq.s32.totalorder %s16, 0
    %p90 = por %p88, %p89
    %s91 = ssub.s32 %s10, %s17
    %p92 = scmp.eq.s32.totalorder %s91, 0
    %s94 = sadd.s32 %s93, 1
    %s95 = scalar_select %p92, %s93, %s94
    %p98 = pneg %p92
    %p99 = scmp.eq.s32.totalorder %s10, 1
    %p100 = por %p98, %p99
    %p101 = scmp.ne.s32.totalorder %s93, %s96
    %p102 = scmp.eq.s32.totalorder %s10, 0
    %p103 = por %p101, %p102
    %p104 = scmp.ne.s32.totalorder %s93, %s96
    %p105 = scmp.eq.s32.totalorder %s15, 1
    %p106 = por %p104, %p105
    %p107 = scmp.ne.s32.totalorder %s96, %s97
    %p108 = scmp.eq.s32.totalorder %s15, 0
    %p109 = por %p107, %p108
    %p110 = scmp.ne.s32.totalorder %s96, %s97
    %p111 = scmp.eq.s32.totalorder %s16, 1
    %p112 = por %p110, %p111
    %p114 = scmp.ne.s32.totalorder %s97, %s113
    %p115 = scmp.eq.s32.totalorder %s16, 0
    %p116 = por %p114, %p115
    %p117 = scmp.le.s32.totalorder 1, %s10
    %p118 = scmp.lt.s32.totalorder %s10, 3
    %p119 = pnand %p117, %p118
    %p120 = pneg %p119
    // Predicated region
    $region9: #{generator_forward.16} parent=5 // pred_check
      _
    $region10: #{generator_forward.16} parent=5 // pred_check_branch
      %122 = sbr.rel (%p119) target = $region12
    $region11: #{generator_forward.16} parent=5 // pred_region
      %s123 = ssub.s32 %s10, 1
      // Predicated region
      $region13: #{generator_forward.16} parent=11 // pred_check
        %p124 = pneg %p57
      $region14: #{generator_forward.16} parent=11 // pred_check_branch
        %126 = sbr.rel (%p124) target = $region16
      $region15: #{generator_forward.16} parent=11 // pred_region
        _
      $region16: #{generator_forward.16} parent=11 // pred_fallthru
        _
    $region12: #{generator_forward.16} parent=5 // pred_fallthru
      _
    %p127 = scmp.lt.s32.totalorder %s10, 2
    // Predicated region
    $region17: #{generator_forward.16} parent=5 // pred_check
      %p128 = pneg %p127
    $region18: #{generator_forward.16} parent=5 // pred_check_branch
      %130 = sbr.rel (%p128) target = $region20
    $region19: #{generator_forward.16} parent=5 // pred_region
      // Predicated region
      $region21: #{generator_forward.16} parent=19 // pred_check
        %p131 = pneg %p30
      $region22: #{generator_forward.16} parent=19 // pred_check_branch
        %133 = sbr.rel (%p131) target = $region24
      $region23: #{generator_forward.16} parent=19 // pred_region
        %p134 = scmp.lt.s32.totalorder %s10, 1
        %s135 = scalar_select %p134, %s10, 1
        %s136 = smul.addr %s135, 6
        %s137 = smul.addr %s136, 4
        %s138 = scalar_lea.vmem %s0, %s137
      $region24: #{generator_forward.16} parent=19 // pred_fallthru
        _
    $region20: #{generator_forward.16} parent=5 // pred_fallthru
      _
    %p139 = scmp.le.s32.totalorder 1, %s10
    %p140 = scmp.lt.s32.totalorder %s10, 3
    %p141 = pnand %p139, %p140
    %p142 = pneg %p141
    // Predicated region
    $region25: #{generator_forward.16} parent=5 // pred_check
      _
    $region26: #{generator_forward.16} parent=5 // pred_check_branch
      %144 = sbr.rel (%p141) target = $region28
    $region27: #{generator_forward.16} parent=5 // pred_region
      %s145 = ssub.s32 %s10, 1
      %p146 = scmp.lt.s32.totalorder %s15, 1
      %s147 = scalar_select %p146, %s15, 1
      %s148 = smul.addr %s147, 6
      %s149 = smul.addr %s148, 4
      %s150 = scalar_lea.vmem %s0, %s149
      %p151 = pneg %p36
      %p152 = pneg %p33
      %p153 = pneg %p57
      %p154 = pneg %p54
      %p155 = pneg %p83
      %p156 = pneg %p80
      %p157 = scmp.lt.s32.totalorder %s15, 1
      %s158 = scalar_select %p157, %s15, 1
      %s159 = smul.addr %s158, 8
      %s160 = smul.addr %s159, 2
      %s161 = scalar_lea.vmem %s2, %s160
      %p162 = pneg %p109
      %p163 = pneg %p106
      %p164 = scmp.lt.s32.totalorder %s15, 1
      %s165 = scalar_select %p164, %s15, 1
      %s166 = smul.addr %s165, 2
      %s167 = scalar_lea.vmem %s3, %s166
      %p168 = scmp.lt.s32.totalorder %s15, 1
      %s169 = scalar_select %p168, %s15, 1
      %s170 = smul.addr %s169, 6
      %s171 = smul.addr %s170, 4
      %s172 = scalar_lea.vmem %s0, %s171
      %p173 = scmp.lt.s32.totalorder %s15, 1
      %s174 = scalar_select %p173, %s15, 1
      %s175 = smul.addr %s174, 8
      %s176 = smul.addr %s175, 2
      %s177 = scalar_lea.vmem %s2, %s176
      %p178 = scmp.lt.s32.totalorder %s15, 1
      %s179 = scalar_select %p178, %s15, 1
      %s180 = smul.addr %s179, 2
      %s181 = scalar_lea.vmem %s3, %s180
      %vm183 = vcmask 253952
      %184 = vst.msk [vmem:[#allocation2] sm:$0x1] %vm183, 0.0
      %185 = vst.msk [vmem:[#allocation3] sm:$0x1] %vm183, 0.0
      loop: start=0, step=1, limit=4
      $region29: #{generator_forward.16} parent=27 // loop_pre_header
        _
      $region30: #{generator_forward.16} parent=27 // loop_header
        %s187 = sphi 0, %s191
        %p188 = scmp.ge.s32.totalorder %s187, 4
      $region31: #{generator_forward.16} parent=27 // loop_header_branch
        %190 = sbr.rel (%p188) target = $region35
      $region32: #{generator_forward.16} parent=27 // loop_body
        %s192 = smul.addr %s187, 4
        %s193 = scalar_lea.vmem %s172, %s192
        %v194 = vld [vmem:[%s193] sm:$0x3]
        %v195 = vld [vmem:[%s1] sm:$0xf]
        %v196 = vld [vmem:[%s1 + $0x4] sm:$0xf]
        %v197 = vld [vmem:[%s1 + $0x8] sm:$0xf]
        %v198 = vld [vmem:[%s1 + $0xc] sm:$0xf]
        %v199 = vld [vmem:[%s1 + $0x10] sm:$0xf]
        %v200 = vld [vmem:[%s1 + $0x14] sm:$0xf]
        %v201 = vld [vmem:[%s1 + $0x18] sm:$0xf]
        %v202 = vld [vmem:[%s1 + $0x1c] sm:$0xf]
        %v203 = vld [vmem:[%s193] sm:$0x7]
        %s204 = scalar_lea.vmem %s1, 32
        %v205 = vld [vmem:[%s204] sm:$0xf]
        %v206 = vld [vmem:[%s204 + $0x4] sm:$0xf]
        %v207 = vld [vmem:[%s204 + $0x8] sm:$0xf]
        %v208 = vld [vmem:[%s204 + $0xc] sm:$0xf]
        %v209 = vld [vmem:[%s204 + $0x10] sm:$0xf]
        %v210 = vld [vmem:[%s204 + $0x14] sm:$0xf]
        %v211 = vld [vmem:[%s204 + $0x18] sm:$0xf]
        %v212 = vld [vmem:[%s204 + $0x1c] sm:$0xf]
        %v214 = vunpack.c.l.b16 %v203
        %v215 = vpack.c.b16 %v214, %v214
        %v217 = vshrl.u32 %v215, 16
        %v219 = vshll.u32 %v215, 16
        %v221 = vrot.slane %v219, 1
        %v222 = vor.u32 %v217, %v221
        %v231 = vunpack.c.l.b16 %v205
        %v232 = vunpack.c.l.b16 %v206
        %v233 = vunpack.c.l.b16 %v207
        %v234 = vunpack.c.l.b16 %v208
        %v235 = vunpack.c.l.b16 %v209
        %v236 = vunpack.c.l.b16 %v210
        %v237 = vunpack.c.l.b16 %v211
        %v238 = vunpack.c.l.b16 %v212
        %v239 = vpack.c.b16 %v232, %v231
        %v240 = vpack.c.b16 %v234, %v233
        %v241 = vpack.c.b16 %v236, %v235
        %v242 = vpack.c.b16 %v238, %v237
        %vm247 = vcmask 523264
        %v249 = vsel %vm247, %v222, 0
        %251 = vmatprep.subr.bf16.mxu0 0
        %252 = vmatpush1.bf16.msra.mxu0 0
        %253 = vmatprep.subr.bf16.mxu0 0
        %254 = vmatpush1.bf16.msra.mxu0 0
        %255 = vmatprep.subr.bf16.mxu0 0
        %256 = vmatpush1.bf16.msra.mxu0 0
        %257 = vmatprep.subr.bf16.mxu0 0
        %258 = vmatpush1.bf16.msra.mxu0 0
        %259 = vmatprep.subr.bf16.mxu0 0
        %260 = vmatpush1.bf16.msra.mxu0 %v242
        %261 = vmatprep.subr.bf16.mxu0 0
        %262 = vmatpush1.bf16.msra.mxu0 %v241
        %263 = vmatprep.subr.bf16.mxu0 0
        %264 = vmatpush1.bf16.msra.mxu0 %v240
        %265 = vmatprep.subr.bf16.mxu0 0
        %266 = vmatpush1.bf16.msra.mxu0 %v239
        %267 = vmatprep.subr.bf16.mxu0 0
        %268 = vmatpush2.bf16.msra.mxu0 0
        %269 = vmatprep.subr.bf16.mxu0 0
        %270 = vmatpush2.bf16.msra.mxu0 0
        %271 = vmatprep.subr.bf16.mxu0 0
        %272 = vmatpush2.bf16.msra.mxu0 0
        %273 = vmatprep.subr.bf16.mxu0 0
        %274 = vmatpush2.bf16.msra.mxu0 0
        %275 = vmatprep.subr.bf16.mxu0 0
        %276 = vmatpush2.bf16.msra.mxu0 0
        %277 = vmatprep.subr.bf16.mxu0 0
        %278 = vmatpush2.bf16.msra.mxu0 0
        %279 = vmatprep.subr.bf16.mxu0 0
        %280 = vmatpush2.bf16.msra.mxu0 0
        %281 = vmatprep.subr.bf16.mxu0 0
        %282 = vmatpush2.bf16.msra.mxu0 0
        %283 = vmatprep.mubr.bf16.mxu0 0
        %284 = vmatmul.mubr.bf16.gmra.mxu0 %v249
        %v285 = vpop.f32.mrf.mxu0
        %v286 = vadd.f32 0.0, %v285
        %v287 = vpop.f32.mrf.mxu0
        %v288 = vpop.f32.mrf.mxu0
        %v289 = vpop.f32.mrf.mxu0
        %290 = vdwg.mxu0
        %v299 = vunpack.c.l.b16 %v195
        %v300 = vunpack.c.l.b16 %v196
        %v301 = vunpack.c.l.b16 %v197
        %v302 = vunpack.c.l.b16 %v198
        %v303 = vunpack.c.l.b16 %v199
        %v304 = vunpack.c.l.b16 %v200
        %v305 = vunpack.c.l.b16 %v201
        %v306 = vunpack.c.l.b16 %v202
        %v307 = vpack.c.b16 %v300, %v299
        %v308 = vpack.c.b16 %v302, %v301
        %v309 = vpack.c.b16 %v304, %v303
        %v310 = vpack.c.b16 %v306, %v305
        %v316 = vsel %vm247, %v194, 0
        %318 = vmatprep.subr.bf16.mxu0 0
        %319 = vmatpush1.bf16.msra.mxu0 0
        %320 = vmatprep.subr.bf16.mxu0 0
        %321 = vmatpush1.bf16.msra.mxu0 0
        %322 = vmatprep.subr.bf16.mxu0 0
        %323 = vmatpush1.bf16.msra.mxu0 0
        %324 = vmatprep.subr.bf16.mxu0 0
        %325 = vmatpush1.bf16.msra.mxu0 0
        %326 = vmatprep.subr.bf16.mxu0 0
        %327 = vmatpush1.bf16.msra.mxu0 %v310
        %328 = vmatprep.subr.bf16.mxu0 0
        %329 = vmatpush1.bf16.msra.mxu0 %v309
        %330 = vmatprep.subr.bf16.mxu0 0
        %331 = vmatpush1.bf16.msra.mxu0 %v308
        %332 = vmatprep.subr.bf16.mxu0 0
        %333 = vmatpush1.bf16.msra.mxu0 %v307
        %334 = vmatprep.subr.bf16.mxu0 0
        %335 = vmatpush2.bf16.msra.mxu0 0
        %336 = vmatprep.subr.bf16.mxu0 0
        %337 = vmatpush2.bf16.msra.mxu0 0
        %338 = vmatprep.subr.bf16.mxu0 0
        %339 = vmatpush2.bf16.msra.mxu0 0
        %340 = vmatprep.subr.bf16.mxu0 0
        %341 = vmatpush2.bf16.msra.mxu0 0
        %342 = vmatprep.subr.bf16.mxu0 0
        %343 = vmatpush2.bf16.msra.mxu0 0
        %344 = vmatprep.subr.bf16.mxu0 0
        %345 = vmatpush2.bf16.msra.mxu0 0
        %346 = vmatprep.subr.bf16.mxu0 0
        %347 = vmatpush2.bf16.msra.mxu0 0
        %348 = vmatprep.subr.bf16.mxu0 0
        %349 = vmatpush2.bf16.msra.mxu0 0
        %350 = vmatprep.mubr.bf16.mxu0 0
        %351 = vmatmul.mubr.bf16.gmra.mxu0 %v316
        %v352 = vpop.f32.mrf.mxu0
        %v353 = vadd.f32 %v286, %v352
        %v354 = vpop.f32.mrf.mxu0
        %v355 = vpop.f32.mrf.mxu0
        %v356 = vpop.f32.mrf.mxu0
        %357 = vdwg.mxu0
        %s358 = sadd.s32 %s187, 1
        %s359 = smul.addr %s358, 4
        %s360 = scalar_lea.vmem %s172, %s359
        %v361 = vld [vmem:[%s360] sm:$0x3]
        %s362 = scalar_lea.vmem %s1, 64
        %v363 = vld [vmem:[%s362] sm:$0xf]
        %v364 = vld [vmem:[%s362 + $0x4] sm:$0xf]
        %v365 = vld [vmem:[%s362 + $0x8] sm:$0xf]
        %v366 = vld [vmem:[%s362 + $0xc] sm:$0xf]
        %v367 = vld [vmem:[%s362 + $0x10] sm:$0xf]
        %v368 = vld [vmem:[%s362 + $0x14] sm:$0xf]
        %v369 = vld [vmem:[%s362 + $0x18] sm:$0xf]
        %v370 = vld [vmem:[%s362 + $0x1c] sm:$0xf]
        %v379 = vunpack.c.l.b16 %v363
        %v380 = vunpack.c.l.b16 %v364
        %v381 = vunpack.c.l.b16 %v365
        %v382 = vunpack.c.l.b16 %v366
        %v383 = vunpack.c.l.b16 %v367
        %v384 = vunpack.c.l.b16 %v368
        %v385 = vunpack.c.l.b16 %v369
        %v386 = vunpack.c.l.b16 %v370
        %v387 = vpack.c.b16 %v380, %v379
        %v388 = vpack.c.b16 %v382, %v381
        %v389 = vpack.c.b16 %v384, %v383
        %v390 = vpack.c.b16 %v386, %v385
        %v396 = vsel %vm247, %v361, 0
        %398 = vmatprep.subr.bf16.mxu0 0
        %399 = vmatpush1.bf16.msra.mxu0 0
        %400 = vmatprep.subr.bf16.mxu0 0
        %401 = vmatpush1.bf16.msra.mxu0 0
        %402 = vmatprep.subr.bf16.mxu0 0
        %403 = vmatpush1.bf16.msra.mxu0 0
        %404 = vmatprep.subr.bf16.mxu0 0
        %405 = vmatpush1.bf16.msra.mxu0 0
        %406 = vmatprep.subr.bf16.mxu0 0
        %407 = vmatpush1.bf16.msra.mxu0 %v390
        %408 = vmatprep.subr.bf16.mxu0 0
        %409 = vmatpush1.bf16.msra.mxu0 %v389
        %410 = vmatprep.subr.bf16.mxu0 0
        %411 = vmatpush1.bf16.msra.mxu0 %v388
        %412 = vmatprep.subr.bf16.mxu0 0
        %413 = vmatpush1.bf16.msra.mxu0 %v387
        %414 = vmatprep.subr.bf16.mxu0 0
        %415 = vmatpush2.bf16.msra.mxu0 0
        %416 = vmatprep.subr.bf16.mxu0 0
        %417 = vmatpush2.bf16.msra.mxu0 0
        %418 = vmatprep.subr.bf16.mxu0 0
        %419 = vmatpush2.bf16.msra.mxu0 0
        %420 = vmatprep.subr.bf16.mxu0 0
        %421 = vmatpush2.bf16.msra.mxu0 0
        %422 = vmatprep.subr.bf16.mxu0 0
        %423 = vmatpush2.bf16.msra.mxu0 0
        %424 = vmatprep.subr.bf16.mxu0 0
        %425 = vmatpush2.bf16.msra.mxu0 0
        %426 = vmatprep.subr.bf16.mxu0 0
        %427 = vmatpush2.bf16.msra.mxu0 0
        %428 = vmatprep.subr.bf16.mxu0 0
        %429 = vmatpush2.bf16.msra.mxu0 0
        %430 = vmatprep.mubr.bf16.mxu0 0
        %431 = vmatmul.mubr.bf16.gmra.mxu0 %v396
        %v432 = vpop.f32.mrf.mxu0
        %v433 = vadd.f32 0.0, %v432
        %v434 = vpop.f32.mrf.mxu0
        %v435 = vpop.f32.mrf.mxu0
        %v436 = vpop.f32.mrf.mxu0
        %437 = vdwg.mxu0
        %v438 = vadd.f32 %v353, %v433
        %v439 = vld [vmem:[%s360] sm:$0x7]
        %s440 = scalar_lea.vmem %s1, 96
        %v441 = vld [vmem:[%s440] sm:$0xf]
        %v442 = vld [vmem:[%s440 + $0x4] sm:$0xf]
        %v443 = vld [vmem:[%s440 + $0x8] sm:$0xf]
        %v444 = vld [vmem:[%s440 + $0xc] sm:$0xf]
        %v445 = vld [vmem:[%s440 + $0x10] sm:$0xf]
        %v446 = vld [vmem:[%s440 + $0x14] sm:$0xf]
        %v447 = vld [vmem:[%s440 + $0x18] sm:$0xf]
        %v448 = vld [vmem:[%s440 + $0x1c] sm:$0xf]
        %v450 = vunpack.c.l.b16 %v439
        %v451 = vpack.c.b16 %v450, %v450
        %v453 = vshrl.u32 %v451, 16
        %v455 = vshll.u32 %v451, 16
        %v457 = vrot.slane %v455, 1
        %v458 = vor.u32 %v453, %v457
        %v467 = vunpack.c.l.b16 %v441
        %v468 = vunpack.c.l.b16 %v442
        %v469 = vunpack.c.l.b16 %v443
        %v470 = vunpack.c.l.b16 %v444
        %v471 = vunpack.c.l.b16 %v445
        %v472 = vunpack.c.l.b16 %v446
        %v473 = vunpack.c.l.b16 %v447
        %v474 = vunpack.c.l.b16 %v448
        %v475 = vpack.c.b16 %v468, %v467
        %v476 = vpack.c.b16 %v470, %v469
        %v477 = vpack.c.b16 %v472, %v471
        %v478 = vpack.c.b16 %v474, %v473
        %v484 = vsel %vm247, %v458, 0
        %486 = vmatprep.subr.bf16.mxu0 0
        %487 = vmatpush1.bf16.msra.mxu0 0
        %488 = vmatprep.subr.bf16.mxu0 0
        %489 = vmatpush1.bf16.msra.mxu0 0
        %490 = vmatprep.subr.bf16.mxu0 0
        %491 = vmatpush1.bf16.msra.mxu0 0
        %492 = vmatprep.subr.bf16.mxu0 0
        %493 = vmatpush1.bf16.msra.mxu0 0
        %494 = vmatprep.subr.bf16.mxu0 0
        %495 = vmatpush1.bf16.msra.mxu0 %v478
        %496 = vmatprep.subr.bf16.mxu0 0
        %497 = vmatpush1.bf16.msra.mxu0 %v477
        %498 = vmatprep.subr.bf16.mxu0 0
        %499 = vmatpush1.bf16.msra.mxu0 %v476
        %500 = vmatprep.subr.bf16.mxu0 0
        %501 = vmatpush1.bf16.msra.mxu0 %v475
        %502 = vmatprep.subr.bf16.mxu0 0
        %503 = vmatpush2.bf16.msra.mxu0 0
        %504 = vmatprep.subr.bf16.mxu0 0
        %505 = vmatpush2.bf16.msra.mxu0 0
        %506 = vmatprep.subr.bf16.mxu0 0
        %507 = vmatpush2.bf16.msra.mxu0 0
        %508 = vmatprep.subr.bf16.mxu0 0
        %509 = vmatpush2.bf16.msra.mxu0 0
        %510 = vmatprep.subr.bf16.mxu0 0
        %511 = vmatpush2.bf16.msra.mxu0 0
        %512 = vmatprep.subr.bf16.mxu0 0
        %513 = vmatpush2.bf16.msra.mxu0 0
        %514 = vmatprep.subr.bf16.mxu0 0
        %515 = vmatpush2.bf16.msra.mxu0 0
        %516 = vmatprep.subr.bf16.mxu0 0
        %517 = vmatpush2.bf16.msra.mxu0 0
        %518 = vmatprep.mubr.bf16.mxu0 0
        %519 = vmatmul.mubr.bf16.gmra.mxu0 %v484
        %v520 = vpop.f32.mrf.mxu0
        %v521 = vadd.f32 0.0, %v520
        %v522 = vpop.f32.mrf.mxu0
        %v523 = vpop.f32.mrf.mxu0
        %v524 = vpop.f32.mrf.mxu0
        %525 = vdwg.mxu0
        %v526 = vadd.f32 %v438, %v521
        %v527 = vld [vmem:[#allocation2] sm:$0x1]
        %vm528 = vcmask 257024
        %v529 = vsel %vm528, %v526, 0.0
        %v530 = vrot.slane %v529, 4
        %v531 = vadd.f32 %v529, %v530
        %v532 = vrot.slane %v531, 2
        %v533 = vadd.f32 %v531, %v532
        %v534 = vrot.slane %v533, 1
        %v535 = vadd.f32 %v533, %v534
        %v536 = vadd.f32 %v527, %v535
        %537 = vst.msk [vmem:[#allocation2] sm:$0x1] %vm183, %v536
        %v538 = vld [vmem:[#allocation3] sm:$0x1]
        %v539 = vmul.f32 %v526, %v526
        %v540 = vsel %vm528, %v539, 0.0
        %v541 = vrot.slane %v540, 4
        %v542 = vadd.f32 %v540, %v541
        %v543 = vrot.slane %v542, 2
        %v544 = vadd.f32 %v542, %v543
        %v545 = vrot.slane %v544, 1
        %v546 = vadd.f32 %v544, %v545
        %v547 = vadd.f32 %v538, %v546
        %548 = vst.msk [vmem:[#allocation3] sm:$0x1] %vm183, %v547
        %v549 = vpack.c.bf16 %v526, %v526
        %s550 = smul.u32 %s187, 2
        %s551 = smul.addr %s550, 2
        %s552 = scalar_lea.vmem %s177, %s551
        %vm553 = vcmask 254976
        %554 = vst.msk [vmem:[%s552] sm:$0x3] %vm553, %v549
        %v555 = vld [vmem:[%s193] sm:$0x7]
        %s556 = scalar_lea.vmem %s1, 128
        %v557 = vld [vmem:[%s556] sm:$0xf]
        %v558 = vld [vmem:[%s556 + $0x4] sm:$0xf]
        %v559 = vld [vmem:[%s556 + $0x8] sm:$0xf]
        %v560 = vld [vmem:[%s556 + $0xc] sm:$0xf]
        %v561 = vld [vmem:[%s556 + $0x10] sm:$0xf]
        %v562 = vld [vmem:[%s556 + $0x14] sm:$0xf]
        %v563 = vld [vmem:[%s556 + $0x18] sm:$0xf]
        %v564 = vld [vmem:[%s556 + $0x1c] sm:$0xf]
        %v565 = vld [vmem:[%s193] sm:$0x6]
        %s566 = scalar_lea.vmem %s1, 160
        %v567 = vld [vmem:[%s566] sm:$0xf]
        %v568 = vld [vmem:[%s566 + $0x4] sm:$0xf]
        %v569 = vld [vmem:[%s566 + $0x8] sm:$0xf]
        %v570 = vld [vmem:[%s566 + $0xc] sm:$0xf]
        %v571 = vld [vmem:[%s566 + $0x10] sm:$0xf]
        %v572 = vld [vmem:[%s566 + $0x14] sm:$0xf]
        %v573 = vld [vmem:[%s566 + $0x18] sm:$0xf]
        %v574 = vld [vmem:[%s566 + $0x1c] sm:$0xf]
        %v576 = vunpack.c.l.b16 %v565
        %v577 = vpack.c.b16 %v576, %v576
        %v578 = vrot.slane %v577, 1
        %v587 = vunpack.c.l.b16 %v567
        %v588 = vunpack.c.l.b16 %v568
        %v589 = vunpack.c.l.b16 %v569
        %v590 = vunpack.c.l.b16 %v570
        %v591 = vunpack.c.l.b16 %v571
        %v592 = vunpack.c.l.b16 %v572
        %v593 = vunpack.c.l.b16 %v573
        %v594 = vunpack.c.l.b16 %v574
        %v595 = vpack.c.b16 %v588, %v587
        %v596 = vpack.c.b16 %v590, %v589
        %v597 = vpack.c.b16 %v592, %v591
        %v598 = vpack.c.b16 %v594, %v593
        %v604 = vsel %vm247, %v578, 0
        %606 = vmatprep.subr.bf16.mxu0 0
        %607 = vmatpush1.bf16.msra.mxu0 0
        %608 = vmatprep.subr.bf16.mxu0 0
        %609 = vmatpush1.bf16.msra.mxu0 0
        %610 = vmatprep.subr.bf16.mxu0 0
        %611 = vmatpush1.bf16.msra.mxu0 0
        %612 = vmatprep.subr.bf16.mxu0 0
        %613 = vmatpush1.bf16.msra.mxu0 0
        %614 = vmatprep.subr.bf16.mxu0 0
        %615 = vmatpush1.bf16.msra.mxu0 %v598
        %616 = vmatprep.subr.bf16.mxu0 0
        %617 = vmatpush1.bf16.msra.mxu0 %v597
        %618 = vmatprep.subr.bf16.mxu0 0
        %619 = vmatpush1.bf16.msra.mxu0 %v596
        %620 = vmatprep.subr.bf16.mxu0 0
        %621 = vmatpush1.bf16.msra.mxu0 %v595
        %622 = vmatprep.subr.bf16.mxu0 0
        %623 = vmatpush2.bf16.msra.mxu0 0
        %624 = vmatprep.subr.bf16.mxu0 0
        %625 = vmatpush2.bf16.msra.mxu0 0
        %626 = vmatprep.subr.bf16.mxu0 0
        %627 = vmatpush2.bf16.msra.mxu0 0
        %628 = vmatprep.subr.bf16.mxu0 0
        %629 = vmatpush2.bf16.msra.mxu0 0
        %630 = vmatprep.subr.bf16.mxu0 0
        %631 = vmatpush2.bf16.msra.mxu0 0
        %632 = vmatprep.subr.bf16.mxu0 0
        %633 = vmatpush2.bf16.msra.mxu0 0
        %634 = vmatprep.subr.bf16.mxu0 0
        %635 = vmatpush2.bf16.msra.mxu0 0
        %636 = vmatprep.subr.bf16.mxu0 0
        %637 = vmatpush2.bf16.msra.mxu0 0
        %638 = vmatprep.mubr.bf16.mxu0 0
        %639 = vmatmul.mubr.bf16.gmra.mxu0 %v604
        %v640 = vpop.f32.mrf.mxu0
        %v641 = vadd.f32 0.0, %v640
        %v642 = vpop.f32.mrf.mxu0
        %v643 = vpop.f32.mrf.mxu0
        %v644 = vpop.f32.mrf.mxu0
        %645 = vdwg.mxu0
        %v647 = vunpack.c.l.b16 %v555
        %v648 = vpack.c.b16 %v647, %v647
        %v650 = vshrl.u32 %v648, 16
        %v652 = vshll.u32 %v648, 16
        %v654 = vrot.slane %v652, 1
        %v655 = vor.u32 %v650, %v654
        %v664 = vunpack.c.l.b16 %v557
        %v665 = vunpack.c.l.b16 %v558
        %v666 = vunpack.c.l.b16 %v559
        %v667 = vunpack.c.l.b16 %v560
        %v668 = vunpack.c.l.b16 %v561
        %v669 = vunpack.c.l.b16 %v562
        %v670 = vunpack.c.l.b16 %v563
        %v671 = vunpack.c.l.b16 %v564
        %v672 = vpack.c.b16 %v665, %v664
        %v673 = vpack.c.b16 %v667, %v666
        %v674 = vpack.c.b16 %v669, %v668
        %v675 = vpack.c.b16 %v671, %v670
        %v681 = vsel %vm247, %v655, 0
        %683 = vmatprep.subr.bf16.mxu0 0
        %684 = vmatpush1.bf16.msra.mxu0 0
        %685 = vmatprep.subr.bf16.mxu0 0
        %686 = vmatpush1.bf16.msra.mxu0 0
        %687 = vmatprep.subr.bf16.mxu0 0
        %688 = vmatpush1.bf16.msra.mxu0 0
        %689 = vmatprep.subr.bf16.mxu0 0
        %690 = vmatpush1.bf16.msra.mxu0 0
        %691 = vmatprep.subr.bf16.mxu0 0
        %692 = vmatpush1.bf16.msra.mxu0 %v675
        %693 = vmatprep.subr.bf16.mxu0 0
        %694 = vmatpush1.bf16.msra.mxu0 %v674
        %695 = vmatprep.subr.bf16.mxu0 0
        %696 = vmatpush1.bf16.msra.mxu0 %v673
        %697 = vmatprep.subr.bf16.mxu0 0
        %698 = vmatpush1.bf16.msra.mxu0 %v672
        %699 = vmatprep.subr.bf16.mxu0 0
        %700 = vmatpush2.bf16.msra.mxu0 0
        %701 = vmatprep.subr.bf16.mxu0 0
        %702 = vmatpush2.bf16.msra.mxu0 0
        %703 = vmatprep.subr.bf16.mxu0 0
        %704 = vmatpush2.bf16.msra.mxu0 0
        %705 = vmatprep.subr.bf16.mxu0 0
        %706 = vmatpush2.bf16.msra.mxu0 0
        %707 = vmatprep.subr.bf16.mxu0 0
        %708 = vmatpush2.bf16.msra.mxu0 0
        %709 = vmatprep.subr.bf16.mxu0 0
        %710 = vmatpush2.bf16.msra.mxu0 0
        %711 = vmatprep.subr.bf16.mxu0 0
        %712 = vmatpush2.bf16.msra.mxu0 0
        %713 = vmatprep.subr.bf16.mxu0 0
        %714 = vmatpush2.bf16.msra.mxu0 0
        %715 = vmatprep.mubr.bf16.mxu0 0
        %716 = vmatmul.mubr.bf16.gmra.mxu0 %v681
        %v717 = vpop.f32.mrf.mxu0
        %v718 = vadd.f32 %v641, %v717
        %v719 = vpop.f32.mrf.mxu0
        %v720 = vpop.f32.mrf.mxu0
        %v721 = vpop.f32.mrf.mxu0
        %722 = vdwg.mxu0
        %v723 = vld [vmem:[%s360] sm:$0x7]
        %s724 = scalar_lea.vmem %s1, 192
        %v725 = vld [vmem:[%s724] sm:$0xf]
        %v726 = vld [vmem:[%s724 + $0x4] sm:$0xf]
        %v727 = vld [vmem:[%s724 + $0x8] sm:$0xf]
        %v728 = vld [vmem:[%s724 + $0xc] sm:$0xf]
        %v729 = vld [vmem:[%s724 + $0x10] sm:$0xf]
        %v730 = vld [vmem:[%s724 + $0x14] sm:$0xf]
        %v731 = vld [vmem:[%s724 + $0x18] sm:$0xf]
        %v732 = vld [vmem:[%s724 + $0x1c] sm:$0xf]
        %v734 = vunpack.c.l.b16 %v723
        %v735 = vpack.c.b16 %v734, %v734
        %v737 = vshrl.u32 %v735, 16
        %v739 = vshll.u32 %v735, 16
        %v741 = vrot.slane %v739, 1
        %v742 = vor.u32 %v737, %v741
        %v751 = vunpack.c.l.b16 %v725
        %v752 = vunpack.c.l.b16 %v726
        %v753 = vunpack.c.l.b16 %v727
        %v754 = vunpack.c.l.b16 %v728
        %v755 = vunpack.c.l.b16 %v729
        %v756 = vunpack.c.l.b16 %v730
        %v757 = vunpack.c.l.b16 %v731
        %v758 = vunpack.c.l.b16 %v732
        %v759 = vpack.c.b16 %v752, %v751
        %v760 = vpack.c.b16 %v754, %v753
        %v761 = vpack.c.b16 %v756, %v755
        %v762 = vpack.c.b16 %v758, %v757
        %v768 = vsel %vm247, %v742, 0
        %770 = vmatprep.subr.bf16.mxu0 0
        %771 = vmatpush1.bf16.msra.mxu0 0
        %772 = vmatprep.subr.bf16.mxu0 0
        %773 = vmatpush1.bf16.msra.mxu0 0
        %774 = vmatprep.subr.bf16.mxu0 0
        %775 = vmatpush1.bf16.msra.mxu0 0
        %776 = vmatprep.subr.bf16.mxu0 0
        %777 = vmatpush1.bf16.msra.mxu0 0
        %778 = vmatprep.subr.bf16.mxu0 0
        %779 = vmatpush1.bf16.msra.mxu0 %v762
        %780 = vmatprep.subr.bf16.mxu0 0
        %781 = vmatpush1.bf16.msra.mxu0 %v761
        %782 = vmatprep.subr.bf16.mxu0 0
        %783 = vmatpush1.bf16.msra.mxu0 %v760
        %784 = vmatprep.subr.bf16.mxu0 0
        %785 = vmatpush1.bf16.msra.mxu0 %v759
        %786 = vmatprep.subr.bf16.mxu0 0
        %787 = vmatpush2.bf16.msra.mxu0 0
        %788 = vmatprep.subr.bf16.mxu0 0
        %789 = vmatpush2.bf16.msra.mxu0 0
        %790 = vmatprep.subr.bf16.mxu0 0
        %791 = vmatpush2.bf16.msra.mxu0 0
        %792 = vmatprep.subr.bf16.mxu0 0
        %793 = vmatpush2.bf16.msra.mxu0 0
        %794 = vmatprep.subr.bf16.mxu0 0
        %795 = vmatpush2.bf16.msra.mxu0 0
        %796 = vmatprep.subr.bf16.mxu0 0
        %797 = vmatpush2.bf16.msra.mxu0 0
        %798 = vmatprep.subr.bf16.mxu0 0
        %799 = vmatpush2.bf16.msra.mxu0 0
        %800 = vmatprep.subr.bf16.mxu0 0
        %801 = vmatpush2.bf16.msra.mxu0 0
        %802 = vmatprep.mubr.bf16.mxu0 0
        %803 = vmatmul.mubr.bf16.gmra.mxu0 %v768
        %v804 = vpop.f32.mrf.mxu0
        %v805 = vadd.f32 0.0, %v804
        %v806 = vpop.f32.mrf.mxu0
        %v807 = vpop.f32.mrf.mxu0
        %v808 = vpop.f32.mrf.mxu0
        %809 = vdwg.mxu0
        %v810 = vadd.f32 %v718, %v805
        %v811 = vld [vmem:[%s360] sm:$0x6]
        %s812 = scalar_lea.vmem %s1, 224
        %v813 = vld [vmem:[%s812] sm:$0xf]
        %v814 = vld [vmem:[%s812 + $0x4] sm:$0xf]
        %v815 = vld [vmem:[%s812 + $0x8] sm:$0xf]
        %v816 = vld [vmem:[%s812 + $0xc] sm:$0xf]
        %v817 = vld [vmem:[%s812 + $0x10] sm:$0xf]
        %v818 = vld [vmem:[%s812 + $0x14] sm:$0xf]
        %v819 = vld [vmem:[%s812 + $0x18] sm:$0xf]
        %v820 = vld [vmem:[%s812 + $0x1c] sm:$0xf]
        %v822 = vunpack.c.l.b16 %v811
        %v823 = vpack.c.b16 %v822, %v822
        %v824 = vrot.slane %v823, 1
        %v833 = vunpack.c.l.b16 %v813
        %v834 = vunpack.c.l.b16 %v814
        %v835 = vunpack.c.l.b16 %v815
        %v836 = vunpack.c.l.b16 %v816
        %v837 = vunpack.c.l.b16 %v817
        %v838 = vunpack.c.l.b16 %v818
        %v839 = vunpack.c.l.b16 %v819
        %v840 = vunpack.c.l.b16 %v820
        %v841 = vpack.c.b16 %v834, %v833
        %v842 = vpack.c.b16 %v836, %v835
        %v843 = vpack.c.b16 %v838, %v837
        %v844 = vpack.c.b16 %v840, %v839
        %v850 = vsel %vm247, %v824, 0
        %852 = vmatprep.subr.bf16.mxu0 0
        %853 = vmatpush1.bf16.msra.mxu0 0
        %854 = vmatprep.subr.bf16.mxu0 0
        %855 = vmatpush1.bf16.msra.mxu0 0
        %856 = vmatprep.subr.bf16.mxu0 0
        %857 = vmatpush1.bf16.msra.mxu0 0
        %858 = vmatprep.subr.bf16.mxu0 0
        %859 = vmatpush1.bf16.msra.mxu0 0
        %860 = vmatprep.subr.bf16.mxu0 0
        %861 = vmatpush1.bf16.msra.mxu0 %v844
        %862 = vmatprep.subr.bf16.mxu0 0
        %863 = vmatpush1.bf16.msra.mxu0 %v843
        %864 = vmatprep.subr.bf16.mxu0 0
        %865 = vmatpush1.bf16.msra.mxu0 %v842
        %866 = vmatprep.subr.bf16.mxu0 0
        %867 = vmatpush1.bf16.msra.mxu0 %v841
        %868 = vmatprep.subr.bf16.mxu0 0
        %869 = vmatpush2.bf16.msra.mxu0 0
        %870 = vmatprep.subr.bf16.mxu0 0
        %871 = vmatpush2.bf16.msra.mxu0 0
        %872 = vmatprep.subr.bf16.mxu0 0
        %873 = vmatpush2.bf16.msra.mxu0 0
        %874 = vmatprep.subr.bf16.mxu0 0
        %875 = vmatpush2.bf16.msra.mxu0 0
        %876 = vmatprep.subr.bf16.mxu0 0
        %877 = vmatpush2.bf16.msra.mxu0 0
        %878 = vmatprep.subr.bf16.mxu0 0
        %879 = vmatpush2.bf16.msra.mxu0 0
        %880 = vmatprep.subr.bf16.mxu0 0
        %881 = vmatpush2.bf16.msra.mxu0 0
        %882 = vmatprep.subr.bf16.mxu0 0
        %883 = vmatpush2.bf16.msra.mxu0 0
        %884 = vmatprep.mubr.bf16.mxu0 0
        %885 = vmatmul.mubr.bf16.gmra.mxu0 %v850
        %v886 = vpop.f32.mrf.mxu0
        %v887 = vadd.f32 0.0, %v886
        %v888 = vpop.f32.mrf.mxu0
        %v889 = vpop.f32.mrf.mxu0
        %v890 = vpop.f32.mrf.mxu0
        %891 = vdwg.mxu0
        %v892 = vadd.f32 %v810, %v887
        %v893 = vld [vmem:[#allocation2] sm:$0x1]
        %v894 = vsel %vm528, %v892, 0.0
        %v895 = vrot.slane %v894, 4
        %v896 = vadd.f32 %v894, %v895
        %v897 = vrot.slane %v896, 2
        %v898 = vadd.f32 %v896, %v897
        %v899 = vrot.slane %v898, 1
        %v900 = vadd.f32 %v898, %v899
        %v901 = vadd.f32 %v893, %v900
        %902 = vst.msk [vmem:[#allocation2] sm:$0x1] %vm183, %v901
        %v903 = vld [vmem:[#allocation3] sm:$0x1]
        %v904 = vmul.f32 %v892, %v892
        %v905 = vsel %vm528, %v904, 0.0
        %v906 = vrot.slane %v905, 4
        %v907 = vadd.f32 %v905, %v906
        %v908 = vrot.slane %v907, 2
        %v909 = vadd.f32 %v907, %v908
        %v910 = vrot.slane %v909, 1
        %v911 = vadd.f32 %v909, %v910
        %v912 = vadd.f32 %v903, %v911
        %913 = vst.msk [vmem:[#allocation3] sm:$0x1] %vm183, %v912
        %v914 = vpack.c.bf16 %v892, %v892
        %v917 = vunpack.c.l.s4 1983009808
        %v918 = vunpack.c.0.s8 %v917
        %v919 = vlaneseq
        %v920 = vshrl.u32 %v919, 7
        %v921 = vsub.s32 %v918, %v920
        %v922 = vrot.slane %v914, %v921
        %923 = vrot.lane.b32.xlu0 %v922, 32
        %v924 = vpop.permute.xlu0 %923
        %vm926 = vcmask 517376
        %927 = vst.msk [vmem:[%s552] sm:$0x3] %vm926, %v924
        %v928 = vld [vmem:[%s360] sm:$0x3]
        %s929 = scalar_lea.vmem %s1, 256
        %v930 = vld [vmem:[%s929] sm:$0xf]
        %v931 = vld [vmem:[%s929 + $0x4] sm:$0xf]
        %v932 = vld [vmem:[%s929 + $0x8] sm:$0xf]
        %v933 = vld [vmem:[%s929 + $0xc] sm:$0xf]
        %v934 = vld [vmem:[%s929 + $0x10] sm:$0xf]
        %v935 = vld [vmem:[%s929 + $0x14] sm:$0xf]
        %v936 = vld [vmem:[%s929 + $0x18] sm:$0xf]
        %v937 = vld [vmem:[%s929 + $0x1c] sm:$0xf]
        %v938 = vld [vmem:[%s360] sm:$0x7]
        %s939 = scalar_lea.vmem %s1, 288
        %v940 = vld [vmem:[%s939] sm:$0xf]
        %v941 = vld [vmem:[%s939 + $0x4] sm:$0xf]
        %v942 = vld [vmem:[%s939 + $0x8] sm:$0xf]
        %v943 = vld [vmem:[%s939 + $0xc] sm:$0xf]
        %v944 = vld [vmem:[%s939 + $0x10] sm:$0xf]
        %v945 = vld [vmem:[%s939 + $0x14] sm:$0xf]
        %v946 = vld [vmem:[%s939 + $0x18] sm:$0xf]
        %v947 = vld [vmem:[%s939 + $0x1c] sm:$0xf]
        %v949 = vunpack.c.l.b16 %v938
        %v950 = vpack.c.b16 %v949, %v949
        %v952 = vshrl.u32 %v950, 16
        %v954 = vshll.u32 %v950, 16
        %v956 = vrot.slane %v954, 1
        %v957 = vor.u32 %v952, %v956
        %v966 = vunpack.c.l.b16 %v940
        %v967 = vunpack.c.l.b16 %v941
        %v968 = vunpack.c.l.b16 %v942
        %v969 = vunpack.c.l.b16 %v943
        %v970 = vunpack.c.l.b16 %v944
        %v971 = vunpack.c.l.b16 %v945
        %v972 = vunpack.c.l.b16 %v946
        %v973 = vunpack.c.l.b16 %v947
        %v974 = vpack.c.b16 %v967, %v966
        %v975 = vpack.c.b16 %v969, %v968
        %v976 = vpack.c.b16 %v971, %v970
        %v977 = vpack.c.b16 %v973, %v972
        %v983 = vsel %vm247, %v957, 0
        %985 = vmatprep.subr.bf16.mxu0 0
        %986 = vmatpush1.bf16.msra.mxu0 0
        %987 = vmatprep.subr.bf16.mxu0 0
        %988 = vmatpush1.bf16.msra.mxu0 0
        %989 = vmatprep.subr.bf16.mxu0 0
        %990 = vmatpush1.bf16.msra.mxu0 0
        %991 = vmatprep.subr.bf16.mxu0 0
        %992 = vmatpush1.bf16.msra.mxu0 0
        %993 = vmatprep.subr.bf16.mxu0 0
        %994 = vmatpush1.bf16.msra.mxu0 %v977
        %995 = vmatprep.subr.bf16.mxu0 0
        %996 = vmatpush1.bf16.msra.mxu0 %v976
        %997 = vmatprep.subr.bf16.mxu0 0
        %998 = vmatpush1.bf16.msra.mxu0 %v975
        %999 = vmatprep.subr.bf16.mxu0 0
        %1000 = vmatpush1.bf16.msra.mxu0 %v974
        %1001 = vmatprep.subr.bf16.mxu0 0
        %1002 = vmatpush2.bf16.msra.mxu0 0
        %1003 = vmatprep.subr.bf16.mxu0 0
        %1004 = vmatpush2.bf16.msra.mxu0 0
        %1005 = vmatprep.subr.bf16.mxu0 0
        %1006 = vmatpush2.bf16.msra.mxu0 0
        %1007 = vmatprep.subr.bf16.mxu0 0
        %1008 = vmatpush2.bf16.msra.mxu0 0
        %1009 = vmatprep.subr.bf16.mxu0 0
        %1010 = vmatpush2.bf16.msra.mxu0 0
        %1011 = vmatprep.subr.bf16.mxu0 0
        %1012 = vmatpush2.bf16.msra.mxu0 0
        %1013 = vmatprep.subr.bf16.mxu0 0
        %1014 = vmatpush2.bf16.msra.mxu0 0
        %1015 = vmatprep.subr.bf16.mxu0 0
        %1016 = vmatpush2.bf16.msra.mxu0 0
        %1017 = vmatprep.mubr.bf16.mxu0 0
        %1018 = vmatmul.mubr.bf16.gmra.mxu0 %v983
        %v1019 = vpop.f32.mrf.mxu0
        %v1020 = vadd.f32 0.0, %v1019
        %v1021 = vpop.f32.mrf.mxu0
        %v1022 = vpop.f32.mrf.mxu0
        %v1023 = vpop.f32.mrf.mxu0
        %1024 = vdwg.mxu0
        %v1033 = vunpack.c.l.b16 %v930
        %v1034 = vunpack.c.l.b16 %v931
        %v1035 = vunpack.c.l.b16 %v932
        %v1036 = vunpack.c.l.b16 %v933
        %v1037 = vunpack.c.l.b16 %v934
        %v1038 = vunpack.c.l.b16 %v935
        %v1039 = vunpack.c.l.b16 %v936
        %v1040 = vunpack.c.l.b16 %v937
        %v1041 = vpack.c.b16 %v1034, %v1033
        %v1042 = vpack.c.b16 %v1036, %v1035
        %v1043 = vpack.c.b16 %v1038, %v1037
        %v1044 = vpack.c.b16 %v1040, %v1039
        %v1050 = vsel %vm247, %v928, 0
        %1052 = vmatprep.subr.bf16.mxu0 0
        %1053 = vmatpush1.bf16.msra.mxu0 0
        %1054 = vmatprep.subr.bf16.mxu0 0
        %1055 = vmatpush1.bf16.msra.mxu0 0
        %1056 = vmatprep.subr.bf16.mxu0 0
        %1057 = vmatpush1.bf16.msra.mxu0 0
        %1058 = vmatprep.subr.bf16.mxu0 0
        %1059 = vmatpush1.bf16.msra.mxu0 0
        %1060 = vmatprep.subr.bf16.mxu0 0
        %1061 = vmatpush1.bf16.msra.mxu0 %v1044
        %1062 = vmatprep.subr.bf16.mxu0 0
        %1063 = vmatpush1.bf16.msra.mxu0 %v1043
        %1064 = vmatprep.subr.bf16.mxu0 0
        %1065 = vmatpush1.bf16.msra.mxu0 %v1042
        %1066 = vmatprep.subr.bf16.mxu0 0
        %1067 = vmatpush1.bf16.msra.mxu0 %v1041
        %1068 = vmatprep.subr.bf16.mxu0 0
        %1069 = vmatpush2.bf16.msra.mxu0 0
        %1070 = vmatprep.subr.bf16.mxu0 0
        %1071 = vmatpush2.bf16.msra.mxu0 0
        %1072 = vmatprep.subr.bf16.mxu0 0
        %1073 = vmatpush2.bf16.msra.mxu0 0
        %1074 = vmatprep.subr.bf16.mxu0 0
        %1075 = vmatpush2.bf16.msra.mxu0 0
        %1076 = vmatprep.subr.bf16.mxu0 0
        %1077 = vmatpush2.bf16.msra.mxu0 0
        %1078 = vmatprep.subr.bf16.mxu0 0
        %1079 = vmatpush2.bf16.msra.mxu0 0
        %1080 = vmatprep.subr.bf16.mxu0 0
        %1081 = vmatpush2.bf16.msra.mxu0 0
        %1082 = vmatprep.subr.bf16.mxu0 0
        %1083 = vmatpush2.bf16.msra.mxu0 0
        %1084 = vmatprep.mubr.bf16.mxu0 0
        %1085 = vmatmul.mubr.bf16.gmra.mxu0 %v1050
        %v1086 = vpop.f32.mrf.mxu0
        %v1087 = vadd.f32 %v1020, %v1086
        %v1088 = vpop.f32.mrf.mxu0
        %v1089 = vpop.f32.mrf.mxu0
        %v1090 = vpop.f32.mrf.mxu0
        %1091 = vdwg.mxu0
        %s1092 = sadd.s32 %s187, 2
        %s1093 = smul.addr %s1092, 4
        %s1094 = scalar_lea.vmem %s172, %s1093
        %v1095 = vld [vmem:[%s1094] sm:$0x3]
        %s1096 = scalar_lea.vmem %s1, 320
        %v1097 = vld [vmem:[%s1096] sm:$0xf]
        %v1098 = vld [vmem:[%s1096 + $0x4] sm:$0xf]
        %v1099 = vld [vmem:[%s1096 + $0x8] sm:$0xf]
        %v1100 = vld [vmem:[%s1096 + $0xc] sm:$0xf]
        %v1101 = vld [vmem:[%s1096 + $0x10] sm:$0xf]
        %v1102 = vld [vmem:[%s1096 + $0x14] sm:$0xf]
        %v1103 = vld [vmem:[%s1096 + $0x18] sm:$0xf]
        %v1104 = vld [vmem:[%s1096 + $0x1c] sm:$0xf]
        %v1113 = vunpack.c.l.b16 %v1097
        %v1114 = vunpack.c.l.b16 %v1098
        %v1115 = vunpack.c.l.b16 %v1099
        %v1116 = vunpack.c.l.b16 %v1100
        %v1117 = vunpack.c.l.b16 %v1101
        %v1118 = vunpack.c.l.b16 %v1102
        %v1119 = vunpack.c.l.b16 %v1103
        %v1120 = vunpack.c.l.b16 %v1104
        %v1121 = vpack.c.b16 %v1114, %v1113
        %v1122 = vpack.c.b16 %v1116, %v1115
        %v1123 = vpack.c.b16 %v1118, %v1117
        %v1124 = vpack.c.b16 %v1120, %v1119
        %v1130 = vsel %vm247, %v1095, 0
        %1132 = vmatprep.subr.bf16.mxu0 0
        %1133 = vmatpush1.bf16.msra.mxu0 0
        %1134 = vmatprep.subr.bf16.mxu0 0
        %1135 = vmatpush1.bf16.msra.mxu0 0
        %1136 = vmatprep.subr.bf16.mxu0 0
        %1137 = vmatpush1.bf16.msra.mxu0 0
        %1138 = vmatprep.subr.bf16.mxu0 0
        %1139 = vmatpush1.bf16.msra.mxu0 0
        %1140 = vmatprep.subr.bf16.mxu0 0
        %1141 = vmatpush1.bf16.msra.mxu0 %v1124
        %1142 = vmatprep.subr.bf16.mxu0 0
        %1143 = vmatpush1.bf16.msra.mxu0 %v1123
        %1144 = vmatprep.subr.bf16.mxu0 0
        %1145 = vmatpush1.bf16.msra.mxu0 %v1122
        %1146 = vmatprep.subr.bf16.mxu0 0
        %1147 = vmatpush1.bf16.msra.mxu0 %v1121
        %1148 = vmatprep.subr.bf16.mxu0 0
        %1149 = vmatpush2.bf16.msra.mxu0 0
        %1150 = vmatprep.subr.bf16.mxu0 0
        %1151 = vmatpush2.bf16.msra.mxu0 0
        %1152 = vmatprep.subr.bf16.mxu0 0
        %1153 = vmatpush2.bf16.msra.mxu0 0
        %1154 = vmatprep.subr.bf16.mxu0 0
        %1155 = vmatpush2.bf16.msra.mxu0 0
        %1156 = vmatprep.subr.bf16.mxu0 0
        %1157 = vmatpush2.bf16.msra.mxu0 0
        %1158 = vmatprep.subr.bf16.mxu0 0
        %1159 = vmatpush2.bf16.msra.mxu0 0
        %1160 = vmatprep.subr.bf16.mxu0 0
        %1161 = vmatpush2.bf16.msra.mxu0 0
        %1162 = vmatprep.subr.bf16.mxu0 0
        %1163 = vmatpush2.bf16.msra.mxu0 0
        %1164 = vmatprep.mubr.bf16.mxu0 0
        %1165 = vmatmul.mubr.bf16.gmra.mxu0 %v1130
        %v1166 = vpop.f32.mrf.mxu0
        %v1167 = vadd.f32 0.0, %v1166
        %v1168 = vpop.f32.mrf.mxu0
        %v1169 = vpop.f32.mrf.mxu0
        %v1170 = vpop.f32.mrf.mxu0
        %1171 = vdwg.mxu0
        %v1172 = vadd.f32 %v1087, %v1167
        %v1173 = vld [vmem:[%s1094] sm:$0x7]
        %s1174 = scalar_lea.vmem %s1, 352
        %v1175 = vld [vmem:[%s1174] sm:$0xf]
        %v1176 = vld [vmem:[%s1174 + $0x4] sm:$0xf]
        %v1177 = vld [vmem:[%s1174 + $0x8] sm:$0xf]
        %v1178 = vld [vmem:[%s1174 + $0xc] sm:$0xf]
        %v1179 = vld [vmem:[%s1174 + $0x10] sm:$0xf]
        %v1180 = vld [vmem:[%s1174 + $0x14] sm:$0xf]
        %v1181 = vld [vmem:[%s1174 + $0x18] sm:$0xf]
        %v1182 = vld [vmem:[%s1174 + $0x1c] sm:$0xf]
        %v1184 = vunpack.c.l.b16 %v1173
        %v1185 = vpack.c.b16 %v1184, %v1184
        %v1187 = vshrl.u32 %v1185, 16
        %v1189 = vshll.u32 %v1185, 16
        %v1191 = vrot.slane %v1189, 1
        %v1192 = vor.u32 %v1187, %v1191
        %v1201 = vunpack.c.l.b16 %v1175
        %v1202 = vunpack.c.l.b16 %v1176
        %v1203 = vunpack.c.l.b16 %v1177
        %v1204 = vunpack.c.l.b16 %v1178
        %v1205 = vunpack.c.l.b16 %v1179
        %v1206 = vunpack.c.l.b16 %v1180
        %v1207 = vunpack.c.l.b16 %v1181
        %v1208 = vunpack.c.l.b16 %v1182
        %v1209 = vpack.c.b16 %v1202, %v1201
        %v1210 = vpack.c.b16 %v1204, %v1203
        %v1211 = vpack.c.b16 %v1206, %v1205
        %v1212 = vpack.c.b16 %v1208, %v1207
        %v1218 = vsel %vm247, %v1192, 0
        %1220 = vmatprep.subr.bf16.mxu0 0
        %1221 = vmatpush1.bf16.msra.mxu0 0
        %1222 = vmatprep.subr.bf16.mxu0 0
        %1223 = vmatpush1.bf16.msra.mxu0 0
        %1224 = vmatprep.subr.bf16.mxu0 0
        %1225 = vmatpush1.bf16.msra.mxu0 0
        %1226 = vmatprep.subr.bf16.mxu0 0
        %1227 = vmatpush1.bf16.msra.mxu0 0
        %1228 = vmatprep.subr.bf16.mxu0 0
        %1229 = vmatpush1.bf16.msra.mxu0 %v1212
        %1230 = vmatprep.subr.bf16.mxu0 0
        %1231 = vmatpush1.bf16.msra.mxu0 %v1211
        %1232 = vmatprep.subr.bf16.mxu0 0
        %1233 = vmatpush1.bf16.msra.mxu0 %v1210
        %1234 = vmatprep.subr.bf16.mxu0 0
        %1235 = vmatpush1.bf16.msra.mxu0 %v1209
        %1236 = vmatprep.subr.bf16.mxu0 0
        %1237 = vmatpush2.bf16.msra.mxu0 0
        %1238 = vmatprep.subr.bf16.mxu0 0
        %1239 = vmatpush2.bf16.msra.mxu0 0
        %1240 = vmatprep.subr.bf16.mxu0 0
        %1241 = vmatpush2.bf16.msra.mxu0 0
        %1242 = vmatprep.subr.bf16.mxu0 0
        %1243 = vmatpush2.bf16.msra.mxu0 0
        %1244 = vmatprep.subr.bf16.mxu0 0
        %1245 = vmatpush2.bf16.msra.mxu0 0
        %1246 = vmatprep.subr.bf16.mxu0 0
        %1247 = vmatpush2.bf16.msra.mxu0 0
        %1248 = vmatprep.subr.bf16.mxu0 0
        %1249 = vmatpush2.bf16.msra.mxu0 0
        %1250 = vmatprep.subr.bf16.mxu0 0
        %1251 = vmatpush2.bf16.msra.mxu0 0
        %1252 = vmatprep.mubr.bf16.mxu0 0
        %1253 = vmatmul.mubr.bf16.gmra.mxu0 %v1218
        %v1254 = vpop.f32.mrf.mxu0
        %v1255 = vadd.f32 0.0, %v1254
        %v1256 = vpop.f32.mrf.mxu0
        %v1257 = vpop.f32.mrf.mxu0
        %v1258 = vpop.f32.mrf.mxu0
        %1259 = vdwg.mxu0
        %v1260 = vadd.f32 %v1172, %v1255
        %v1261 = vld [vmem:[#allocation2] sm:$0x1]
        %v1262 = vsel %vm528, %v1260, 0.0
        %v1263 = vrot.slane %v1262, 4
        %v1264 = vadd.f32 %v1262, %v1263
        %v1265 = vrot.slane %v1264, 2
        %v1266 = vadd.f32 %v1264, %v1265
        %v1267 = vrot.slane %v1266, 1
        %v1268 = vadd.f32 %v1266, %v1267
        %v1269 = vadd.f32 %v1261, %v1268
        %1270 = vst.msk [vmem:[#allocation2] sm:$0x1] %vm183, %v1269
        %v1271 = vld [vmem:[#allocation3] sm:$0x1]
        %v1272 = vmul.f32 %v1260, %v1260
        %v1273 = vsel %vm528, %v1272, 0.0
        %v1274 = vrot.slane %v1273, 4
        %v1275 = vadd.f32 %v1273, %v1274
        %v1276 = vrot.slane %v1275, 2
        %v1277 = vadd.f32 %v1275, %v1276
        %v1278 = vrot.slane %v1277, 1
        %v1279 = vadd.f32 %v1277, %v1278
        %v1280 = vadd.f32 %v1271, %v1279
        %1281 = vst.msk [vmem:[#allocation3] sm:$0x1] %vm183, %v1280
        %v1282 = vpack.c.bf16 %v1260, %v1260
        %s1283 = sadd.s32 1, %s550
        %s1284 = smul.addr %s1283, 2
        %s1285 = scalar_lea.vmem %s177, %s1284
        %1286 = vst.msk [vmem:[%s1285] sm:$0x3] %vm553, %v1282
        %v1287 = vld [vmem:[%s360] sm:$0x7]
        %s1288 = scalar_lea.vmem %s1, 384
        %v1289 = vld [vmem:[%s1288] sm:$0xf]
        %v1290 = vld [vmem:[%s1288 + $0x4] sm:$0xf]
        %v1291 = vld [vmem:[%s1288 + $0x8] sm:$0xf]
        %v1292 = vld [vmem:[%s1288 + $0xc] sm:$0xf]
        %v1293 = vld [vmem:[%s1288 + $0x10] sm:$0xf]
        %v1294 = vld [vmem:[%s1288 + $0x14] sm:$0xf]
        %v1295 = vld [vmem:[%s1288 + $0x18] sm:$0xf]
        %v1296 = vld [vmem:[%s1288 + $0x1c] sm:$0xf]
        %v1297 = vld [vmem:[%s360] sm:$0x6]
        %s1298 = scalar_lea.vmem %s1, 416
        %v1299 = vld [vmem:[%s1298] sm:$0xf]
        %v1300 = vld [vmem:[%s1298 + $0x4] sm:$0xf]
        %v1301 = vld [vmem:[%s1298 + $0x8] sm:$0xf]
        %v1302 = vld [vmem:[%s1298 + $0xc] sm:$0xf]
        %v1303 = vld [vmem:[%s1298 + $0x10] sm:$0xf]
        %v1304 = vld [vmem:[%s1298 + $0x14] sm:$0xf]
        %v1305 = vld [vmem:[%s1298 + $0x18] sm:$0xf]
        %v1306 = vld [vmem:[%s1298 + $0x1c] sm:$0xf]
        %v1308 = vunpack.c.l.b16 %v1297
        %v1309 = vpack.c.b16 %v1308, %v1308
        %v1310 = vrot.slane %v1309, 1
        %v1319 = vunpack.c.l.b16 %v1299
        %v1320 = vunpack.c.l.b16 %v1300
        %v1321 = vunpack.c.l.b16 %v1301
        %v1322 = vunpack.c.l.b16 %v1302
        %v1323 = vunpack.c.l.b16 %v1303
        %v1324 = vunpack.c.l.b16 %v1304
        %v1325 = vunpack.c.l.b16 %v1305
        %v1326 = vunpack.c.l.b16 %v1306
        %v1327 = vpack.c.b16 %v1320, %v1319
        %v1328 = vpack.c.b16 %v1322, %v1321
        %v1329 = vpack.c.b16 %v1324, %v1323
        %v1330 = vpack.c.b16 %v1326, %v1325
        %v1336 = vsel %vm247, %v1310, 0
        %1338 = vmatprep.subr.bf16.mxu0 0
        %1339 = vmatpush1.bf16.msra.mxu0 0
        %1340 = vmatprep.subr.bf16.mxu0 0
        %1341 = vmatpush1.bf16.msra.mxu0 0
        %1342 = vmatprep.subr.bf16.mxu0 0
        %1343 = vmatpush1.bf16.msra.mxu0 0
        %1344 = vmatprep.subr.bf16.mxu0 0
        %1345 = vmatpush1.bf16.msra.mxu0 0
        %1346 = vmatprep.subr.bf16.mxu0 0
        %1347 = vmatpush1.bf16.msra.mxu0 %v1330
        %1348 = vmatprep.subr.bf16.mxu0 0
        %1349 = vmatpush1.bf16.msra.mxu0 %v1329
        %1350 = vmatprep.subr.bf16.mxu0 0
        %1351 = vmatpush1.bf16.msra.mxu0 %v1328
        %1352 = vmatprep.subr.bf16.mxu0 0
        %1353 = vmatpush1.bf16.msra.mxu0 %v1327
        %1354 = vmatprep.subr.bf16.mxu0 0
        %1355 = vmatpush2.bf16.msra.mxu0 0
        %1356 = vmatprep.subr.bf16.mxu0 0
        %1357 = vmatpush2.bf16.msra.mxu0 0
        %1358 = vmatprep.subr.bf16.mxu0 0
        %1359 = vmatpush2.bf16.msra.mxu0 0
        %1360 = vmatprep.subr.bf16.mxu0 0
        %1361 = vmatpush2.bf16.msra.mxu0 0
        %1362 = vmatprep.subr.bf16.mxu0 0
        %1363 = vmatpush2.bf16.msra.mxu0 0
        %1364 = vmatprep.subr.bf16.mxu0 0
        %1365 = vmatpush2.bf16.msra.mxu0 0
        %1366 = vmatprep.subr.bf16.mxu0 0
        %1367 = vmatpush2.bf16.msra.mxu0 0
        %1368 = vmatprep.subr.bf16.mxu0 0
        %1369 = vmatpush2.bf16.msra.mxu0 0
        %1370 = vmatprep.mubr.bf16.mxu0 0
        %1371 = vmatmul.mubr.bf16.gmra.mxu0 %v1336
        %v1372 = vpop.f32.mrf.mxu0
        %v1373 = vadd.f32 0.0, %v1372
        %v1374 = vpop.f32.mrf.mxu0
        %v1375 = vpop.f32.mrf.mxu0
        %v1376 = vpop.f32.mrf.mxu0
        %1377 = vdwg.mxu0
        %v1379 = vunpack.c.l.b16 %v1287
        %v1380 = vpack.c.b16 %v1379, %v1379
        %v1382 = vshrl.u32 %v1380, 16
        %v1384 = vshll.u32 %v1380, 16
        %v1386 = vrot.slane %v1384, 1
        %v1387 = vor.u32 %v1382, %v1386
        %v1396 = vunpack.c.l.b16 %v1289
        %v1397 = vunpack.c.l.b16 %v1290
        %v1398 = vunpack.c.l.b16 %v1291
        %v1399 = vunpack.c.l.b16 %v1292
        %v1400 = vunpack.c.l.b16 %v1293
        %v1401 = vunpack.c.l.b16 %v1294
        %v1402 = vunpack.c.l.b16 %v1295
        %v1403 = vunpack.c.l.b16 %v1296
        %v1404 = vpack.c.b16 %v1397, %v1396
        %v1405 = vpack.c.b16 %v1399, %v1398
        %v1406 = vpack.c.b16 %v1401, %v1400
        %v1407 = vpack.c.b16 %v1403, %v1402
        %v1413 = vsel %vm247, %v1387, 0
        %1415 = vmatprep.subr.bf16.mxu0 0
        %1416 = vmatpush1.bf16.msra.mxu0 0
        %1417 = vmatprep.subr.bf16.mxu0 0
        %1418 = vmatpush1.bf16.msra.mxu0 0
        %1419 = vmatprep.subr.bf16.mxu0 0
        %1420 = vmatpush1.bf16.msra.mxu0 0
        %1421 = vmatprep.subr.bf16.mxu0 0
        %1422 = vmatpush1.bf16.msra.mxu0 0
        %1423 = vmatprep.subr.bf16.mxu0 0
        %1424 = vmatpush1.bf16.msra.mxu0 %v1407
        %1425 = vmatprep.subr.bf16.mxu0 0
        %1426 = vmatpush1.bf16.msra.mxu0 %v1406
        %1427 = vmatprep.subr.bf16.mxu0 0
        %1428 = vmatpush1.bf16.msra.mxu0 %v1405
        %1429 = vmatprep.subr.bf16.mxu0 0
        %1430 = vmatpush1.bf16.msra.mxu0 %v1404
        %1431 = vmatprep.subr.bf16.mxu0 0
        %1432 = vmatpush2.bf16.msra.mxu0 0
        %1433 = vmatprep.subr.bf16.mxu0 0
        %1434 = vmatpush2.bf16.msra.mxu0 0
        %1435 = vmatprep.subr.bf16.mxu0 0
        %1436 = vmatpush2.bf16.msra.mxu0 0
        %1437 = vmatprep.subr.bf16.mxu0 0
        %1438 = vmatpush2.bf16.msra.mxu0 0
        %1439 = vmatprep.subr.bf16.mxu0 0
        %1440 = vmatpush2.bf16.msra.mxu0 0
        %1441 = vmatprep.subr.bf16.mxu0 0
        %1442 = vmatpush2.bf16.msra.mxu0 0
        %1443 = vmatprep.subr.bf16.mxu0 0
        %1444 = vmatpush2.bf16.msra.mxu0 0
        %1445 = vmatprep.subr.bf16.mxu0 0
        %1446 = vmatpush2.bf16.msra.mxu0 0
        %1447 = vmatprep.mubr.bf16.mxu0 0
        %1448 = vmatmul.mubr.bf16.gmra.mxu0 %v1413
        %v1449 = vpop.f32.mrf.mxu0
        %v1450 = vadd.f32 %v1373, %v1449
        %v1451 = vpop.f32.mrf.mxu0
        %v1452 = vpop.f32.mrf.mxu0
        %v1453 = vpop.f32.mrf.mxu0
        %1454 = vdwg.mxu0
        %v1455 = vld [vmem:[%s1094] sm:$0x7]
        %s1456 = scalar_lea.vmem %s1, 448
        %v1457 = vld [vmem:[%s1456] sm:$0xf]
        %v1458 = vld [vmem:[%s1456 + $0x4] sm:$0xf]
        %v1459 = vld [vmem:[%s1456 + $0x8] sm:$0xf]
        %v1460 = vld [vmem:[%s1456 + $0xc] sm:$0xf]
        %v1461 = vld [vmem:[%s1456 + $0x10] sm:$0xf]
        %v1462 = vld [vmem:[%s1456 + $0x14] sm:$0xf]
        %v1463 = vld [vmem:[%s1456 + $0x18] sm:$0xf]
        %v1464 = vld [vmem:[%s1456 + $0x1c] sm:$0xf]
        %v1466 = vunpack.c.l.b16 %v1455
        %v1467 = vpack.c.b16 %v1466, %v1466
        %v1469 = vshrl.u32 %v1467, 16
        %v1471 = vshll.u32 %v1467, 16
        %v1473 = vrot.slane %v1471, 1
        %v1474 = vor.u32 %v1469, %v1473
        %v1483 = vunpack.c.l.b16 %v1457
        %v1484 = vunpack.c.l.b16 %v1458
        %v1485 = vunpack.c.l.b16 %v1459
        %v1486 = vunpack.c.l.b16 %v1460
        %v1487 = vunpack.c.l.b16 %v1461
        %v1488 = vunpack.c.l.b16 %v1462
        %v1489 = vunpack.c.l.b16 %v1463
        %v1490 = vunpack.c.l.b16 %v1464
        %v1491 = vpack.c.b16 %v1484, %v1483
        %v1492 = vpack.c.b16 %v1486, %v1485
        %v1493 = vpack.c.b16 %v1488, %v1487
        %v1494 = vpack.c.b16 %v1490, %v1489
        %v1500 = vsel %vm247, %v1474, 0
        %1502 = vmatprep.subr.bf16.mxu0 0
        %1503 = vmatpush1.bf16.msra.mxu0 0
        %1504 = vmatprep.subr.bf16.mxu0 0
        %1505 = vmatpush1.bf16.msra.mxu0 0
        %1506 = vmatprep.subr.bf16.mxu0 0
        %1507 = vmatpush1.bf16.msra.mxu0 0
        %1508 = vmatprep.subr.bf16.mxu0 0
        %1509 = vmatpush1.bf16.msra.mxu0 0
        %1510 = vmatprep.subr.bf16.mxu0 0
        %1511 = vmatpush1.bf16.msra.mxu0 %v1494
        %1512 = vmatprep.subr.bf16.mxu0 0
        %1513 = vmatpush1.bf16.msra.mxu0 %v1493
        %1514 = vmatprep.subr.bf16.mxu0 0
        %1515 = vmatpush1.bf16.msra.mxu0 %v1492
        %1516 = vmatprep.subr.bf16.mxu0 0
        %1517 = vmatpush1.bf16.msra.mxu0 %v1491
        %1518 = vmatprep.subr.bf16.mxu0 0
        %1519 = vmatpush2.bf16.msra.mxu0 0
        %1520 = vmatprep.subr.bf16.mxu0 0
        %1521 = vmatpush2.bf16.msra.mxu0 0
        %1522 = vmatprep.subr.bf16.mxu0 0
        %1523 = vmatpush2.bf16.msra.mxu0 0
        %1524 = vmatprep.subr.bf16.mxu0 0
        %1525 = vmatpush2.bf16.msra.mxu0 0
        %1526 = vmatprep.subr.bf16.mxu0 0
        %1527 = vmatpush2.bf16.msra.mxu0 0
        %1528 = vmatprep.subr.bf16.mxu0 0
        %1529 = vmatpush2.bf16.msra.mxu0 0
        %1530 = vmatprep.subr.bf16.mxu0 0
        %1531 = vmatpush2.bf16.msra.mxu0 0
        %1532 = vmatprep.subr.bf16.mxu0 0
        %1533 = vmatpush2.bf16.msra.mxu0 0
        %1534 = vmatprep.mubr.bf16.mxu0 0
        %1535 = vmatmul.mubr.bf16.gmra.mxu0 %v1500
        %v1536 = vpop.f32.mrf.mxu0
        %v1537 = vadd.f32 0.0, %v1536
        %v1538 = vpop.f32.mrf.mxu0
        %v1539 = vpop.f32.mrf.mxu0
        %v1540 = vpop.f32.mrf.mxu0
        %1541 = vdwg.mxu0
        %v1542 = vadd.f32 %v1450, %v1537
        %v1543 = vld [vmem:[%s1094] sm:$0x6]
        %s1544 = scalar_lea.vmem %s1, 480
        %v1545 = vld [vmem:[%s1544] sm:$0xf]
        %v1546 = vld [vmem:[%s1544 + $0x4] sm:$0xf]
        %v1547 = vld [vmem:[%s1544 + $0x8] sm:$0xf]
        %v1548 = vld [vmem:[%s1544 + $0xc] sm:$0xf]
        %v1549 = vld [vmem:[%s1544 + $0x10] sm:$0xf]
        %v1550 = vld [vmem:[%s1544 + $0x14] sm:$0xf]
        %v1551 = vld [vmem:[%s1544 + $0x18] sm:$0xf]
        %v1552 = vld [vmem:[%s1544 + $0x1c] sm:$0xf]
        %v1554 = vunpack.c.l.b16 %v1543
        %v1555 = vpack.c.b16 %v1554, %v1554
        %v1556 = vrot.slane %v1555, 1
        %v1565 = vunpack.c.l.b16 %v1545
        %v1566 = vunpack.c.l.b16 %v1546
        %v1567 = vunpack.c.l.b16 %v1547
        %v1568 = vunpack.c.l.b16 %v1548
        %v1569 = vunpack.c.l.b16 %v1549
        %v1570 = vunpack.c.l.b16 %v1550
        %v1571 = vunpack.c.l.b16 %v1551
        %v1572 = vunpack.c.l.b16 %v1552
        %v1573 = vpack.c.b16 %v1566, %v1565
        %v1574 = vpack.c.b16 %v1568, %v1567
        %v1575 = vpack.c.b16 %v1570, %v1569
        %v1576 = vpack.c.b16 %v1572, %v1571
        %v1582 = vsel %vm247, %v1556, 0
        %1584 = vmatprep.subr.bf16.mxu0 0
        %1585 = vmatpush1.bf16.msra.mxu0 0
        %1586 = vmatprep.subr.bf16.mxu0 0
        %1587 = vmatpush1.bf16.msra.mxu0 0
        %1588 = vmatprep.subr.bf16.mxu0 0
        %1589 = vmatpush1.bf16.msra.mxu0 0
        %1590 = vmatprep.subr.bf16.mxu0 0
        %1591 = vmatpush1.bf16.msra.mxu0 0
        %1592 = vmatprep.subr.bf16.mxu0 0
        %1593 = vmatpush1.bf16.msra.mxu0 %v1576
        %1594 = vmatprep.subr.bf16.mxu0 0
        %1595 = vmatpush1.bf16.msra.mxu0 %v1575
        %1596 = vmatprep.subr.bf16.mxu0 0
        %1597 = vmatpush1.bf16.msra.mxu0 %v1574
        %1598 = vmatprep.subr.bf16.mxu0 0
        %1599 = vmatpush1.bf16.msra.mxu0 %v1573
        %1600 = vmatprep.subr.bf16.mxu0 0
        %1601 = vmatpush2.bf16.msra.mxu0 0
        %1602 = vmatprep.subr.bf16.mxu0 0
        %1603 = vmatpush2.bf16.msra.mxu0 0
        %1604 = vmatprep.subr.bf16.mxu0 0
        %1605 = vmatpush2.bf16.msra.mxu0 0
        %1606 = vmatprep.subr.bf16.mxu0 0
        %1607 = vmatpush2.bf16.msra.mxu0 0
        %1608 = vmatprep.subr.bf16.mxu0 0
        %1609 = vmatpush2.bf16.msra.mxu0 0
        %1610 = vmatprep.subr.bf16.mxu0 0
        %1611 = vmatpush2.bf16.msra.mxu0 0
        %1612 = vmatprep.subr.bf16.mxu0 0
        %1613 = vmatpush2.bf16.msra.mxu0 0
        %1614 = vmatprep.subr.bf16.mxu0 0
        %1615 = vmatpush2.bf16.msra.mxu0 0
        %1616 = vmatprep.mubr.bf16.mxu0 0
        %1617 = vmatmul.mubr.bf16.gmra.mxu0 %v1582
        %v1618 = vpop.f32.mrf.mxu0
        %v1619 = vadd.f32 0.0, %v1618
        %v1620 = vpop.f32.mrf.mxu0
        %v1621 = vpop.f32.mrf.mxu0
        %v1622 = vpop.f32.mrf.mxu0
        %1623 = vdwg.mxu0
        %v1624 = vadd.f32 %v1542, %v1619
        %v1625 = vld [vmem:[#allocation2] sm:$0x1]
        %v1626 = vsel %vm528, %v1624, 0.0
        %v1627 = vrot.slane %v1626, 4
        %v1628 = vadd.f32 %v1626, %v1627
        %v1629 = vrot.slane %v1628, 2
        %v1630 = vadd.f32 %v1628, %v1629
        %v1631 = vrot.slane %v1630, 1
        %v1632 = vadd.f32 %v1630, %v1631
        %v1633 = vadd.f32 %v1625, %v1632
        %1634 = vst.msk [vmem:[#allocation2] sm:$0x1] %vm183, %v1633
        %v1635 = vld [vmem:[#allocation3] sm:$0x1]
        %v1636 = vmul.f32 %v1624, %v1624
        %v1637 = vsel %vm528, %v1636, 0.0
        %v1638 = vrot.slane %v1637, 4
        %v1639 = vadd.f32 %v1637, %v1638
        %v1640 = vrot.slane %v1639, 2
        %v1641 = vadd.f32 %v1639, %v1640
        %v1642 = vrot.slane %v1641, 1
        %v1643 = vadd.f32 %v1641, %v1642
        %v1644 = vadd.f32 %v1635, %v1643
        %1645 = vst.msk [vmem:[#allocation3] sm:$0x1] %vm183, %v1644
        %v1646 = vpack.c.bf16 %v1624, %v1624
        %v1649 = vunpack.c.l.s4 1983009808
        %v1650 = vunpack.c.0.s8 %v1649
        %v1651 = vlaneseq
        %v1652 = vshrl.u32 %v1651, 7
        %v1653 = vsub.s32 %v1650, %v1652
        %v1654 = vrot.slane %v1646, %v1653
        %1655 = vrot.lane.b32.xlu0 %v1654, 32
        %v1656 = vpop.permute.xlu0 %1655
        %1658 = vst.msk [vmem:[%s1285] sm:$0x3] %vm926, %v1656
      $region33: #{generator_forward.16} parent=27 // loop_footer
        %s191 = sadd.s32 1, %s187
      $region34: #{generator_forward.16} parent=27 // loop_footer_branch
        %186 = sbr.rel target = $region30
      $region35: #{generator_forward.16} parent=27 // loop_exit
        _
      %v1659 = vld [vmem:[#allocation2] sm:$0x1]
      %1660 = vst.msk [vmem:[%s181] sm:$0x1] %vm183, %v1659
      %v1661 = vld [vmem:[#allocation3] sm:$0x1]
      %1662 = vst.msk [vmem:[%s181 + $0x1] sm:$0x1] %vm183, %v1661
      %p1663 = scmp.lt.s32.totalorder %s15, 1
      %s1664 = scalar_select %p1663, %s15, 1
      %s1665 = smul.addr %s1664, 8
      %s1666 = smul.addr %s1665, 2
      %s1667 = scalar_lea.vmem %s2, %s1666
      %p1668 = scmp.lt.s32.totalorder %s15, 1
      %s1669 = scalar_select %p1668, %s15, 1
      %s1670 = smul.addr %s1669, 2
      %s1671 = scalar_lea.vmem %s3, %s1670
      // Predicated region
      $region36: #{generator_forward.16} parent=27 // pred_check
        %p1672 = pneg %p80
      $region37: #{generator_forward.16} parent=27 // pred_check_branch
        %1674 = sbr.rel (%p1672) target = $region39
      $region38: #{generator_forward.16} parent=27 // pred_region
        _
      $region39: #{generator_forward.16} parent=27 // pred_fallthru
        _
      // Predicated region
      $region40: #{generator_forward.16} parent=27 // pred_check
        %p1675 = pneg %p106
      $region41: #{generator_forward.16} parent=27 // pred_check_branch
        %1677 = sbr.rel (%p1675) target = $region43
      $region42: #{generator_forward.16} parent=27 // pred_region
        _
      $region43: #{generator_forward.16} parent=27 // pred_fallthru
        _
    $region28: #{generator_forward.16} parent=5 // pred_fallthru
      _
    %p1678 = scmp.le.s32.totalorder 2, %s10
    // Predicated region
    $region44: #{generator_forward.16} parent=5 // pred_check
      %p1679 = pneg %p1678
    $region45: #{generator_forward.16} parent=5 // pred_check_branch
      %1681 = sbr.rel (%p1679) target = $region47
    $region46: #{generator_forward.16} parent=5 // pred_region
      %s1682 = ssub.s32 %s10, 2
      // Predicated region
      $region48: #{generator_forward.16} parent=46 // pred_check
        %p1683 = pneg %p86
      $region49: #{generator_forward.16} parent=46 // pred_check_branch
        %1685 = sbr.rel (%p1683) target = $region51
      $region50: #{generator_forward.16} parent=46 // pred_region
        %p1686 = scmp.lt.s32.totalorder %s16, 1
        %s1687 = scalar_select %p1686, %s16, 1
        %s1688 = smul.addr %s1687, 8
        %s1689 = smul.addr %s1688, 2
        %s1690 = scalar_lea.vmem %s2, %s1689
      $region51: #{generator_forward.16} parent=46 // pred_fallthru
        _
      // Predicated region
      $region52: #{generator_forward.16} parent=46 // pred_check
        %p1691 = pneg %p112
      $region53: #{generator_forward.16} parent=46 // pred_check_branch
        %1693 = sbr.rel (%p1691) target = $region55
      $region54: #{generator_forward.16} parent=46 // pred_region
        %p1694 = scmp.lt.s32.totalorder %s16, 1
        %s1695 = scalar_select %p1694, %s16, 1
        %s1696 = smul.addr %s1695, 2
        %s1697 = scalar_lea.vmem %s3, %s1696
      $region55: #{generator_forward.16} parent=46 // pred_fallthru
        _
    $region47: #{generator_forward.16} parent=5 // pred_fallthru
      _
  $region6: #{generator_forward.16} parent=0 // loop_footer
    %s14 = sadd.s32 1, %s10
  $region7: #{generator_forward.16} parent=0 // loop_footer_branch
    %9 = sbr.rel target = $region3
  $region8: #{generator_forward.16} parent=0 // loop_exit
    _

// kernel: generator_forward.20
$region0: #{generator_forward.20}
  #allocation0 [shape = 'u32[]', space=smem, size = 0x4, offset = 0x4, fixed_abs, tag = 'smem constant byte address 0x4 - core index']
  #allocation1 [shape = 'u32[144,128]{1,0:T(1,128)}', space=vmem, size = 0x12000, scoped, tag = 'internal scratch']
  %s0 = inlined_call_operand.vmem [shape: f32[2,2,16], index: 0, kind: input, shape index: {}]
  %s1 = inlined_call_operand.hbm [shape: f32[1,16], index: 1, kind: input, shape index: {}]
  %s2 = inlined_call_operand.hbm [shape: f32[1,16], index: 2, kind: input, shape index: {}]
  %s3 = inlined_call_operand.vmem [shape: f32[2,16], index: 3, kind: output, shape index: {}]
  %s4 = sld [smem:[#allocation0]]
  $region30: #{generator_forward.20} parent=0
    _
  %s6 = ssub.s32 1, %s4
  %s7 = scalar_select 0, %s6, %s4
  $region1: #{generator_forward.20} parent=0
    #allocation2 [shape = 'u8[512]{0}', space=vmem, size = 0x400, scoped, tag = 'input window, operand 1, single buffered']
    #allocation3 [shape = 's32[1]{0}', space=sflag, size = 0x4, scoped, tag = 'scoped memory for generator_forward.20']
    #allocation4 [shape = 'u8[512]{0}', space=vmem, size = 0x400, scoped, tag = 'input window, operand 2, single buffered']
    #allocation5 [shape = 's32[1]{0}', space=sflag, size = 0x4, scoped, tag = 'scoped memory for generator_forward.20']
    %8 = vsyncpa [#allocation3], 0
    %9 = vsyncpa [#allocation5], 0
    // Predicated region
    $region2: #{generator_forward.20} parent=1 // pred_check
      _
    $region3: #{generator_forward.20} parent=1 // pred_check_branch
      %11 = sbr.rel (0) target = $region5
    $region4: #{generator_forward.20} parent=1 // pred_region
      _
    $region5: #{generator_forward.20} parent=1 // pred_fallthru
      _
    // Predicated region
    $region6: #{generator_forward.20} parent=1 // pred_check
      _
    $region7: #{generator_forward.20} parent=1 // pred_check_branch
      %13 = sbr.rel (0) target = $region9
    $region8: #{generator_forward.20} parent=1 // pred_region
      %s15 = ssub.s32 16, 16
      %16 = vsyncadd [#allocation3], %s15
      %s18 = sshll.u32 [#allocation2], 4
      %s19 = int_to_ptr.vmem [resolvable:$true] %s18
      %21 = dma.hbm_to_vmem [thread:$0]  %s1, 16, %s19, [#allocation3]
    $region9: #{generator_forward.20} parent=1 // pred_fallthru
      _
    // Predicated region
    $region10: #{generator_forward.20} parent=1 // pred_check
      _
    $region11: #{generator_forward.20} parent=1 // pred_check_branch
      %23 = sbr.rel (0) target = $region13
    $region12: #{generator_forward.20} parent=1 // pred_region
      %s25 = ssub.s32 16, 16
      %26 = vsyncadd [#allocation5], %s25
      %s28 = sshll.u32 [#allocation4], 4
      %s29 = int_to_ptr.vmem [resolvable:$true] %s28
      %31 = dma.hbm_to_vmem [thread:$0]  %s2, 16, %s29, [#allocation5]
    $region13: #{generator_forward.20} parent=1 // pred_fallthru
      _
    // Predicated region
    $region14: #{generator_forward.20} parent=1 // pred_check
      _
    $region15: #{generator_forward.20} parent=1 // pred_check_branch
      %33 = sbr.rel (0) target = $region17
    $region16: #{generator_forward.20} parent=1 // pred_region
      %34 = dma.done [#allocation3], 16
    $region17: #{generator_forward.20} parent=1 // pred_fallthru
      _
    // Predicated region
    $region18: #{generator_forward.20} parent=1 // pred_check
      _
    $region19: #{generator_forward.20} parent=1 // pred_check_branch
      %36 = sbr.rel (0) target = $region21
    $region20: #{generator_forward.20} parent=1 // pred_region
      %37 = dma.done [#allocation5], 16
    $region21: #{generator_forward.20} parent=1 // pred_fallthru
      _
    %v38 = vld [vmem:[%s0] sm:$0x3]
    %v39 = vld [vmem:[%s0 + $0x2] sm:$0x3]
    %vm40 = vcmask 123904
    %v41 = vsel %vm40, %v38, 0.0
    %v42 = vsel %vm40, %v39, 0.0
    %v43 = vadd.f32 %v41, %v42
    %v44 = vmul.f32 %v43, 0.001953125
    %v45 = vmul.f32 %v44, %v44
    %v47 = vrot.slane %v45, 7
    %v49 = vsub.f32 %v44, %v47
    %v50 = vmax.f32 %v49, 0.0
    %v51 = vadd.f32 %v50, 1e-05
    %v52 = vrsqrt.pop %v51
    %v53 = vld [vmem:[#allocation2] sm:$0x1]
    %v56 = vunpack.c.l.s4 1966171168
    %v57 = vunpack.c.0.s8 %v56
    %v58 = vlaneseq
    %v59 = vshrl.u32 %v58, 7
    %v60 = vsub.s32 %v57, %v59
    %v61 = vrot.slane %v52, %v60
    %v62 = vcombine.high %v61, %v61
    %v64 = vunpack.c.l.s4 1966171168
    %v65 = vunpack.c.0.s8 %v64
    %v66 = vlaneseq
    %v67 = vshrl.u32 %v66, 7
    %v68 = vsub.s32 %v65, %v67
    %v69 = vrot.slane %v62, %v68
    %v71 = vmul.f32 %v53, %v69
    %v72 = vld [vmem:[#allocation4] sm:$0x1]
    %v73 = vmul.f32 %v44, %v71
    %v74 = vsub.f32 %v72, %v73
    %vm75 = vcmask 122880
    %76 = vst.msk [vmem:[%s3] sm:$0x1] %vm75, %v71
    %77 = vst.msk [vmem:[%s3 + $0x1] sm:$0x1] %vm75, %v74
    // Predicated region
    $region22: #{generator_forward.20} parent=1 // pred_check
      _
    $region23: #{generator_forward.20} parent=1 // pred_check_branch
      %79 = sbr.rel (0) target = $region25
    $region24: #{generator_forward.20} parent=1 // pred_region
      _
    $region25: #{generator_forward.20} parent=1 // pred_fallthru
      _
    // Predicated region
    $region26: #{generator_forward.20} parent=1 // pred_check
      _
    $region27: #{generator_forward.20} parent=1 // pred_check_branch
      %81 = sbr.rel (0) target = $region29
    $region28: #{generator_forward.20} parent=1 // pred_region
      _
    $region29: #{generator_forward.20} parent=1 // pred_fallthru
      _
    %82 = vsyncpa [#allocation3], 1
    %83 = vsyncpa [#allocation5], 1

// kernel: generator_forward.21
$region0: #{generator_forward.21}
  #allocation0 [shape = 'u32[]', space=smem, size = 0x4, offset = 0x4, fixed_abs, tag = 'smem constant byte address 0x4 - core index']
  #allocation1 [shape = 'u32[144,128]{1,0:T(1,128)}', space=vmem, size = 0x12000, scoped, tag = 'internal scratch']
  %s0 = inlined_call_operand.vmem [shape: bf16[32,256], index: 0, kind: input, shape index: {}]
  %s1 = inlined_call_operand.vmem [shape: f32[1,256], index: 1, kind: input, shape index: {}]
  %s2 = inlined_call_operand.vmem [shape: f32[1,256], index: 2, kind: input, shape index: {}]
  %s3 = inlined_call_operand.vmem [shape: bf16[32,256], index: 3, kind: output, shape index: {}]
  %s4 = sld [smem:[#allocation0]]
  $region22: #{generator_forward.21} parent=0
    _
  %s6 = ssub.s32 1, %s4
  %s7 = scalar_select 0, %s6, %s4
  // Predicated region
  $region2: #{generator_forward.21} parent=0 // pred_check
    _
  $region3: #{generator_forward.21} parent=0 // pred_check_branch
    %9 = sbr.rel (0) target = $region5
  $region4: #{generator_forward.21} parent=0 // pred_region
    _
  $region5: #{generator_forward.21} parent=0 // pred_fallthru
    _
  // Predicated region
  $region6: #{generator_forward.21} parent=0 // pred_check
    _
  $region7: #{generator_forward.21} parent=0 // pred_check_branch
    %11 = sbr.rel (0) target = $region9
  $region8: #{generator_forward.21} parent=0 // pred_region
    _
  $region9: #{generator_forward.21} parent=0 // pred_fallthru
    _
  // Predicated region
  $region10: #{generator_forward.21} parent=0 // pred_check
    _
  $region11: #{generator_forward.21} parent=0 // pred_check_branch
    %13 = sbr.rel (0) target = $region13
  $region12: #{generator_forward.21} parent=0 // pred_region
    _
  $region13: #{generator_forward.21} parent=0 // pred_fallthru
    _
  %v14 = vld [vmem:[%s0] sm:$0xff]
  %v15 = vld [vmem:[%s0 + $0x8] sm:$0xff]
  %v16 = vld [vmem:[%s0 + $0x10] sm:$0xff]
  %v17 = vld [vmem:[%s0 + $0x18] sm:$0xff]
  %v18 = vunpack.c.l.bf16 %v14
  %v19 = vunpack.c.h.bf16 %v14
  %v20 = vunpack.c.l.bf16 %v15
  %v21 = vunpack.c.h.bf16 %v15
  %v22 = vunpack.c.l.bf16 %v16
  %v23 = vunpack.c.h.bf16 %v16
  %v24 = vunpack.c.l.bf16 %v17
  %v25 = vunpack.c.h.bf16 %v17
  %v26 = vld [vmem:[%s1] sm:$0x3]
  %v28 = vlaneseq
  %v29 = vshrl.u32 %v28, 7
  %v30 = vsub.s32 0, %v29
  %v31 = vrot.slane %v26, %v30
  %v32 = vlaneseq
  %v33 = vshrl.u32 %v32, 7
  %v34 = vsub.s32 1, %v33
  %v35 = vrot.slane %v26, %v34
  %v38 = vmul.f32 %v18, %v31
  %v39 = vmul.f32 %v19, %v35
  %v40 = vmul.f32 %v20, %v31
  %v41 = vmul.f32 %v21, %v35
  %v42 = vmul.f32 %v22, %v31
  %v43 = vmul.f32 %v23, %v35
  %v44 = vmul.f32 %v24, %v31
  %v45 = vmul.f32 %v25, %v35
  %v46 = vld [vmem:[%s2] sm:$0x3]
  %v48 = vlaneseq
  %v49 = vshrl.u32 %v48, 7
  %v50 = vsub.s32 0, %v49
  %v51 = vrot.slane %v46, %v50
  %v52 = vlaneseq
  %v53 = vshrl.u32 %v52, 7
  %v54 = vsub.s32 1, %v53
  %v55 = vrot.slane %v46, %v54
  %v58 = vadd.f32 %v38, %v51
  %v59 = vadd.f32 %v39, %v55
  %v60 = vadd.f32 %v40, %v51
  %v61 = vadd.f32 %v41, %v55
  %v62 = vadd.f32 %v42, %v51
  %v63 = vadd.f32 %v43, %v55
  %v64 = vadd.f32 %v44, %v51
  %v65 = vadd.f32 %v45, %v55
  %v66 = vmax.f32 %v58, 0.0
  %v67 = vmax.f32 %v59, 0.0
  %v68 = vmax.f32 %v60, 0.0
  %v69 = vmax.f32 %v61, 0.0
  %v70 = vmax.f32 %v62, 0.0
  %v71 = vmax.f32 %v63, 0.0
  %v72 = vmax.f32 %v64, 0.0
  %v73 = vmax.f32 %v65, 0.0
  %v74 = vpack.c.bf16 %v68, %v66
  %v75 = vpack.c.bf16 %v69, %v67
  %v76 = vpack.c.bf16 %v72, %v70
  %v77 = vpack.c.bf16 %v73, %v71
  %v82 = vunpack.c.l.b16 %v74
  %v83 = vunpack.c.l.b16 %v75
  %v84 = vunpack.c.h.b16 %v74
  %v85 = vunpack.c.h.b16 %v75
  %v86 = vunpack.c.l.b16 %v76
  %v87 = vunpack.c.l.b16 %v77
  %v88 = vunpack.c.h.b16 %v76
  %v89 = vunpack.c.h.b16 %v77
  %v90 = vpack.c.b16 %v83, %v82
  %v91 = vpack.c.b16 %v85, %v84
  %v92 = vpack.c.b16 %v87, %v86
  %v93 = vpack.c.b16 %v89, %v88
  %98 = vst [vmem:[%s3] sm:$0xff] %v90
  %99 = vst [vmem:[%s3 + $0x8] sm:$0xff] %v91
  %100 = vst [vmem:[%s3 + $0x10] sm:$0xff] %v92
  %101 = vst [vmem:[%s3 + $0x18] sm:$0xff] %v93
  // Predicated region
  $region14: #{generator_forward.21} parent=0 // pred_check
    _
  $region15: #{generator_forward.21} parent=0 // pred_check_branch
    %103 = sbr.rel (0) target = $region17
  $region16: #{generator_forward.21} parent=0 // pred_region
    _
  $region17: #{generator_forward.21} parent=0 // pred_fallthru
    _
  // Predicated region
  $region18: #{generator_forward.21} parent=0 // pred_check
    _
  $region19: #{generator_forward.21} parent=0 // pred_check_branch
    %105 = sbr.rel (0) target = $region21
  $region20: #{generator_forward.21} parent=0 // pred_region
    _
  $region21: #{generator_forward.21} parent=0 // pred_fallthru
    _

// kernel: generator_forward.19
$region0: #{generator_forward.19}
  #allocation0 [shape = 'u32[]', space=smem, size = 0x4, offset = 0x4, fixed_abs, tag = 'smem constant byte address 0x4 - core index']
  #allocation1 [shape = 'u32[144,128]{1,0:T(1,128)}', space=vmem, size = 0x12000, scoped, tag = 'internal scratch']
  #allocation2 [shape = 'f32[1,16]{1,0:T(1,128)}', space=vmem, size = 0x200, scoped, tag = 'scratch operand']
  #allocation3 [shape = 'f32[1,16]{1,0:T(1,128)}', space=vmem, size = 0x200, scoped, tag = 'scratch operand']
  %s0 = inlined_call_operand.vmem [shape: bf16[2,10,10,32], index: 0, kind: input, shape index: {}]
  %s1 = inlined_call_operand.vmem [shape: bf16[16,32,16], index: 1, kind: input, shape index: {}]
  %s2 = inlined_call_operand.vmem [shape: bf16[2,8,2,8,32], index: 2, kind: output, shape index: {0}]
  %s3 = inlined_call_operand.vmem [shape: f32[2,2,16], index: 3, kind: output, shape index: {1}]
  %4 = xla_tuple %s2, %s3
  %s5 = sld [smem:[#allocation0]]
  $region56: #{generator_forward.19} parent=0
    _
  %s7 = ssub.s32 1, %s5
  %s8 = scalar_select 0, %s7, %s5
  loop: start=0, step=1, limit=4
  $region2: #{generator_forward.19} parent=0 // loop_pre_header
    _
  $region3: #{generator_forward.19} parent=0 // loop_header
    %s10 = sphi 0, %s14
    %p11 = scmp.ge.s32.totalorder %s10, 4
    %s20 = sphi 0, %s22
    %s23 = sphi 0, %s20
    %s24 = sphi 0, %s23
    %s40 = sphi 0, %s24
    %s44 = sphi 0, %s44
    %s46 = sphi 0, %s44
    %s47 = sphi 0, %s46
    %s61 = sphi 0, %s47
    %s67 = sphi 0, %s69
    %s70 = sphi 0, %s67
    %s71 = sphi 0, %s70
    %s87 = sphi 0, %s71
    %s93 = sphi 0, %s95
    %s96 = sphi 0, %s93
    %s97 = sphi 0, %s96
    %s113 = sphi 0, %s97
  $region4: #{generator_forward.19} parent=0 // loop_header_branch
    %13 = sbr.rel (%p11) target = $region8
  $region5: #{generator_forward.19} parent=0 // loop_body
    %s15 = ssub.s32 %s10, 1
    %s16 = ssub.s32 %s10, 2
    %s17 = sadd.s32 %s10, 1
    %s18 = ssub.s32 %s10, %s17
    %p19 = scmp.eq.s32.totalorder %s18, 0
    %s21 = sadd.s32 %s20, 1
    %s22 = scalar_select %p19, %s20, %s21
    %p25 = pneg %p19
    %p26 = scmp.eq.s32.totalorder %s10, 1
    %p27 = por %p25, %p26
    %p28 = scmp.ne.s32.totalorder %s20, %s23
    %p29 = scmp.eq.s32.totalorder %s10, 0
    %p30 = por %p28, %p29
    %p31 = scmp.ne.s32.totalorder %s20, %s23
    %p32 = scmp.eq.s32.totalorder %s15, 1
    %p33 = por %p31, %p32
    %p34 = scmp.ne.s32.totalorder %s23, %s24
    %p35 = scmp.eq.s32.totalorder %s15, 0
    %p36 = por %p34, %p35
    %p37 = scmp.ne.s32.totalorder %s23, %s24
    %p38 = scmp.eq.s32.totalorder %s16, 1
    %p39 = por %p37, %p38
    %p41 = scmp.ne.s32.totalorder %s24, %s40
    %p42 = scmp.eq.s32.totalorder %s16, 0
    %p43 = por %p41, %p42
    %s45 = sadd.s32 %s44, 1
    %p48 = scmp.eq.s32.totalorder %s10, 1
    %p49 = scmp.ne.s32.totalorder %s44, %s46
    %p50 = scmp.eq.s32.totalorder %s10, 0
    %p51 = por %p49, %p50
    %p52 = scmp.ne.s32.totalorder %s44, %s46
    %p53 = scmp.eq.s32.totalorder %s15, 1
    %p54 = por %p52, %p53
    %p55 = scmp.ne.s32.totalorder %s46, %s47
    %p56 = scmp.eq.s32.totalorder %s15, 0
    %p57 = por %p55, %p56
    %p58 = scmp.ne.s32.totalorder %s46, %s47
    %p59 = scmp.eq.s32.totalorder %s16, 1
    %p60 = por %p58, %p59
    %p62 = scmp.ne.s32.totalorder %s47, %s61
    %p63 = scmp.eq.s32.totalorder %s16, 0
    %p64 = por %p62, %p63
    %s65 = ssub.s32 %s10, %s17
    %p66 = scmp.eq.s32.totalorder %s65, 0
    %s68 = sadd.s32 %s67, 1
    %s69 = scalar_select %p66, %s67, %s68
    %p72 = pneg %p66
    %p73 = scmp.eq.s32.totalorder %s10, 1
    %p74 = por %p72, %p73
    %p75 = scmp.ne.s32.totalorder %s67, %s70
    %p76 = scmp.eq.s32.totalorder %s10, 0
    %p77 = por %p75, %p76
    %p78 = scmp.ne.s32.totalorder %s67, %s70
    %p79 = scmp.eq.s32.totalorder %s15, 1
    %p80 = por %p78, %p79
    %p81 = scmp.ne.s32.totalorder %s70, %s71
    %p82 = scmp.eq.s32.totalorder %s15, 0
    %p83 = por %p81, %p82
    %p84 = scmp.ne.s32.totalorder %s70, %s71
    %p85 = scmp.eq.s32.totalorder %s16, 1
    %p86 = por %p84, %p85
    %p88 = scmp.ne.s32.totalorder %s71, %s87
    %p89 = scmp.eq.s32.totalorder %s16, 0
    %p90 = por %p88, %p89
    %s91 = ssub.s32 %s10, %s17
    %p92 = scmp.eq.s32.totalorder %s91, 0
    %s94 = sadd.s32 %s93, 1
    %s95 = scalar_select %p92, %s93, %s94
    %p98 = pneg %p92
    %p99 = scmp.eq.s32.totalorder %s10, 1
    %p100 = por %p98, %p99
    %p101 = scmp.ne.s32.totalorder %s93, %s96
    %p102 = scmp.eq.s32.totalorder %s10, 0
    %p103 = por %p101, %p102
    %p104 = scmp.ne.s32.totalorder %s93, %s96
    %p105 = scmp.eq.s32.totalorder %s15, 1
    %p106 = por %p104, %p105
    %p107 = scmp.ne.s32.totalorder %s96, %s97
    %p108 = scmp.eq.s32.totalorder %s15, 0
    %p109 = por %p107, %p108
    %p110 = scmp.ne.s32.totalorder %s96, %s97
    %p111 = scmp.eq.s32.totalorder %s16, 1
    %p112 = por %p110, %p111
    %p114 = scmp.ne.s32.totalorder %s97, %s113
    %p115 = scmp.eq.s32.totalorder %s16, 0
    %p116 = por %p114, %p115
    %p117 = scmp.le.s32.totalorder 1, %s10
    %p118 = scmp.lt.s32.totalorder %s10, 3
    %p119 = pnand %p117, %p118
    %p120 = pneg %p119
    // Predicated region
    $region9: #{generator_forward.19} parent=5 // pred_check
      _
    $region10: #{generator_forward.19} parent=5 // pred_check_branch
      %122 = sbr.rel (%p119) target = $region12
    $region11: #{generator_forward.19} parent=5 // pred_region
      %s123 = ssub.s32 %s10, 1
      // Predicated region
      $region13: #{generator_forward.19} parent=11 // pred_check
        %p124 = pneg %p57
      $region14: #{generator_forward.19} parent=11 // pred_check_branch
        %126 = sbr.rel (%p124) target = $region16
      $region15: #{generator_forward.19} parent=11 // pred_region
        _
      $region16: #{generator_forward.19} parent=11 // pred_fallthru
        _
    $region12: #{generator_forward.19} parent=5 // pred_fallthru
      _
    %p127 = scmp.lt.s32.totalorder %s10, 2
    // Predicated region
    $region17: #{generator_forward.19} parent=5 // pred_check
      %p128 = pneg %p127
    $region18: #{generator_forward.19} parent=5 // pred_check_branch
      %130 = sbr.rel (%p128) target = $region20
    $region19: #{generator_forward.19} parent=5 // pred_region
      // Predicated region
      $region21: #{generator_forward.19} parent=19 // pred_check
        %p131 = pneg %p30
      $region22: #{generator_forward.19} parent=19 // pred_check_branch
        %133 = sbr.rel (%p131) target = $region24
      $region23: #{generator_forward.19} parent=19 // pred_region
        %p134 = scmp.lt.s32.totalorder %s10, 1
        %s135 = scalar_select %p134, %s10, 1
        %s136 = smul.addr %s135, 20
        %s137 = smul.addr %s136, 4
        %s138 = scalar_lea.vmem %s0, %s137
      $region24: #{generator_forward.19} parent=19 // pred_fallthru
        _
    $region20: #{generator_forward.19} parent=5 // pred_fallthru
      _
    %p139 = scmp.le.s32.totalorder 1, %s10
    %p140 = scmp.lt.s32.totalorder %s10, 3
    %p141 = pnand %p139, %p140
    %p142 = pneg %p141
    // Predicated region
    $region25: #{generator_forward.19} parent=5 // pred_check
      _
    $region26: #{generator_forward.19} parent=5 // pred_check_branch
      %144 = sbr.rel (%p141) target = $region28
    $region27: #{generator_forward.19} parent=5 // pred_region
      %s145 = ssub.s32 %s10, 1
      %p146 = scmp.lt.s32.totalorder %s15, 1
      %s147 = scalar_select %p146, %s15, 1
      %s148 = smul.addr %s147, 20
      %s149 = smul.addr %s148, 4
      %s150 = scalar_lea.vmem %s0, %s149
      %p151 = pneg %p36
      %p152 = pneg %p33
      %p153 = pneg %p57
      %p154 = pneg %p54
      %p155 = pneg %p83
      %p156 = pneg %p80
      %p157 = scmp.lt.s32.totalorder %s15, 1
      %s158 = scalar_select %p157, %s15, 1
      %s159 = smul.addr %s158, 16
      %s160 = smul.addr %s159, 4
      %s161 = scalar_lea.vmem %s2, %s160
      %p162 = pneg %p109
      %p163 = pneg %p106
      %p164 = scmp.lt.s32.totalorder %s15, 1
      %s165 = scalar_select %p164, %s15, 1
      %s166 = smul.addr %s165, 2
      %s167 = scalar_lea.vmem %s3, %s166
      %p168 = scmp.lt.s32.totalorder %s15, 1
      %s169 = scalar_select %p168, %s15, 1
      %s170 = smul.addr %s169, 20
      %s171 = smul.addr %s170, 4
      %s172 = scalar_lea.vmem %s0, %s171
      %p173 = scmp.lt.s32.totalorder %s15, 1
      %s174 = scalar_select %p173, %s15, 1
      %s175 = smul.addr %s174, 16
      %s176 = smul.addr %s175, 4
      %s177 = scalar_lea.vmem %s2, %s176
      %p178 = scmp.lt.s32.totalorder %s15, 1
      %s179 = scalar_select %p178, %s15, 1
      %s180 = smul.addr %s179, 2
      %s181 = scalar_lea.vmem %s3, %s180
      %vm183 = vcmask 122880
      %184 = vst.msk [vmem:[#allocation2] sm:$0x1] %vm183, 0.0
      %185 = vst.msk [vmem:[#allocation3] sm:$0x1] %vm183, 0.0
      loop: start=0, step=1, limit=8
      $region29: #{generator_forward.19} parent=27 // loop_pre_header
        _
      $region30: #{generator_forward.19} parent=27 // loop_header
        %s187 = sphi 0, %s191
        %p188 = scmp.ge.s32.totalorder %s187, 8
      $region31: #{generator_forward.19} parent=27 // loop_header_branch
        %190 = sbr.rel (%p188) target = $region35
      $region32: #{generator_forward.19} parent=27 // loop_body
        %s192 = smul.u32 %s187, 2
        %s193 = smul.addr %s192, 4
        %s194 = scalar_lea.vmem %s172, %s193
        %v195 = vld [vmem:[%s194] sm:$0xf]
        %v196 = vld [vmem:[%s1] sm:$0xf]
        %v197 = vld [vmem:[%s1 + $0x4] sm:$0xf]
        %v198 = vld [vmem:[%s1 + $0x8] sm:$0xf]
        %v199 = vld [vmem:[%s1 + $0xc] sm:$0xf]
        %v200 = vld [vmem:[%s194 + $0x4] sm:$0x1]
        %s201 = scalar_lea.vmem %s1, 16
        %v202 = vld [vmem:[%s201] sm:$0xf]
        %v203 = vld [vmem:[%s201 + $0x4] sm:$0xf]
        %v204 = vld [vmem:[%s201 + $0x8] sm:$0xf]
        %v205 = vld [vmem:[%s201 + $0xc] sm:$0xf]
        %v208 = vunpack.c.l.b16 %v195
        %v209 = vunpack.c.l.b16 %v200
        %v210 = vpack.c.b16 %v209, %v208
        %v212 = vshrl.u32 %v210, 16
        %v214 = vshll.u32 %v210, 16
        %v216 = vrot.slane %v214, 1
        %v217 = vor.u32 %v212, %v216
        %v222 = vunpack.c.l.b16 %v202
        %v223 = vunpack.c.l.b16 %v203
        %v224 = vunpack.c.l.b16 %v204
        %v225 = vunpack.c.l.b16 %v205
        %v226 = vpack.c.b16 %v223, %v222
        %v227 = vpack.c.b16 %v225, %v224
        %vm230 = vcmask 261120
        %v232 = vsel %vm230, %v217, 0
        %234 = vmatprep.subr.bf16.mxu0 0
        %235 = vmatpush1.bf16.msra.mxu0 0
        %236 = vmatprep.subr.bf16.mxu0 0
        %237 = vmatpush1.bf16.msra.mxu0 0
        %238 = vmatprep.subr.bf16.mxu0 0
        %239 = vmatpush1.bf16.msra.mxu0 0
        %240 = vmatprep.subr.bf16.mxu0 0
        %241 = vmatpush1.bf16.msra.mxu0 0
        %242 = vmatprep.subr.bf16.mxu0 0
        %243 = vmatpush1.bf16.msra.mxu0 0
        %244 = vmatprep.subr.bf16.mxu0 0
        %245 = vmatpush1.bf16.msra.mxu0 0
        %246 = vmatprep.subr.bf16.mxu0 0
        %247 = vmatpush1.bf16.msra.mxu0 %v227
        %248 = vmatprep.subr.bf16.mxu0 0
        %249 = vmatpush1.bf16.msra.mxu0 %v226
        %250 = vmatprep.subr.bf16.mxu0 0
        %251 = vmatpush2.bf16.msra.mxu0 0
        %252 = vmatprep.subr.bf16.mxu0 0
        %253 = vmatpush2.bf16.msra.mxu0 0
        %254 = vmatprep.subr.bf16.mxu0 0
        %255 = vmatpush2.bf16.msra.mxu0 0
        %256 = vmatprep.subr.bf16.mxu0 0
        %257 = vmatpush2.bf16.msra.mxu0 0
        %258 = vmatprep.subr.bf16.mxu0 0
        %259 = vmatpush2.bf16.msra.mxu0 0
        %260 = vmatprep.subr.bf16.mxu0 0
        %261 = vmatpush2.bf16.msra.mxu0 0
        %262 = vmatprep.subr.bf16.mxu0 0
        %263 = vmatpush2.bf16.msra.mxu0 0
        %264 = vmatprep.subr.bf16.mxu0 0
        %265 = vmatpush2.bf16.msra.mxu0 0
        %266 = vmatprep.mubr.bf16.mxu0 0
        %267 = vmatmul.mubr.bf16.gmra.mxu0 %v232
        %v268 = vpop.f32.mrf.mxu0
        %v269 = vadd.f32 0.0, %v268
        %v270 = vpop.f32.mrf.mxu0
        %v271 = vpop.f32.mrf.mxu0
        %v272 = vpop.f32.mrf.mxu0
        %273 = vdwg.mxu0
        %v278 = vunpack.c.l.b16 %v196
        %v279 = vunpack.c.l.b16 %v197
        %v280 = vunpack.c.l.b16 %v198
        %v281 = vunpack.c.l.b16 %v199
        %v282 = vpack.c.b16 %v279, %v278
        %v283 = vpack.c.b16 %v281, %v280
        %v287 = vsel %vm230, %v195, 0
        %289 = vmatprep.subr.bf16.mxu0 0
        %290 = vmatpush1.bf16.msra.mxu0 0
        %291 = vmatprep.subr.bf16.mxu0 0
        %292 = vmatpush1.bf16.msra.mxu0 0
        %293 = vmatprep.subr.bf16.mxu0 0
        %294 = vmatpush1.bf16.msra.mxu0 0
        %295 = vmatprep.subr.bf16.mxu0 0
        %296 = vmatpush1.bf16.msra.mxu0 0
        %297 = vmatprep.subr.bf16.mxu0 0
        %298 = vmatpush1.bf16.msra.mxu0 0
        %299 = vmatprep.subr.bf16.mxu0 0
        %300 = vmatpush1.bf16.msra.mxu0 0
        %301 = vmatprep.subr.bf16.mxu0 0
        %302 = vmatpush1.bf16.msra.mxu0 %v283
        %303 = vmatprep.subr.bf16.mxu0 0
        %304 = vmatpush1.bf16.msra.mxu0 %v282
        %305 = vmatprep.subr.bf16.mxu0 0
        %306 = vmatpush2.bf16.msra.mxu0 0
        %307 = vmatprep.subr.bf16.mxu0 0
        %308 = vmatpush2.bf16.msra.mxu0 0
        %309 = vmatprep.subr.bf16.mxu0 0
        %310 = vmatpush2.bf16.msra.mxu0 0
        %311 = vmatprep.subr.bf16.mxu0 0
        %312 = vmatpush2.bf16.msra.mxu0 0
        %313 = vmatprep.subr.bf16.mxu0 0
        %314 = vmatpush2.bf16.msra.mxu0 0
        %315 = vmatprep.subr.bf16.mxu0 0
        %316 = vmatpush2.bf16.msra.mxu0 0
        %317 = vmatprep.subr.bf16.mxu0 0
        %318 = vmatpush2.bf16.msra.mxu0 0
        %319 = vmatprep.subr.bf16.mxu0 0
        %320 = vmatpush2.bf16.msra.mxu0 0
        %321 = vmatprep.mubr.bf16.mxu0 0
        %322 = vmatmul.mubr.bf16.gmra.mxu0 %v287
        %v323 = vpop.f32.mrf.mxu0
        %v324 = vadd.f32 %v269, %v323
        %v325 = vpop.f32.mrf.mxu0
        %v326 = vpop.f32.mrf.mxu0
        %v327 = vpop.f32.mrf.mxu0
        %328 = vdwg.mxu0
        %s329 = sadd.s32 %s187, 1
        %s330 = smul.u32 %s329, 2
        %s331 = smul.addr %s330, 4
        %s332 = scalar_lea.vmem %s172, %s331
        %v333 = vld [vmem:[%s332] sm:$0xf]
        %s334 = scalar_lea.vmem %s1, 32
        %v335 = vld [vmem:[%s334] sm:$0xf]
        %v336 = vld [vmem:[%s334 + $0x4] sm:$0xf]
        %v337 = vld [vmem:[%s334 + $0x8] sm:$0xf]
        %v338 = vld [vmem:[%s334 + $0xc] sm:$0xf]
        %v343 = vunpack.c.l.b16 %v335
        %v344 = vunpack.c.l.b16 %v336
        %v345 = vunpack.c.l.b16 %v337
        %v346 = vunpack.c.l.b16 %v338
        %v347 = vpack.c.b16 %v344, %v343
        %v348 = vpack.c.b16 %v346, %v345
        %v352 = vsel %vm230, %v333, 0
        %354 = vmatprep.subr.bf16.mxu0 0
        %355 = vmatpush1.bf16.msra.mxu0 0
        %356 = vmatprep.subr.bf16.mxu0 0
        %357 = vmatpush1.bf16.msra.mxu0 0
        %358 = vmatprep.subr.bf16.mxu0 0
        %359 = vmatpush1.bf16.msra.mxu0 0
        %360 = vmatprep.subr.bf16.mxu0 0
        %361 = vmatpush1.bf16.msra.mxu0 0
        %362 = vmatprep.subr.bf16.mxu0 0
        %363 = vmatpush1.bf16.msra.mxu0 0
        %364 = vmatprep.subr.bf16.mxu0 0
        %365 = vmatpush1.bf16.msra.mxu0 0
        %366 = vmatprep.subr.bf16.mxu0 0
        %367 = vmatpush1.bf16.msra.mxu0 %v348
        %368 = vmatprep.subr.bf16.mxu0 0
        %369 = vmatpush1.bf16.msra.mxu0 %v347
        %370 = vmatprep.subr.bf16.mxu0 0
        %371 = vmatpush2.bf16.msra.mxu0 0
        %372 = vmatprep.subr.bf16.mxu0 0
        %373 = vmatpush2.bf16.msra.mxu0 0
        %374 = vmatprep.subr.bf16.mxu0 0
        %375 = vmatpush2.bf16.msra.mxu0 0
        %376 = vmatprep.subr.bf16.mxu0 0
        %377 = vmatpush2.bf16.msra.mxu0 0
        %378 = vmatprep.subr.bf16.mxu0 0
        %379 = vmatpush2.bf16.msra.mxu0 0
        %380 = vmatprep.subr.bf16.mxu0 0
        %381 = vmatpush2.bf16.msra.mxu0 0
        %382 = vmatprep.subr.bf16.mxu0 0
        %383 = vmatpush2.bf16.msra.mxu0 0
        %384 = vmatprep.subr.bf16.mxu0 0
        %385 = vmatpush2.bf16.msra.mxu0 0
        %386 = vmatprep.mubr.bf16.mxu0 0
        %387 = vmatmul.mubr.bf16.gmra.mxu0 %v352
        %v388 = vpop.f32.mrf.mxu0
        %v389 = vadd.f32 0.0, %v388
        %v390 = vpop.f32.mrf.mxu0
        %v391 = vpop.f32.mrf.mxu0
        %v392 = vpop.f32.mrf.mxu0
        %393 = vdwg.mxu0
        %v394 = vadd.f32 %v324, %v389
        %v395 = vld [vmem:[%s332] sm:$0xf]
        %v396 = vld [vmem:[%s332 + $0x4] sm:$0x1]
        %s397 = scalar_lea.vmem %s1, 48
        %v398 = vld [vmem:[%s397] sm:$0xf]
        %v399 = vld [vmem:[%s397 + $0x4] sm:$0xf]
        %v400 = vld [vmem:[%s397 + $0x8] sm:$0xf]
        %v401 = vld [vmem:[%s397 + $0xc] sm:$0xf]
        %v404 = vunpack.c.l.b16 %v395
        %v405 = vunpack.c.l.b16 %v396
        %v406 = vpack.c.b16 %v405, %v404
        %v408 = vshrl.u32 %v406, 16
        %v410 = vshll.u32 %v406, 16
        %v412 = vrot.slane %v410, 1
        %v413 = vor.u32 %v408, %v412
        %v418 = vunpack.c.l.b16 %v398
        %v419 = vunpack.c.l.b16 %v399
        %v420 = vunpack.c.l.b16 %v400
        %v421 = vunpack.c.l.b16 %v401
        %v422 = vpack.c.b16 %v419, %v418
        %v423 = vpack.c.b16 %v421, %v420
        %v427 = vsel %vm230, %v413, 0
        %429 = vmatprep.subr.bf16.mxu0 0
        %430 = vmatpush1.bf16.msra.mxu0 0
        %431 = vmatprep.subr.bf16.mxu0 0
        %432 = vmatpush1.bf16.msra.mxu0 0
        %433 = vmatprep.subr.bf16.mxu0 0
        %434 = vmatpush1.bf16.msra.mxu0 0
        %435 = vmatprep.subr.bf16.mxu0 0
        %436 = vmatpush1.bf16.msra.mxu0 0
        %437 = vmatprep.subr.bf16.mxu0 0
        %438 = vmatpush1.bf16.msra.mxu0 0
        %439 = vmatprep.subr.bf16.mxu0 0
        %440 = vmatpush1.bf16.msra.mxu0 0
        %441 = vmatprep.subr.bf16.mxu0 0
        %442 = vmatpush1.bf16.msra.mxu0 %v423
        %443 = vmatprep.subr.bf16.mxu0 0
        %444 = vmatpush1.bf16.msra.mxu0 %v422
        %445 = vmatprep.subr.bf16.mxu0 0
        %446 = vmatpush2.bf16.msra.mxu0 0
        %447 = vmatprep.subr.bf16.mxu0 0
        %448 = vmatpush2.bf16.msra.mxu0 0
        %449 = vmatprep.subr.bf16.mxu0 0
        %450 = vmatpush2.bf16.msra.mxu0 0
        %451 = vmatprep.subr.bf16.mxu0 0
        %452 = vmatpush2.bf16.msra.mxu0 0
        %453 = vmatprep.subr.bf16.mxu0 0
        %454 = vmatpush2.bf16.msra.mxu0 0
        %455 = vmatprep.subr.bf16.mxu0 0
        %456 = vmatpush2.bf16.msra.mxu0 0
        %457 = vmatprep.subr.bf16.mxu0 0
        %458 = vmatpush2.bf16.msra.mxu0 0
        %459 = vmatprep.subr.bf16.mxu0 0
        %460 = vmatpush2.bf16.msra.mxu0 0
        %461 = vmatprep.mubr.bf16.mxu0 0
        %462 = vmatmul.mubr.bf16.gmra.mxu0 %v427
        %v463 = vpop.f32.mrf.mxu0
        %v464 = vadd.f32 0.0, %v463
        %v465 = vpop.f32.mrf.mxu0
        %v466 = vpop.f32.mrf.mxu0
        %v467 = vpop.f32.mrf.mxu0
        %468 = vdwg.mxu0
        %v469 = vadd.f32 %v394, %v464
        %v470 = vld [vmem:[#allocation2] sm:$0x1]
        %vm471 = vcmask 130048
        %v472 = vsel %vm471, %v469, 0.0
        %v473 = vrot.slane %v472, 4
        %v474 = vadd.f32 %v472, %v473
        %v475 = vrot.slane %v474, 2
        %v476 = vadd.f32 %v474, %v475
        %v477 = vrot.slane %v476, 1
        %v478 = vadd.f32 %v476, %v477
        %v479 = vadd.f32 %v470, %v478
        %480 = vst.msk [vmem:[#allocation2] sm:$0x1] %vm183, %v479
        %v481 = vld [vmem:[#allocation3] sm:$0x1]
        %v482 = vmul.f32 %v469, %v469
        %v483 = vsel %vm471, %v482, 0.0
        %v484 = vrot.slane %v483, 4
        %v485 = vadd.f32 %v483, %v484
        %v486 = vrot.slane %v485, 2
        %v487 = vadd.f32 %v485, %v486
        %v488 = vrot.slane %v487, 1
        %v489 = vadd.f32 %v487, %v488
        %v490 = vadd.f32 %v481, %v489
        %491 = vst.msk [vmem:[#allocation3] sm:$0x1] %vm183, %v490
        %v492 = vpack.c.bf16 %v469, %v469
        %s493 = smul.addr %s192, 4
        %s494 = scalar_lea.vmem %s177, %s493
        %vm495 = vcmask 125952
        %496 = vst.msk [vmem:[%s494] sm:$0xf] %vm495, %v492
        %v497 = vld [vmem:[%s194] sm:$0xf]
        %v498 = vld [vmem:[%s194 + $0x4] sm:$0x1]
        %s499 = scalar_lea.vmem %s1, 64
        %v500 = vld [vmem:[%s499] sm:$0xf]
        %v501 = vld [vmem:[%s499 + $0x4] sm:$0xf]
        %v502 = vld [vmem:[%s499 + $0x8] sm:$0xf]
        %v503 = vld [vmem:[%s499 + $0xc] sm:$0xf]
        %v504 = vld [vmem:[%s194] sm:$0xe]
        %s505 = scalar_lea.vmem %s1, 80
        %v506 = vld [vmem:[%s505] sm:$0xf]
        %v507 = vld [vmem:[%s505 + $0x4] sm:$0xf]
        %v508 = vld [vmem:[%s505 + $0x8] sm:$0xf]
        %v509 = vld [vmem:[%s505 + $0xc] sm:$0xf]
        %v512 = vunpack.c.l.b16 %v504
        %v513 = vunpack.c.l.b16 %v498
        %v514 = vpack.c.b16 %v513, %v512
        %v515 = vrot.slane %v514, 1
        %v520 = vunpack.c.l.b16 %v506
        %v521 = vunpack.c.l.b16 %v507
        %v522 = vunpack.c.l.b16 %v508
        %v523 = vunpack.c.l.b16 %v509
        %v524 = vpack.c.b16 %v521, %v520
        %v525 = vpack.c.b16 %v523, %v522
        %v529 = vsel %vm230, %v515, 0
        %531 = vmatprep.subr.bf16.mxu0 0
        %532 = vmatpush1.bf16.msra.mxu0 0
        %533 = vmatprep.subr.bf16.mxu0 0
        %534 = vmatpush1.bf16.msra.mxu0 0
        %535 = vmatprep.subr.bf16.mxu0 0
        %536 = vmatpush1.bf16.msra.mxu0 0
        %537 = vmatprep.subr.bf16.mxu0 0
        %538 = vmatpush1.bf16.msra.mxu0 0
        %539 = vmatprep.subr.bf16.mxu0 0
        %540 = vmatpush1.bf16.msra.mxu0 0
        %541 = vmatprep.subr.bf16.mxu0 0
        %542 = vmatpush1.bf16.msra.mxu0 0
        %543 = vmatprep.subr.bf16.mxu0 0
        %544 = vmatpush1.bf16.msra.mxu0 %v525
        %545 = vmatprep.subr.bf16.mxu0 0
        %546 = vmatpush1.bf16.msra.mxu0 %v524
        %547 = vmatprep.subr.bf16.mxu0 0
        %548 = vmatpush2.bf16.msra.mxu0 0
        %549 = vmatprep.subr.bf16.mxu0 0
        %550 = vmatpush2.bf16.msra.mxu0 0
        %551 = vmatprep.subr.bf16.mxu0 0
        %552 = vmatpush2.bf16.msra.mxu0 0
        %553 = vmatprep.subr.bf16.mxu0 0
        %554 = vmatpush2.bf16.msra.mxu0 0
        %555 = vmatprep.subr.bf16.mxu0 0
        %556 = vmatpush2.bf16.msra.mxu0 0
        %557 = vmatprep.subr.bf16.mxu0 0
        %558 = vmatpush2.bf16.msra.mxu0 0
        %559 = vmatprep.subr.bf16.mxu0 0
        %560 = vmatpush2.bf16.msra.mxu0 0
        %561 = vmatprep.subr.bf16.mxu0 0
        %562 = vmatpush2.bf16.msra.mxu0 0
        %563 = vmatprep.mubr.bf16.mxu0 0
        %564 = vmatmul.mubr.bf16.gmra.mxu0 %v529
        %v565 = vpop.f32.mrf.mxu0
        %v566 = vadd.f32 0.0, %v565
        %v567 = vpop.f32.mrf.mxu0
        %v568 = vpop.f32.mrf.mxu0
        %v569 = vpop.f32.mrf.mxu0
        %570 = vdwg.mxu0
        %v572 = vunpack.c.l.b16 %v497
        %v573 = vpack.c.b16 %v513, %v572
        %v575 = vshrl.u32 %v573, 16
        %v577 = vshll.u32 %v573, 16
        %v579 = vrot.slane %v577, 1
        %v580 = vor.u32 %v575, %v579
        %v585 = vunpack.c.l.b16 %v500
        %v586 = vunpack.c.l.b16 %v501
        %v587 = vunpack.c.l.b16 %v502
        %v588 = vunpack.c.l.b16 %v503
        %v589 = vpack.c.b16 %v586, %v585
        %v590 = vpack.c.b16 %v588, %v587
        %v594 = vsel %vm230, %v580, 0
        %596 = vmatprep.subr.bf16.mxu0 0
        %597 = vmatpush1.bf16.msra.mxu0 0
        %598 = vmatprep.subr.bf16.mxu0 0
        %599 = vmatpush1.bf16.msra.mxu0 0
        %600 = vmatprep.subr.bf16.mxu0 0
        %601 = vmatpush1.bf16.msra.mxu0 0
        %602 = vmatprep.subr.bf16.mxu0 0
        %603 = vmatpush1.bf16.msra.mxu0 0
        %604 = vmatprep.subr.bf16.mxu0 0
        %605 = vmatpush1.bf16.msra.mxu0 0
        %606 = vmatprep.subr.bf16.mxu0 0
        %607 = vmatpush1.bf16.msra.mxu0 0
        %608 = vmatprep.subr.bf16.mxu0 0
        %609 = vmatpush1.bf16.msra.mxu0 %v590
        %610 = vmatprep.subr.bf16.mxu0 0
        %611 = vmatpush1.bf16.msra.mxu0 %v589
        %612 = vmatprep.subr.bf16.mxu0 0
        %613 = vmatpush2.bf16.msra.mxu0 0
        %614 = vmatprep.subr.bf16.mxu0 0
        %615 = vmatpush2.bf16.msra.mxu0 0
        %616 = vmatprep.subr.bf16.mxu0 0
        %617 = vmatpush2.bf16.msra.mxu0 0
        %618 = vmatprep.subr.bf16.mxu0 0
        %619 = vmatpush2.bf16.msra.mxu0 0
        %620 = vmatprep.subr.bf16.mxu0 0
        %621 = vmatpush2.bf16.msra.mxu0 0
        %622 = vmatprep.subr.bf16.mxu0 0
        %623 = vmatpush2.bf16.msra.mxu0 0
        %624 = vmatprep.subr.bf16.mxu0 0
        %625 = vmatpush2.bf16.msra.mxu0 0
        %626 = vmatprep.subr.bf16.mxu0 0
        %627 = vmatpush2.bf16.msra.mxu0 0
        %628 = vmatprep.mubr.bf16.mxu0 0
        %629 = vmatmul.mubr.bf16.gmra.mxu0 %v594
        %v630 = vpop.f32.mrf.mxu0
        %v631 = vadd.f32 %v566, %v630
        %v632 = vpop.f32.mrf.mxu0
        %v633 = vpop.f32.mrf.mxu0
        %v634 = vpop.f32.mrf.mxu0
        %635 = vdwg.mxu0
        %v636 = vld [vmem:[%s332] sm:$0xf]
        %v637 = vld [vmem:[%s332 + $0x4] sm:$0x1]
        %s638 = scalar_lea.vmem %s1, 96
        %v639 = vld [vmem:[%s638] sm:$0xf]
        %v640 = vld [vmem:[%s638 + $0x4] sm:$0xf]
        %v641 = vld [vmem:[%s638 + $0x8] sm:$0xf]
        %v642 = vld [vmem:[%s638 + $0xc] sm:$0xf]
        %v645 = vunpack.c.l.b16 %v636
        %v646 = vunpack.c.l.b16 %v637
        %v647 = vpack.c.b16 %v646, %v645
        %v649 = vshrl.u32 %v647, 16
        %v651 = vshll.u32 %v647, 16
        %v653 = vrot.slane %v651, 1
        %v654 = vor.u32 %v649, %v653
        %v659 = vunpack.c.l.b16 %v639
        %v660 = vunpack.c.l.b16 %v640
        %v661 = vunpack.c.l.b16 %v641
        %v662 = vunpack.c.l.b16 %v642
        %v663 = vpack.c.b16 %v660, %v659
        %v664 = vpack.c.b16 %v662, %v661
        %v668 = vsel %vm230, %v654, 0
        %670 = vmatprep.subr.bf16.mxu0 0
        %671 = vmatpush1.bf16.msra.mxu0 0
        %672 = vmatprep.subr.bf16.mxu0 0
        %673 = vmatpush1.bf16.msra.mxu0 0
        %674 = vmatprep.subr.bf16.mxu0 0
        %675 = vmatpush1.bf16.msra.mxu0 0
        %676 = vmatprep.subr.bf16.mxu0 0
        %677 = vmatpush1.bf16.msra.mxu0 0
        %678 = vmatprep.subr.bf16.mxu0 0
        %679 = vmatpush1.bf16.msra.mxu0 0
        %680 = vmatprep.subr.bf16.mxu0 0
        %681 = vmatpush1.bf16.msra.mxu0 0
        %682 = vmatprep.subr.bf16.mxu0 0
        %683 = vmatpush1.bf16.msra.mxu0 %v664
        %684 = vmatprep.subr.bf16.mxu0 0
        %685 = vmatpush1.bf16.msra.mxu0 %v663
        %686 = vmatprep.subr.bf16.mxu0 0
        %687 = vmatpush2.bf16.msra.mxu0 0
        %688 = vmatprep.subr.bf16.mxu0 0
        %689 = vmatpush2.bf16.msra.mxu0 0
        %690 = vmatprep.subr.bf16.mxu0 0
        %691 = vmatpush2.bf16.msra.mxu0 0
        %692 = vmatprep.subr.bf16.mxu0 0
        %693 = vmatpush2.bf16.msra.mxu0 0
        %694 = vmatprep.subr.bf16.mxu0 0
        %695 = vmatpush2.bf16.msra.mxu0 0
        %696 = vmatprep.subr.bf16.mxu0 0
        %697 = vmatpush2.bf16.msra.mxu0 0
        %698 = vmatprep.subr.bf16.mxu0 0
        %699 = vmatpush2.bf16.msra.mxu0 0
        %700 = vmatprep.subr.bf16.mxu0 0
        %701 = vmatpush2.bf16.msra.mxu0 0
        %702 = vmatprep.mubr.bf16.mxu0 0
        %703 = vmatmul.mubr.bf16.gmra.mxu0 %v668
        %v704 = vpop.f32.mrf.mxu0
        %v705 = vadd.f32 0.0, %v704
        %v706 = vpop.f32.mrf.mxu0
        %v707 = vpop.f32.mrf.mxu0
        %v708 = vpop.f32.mrf.mxu0
        %709 = vdwg.mxu0
        %v710 = vadd.f32 %v631, %v705
        %v711 = vld [vmem:[%s332] sm:$0xe]
        %s712 = scalar_lea.vmem %s1, 112
        %v713 = vld [vmem:[%s712] sm:$0xf]
        %v714 = vld [vmem:[%s712 + $0x4] sm:$0xf]
        %v715 = vld [vmem:[%s712 + $0x8] sm:$0xf]
        %v716 = vld [vmem:[%s712 + $0xc] sm:$0xf]
        %v718 = vunpack.c.l.b16 %v711
        %v719 = vpack.c.b16 %v646, %v718
        %v720 = vrot.slane %v719, 1
        %v725 = vunpack.c.l.b16 %v713
        %v726 = vunpack.c.l.b16 %v714
        %v727 = vunpack.c.l.b16 %v715
        %v728 = vunpack.c.l.b16 %v716
        %v729 = vpack.c.b16 %v726, %v725
        %v730 = vpack.c.b16 %v728, %v727
        %v734 = vsel %vm230, %v720, 0
        %736 = vmatprep.subr.bf16.mxu0 0
        %737 = vmatpush1.bf16.msra.mxu0 0
        %738 = vmatprep.subr.bf16.mxu0 0
        %739 = vmatpush1.bf16.msra.mxu0 0
        %740 = vmatprep.subr.bf16.mxu0 0
        %741 = vmatpush1.bf16.msra.mxu0 0
        %742 = vmatprep.subr.bf16.mxu0 0
        %743 = vmatpush1.bf16.msra.mxu0 0
        %744 = vmatprep.subr.bf16.mxu0 0
        %745 = vmatpush1.bf16.msra.mxu0 0
        %746 = vmatprep.subr.bf16.mxu0 0
        %747 = vmatpush1.bf16.msra.mxu0 0
        %748 = vmatprep.subr.bf16.mxu0 0
        %749 = vmatpush1.bf16.msra.mxu0 %v730
        %750 = vmatprep.subr.bf16.mxu0 0
        %751 = vmatpush1.bf16.msra.mxu0 %v729
        %752 = vmatprep.subr.bf16.mxu0 0
        %753 = vmatpush2.bf16.msra.mxu0 0
        %754 = vmatprep.subr.bf16.mxu0 0
        %755 = vmatpush2.bf16.msra.mxu0 0
        %756 = vmatprep.subr.bf16.mxu0 0
        %757 = vmatpush2.bf16.msra.mxu0 0
        %758 = vmatprep.subr.bf16.mxu0 0
        %759 = vmatpush2.bf16.msra.mxu0 0
        %760 = vmatprep.subr.bf16.mxu0 0
        %761 = vmatpush2.bf16.msra.mxu0 0
        %762 = vmatprep.subr.bf16.mxu0 0
        %763 = vmatpush2.bf16.msra.mxu0 0
        %764 = vmatprep.subr.bf16.mxu0 0
        %765 = vmatpush2.bf16.msra.mxu0 0
        %766 = vmatprep.subr.bf16.mxu0 0
        %767 = vmatpush2.bf16.msra.mxu0 0
        %768 = vmatprep.mubr.bf16.mxu0 0
        %769 = vmatmul.mubr.bf16.gmra.mxu0 %v734
        %v770 = vpop.f32.mrf.mxu0
        %v771 = vadd.f32 0.0, %v770
        %v772 = vpop.f32.mrf.mxu0
        %v773 = vpop.f32.mrf.mxu0
        %v774 = vpop.f32.mrf.mxu0
        %775 = vdwg.mxu0
        %v776 = vadd.f32 %v710, %v771
        %v777 = vld [vmem:[#allocation2] sm:$0x1]
        %v778 = vsel %vm471, %v776, 0.0
        %v779 = vrot.slane %v778, 4
        %v780 = vadd.f32 %v778, %v779
        %v781 = vrot.slane %v780, 2
        %v782 = vadd.f32 %v780, %v781
        %v783 = vrot.slane %v782, 1
        %v784 = vadd.f32 %v782, %v783
        %v785 = vadd.f32 %v777, %v784
        %786 = vst.msk [vmem:[#allocation2] sm:$0x1] %vm183, %v785
        %v787 = vld [vmem:[#allocation3] sm:$0x1]
        %v788 = vmul.f32 %v776, %v776
        %v789 = vsel %vm471, %v788, 0.0
        %v790 = vrot.slane %v789, 4
        %v791 = vadd.f32 %v789, %v790
        %v792 = vrot.slane %v791, 2
        %v793 = vadd.f32 %v791, %v792
        %v794 = vrot.slane %v793, 1
        %v795 = vadd.f32 %v793, %v794
        %v796 = vadd.f32 %v787, %v795
        %797 = vst.msk [vmem:[#allocation3] sm:$0x1] %vm183, %v796
        %v798 = vpack.c.bf16 %v776, %v776
        %v800 = vunpack.c.l.b16 %v798
        %v801 = vpack.c.b16 %v800, %v800
        %802 = vrot.lane.b32.xlu0 %v801, 16
        %v803 = vpop.permute.xlu0 %802
        %vm805 = vcmask 257152
        %806 = vst.msk [vmem:[%s494] sm:$0xf] %vm805, %v803
        %v807 = vld [vmem:[%s332] sm:$0xf]
        %s808 = scalar_lea.vmem %s1, 128
        %v809 = vld [vmem:[%s808] sm:$0xf]
        %v810 = vld [vmem:[%s808 + $0x4] sm:$0xf]
        %v811 = vld [vmem:[%s808 + $0x8] sm:$0xf]
        %v812 = vld [vmem:[%s808 + $0xc] sm:$0xf]
        %v813 = vld [vmem:[%s332 + $0x4] sm:$0x1]
        %s814 = scalar_lea.vmem %s1, 144
        %v815 = vld [vmem:[%s814] sm:$0xf]
        %v816 = vld [vmem:[%s814 + $0x4] sm:$0xf]
        %v817 = vld [vmem:[%s814 + $0x8] sm:$0xf]
        %v818 = vld [vmem:[%s814 + $0xc] sm:$0xf]
        %v821 = vunpack.c.l.b16 %v807
        %v822 = vunpack.c.l.b16 %v813
        %v823 = vpack.c.b16 %v822, %v821
        %v825 = vshrl.u32 %v823, 16
        %v827 = vshll.u32 %v823, 16
        %v829 = vrot.slane %v827, 1
        %v830 = vor.u32 %v825, %v829
        %v835 = vunpack.c.l.b16 %v815
        %v836 = vunpack.c.l.b16 %v816
        %v837 = vunpack.c.l.b16 %v817
        %v838 = vunpack.c.l.b16 %v818
        %v839 = vpack.c.b16 %v836, %v835
        %v840 = vpack.c.b16 %v838, %v837
        %v844 = vsel %vm230, %v830, 0
        %846 = vmatprep.subr.bf16.mxu0 0
        %847 = vmatpush1.bf16.msra.mxu0 0
        %848 = vmatprep.subr.bf16.mxu0 0
        %849 = vmatpush1.bf16.msra.mxu0 0
        %850 = vmatprep.subr.bf16.mxu0 0
        %851 = vmatpush1.bf16.msra.mxu0 0
        %852 = vmatprep.subr.bf16.mxu0 0
        %853 = vmatpush1.bf16.msra.mxu0 0
        %854 = vmatprep.subr.bf16.mxu0 0
        %855 = vmatpush1.bf16.msra.mxu0 0
        %856 = vmatprep.subr.bf16.mxu0 0
        %857 = vmatpush1.bf16.msra.mxu0 0
        %858 = vmatprep.subr.bf16.mxu0 0
        %859 = vmatpush1.bf16.msra.mxu0 %v840
        %860 = vmatprep.subr.bf16.mxu0 0
        %861 = vmatpush1.bf16.msra.mxu0 %v839
        %862 = vmatprep.subr.bf16.mxu0 0
        %863 = vmatpush2.bf16.msra.mxu0 0
        %864 = vmatprep.subr.bf16.mxu0 0
        %865 = vmatpush2.bf16.msra.mxu0 0
        %866 = vmatprep.subr.bf16.mxu0 0
        %867 = vmatpush2.bf16.msra.mxu0 0
        %868 = vmatprep.subr.bf16.mxu0 0
        %869 = vmatpush2.bf16.msra.mxu0 0
        %870 = vmatprep.subr.bf16.mxu0 0
        %871 = vmatpush2.bf16.msra.mxu0 0
        %872 = vmatprep.subr.bf16.mxu0 0
        %873 = vmatpush2.bf16.msra.mxu0 0
        %874 = vmatprep.subr.bf16.mxu0 0
        %875 = vmatpush2.bf16.msra.mxu0 0
        %876 = vmatprep.subr.bf16.mxu0 0
        %877 = vmatpush2.bf16.msra.mxu0 0
        %878 = vmatprep.mubr.bf16.mxu0 0
        %879 = vmatmul.mubr.bf16.gmra.mxu0 %v844
        %v880 = vpop.f32.mrf.mxu0
        %v881 = vadd.f32 0.0, %v880
        %v882 = vpop.f32.mrf.mxu0
        %v883 = vpop.f32.mrf.mxu0
        %v884 = vpop.f32.mrf.mxu0
        %885 = vdwg.mxu0
        %v890 = vunpack.c.l.b16 %v809
        %v891 = vunpack.c.l.b16 %v810
        %v892 = vunpack.c.l.b16 %v811
        %v893 = vunpack.c.l.b16 %v812
        %v894 = vpack.c.b16 %v891, %v890
        %v895 = vpack.c.b16 %v893, %v892
        %v899 = vsel %vm230, %v807, 0
        %901 = vmatprep.subr.bf16.mxu0 0
        %902 = vmatpush1.bf16.msra.mxu0 0
        %903 = vmatprep.subr.bf16.mxu0 0
        %904 = vmatpush1.bf16.msra.mxu0 0
        %905 = vmatprep.subr.bf16.mxu0 0
        %906 = vmatpush1.bf16.msra.mxu0 0
        %907 = vmatprep.subr.bf16.mxu0 0
        %908 = vmatpush1.bf16.msra.mxu0 0
        %909 = vmatprep.subr.bf16.mxu0 0
        %910 = vmatpush1.bf16.msra.mxu0 0
        %911 = vmatprep.subr.bf16.mxu0 0
        %912 = vmatpush1.bf16.msra.mxu0 0
        %913 = vmatprep.subr.bf16.mxu0 0
        %914 = vmatpush1.bf16.msra.mxu0 %v895
        %915 = vmatprep.subr.bf16.mxu0 0
        %916 = vmatpush1.bf16.msra.mxu0 %v894
        %917 = vmatprep.subr.bf16.mxu0 0
        %918 = vmatpush2.bf16.msra.mxu0 0
        %919 = vmatprep.subr.bf16.mxu0 0
        %920 = vmatpush2.bf16.msra.mxu0 0
        %921 = vmatprep.subr.bf16.mxu0 0
        %922 = vmatpush2.bf16.msra.mxu0 0
        %923 = vmatprep.subr.bf16.mxu0 0
        %924 = vmatpush2.bf16.msra.mxu0 0
        %925 = vmatprep.subr.bf16.mxu0 0
        %926 = vmatpush2.bf16.msra.mxu0 0
        %927 = vmatprep.subr.bf16.mxu0 0
        %928 = vmatpush2.bf16.msra.mxu0 0
        %929 = vmatprep.subr.bf16.mxu0 0
        %930 = vmatpush2.bf16.msra.mxu0 0
        %931 = vmatprep.subr.bf16.mxu0 0
        %932 = vmatpush2.bf16.msra.mxu0 0
        %933 = vmatprep.mubr.bf16.mxu0 0
        %934 = vmatmul.mubr.bf16.gmra.mxu0 %v899
        %v935 = vpop.f32.mrf.mxu0
        %v936 = vadd.f32 %v881, %v935
        %v937 = vpop.f32.mrf.mxu0
        %v938 = vpop.f32.mrf.mxu0
        %v939 = vpop.f32.mrf.mxu0
        %940 = vdwg.mxu0
        %s941 = sadd.s32 %s187, 2
        %s942 = smul.u32 %s941, 2
        %s943 = smul.addr %s942, 4
        %s944 = scalar_lea.vmem %s172, %s943
        %v945 = vld [vmem:[%s944] sm:$0xf]
        %s946 = scalar_lea.vmem %s1, 160
        %v947 = vld [vmem:[%s946] sm:$0xf]
        %v948 = vld [vmem:[%s946 + $0x4] sm:$0xf]
        %v949 = vld [vmem:[%s946 + $0x8] sm:$0xf]
        %v950 = vld [vmem:[%s946 + $0xc] sm:$0xf]
        %v955 = vunpack.c.l.b16 %v947
        %v956 = vunpack.c.l.b16 %v948
        %v957 = vunpack.c.l.b16 %v949
        %v958 = vunpack.c.l.b16 %v950
        %v959 = vpack.c.b16 %v956, %v955
        %v960 = vpack.c.b16 %v958, %v957
        %v964 = vsel %vm230, %v945, 0
        %966 = vmatprep.subr.bf16.mxu0 0
        %967 = vmatpush1.bf16.msra.mxu0 0
        %968 = vmatprep.subr.bf16.mxu0 0
        %969 = vmatpush1.bf16.msra.mxu0 0
        %970 = vmatprep.subr.bf16.mxu0 0
        %971 = vmatpush1.bf16.msra.mxu0 0
        %972 = vmatprep.subr.bf16.mxu0 0
        %973 = vmatpush1.bf16.msra.mxu0 0
        %974 = vmatprep.subr.bf16.mxu0 0
        %975 = vmatpush1.bf16.msra.mxu0 0
        %976 = vmatprep.subr.bf16.mxu0 0
        %977 = vmatpush1.bf16.msra.mxu0 0
        %978 = vmatprep.subr.bf16.mxu0 0
        %979 = vmatpush1.bf16.msra.mxu0 %v960
        %980 = vmatprep.subr.bf16.mxu0 0
        %981 = vmatpush1.bf16.msra.mxu0 %v959
        %982 = vmatprep.subr.bf16.mxu0 0
        %983 = vmatpush2.bf16.msra.mxu0 0
        %984 = vmatprep.subr.bf16.mxu0 0
        %985 = vmatpush2.bf16.msra.mxu0 0
        %986 = vmatprep.subr.bf16.mxu0 0
        %987 = vmatpush2.bf16.msra.mxu0 0
        %988 = vmatprep.subr.bf16.mxu0 0
        %989 = vmatpush2.bf16.msra.mxu0 0
        %990 = vmatprep.subr.bf16.mxu0 0
        %991 = vmatpush2.bf16.msra.mxu0 0
        %992 = vmatprep.subr.bf16.mxu0 0
        %993 = vmatpush2.bf16.msra.mxu0 0
        %994 = vmatprep.subr.bf16.mxu0 0
        %995 = vmatpush2.bf16.msra.mxu0 0
        %996 = vmatprep.subr.bf16.mxu0 0
        %997 = vmatpush2.bf16.msra.mxu0 0
        %998 = vmatprep.mubr.bf16.mxu0 0
        %999 = vmatmul.mubr.bf16.gmra.mxu0 %v964
        %v1000 = vpop.f32.mrf.mxu0
        %v1001 = vadd.f32 0.0, %v1000
        %v1002 = vpop.f32.mrf.mxu0
        %v1003 = vpop.f32.mrf.mxu0
        %v1004 = vpop.f32.mrf.mxu0
        %1005 = vdwg.mxu0
        %v1006 = vadd.f32 %v936, %v1001
        %v1007 = vld [vmem:[%s944] sm:$0xf]
        %v1008 = vld [vmem:[%s944 + $0x4] sm:$0x1]
        %s1009 = scalar_lea.vmem %s1, 176
        %v1010 = vld [vmem:[%s1009] sm:$0xf]
        %v1011 = vld [vmem:[%s1009 + $0x4] sm:$0xf]
        %v1012 = vld [vmem:[%s1009 + $0x8] sm:$0xf]
        %v1013 = vld [vmem:[%s1009 + $0xc] sm:$0xf]
        %v1016 = vunpack.c.l.b16 %v1007
        %v1017 = vunpack.c.l.b16 %v1008
        %v1018 = vpack.c.b16 %v1017, %v1016
        %v1020 = vshrl.u32 %v1018, 16
        %v1022 = vshll.u32 %v1018, 16
        %v1024 = vrot.slane %v1022, 1
        %v1025 = vor.u32 %v1020, %v1024
        %v1030 = vunpack.c.l.b16 %v1010
        %v1031 = vunpack.c.l.b16 %v1011
        %v1032 = vunpack.c.l.b16 %v1012
        %v1033 = vunpack.c.l.b16 %v1013
        %v1034 = vpack.c.b16 %v1031, %v1030
        %v1035 = vpack.c.b16 %v1033, %v1032
        %v1039 = vsel %vm230, %v1025, 0
        %1041 = vmatprep.subr.bf16.mxu0 0
        %1042 = vmatpush1.bf16.msra.mxu0 0
        %1043 = vmatprep.subr.bf16.mxu0 0
        %1044 = vmatpush1.bf16.msra.mxu0 0
        %1045 = vmatprep.subr.bf16.mxu0 0
        %1046 = vmatpush1.bf16.msra.mxu0 0
        %1047 = vmatprep.subr.bf16.mxu0 0
        %1048 = vmatpush1.bf16.msra.mxu0 0
        %1049 = vmatprep.subr.bf16.mxu0 0
        %1050 = vmatpush1.bf16.msra.mxu0 0
        %1051 = vmatprep.subr.bf16.mxu0 0
        %1052 = vmatpush1.bf16.msra.mxu0 0
        %1053 = vmatprep.subr.bf16.mxu0 0
        %1054 = vmatpush1.bf16.msra.mxu0 %v1035
        %1055 = vmatprep.subr.bf16.mxu0 0
        %1056 = vmatpush1.bf16.msra.mxu0 %v1034
        %1057 = vmatprep.subr.bf16.mxu0 0
        %1058 = vmatpush2.bf16.msra.mxu0 0
        %1059 = vmatprep.subr.bf16.mxu0 0
        %1060 = vmatpush2.bf16.msra.mxu0 0
        %1061 = vmatprep.subr.bf16.mxu0 0
        %1062 = vmatpush2.bf16.msra.mxu0 0
        %1063 = vmatprep.subr.bf16.mxu0 0
        %1064 = vmatpush2.bf16.msra.mxu0 0
        %1065 = vmatprep.subr.bf16.mxu0 0
        %1066 = vmatpush2.bf16.msra.mxu0 0
        %1067 = vmatprep.subr.bf16.mxu0 0
        %1068 = vmatpush2.bf16.msra.mxu0 0
        %1069 = vmatprep.subr.bf16.mxu0 0
        %1070 = vmatpush2.bf16.msra.mxu0 0
        %1071 = vmatprep.subr.bf16.mxu0 0
        %1072 = vmatpush2.bf16.msra.mxu0 0
        %1073 = vmatprep.mubr.bf16.mxu0 0
        %1074 = vmatmul.mubr.bf16.gmra.mxu0 %v1039
        %v1075 = vpop.f32.mrf.mxu0
        %v1076 = vadd.f32 0.0, %v1075
        %v1077 = vpop.f32.mrf.mxu0
        %v1078 = vpop.f32.mrf.mxu0
        %v1079 = vpop.f32.mrf.mxu0
        %1080 = vdwg.mxu0
        %v1081 = vadd.f32 %v1006, %v1076
        %v1082 = vld [vmem:[#allocation2] sm:$0x1]
        %v1083 = vsel %vm471, %v1081, 0.0
        %v1084 = vrot.slane %v1083, 4
        %v1085 = vadd.f32 %v1083, %v1084
        %v1086 = vrot.slane %v1085, 2
        %v1087 = vadd.f32 %v1085, %v1086
        %v1088 = vrot.slane %v1087, 1
        %v1089 = vadd.f32 %v1087, %v1088
        %v1090 = vadd.f32 %v1082, %v1089
        %1091 = vst.msk [vmem:[#allocation2] sm:$0x1] %vm183, %v1090
        %v1092 = vld [vmem:[#allocation3] sm:$0x1]
        %v1093 = vmul.f32 %v1081, %v1081
        %v1094 = vsel %vm471, %v1093, 0.0
        %v1095 = vrot.slane %v1094, 4
        %v1096 = vadd.f32 %v1094, %v1095
        %v1097 = vrot.slane %v1096, 2
        %v1098 = vadd.f32 %v1096, %v1097
        %v1099 = vrot.slane %v1098, 1
        %v1100 = vadd.f32 %v1098, %v1099
        %v1101 = vadd.f32 %v1092, %v1100
        %1102 = vst.msk [vmem:[#allocation3] sm:$0x1] %vm183, %v1101
        %v1103 = vpack.c.bf16 %v1081, %v1081
        %s1104 = sadd.s32 1, %s192
        %s1105 = smul.addr %s1104, 4
        %s1106 = scalar_lea.vmem %s177, %s1105
        %1107 = vst.msk [vmem:[%s1106] sm:$0xf] %vm495, %v1103
        %v1108 = vld [vmem:[%s332] sm:$0xf]
        %v1109 = vld [vmem:[%s332 + $0x4] sm:$0x1]
        %s1110 = scalar_lea.vmem %s1, 192
        %v1111 = vld [vmem:[%s1110] sm:$0xf]
        %v1112 = vld [vmem:[%s1110 + $0x4] sm:$0xf]
        %v1113 = vld [vmem:[%s1110 + $0x8] sm:$0xf]
        %v1114 = vld [vmem:[%s1110 + $0xc] sm:$0xf]
        %v1115 = vld [vmem:[%s332] sm:$0xe]
        %s1116 = scalar_lea.vmem %s1, 208
        %v1117 = vld [vmem:[%s1116] sm:$0xf]
        %v1118 = vld [vmem:[%s1116 + $0x4] sm:$0xf]
        %v1119 = vld [vmem:[%s1116 + $0x8] sm:$0xf]
        %v1120 = vld [vmem:[%s1116 + $0xc] sm:$0xf]
        %v1123 = vunpack.c.l.b16 %v1115
        %v1124 = vunpack.c.l.b16 %v1109
        %v1125 = vpack.c.b16 %v1124, %v1123
        %v1126 = vrot.slane %v1125, 1
        %v1131 = vunpack.c.l.b16 %v1117
        %v1132 = vunpack.c.l.b16 %v1118
        %v1133 = vunpack.c.l.b16 %v1119
        %v1134 = vunpack.c.l.b16 %v1120
        %v1135 = vpack.c.b16 %v1132, %v1131
        %v1136 = vpack.c.b16 %v1134, %v1133
        %v1140 = vsel %vm230, %v1126, 0
        %1142 = vmatprep.subr.bf16.mxu0 0
        %1143 = vmatpush1.bf16.msra.mxu0 0
        %1144 = vmatprep.subr.bf16.mxu0 0
        %1145 = vmatpush1.bf16.msra.mxu0 0
        %1146 = vmatprep.subr.bf16.mxu0 0
        %1147 = vmatpush1.bf16.msra.mxu0 0
        %1148 = vmatprep.subr.bf16.mxu0 0
        %1149 = vmatpush1.bf16.msra.mxu0 0
        %1150 = vmatprep.subr.bf16.mxu0 0
        %1151 = vmatpush1.bf16.msra.mxu0 0
        %1152 = vmatprep.subr.bf16.mxu0 0
        %1153 = vmatpush1.bf16.msra.mxu0 0
        %1154 = vmatprep.subr.bf16.mxu0 0
        %1155 = vmatpush1.bf16.msra.mxu0 %v1136
        %1156 = vmatprep.subr.bf16.mxu0 0
        %1157 = vmatpush1.bf16.msra.mxu0 %v1135
        %1158 = vmatprep.subr.bf16.mxu0 0
        %1159 = vmatpush2.bf16.msra.mxu0 0
        %1160 = vmatprep.subr.bf16.mxu0 0
        %1161 = vmatpush2.bf16.msra.mxu0 0
        %1162 = vmatprep.subr.bf16.mxu0 0
        %1163 = vmatpush2.bf16.msra.mxu0 0
        %1164 = vmatprep.subr.bf16.mxu0 0
        %1165 = vmatpush2.bf16.msra.mxu0 0
        %1166 = vmatprep.subr.bf16.mxu0 0
        %1167 = vmatpush2.bf16.msra.mxu0 0
        %1168 = vmatprep.subr.bf16.mxu0 0
        %1169 = vmatpush2.bf16.msra.mxu0 0
        %1170 = vmatprep.subr.bf16.mxu0 0
        %1171 = vmatpush2.bf16.msra.mxu0 0
        %1172 = vmatprep.subr.bf16.mxu0 0
        %1173 = vmatpush2.bf16.msra.mxu0 0
        %1174 = vmatprep.mubr.bf16.mxu0 0
        %1175 = vmatmul.mubr.bf16.gmra.mxu0 %v1140
        %v1176 = vpop.f32.mrf.mxu0
        %v1177 = vadd.f32 0.0, %v1176
        %v1178 = vpop.f32.mrf.mxu0
        %v1179 = vpop.f32.mrf.mxu0
        %v1180 = vpop.f32.mrf.mxu0
        %1181 = vdwg.mxu0
        %v1183 = vunpack.c.l.b16 %v1108
        %v1184 = vpack.c.b16 %v1124, %v1183
        %v1186 = vshrl.u32 %v1184, 16
        %v1188 = vshll.u32 %v1184, 16
        %v1190 = vrot.slane %v1188, 1
        %v1191 = vor.u32 %v1186, %v1190
        %v1196 = vunpack.c.l.b16 %v1111
        %v1197 = vunpack.c.l.b16 %v1112
        %v1198 = vunpack.c.l.b16 %v1113
        %v1199 = vunpack.c.l.b16 %v1114
        %v1200 = vpack.c.b16 %v1197, %v1196
        %v1201 = vpack.c.b16 %v1199, %v1198
        %v1205 = vsel %vm230, %v1191, 0
        %1207 = vmatprep.subr.bf16.mxu0 0
        %1208 = vmatpush1.bf16.msra.mxu0 0
        %1209 = vmatprep.subr.bf16.mxu0 0
        %1210 = vmatpush1.bf16.msra.mxu0 0
        %1211 = vmatprep.subr.bf16.mxu0 0
        %1212 = vmatpush1.bf16.msra.mxu0 0
        %1213 = vmatprep.subr.bf16.mxu0 0
        %1214 = vmatpush1.bf16.msra.mxu0 0
        %1215 = vmatprep.subr.bf16.mxu0 0
        %1216 = vmatpush1.bf16.msra.mxu0 0
        %1217 = vmatprep.subr.bf16.mxu0 0
        %1218 = vmatpush1.bf16.msra.mxu0 0
        %1219 = vmatprep.subr.bf16.mxu0 0
        %1220 = vmatpush1.bf16.msra.mxu0 %v1201
        %1221 = vmatprep.subr.bf16.mxu0 0
        %1222 = vmatpush1.bf16.msra.mxu0 %v1200
        %1223 = vmatprep.subr.bf16.mxu0 0
        %1224 = vmatpush2.bf16.msra.mxu0 0
        %1225 = vmatprep.subr.bf16.mxu0 0
        %1226 = vmatpush2.bf16.msra.mxu0 0
        %1227 = vmatprep.subr.bf16.mxu0 0
        %1228 = vmatpush2.bf16.msra.mxu0 0
        %1229 = vmatprep.subr.bf16.mxu0 0
        %1230 = vmatpush2.bf16.msra.mxu0 0
        %1231 = vmatprep.subr.bf16.mxu0 0
        %1232 = vmatpush2.bf16.msra.mxu0 0
        %1233 = vmatprep.subr.bf16.mxu0 0
        %1234 = vmatpush2.bf16.msra.mxu0 0
        %1235 = vmatprep.subr.bf16.mxu0 0
        %1236 = vmatpush2.bf16.msra.mxu0 0
        %1237 = vmatprep.subr.bf16.mxu0 0
        %1238 = vmatpush2.bf16.msra.mxu0 0
        %1239 = vmatprep.mubr.bf16.mxu0 0
        %1240 = vmatmul.mubr.bf16.gmra.mxu0 %v1205
        %v1241 = vpop.f32.mrf.mxu0
        %v1242 = vadd.f32 %v1177, %v1241
        %v1243 = vpop.f32.mrf.mxu0
        %v1244 = vpop.f32.mrf.mxu0
        %v1245 = vpop.f32.mrf.mxu0
        %1246 = vdwg.mxu0
        %v1247 = vld [vmem:[%s944] sm:$0xf]
        %v1248 = vld [vmem:[%s944 + $0x4] sm:$0x1]
        %s1249 = scalar_lea.vmem %s1, 224
        %v1250 = vld [vmem:[%s1249] sm:$0xf]
        %v1251 = vld [vmem:[%s1249 + $0x4] sm:$0xf]
        %v1252 = vld [vmem:[%s1249 + $0x8] sm:$0xf]
        %v1253 = vld [vmem:[%s1249 + $0xc] sm:$0xf]
        %v1256 = vunpack.c.l.b16 %v1247
        %v1257 = vunpack.c.l.b16 %v1248
        %v1258 = vpack.c.b16 %v1257, %v1256
        %v1260 = vshrl.u32 %v1258, 16
        %v1262 = vshll.u32 %v1258, 16
        %v1264 = vrot.slane %v1262, 1
        %v1265 = vor.u32 %v1260, %v1264
        %v1270 = vunpack.c.l.b16 %v1250
        %v1271 = vunpack.c.l.b16 %v1251
        %v1272 = vunpack.c.l.b16 %v1252
        %v1273 = vunpack.c.l.b16 %v1253
        %v1274 = vpack.c.b16 %v1271, %v1270
        %v1275 = vpack.c.b16 %v1273, %v1272
        %v1279 = vsel %vm230, %v1265, 0
        %1281 = vmatprep.subr.bf16.mxu0 0
        %1282 = vmatpush1.bf16.msra.mxu0 0
        %1283 = vmatprep.subr.bf16.mxu0 0
        %1284 = vmatpush1.bf16.msra.mxu0 0
        %1285 = vmatprep.subr.bf16.mxu0 0
        %1286 = vmatpush1.bf16.msra.mxu0 0
        %1287 = vmatprep.subr.bf16.mxu0 0
        %1288 = vmatpush1.bf16.msra.mxu0 0
        %1289 = vmatprep.subr.bf16.mxu0 0
        %1290 = vmatpush1.bf16.msra.mxu0 0
        %1291 = vmatprep.subr.bf16.mxu0 0
        %1292 = vmatpush1.bf16.msra.mxu0 0
        %1293 = vmatprep.subr.bf16.mxu0 0
        %1294 = vmatpush1.bf16.msra.mxu0 %v1275
        %1295 = vmatprep.subr.bf16.mxu0 0
        %1296 = vmatpush1.bf16.msra.mxu0 %v1274
        %1297 = vmatprep.subr.bf16.mxu0 0
        %1298 = vmatpush2.bf16.msra.mxu0 0
        %1299 = vmatprep.subr.bf16.mxu0 0
        %1300 = vmatpush2.bf16.msra.mxu0 0
        %1301 = vmatprep.subr.bf16.mxu0 0
        %1302 = vmatpush2.bf16.msra.mxu0 0
        %1303 = vmatprep.subr.bf16.mxu0 0
        %1304 = vmatpush2.bf16.msra.mxu0 0
        %1305 = vmatprep.subr.bf16.mxu0 0
        %1306 = vmatpush2.bf16.msra.mxu0 0
        %1307 = vmatprep.subr.bf16.mxu0 0
        %1308 = vmatpush2.bf16.msra.mxu0 0
        %1309 = vmatprep.subr.bf16.mxu0 0
        %1310 = vmatpush2.bf16.msra.mxu0 0
        %1311 = vmatprep.subr.bf16.mxu0 0
        %1312 = vmatpush2.bf16.msra.mxu0 0
        %1313 = vmatprep.mubr.bf16.mxu0 0
        %1314 = vmatmul.mubr.bf16.gmra.mxu0 %v1279
        %v1315 = vpop.f32.mrf.mxu0
        %v1316 = vadd.f32 0.0, %v1315
        %v1317 = vpop.f32.mrf.mxu0
        %v1318 = vpop.f32.mrf.mxu0
        %v1319 = vpop.f32.mrf.mxu0
        %1320 = vdwg.mxu0
        %v1321 = vadd.f32 %v1242, %v1316
        %v1322 = vld [vmem:[%s944] sm:$0xe]
        %s1323 = scalar_lea.vmem %s1, 240
        %v1324 = vld [vmem:[%s1323] sm:$0xf]
        %v1325 = vld [vmem:[%s1323 + $0x4] sm:$0xf]
        %v1326 = vld [vmem:[%s1323 + $0x8] sm:$0xf]
        %v1327 = vld [vmem:[%s1323 + $0xc] sm:$0xf]
        %v1329 = vunpack.c.l.b16 %v1322
        %v1330 = vpack.c.b16 %v1257, %v1329
        %v1331 = vrot.slane %v1330, 1
        %v1336 = vunpack.c.l.b16 %v1324
        %v1337 = vunpack.c.l.b16 %v1325
        %v1338 = vunpack.c.l.b16 %v1326
        %v1339 = vunpack.c.l.b16 %v1327
        %v1340 = vpack.c.b16 %v1337, %v1336
        %v1341 = vpack.c.b16 %v1339, %v1338
        %v1345 = vsel %vm230, %v1331, 0
        %1347 = vmatprep.subr.bf16.mxu0 0
        %1348 = vmatpush1.bf16.msra.mxu0 0
        %1349 = vmatprep.subr.bf16.mxu0 0
        %1350 = vmatpush1.bf16.msra.mxu0 0
        %1351 = vmatprep.subr.bf16.mxu0 0
        %1352 = vmatpush1.bf16.msra.mxu0 0
        %1353 = vmatprep.subr.bf16.mxu0 0
        %1354 = vmatpush1.bf16.msra.mxu0 0
        %1355 = vmatprep.subr.bf16.mxu0 0
        %1356 = vmatpush1.bf16.msra.mxu0 0
        %1357 = vmatprep.subr.bf16.mxu0 0
        %1358 = vmatpush1.bf16.msra.mxu0 0
        %1359 = vmatprep.subr.bf16.mxu0 0
        %1360 = vmatpush1.bf16.msra.mxu0 %v1341
        %1361 = vmatprep.subr.bf16.mxu0 0
        %1362 = vmatpush1.bf16.msra.mxu0 %v1340
        %1363 = vmatprep.subr.bf16.mxu0 0
        %1364 = vmatpush2.bf16.msra.mxu0 0
        %1365 = vmatprep.subr.bf16.mxu0 0
        %1366 = vmatpush2.bf16.msra.mxu0 0
        %1367 = vmatprep.subr.bf16.mxu0 0
        %1368 = vmatpush2.bf16.msra.mxu0 0
        %1369 = vmatprep.subr.bf16.mxu0 0
        %1370 = vmatpush2.bf16.msra.mxu0 0
        %1371 = vmatprep.subr.bf16.mxu0 0
        %1372 = vmatpush2.bf16.msra.mxu0 0
        %1373 = vmatprep.subr.bf16.mxu0 0
        %1374 = vmatpush2.bf16.msra.mxu0 0
        %1375 = vmatprep.subr.bf16.mxu0 0
        %1376 = vmatpush2.bf16.msra.mxu0 0
        %1377 = vmatprep.subr.bf16.mxu0 0
        %1378 = vmatpush2.bf16.msra.mxu0 0
        %1379 = vmatprep.mubr.bf16.mxu0 0
        %1380 = vmatmul.mubr.bf16.gmra.mxu0 %v1345
        %v1381 = vpop.f32.mrf.mxu0
        %v1382 = vadd.f32 0.0, %v1381
        %v1383 = vpop.f32.mrf.mxu0
        %v1384 = vpop.f32.mrf.mxu0
        %v1385 = vpop.f32.mrf.mxu0
        %1386 = vdwg.mxu0
        %v1387 = vadd.f32 %v1321, %v1382
        %v1388 = vld [vmem:[#allocation2] sm:$0x1]
        %v1389 = vsel %vm471, %v1387, 0.0
        %v1390 = vrot.slane %v1389, 4
        %v1391 = vadd.f32 %v1389, %v1390
        %v1392 = vrot.slane %v1391, 2
        %v1393 = vadd.f32 %v1391, %v1392
        %v1394 = vrot.slane %v1393, 1
        %v1395 = vadd.f32 %v1393, %v1394
        %v1396 = vadd.f32 %v1388, %v1395
        %1397 = vst.msk [vmem:[#allocation2] sm:$0x1] %vm183, %v1396
        %v1398 = vld [vmem:[#allocation3] sm:$0x1]
        %v1399 = vmul.f32 %v1387, %v1387
        %v1400 = vsel %vm471, %v1399, 0.0
        %v1401 = vrot.slane %v1400, 4
        %v1402 = vadd.f32 %v1400, %v1401
        %v1403 = vrot.slane %v1402, 2
        %v1404 = vadd.f32 %v1402, %v1403
        %v1405 = vrot.slane %v1404, 1
        %v1406 = vadd.f32 %v1404, %v1405
        %v1407 = vadd.f32 %v1398, %v1406
        %1408 = vst.msk [vmem:[#allocation3] sm:$0x1] %vm183, %v1407
        %v1409 = vpack.c.bf16 %v1387, %v1387
        %v1411 = vunpack.c.l.b16 %v1409
        %v1412 = vpack.c.b16 %v1411, %v1411
        %1413 = vrot.lane.b32.xlu0 %v1412, 16
        %v1414 = vpop.permute.xlu0 %1413
        %1416 = vst.msk [vmem:[%s1106] sm:$0xf] %vm805, %v1414
      $region33: #{generator_forward.19} parent=27 // loop_footer
        %s191 = sadd.s32 1, %s187
      $region34: #{generator_forward.19} parent=27 // loop_footer_branch
        %186 = sbr.rel target = $region30
      $region35: #{generator_forward.19} parent=27 // loop_exit
        _
      %v1417 = vld [vmem:[#allocation2] sm:$0x1]
      %1418 = vst.msk [vmem:[%s181] sm:$0x1] %vm183, %v1417
      %v1419 = vld [vmem:[#allocation3] sm:$0x1]
      %1420 = vst.msk [vmem:[%s181 + $0x1] sm:$0x1] %vm183, %v1419
      %p1421 = scmp.lt.s32.totalorder %s15, 1
      %s1422 = scalar_select %p1421, %s15, 1
      %s1423 = smul.addr %s1422, 16
      %s1424 = smul.addr %s1423, 4
      %s1425 = scalar_lea.vmem %s2, %s1424
      %p1426 = scmp.lt.s32.totalorder %s15, 1
      %s1427 = scalar_select %p1426, %s15, 1
      %s1428 = smul.addr %s1427, 2
      %s1429 = scalar_lea.vmem %s3, %s1428
      // Predicated region
      $region36: #{generator_forward.19} parent=27 // pred_check
        %p1430 = pneg %p80
      $region37: #{generator_forward.19} parent=27 // pred_check_branch
        %1432 = sbr.rel (%p1430) target = $region39
      $region38: #{generator_forward.19} parent=27 // pred_region
        _
      $region39: #{generator_forward.19} parent=27 // pred_fallthru
        _
      // Predicated region
      $region40: #{generator_forward.19} parent=27 // pred_check
        %p1433 = pneg %p106
      $region41: #{generator_forward.19} parent=27 // pred_check_branch
        %1435 = sbr.rel (%p1433) target = $region43
      $region42: #{generator_forward.19} parent=27 // pred_region
        _
      $region43: #{generator_forward.19} parent=27 // pred_fallthru
        _
    $region28: #{generator_forward.19} parent=5 // pred_fallthru
      _
    %p1436 = scmp.le.s32.totalorder 2, %s10
    // Predicated region
    $region44: #{generator_forward.19} parent=5 // pred_check
      %p1437 = pneg %p1436
    $region45: #{generator_forward.19} parent=5 // pred_check_branch
      %1439 = sbr.rel (%p1437) target = $region47
    $region46: #{generator_forward.19} parent=5 // pred_region
      %s1440 = ssub.s32 %s10, 2
      // Predicated region
      $region48: #{generator_forward.19} parent=46 // pred_check
        %p1441 = pneg %p86
      $region49: #{generator_forward.19} parent=46 // pred_check_branch
        %1443 = sbr.rel (%p1441) target = $region51
      $region50: #{generator_forward.19} parent=46 // pred_region
        %p1444 = scmp.lt.s32.totalorder %s16, 1
        %s1445 = scalar_select %p1444, %s16, 1
        %s1446 = smul.addr %s1445, 16
        %s1447 = smul.addr %s1446, 4
        %s1448 = scalar_lea.vmem %s2, %s1447
      $region51: #{generator_forward.19} parent=46 // pred_fallthru
        _
      // Predicated region
      $region52: #{generator_forward.19} parent=46 // pred_check
        %p1449 = pneg %p112
      $region53: #{generator_forward.19} parent=46 // pred_check_branch
        %1451 = sbr.rel (%p1449) target = $region55
      $region54: #{generator_forward.19} parent=46 // pred_region
        %p1452 = scmp.lt.s32.totalorder %s16, 1
        %s1453 = scalar_select %p1452, %s16, 1
        %s1454 = smul.addr %s1453, 2
        %s1455 = scalar_lea.vmem %s3, %s1454
      $region55: #{generator_forward.19} parent=46 // pred_fallthru
        _
    $region47: #{generator_forward.19} parent=5 // pred_fallthru
      _
  $region6: #{generator_forward.19} parent=0 // loop_footer
    %s14 = sadd.s32 1, %s10
  $region7: #{generator_forward.19} parent=0 // loop_footer_branch
    %9 = sbr.rel target = $region3
  $region8: #{generator_forward.19} parent=0 // loop_exit
    _

// kernel: generator_forward.23
$region0: #{generator_forward.23}
  #allocation0 [shape = 'u32[]', space=smem, size = 0x4, offset = 0x4, fixed_abs, tag = 'smem constant byte address 0x4 - core index']
  #allocation1 [shape = 'u32[144,128]{1,0:T(1,128)}', space=vmem, size = 0x12000, scoped, tag = 'internal scratch']
  %s0 = inlined_call_operand.vmem [shape: f32[2,2,8], index: 0, kind: input, shape index: {}]
  %s1 = inlined_call_operand.hbm [shape: f32[1,8], index: 1, kind: input, shape index: {}]
  %s2 = inlined_call_operand.hbm [shape: f32[1,8], index: 2, kind: input, shape index: {}]
  %s3 = inlined_call_operand.vmem [shape: f32[2,8], index: 3, kind: output, shape index: {}]
  %s4 = sld [smem:[#allocation0]]
  $region30: #{generator_forward.23} parent=0
    _
  %s6 = ssub.s32 1, %s4
  %s7 = scalar_select 0, %s6, %s4
  $region1: #{generator_forward.23} parent=0
    #allocation2 [shape = 'u8[512]{0}', space=vmem, size = 0x400, scoped, tag = 'input window, operand 1, single buffered']
    #allocation3 [shape = 's32[1]{0}', space=sflag, size = 0x4, scoped, tag = 'scoped memory for generator_forward.23']
    #allocation4 [shape = 'u8[512]{0}', space=vmem, size = 0x400, scoped, tag = 'input window, operand 2, single buffered']
    #allocation5 [shape = 's32[1]{0}', space=sflag, size = 0x4, scoped, tag = 'scoped memory for generator_forward.23']
    %8 = vsyncpa [#allocation3], 0
    %9 = vsyncpa [#allocation5], 0
    // Predicated region
    $region2: #{generator_forward.23} parent=1 // pred_check
      _
    $region3: #{generator_forward.23} parent=1 // pred_check_branch
      %11 = sbr.rel (0) target = $region5
    $region4: #{generator_forward.23} parent=1 // pred_region
      _
    $region5: #{generator_forward.23} parent=1 // pred_fallthru
      _
    // Predicated region
    $region6: #{generator_forward.23} parent=1 // pred_check
      _
    $region7: #{generator_forward.23} parent=1 // pred_check_branch
      %13 = sbr.rel (0) target = $region9
    $region8: #{generator_forward.23} parent=1 // pred_region
      %s15 = ssub.s32 16, 16
      %16 = vsyncadd [#allocation3], %s15
      %s18 = sshll.u32 [#allocation2], 4
      %s19 = int_to_ptr.vmem [resolvable:$true] %s18
      %21 = dma.hbm_to_vmem [thread:$0]  %s1, 16, %s19, [#allocation3]
    $region9: #{generator_forward.23} parent=1 // pred_fallthru
      _
    // Predicated region
    $region10: #{generator_forward.23} parent=1 // pred_check
      _
    $region11: #{generator_forward.23} parent=1 // pred_check_branch
      %23 = sbr.rel (0) target = $region13
    $region12: #{generator_forward.23} parent=1 // pred_region
      %s25 = ssub.s32 16, 16
      %26 = vsyncadd [#allocation5], %s25
      %s28 = sshll.u32 [#allocation4], 4
      %s29 = int_to_ptr.vmem [resolvable:$true] %s28
      %31 = dma.hbm_to_vmem [thread:$0]  %s2, 16, %s29, [#allocation5]
    $region13: #{generator_forward.23} parent=1 // pred_fallthru
      _
    // Predicated region
    $region14: #{generator_forward.23} parent=1 // pred_check
      _
    $region15: #{generator_forward.23} parent=1 // pred_check_branch
      %33 = sbr.rel (0) target = $region17
    $region16: #{generator_forward.23} parent=1 // pred_region
      %34 = dma.done [#allocation3], 16
    $region17: #{generator_forward.23} parent=1 // pred_fallthru
      _
    // Predicated region
    $region18: #{generator_forward.23} parent=1 // pred_check
      _
    $region19: #{generator_forward.23} parent=1 // pred_check_branch
      %36 = sbr.rel (0) target = $region21
    $region20: #{generator_forward.23} parent=1 // pred_region
      %37 = dma.done [#allocation5], 16
    $region21: #{generator_forward.23} parent=1 // pred_fallthru
      _
    %v38 = vld [vmem:[%s0] sm:$0x3]
    %v39 = vld [vmem:[%s0 + $0x2] sm:$0x3]
    %vm40 = vcmask 58368
    %v41 = vsel %vm40, %v38, 0.0
    %v42 = vsel %vm40, %v39, 0.0
    %v43 = vadd.f32 %v41, %v42
    %v44 = vmul.f32 %v43, 0.00048828125
    %v45 = vmul.f32 %v44, %v44
    %v47 = vrot.slane %v45, 7
    %v49 = vsub.f32 %v44, %v47
    %v50 = vmax.f32 %v49, 0.0
    %v51 = vadd.f32 %v50, 1e-05
    %v52 = vrsqrt.pop %v51
    %v53 = vld [vmem:[#allocation2] sm:$0x1]
    %v56 = vunpack.c.l.s4 1966171168
    %v57 = vunpack.c.0.s8 %v56
    %v58 = vlaneseq
    %v59 = vshrl.u32 %v58, 7
    %v60 = vsub.s32 %v57, %v59
    %v61 = vrot.slane %v52, %v60
    %v62 = vcombine.high %v61, %v61
    %v64 = vunpack.c.l.s4 1966171168
    %v65 = vunpack.c.0.s8 %v64
    %v66 = vlaneseq
    %v67 = vshrl.u32 %v66, 7
    %v68 = vsub.s32 %v65, %v67
    %v69 = vrot.slane %v62, %v68
    %v71 = vmul.f32 %v53, %v69
    %v72 = vld [vmem:[#allocation4] sm:$0x1]
    %v73 = vmul.f32 %v44, %v71
    %v74 = vsub.f32 %v72, %v73
    %vm75 = vcmask 57344
    %76 = vst.msk [vmem:[%s3] sm:$0x1] %vm75, %v71
    %77 = vst.msk [vmem:[%s3 + $0x1] sm:$0x1] %vm75, %v74
    // Predicated region
    $region22: #{generator_forward.23} parent=1 // pred_check
      _
    $region23: #{generator_forward.23} parent=1 // pred_check_branch
      %79 = sbr.rel (0) target = $region25
    $region24: #{generator_forward.23} parent=1 // pred_region
      _
    $region25: #{generator_forward.23} parent=1 // pred_fallthru
      _
    // Predicated region
    $region26: #{generator_forward.23} parent=1 // pred_check
      _
    $region27: #{generator_forward.23} parent=1 // pred_check_branch
      %81 = sbr.rel (0) target = $region29
    $region28: #{generator_forward.23} parent=1 // pred_region
      _
    $region29: #{generator_forward.23} parent=1 // pred_fallthru
      _
    %82 = vsyncpa [#allocation3], 1
    %83 = vsyncpa [#allocation5], 1

// kernel: generator_forward.24
$region0: #{generator_forward.24}
  #allocation0 [shape = 'u32[]', space=smem, size = 0x4, offset = 0x4, fixed_abs, tag = 'smem constant byte address 0x4 - core index']
  #allocation1 [shape = 'u32[144,128]{1,0:T(1,128)}', space=vmem, size = 0x12000, scoped, tag = 'internal scratch']
  %s0 = inlined_call_operand.vmem [shape: bf16[64,256], index: 0, kind: input, shape index: {}]
  %s1 = inlined_call_operand.vmem [shape: f32[1,256], index: 1, kind: input, shape index: {}]
  %s2 = inlined_call_operand.vmem [shape: f32[1,256], index: 2, kind: input, shape index: {}]
  %s3 = inlined_call_operand.vmem [shape: bf16[64,256], index: 3, kind: output, shape index: {}]
  %s4 = sld [smem:[#allocation0]]
  $region22: #{generator_forward.24} parent=0
    _
  %s6 = ssub.s32 1, %s4
  %s7 = scalar_select 0, %s6, %s4
  // Predicated region
  $region2: #{generator_forward.24} parent=0 // pred_check
    _
  $region3: #{generator_forward.24} parent=0 // pred_check_branch
    %9 = sbr.rel (0) target = $region5
  $region4: #{generator_forward.24} parent=0 // pred_region
    _
  $region5: #{generator_forward.24} parent=0 // pred_fallthru
    _
  // Predicated region
  $region6: #{generator_forward.24} parent=0 // pred_check
    _
  $region7: #{generator_forward.24} parent=0 // pred_check_branch
    %11 = sbr.rel (0) target = $region9
  $region8: #{generator_forward.24} parent=0 // pred_region
    _
  $region9: #{generator_forward.24} parent=0 // pred_fallthru
    _
  // Predicated region
  $region10: #{generator_forward.24} parent=0 // pred_check
    _
  $region11: #{generator_forward.24} parent=0 // pred_check_branch
    %13 = sbr.rel (0) target = $region13
  $region12: #{generator_forward.24} parent=0 // pred_region
    _
  $region13: #{generator_forward.24} parent=0 // pred_fallthru
    _
  %v14 = vld [vmem:[%s0] sm:$0xff]
  %v15 = vld [vmem:[%s0 + $0x8] sm:$0xff]
  %v16 = vld [vmem:[%s0 + $0x10] sm:$0xff]
  %v17 = vld [vmem:[%s0 + $0x18] sm:$0xff]
  %v18 = vld [vmem:[%s0 + $0x20] sm:$0xff]
  %v19 = vld [vmem:[%s0 + $0x28] sm:$0xff]
  %v20 = vld [vmem:[%s0 + $0x30] sm:$0xff]
  %v21 = vld [vmem:[%s0 + $0x38] sm:$0xff]
  %v22 = vunpack.c.l.bf16 %v14
  %v23 = vunpack.c.h.bf16 %v14
  %v24 = vunpack.c.l.bf16 %v15
  %v25 = vunpack.c.h.bf16 %v15
  %v26 = vunpack.c.l.bf16 %v16
  %v27 = vunpack.c.h.bf16 %v16
  %v28 = vunpack.c.l.bf16 %v17
  %v29 = vunpack.c.h.bf16 %v17
  %v30 = vunpack.c.l.bf16 %v18
  %v31 = vunpack.c.h.bf16 %v18
  %v32 = vunpack.c.l.bf16 %v19
  %v33 = vunpack.c.h.bf16 %v19
  %v34 = vunpack.c.l.bf16 %v20
  %v35 = vunpack.c.h.bf16 %v20
  %v36 = vunpack.c.l.bf16 %v21
  %v37 = vunpack.c.h.bf16 %v21
  %v38 = vld [vmem:[%s1] sm:$0x3]
  %v40 = vlaneseq
  %v41 = vshrl.u32 %v40, 7
  %v42 = vsub.s32 0, %v41
  %v43 = vrot.slane %v38, %v42
  %v44 = vlaneseq
  %v45 = vshrl.u32 %v44, 7
  %v46 = vsub.s32 1, %v45
  %v47 = vrot.slane %v38, %v46
  %v50 = vmul.f32 %v22, %v43
  %v51 = vmul.f32 %v23, %v47
  %v52 = vmul.f32 %v24, %v43
  %v53 = vmul.f32 %v25, %v47
  %v54 = vmul.f32 %v26, %v43
  %v55 = vmul.f32 %v27, %v47
  %v56 = vmul.f32 %v28, %v43
  %v57 = vmul.f32 %v29, %v47
  %v58 = vmul.f32 %v30, %v43
  %v59 = vmul.f32 %v31, %v47
  %v60 = vmul.f32 %v32, %v43
  %v61 = vmul.f32 %v33, %v47
  %v62 = vmul.f32 %v34, %v43
  %v63 = vmul.f32 %v35, %v47
  %v64 = vmul.f32 %v36, %v43
  %v65 = vmul.f32 %v37, %v47
  %v66 = vld [vmem:[%s2] sm:$0x3]
  %v68 = vlaneseq
  %v69 = vshrl.u32 %v68, 7
  %v70 = vsub.s32 0, %v69
  %v71 = vrot.slane %v66, %v70
  %v72 = vlaneseq
  %v73 = vshrl.u32 %v72, 7
  %v74 = vsub.s32 1, %v73
  %v75 = vrot.slane %v66, %v74
  %v78 = vadd.f32 %v50, %v71
  %v79 = vadd.f32 %v51, %v75
  %v80 = vadd.f32 %v52, %v71
  %v81 = vadd.f32 %v53, %v75
  %v82 = vadd.f32 %v54, %v71
  %v83 = vadd.f32 %v55, %v75
  %v84 = vadd.f32 %v56, %v71
  %v85 = vadd.f32 %v57, %v75
  %v86 = vadd.f32 %v58, %v71
  %v87 = vadd.f32 %v59, %v75
  %v88 = vadd.f32 %v60, %v71
  %v89 = vadd.f32 %v61, %v75
  %v90 = vadd.f32 %v62, %v71
  %v91 = vadd.f32 %v63, %v75
  %v92 = vadd.f32 %v64, %v71
  %v93 = vadd.f32 %v65, %v75
  %v94 = vmax.f32 %v78, 0.0
  %v95 = vmax.f32 %v79, 0.0
  %v96 = vmax.f32 %v80, 0.0
  %v97 = vmax.f32 %v81, 0.0
  %v98 = vmax.f32 %v82, 0.0
  %v99 = vmax.f32 %v83, 0.0
  %v100 = vmax.f32 %v84, 0.0
  %v101 = vmax.f32 %v85, 0.0
  %v102 = vmax.f32 %v86, 0.0
  %v103 = vmax.f32 %v87, 0.0
  %v104 = vmax.f32 %v88, 0.0
  %v105 = vmax.f32 %v89, 0.0
  %v106 = vmax.f32 %v90, 0.0
  %v107 = vmax.f32 %v91, 0.0
  %v108 = vmax.f32 %v92, 0.0
  %v109 = vmax.f32 %v93, 0.0
  %v110 = vpack.c.bf16 %v96, %v94
  %v111 = vpack.c.bf16 %v97, %v95
  %v112 = vpack.c.bf16 %v100, %v98
  %v113 = vpack.c.bf16 %v101, %v99
  %v114 = vpack.c.bf16 %v104, %v102
  %v115 = vpack.c.bf16 %v105, %v103
  %v116 = vpack.c.bf16 %v108, %v106
  %v117 = vpack.c.bf16 %v109, %v107
  %v126 = vunpack.c.l.b16 %v110
  %v127 = vunpack.c.l.b16 %v111
  %v128 = vunpack.c.h.b16 %v110
  %v129 = vunpack.c.h.b16 %v111
  %v130 = vunpack.c.l.b16 %v112
  %v131 = vunpack.c.l.b16 %v113
  %v132 = vunpack.c.h.b16 %v112
  %v133 = vunpack.c.h.b16 %v113
  %v134 = vunpack.c.l.b16 %v114
  %v135 = vunpack.c.l.b16 %v115
  %v136 = vunpack.c.h.b16 %v114
  %v137 = vunpack.c.h.b16 %v115
  %v138 = vunpack.c.l.b16 %v116
  %v139 = vunpack.c.l.b16 %v117
  %v140 = vunpack.c.h.b16 %v116
  %v141 = vunpack.c.h.b16 %v117
  %v142 = vpack.c.b16 %v127, %v126
  %v143 = vpack.c.b16 %v129, %v128
  %v144 = vpack.c.b16 %v131, %v130
  %v145 = vpack.c.b16 %v133, %v132
  %v146 = vpack.c.b16 %v135, %v134
  %v147 = vpack.c.b16 %v137, %v136
  %v148 = vpack.c.b16 %v139, %v138
  %v149 = vpack.c.b16 %v141, %v140
  %158 = vst [vmem:[%s3] sm:$0xff] %v142
  %159 = vst [vmem:[%s3 + $0x8] sm:$0xff] %v143
  %160 = vst [vmem:[%s3 + $0x10] sm:$0xff] %v144
  %161 = vst [vmem:[%s3 + $0x18] sm:$0xff] %v145
  %162 = vst [vmem:[%s3 + $0x20] sm:$0xff] %v146
  %163 = vst [vmem:[%s3 + $0x28] sm:$0xff] %v147
  %164 = vst [vmem:[%s3 + $0x30] sm:$0xff] %v148
  %165 = vst [vmem:[%s3 + $0x38] sm:$0xff] %v149
  // Predicated region
  $region14: #{generator_forward.24} parent=0 // pred_check
    _
  $region15: #{generator_forward.24} parent=0 // pred_check_branch
    %167 = sbr.rel (0) target = $region17
  $region16: #{generator_forward.24} parent=0 // pred_region
    _
  $region17: #{generator_forward.24} parent=0 // pred_fallthru
    _
  // Predicated region
  $region18: #{generator_forward.24} parent=0 // pred_check
    _
  $region19: #{generator_forward.24} parent=0 // pred_check_branch
    %169 = sbr.rel (0) target = $region21
  $region20: #{generator_forward.24} parent=0 // pred_region
    _
  $region21: #{generator_forward.24} parent=0 // pred_fallthru
    _

// kernel: generator_forward.22
$region0: #{generator_forward.22}
  #allocation0 [shape = 'u32[]', space=smem, size = 0x4, offset = 0x4, fixed_abs, tag = 'smem constant byte address 0x4 - core index']
  #allocation1 [shape = 'u32[144,128]{1,0:T(1,128)}', space=vmem, size = 0x12000, scoped, tag = 'internal scratch']
  #allocation2 [shape = 'f32[1,8]{1,0:T(1,128)}', space=vmem, size = 0x200, scoped, tag = 'scratch operand']
  #allocation3 [shape = 'f32[1,8]{1,0:T(1,128)}', space=vmem, size = 0x200, scoped, tag = 'scratch operand']
  %s0 = inlined_call_operand.vmem [shape: bf16[2,18,18,16], index: 0, kind: input, shape index: {}]
  %s1 = inlined_call_operand.vmem [shape: bf16[16,16,8], index: 1, kind: input, shape index: {}]
  %s2 = inlined_call_operand.vmem [shape: bf16[2,16,2,16,16], index: 2, kind: output, shape index: {0}]
  %s3 = inlined_call_operand.vmem [shape: f32[2,2,8], index: 3, kind: output, shape index: {1}]
  %4 = xla_tuple %s2, %s3
  %s5 = sld [smem:[#allocation0]]
  $region56: #{generator_forward.22} parent=0
    _
  %s7 = ssub.s32 1, %s5
  %s8 = scalar_select 0, %s7, %s5
  loop: start=0, step=1, limit=4
  $region2: #{generator_forward.22} parent=0 // loop_pre_header
    _
  $region3: #{generator_forward.22} parent=0 // loop_header
    %s10 = sphi 0, %s14
    %p11 = scmp.ge.s32.totalorder %s10, 4
    %s20 = sphi 0, %s22
    %s23 = sphi 0, %s20
    %s24 = sphi 0, %s23
    %s40 = sphi 0, %s24
    %s44 = sphi 0, %s44
    %s46 = sphi 0, %s44
    %s47 = sphi 0, %s46
    %s61 = sphi 0, %s47
    %s67 = sphi 0, %s69
    %s70 = sphi 0, %s67
    %s71 = sphi 0, %s70
    %s87 = sphi 0, %s71
    %s93 = sphi 0, %s95
    %s96 = sphi 0, %s93
    %s97 = sphi 0, %s96
    %s113 = sphi 0, %s97
  $region4: #{generator_forward.22} parent=0 // loop_header_branch
    %13 = sbr.rel (%p11) target = $region8
  $region5: #{generator_forward.22} parent=0 // loop_body
    %s15 = ssub.s32 %s10, 1
    %s16 = ssub.s32 %s10, 2
    %s17 = sadd.s32 %s10, 1
    %s18 = ssub.s32 %s10, %s17
    %p19 = scmp.eq.s32.totalorder %s18, 0
    %s21 = sadd.s32 %s20, 1
    %s22 = scalar_select %p19, %s20, %s21
    %p25 = pneg %p19
    %p26 = scmp.eq.s32.totalorder %s10, 1
    %p27 = por %p25, %p26
    %p28 = scmp.ne.s32.totalorder %s20, %s23
    %p29 = scmp.eq.s32.totalorder %s10, 0
    %p30 = por %p28, %p29
    %p31 = scmp.ne.s32.totalorder %s20, %s23
    %p32 = scmp.eq.s32.totalorder %s15, 1
    %p33 = por %p31, %p32
    %p34 = scmp.ne.s32.totalorder %s23, %s24
    %p35 = scmp.eq.s32.totalorder %s15, 0
    %p36 = por %p34, %p35
    %p37 = scmp.ne.s32.totalorder %s23, %s24
    %p38 = scmp.eq.s32.totalorder %s16, 1
    %p39 = por %p37, %p38
    %p41 = scmp.ne.s32.totalorder %s24, %s40
    %p42 = scmp.eq.s32.totalorder %s16, 0
    %p43 = por %p41, %p42
    %s45 = sadd.s32 %s44, 1
    %p48 = scmp.eq.s32.totalorder %s10, 1
    %p49 = scmp.ne.s32.totalorder %s44, %s46
    %p50 = scmp.eq.s32.totalorder %s10, 0
    %p51 = por %p49, %p50
    %p52 = scmp.ne.s32.totalorder %s44, %s46
    %p53 = scmp.eq.s32.totalorder %s15, 1
    %p54 = por %p52, %p53
    %p55 = scmp.ne.s32.totalorder %s46, %s47
    %p56 = scmp.eq.s32.totalorder %s15, 0
    %p57 = por %p55, %p56
    %p58 = scmp.ne.s32.totalorder %s46, %s47
    %p59 = scmp.eq.s32.totalorder %s16, 1
    %p60 = por %p58, %p59
    %p62 = scmp.ne.s32.totalorder %s47, %s61
    %p63 = scmp.eq.s32.totalorder %s16, 0
    %p64 = por %p62, %p63
    %s65 = ssub.s32 %s10, %s17
    %p66 = scmp.eq.s32.totalorder %s65, 0
    %s68 = sadd.s32 %s67, 1
    %s69 = scalar_select %p66, %s67, %s68
    %p72 = pneg %p66
    %p73 = scmp.eq.s32.totalorder %s10, 1
    %p74 = por %p72, %p73
    %p75 = scmp.ne.s32.totalorder %s67, %s70
    %p76 = scmp.eq.s32.totalorder %s10, 0
    %p77 = por %p75, %p76
    %p78 = scmp.ne.s32.totalorder %s67, %s70
    %p79 = scmp.eq.s32.totalorder %s15, 1
    %p80 = por %p78, %p79
    %p81 = scmp.ne.s32.totalorder %s70, %s71
    %p82 = scmp.eq.s32.totalorder %s15, 0
    %p83 = por %p81, %p82
    %p84 = scmp.ne.s32.totalorder %s70, %s71
    %p85 = scmp.eq.s32.totalorder %s16, 1
    %p86 = por %p84, %p85
    %p88 = scmp.ne.s32.totalorder %s71, %s87
    %p89 = scmp.eq.s32.totalorder %s16, 0
    %p90 = por %p88, %p89
    %s91 = ssub.s32 %s10, %s17
    %p92 = scmp.eq.s32.totalorder %s91, 0
    %s94 = sadd.s32 %s93, 1
    %s95 = scalar_select %p92, %s93, %s94
    %p98 = pneg %p92
    %p99 = scmp.eq.s32.totalorder %s10, 1
    %p100 = por %p98, %p99
    %p101 = scmp.ne.s32.totalorder %s93, %s96
    %p102 = scmp.eq.s32.totalorder %s10, 0
    %p103 = por %p101, %p102
    %p104 = scmp.ne.s32.totalorder %s93, %s96
    %p105 = scmp.eq.s32.totalorder %s15, 1
    %p106 = por %p104, %p105
    %p107 = scmp.ne.s32.totalorder %s96, %s97
    %p108 = scmp.eq.s32.totalorder %s15, 0
    %p109 = por %p107, %p108
    %p110 = scmp.ne.s32.totalorder %s96, %s97
    %p111 = scmp.eq.s32.totalorder %s16, 1
    %p112 = por %p110, %p111
    %p114 = scmp.ne.s32.totalorder %s97, %s113
    %p115 = scmp.eq.s32.totalorder %s16, 0
    %p116 = por %p114, %p115
    %p117 = scmp.le.s32.totalorder 1, %s10
    %p118 = scmp.lt.s32.totalorder %s10, 3
    %p119 = pnand %p117, %p118
    %p120 = pneg %p119
    // Predicated region
    $region9: #{generator_forward.22} parent=5 // pred_check
      _
    $region10: #{generator_forward.22} parent=5 // pred_check_branch
      %122 = sbr.rel (%p119) target = $region12
    $region11: #{generator_forward.22} parent=5 // pred_region
      %s123 = ssub.s32 %s10, 1
      // Predicated region
      $region13: #{generator_forward.22} parent=11 // pred_check
        %p124 = pneg %p57
      $region14: #{generator_forward.22} parent=11 // pred_check_branch
        %126 = sbr.rel (%p124) target = $region16
      $region15: #{generator_forward.22} parent=11 // pred_region
        _
      $region16: #{generator_forward.22} parent=11 // pred_fallthru
        _
    $region12: #{generator_forward.22} parent=5 // pred_fallthru
      _
    %p127 = scmp.lt.s32.totalorder %s10, 2
    // Predicated region
    $region17: #{generator_forward.22} parent=5 // pred_check
      %p128 = pneg %p127
    $region18: #{generator_forward.22} parent=5 // pred_check_branch
      %130 = sbr.rel (%p128) target = $region20
    $region19: #{generator_forward.22} parent=5 // pred_region
      // Predicated region
      $region21: #{generator_forward.22} parent=19 // pred_check
        %p131 = pneg %p30
      $region22: #{generator_forward.22} parent=19 // pred_check_branch
        %133 = sbr.rel (%p131) target = $region24
      $region23: #{generator_forward.22} parent=19 // pred_region
        %p134 = scmp.lt.s32.totalorder %s10, 1
        %s135 = scalar_select %p134, %s10, 1
        %s136 = smul.addr %s135, 54
        %s137 = smul.addr %s136, 4
        %s138 = scalar_lea.vmem %s0, %s137
      $region24: #{generator_forward.22} parent=19 // pred_fallthru
        _
    $region20: #{generator_forward.22} parent=5 // pred_fallthru
      _
    %p139 = scmp.le.s32.totalorder 1, %s10
    %p140 = scmp.lt.s32.totalorder %s10, 3
    %p141 = pnand %p139, %p140
    %p142 = pneg %p141
    // Predicated region
    $region25: #{generator_forward.22} parent=5 // pred_check
      _
    $region26: #{generator_forward.22} parent=5 // pred_check_branch
      %144 = sbr.rel (%p141) target = $region28
    $region27: #{generator_forward.22} parent=5 // pred_region
      %s145 = ssub.s32 %s10, 1
      %p146 = scmp.lt.s32.totalorder %s15, 1
      %s147 = scalar_select %p146, %s15, 1
      %s148 = smul.addr %s147, 54
      %s149 = smul.addr %s148, 4
      %s150 = scalar_lea.vmem %s0, %s149
      %p151 = pneg %p36
      %p152 = pneg %p33
      %p153 = pneg %p57
      %p154 = pneg %p54
      %p155 = pneg %p83
      %p156 = pneg %p80
      %p157 = scmp.lt.s32.totalorder %s15, 1
      %s158 = scalar_select %p157, %s15, 1
      %s159 = smul.addr %s158, 64
      %s160 = smul.addr %s159, 4
      %s161 = scalar_lea.vmem %s2, %s160
      %p162 = pneg %p109
      %p163 = pneg %p106
      %p164 = scmp.lt.s32.totalorder %s15, 1
      %s165 = scalar_select %p164, %s15, 1
      %s166 = smul.addr %s165, 2
      %s167 = scalar_lea.vmem %s3, %s166
      %p168 = scmp.lt.s32.totalorder %s15, 1
      %s169 = scalar_select %p168, %s15, 1
      %s170 = smul.addr %s169, 54
      %s171 = smul.addr %s170, 4
      %s172 = scalar_lea.vmem %s0, %s171
      %p173 = scmp.lt.s32.totalorder %s15, 1
      %s174 = scalar_select %p173, %s15, 1
      %s175 = smul.addr %s174, 64
      %s176 = smul.addr %s175, 4
      %s177 = scalar_lea.vmem %s2, %s176
      %p178 = scmp.lt.s32.totalorder %s15, 1
      %s179 = scalar_select %p178, %s15, 1
      %s180 = smul.addr %s179, 2
      %s181 = scalar_lea.vmem %s3, %s180
      %vm183 = vcmask 57344
      %184 = vst.msk [vmem:[#allocation2] sm:$0x1] %vm183, 0.0
      %185 = vst.msk [vmem:[#allocation3] sm:$0x1] %vm183, 0.0
      loop: start=0, step=1, limit=16
      $region29: #{generator_forward.22} parent=27 // loop_pre_header
        _
      $region30: #{generator_forward.22} parent=27 // loop_header
        %s187 = sphi 0, %s191
        %p188 = scmp.ge.s32.totalorder %s187, 16
      $region31: #{generator_forward.22} parent=27 // loop_header_branch
        %190 = sbr.rel (%p188) target = $region35
      $region32: #{generator_forward.22} parent=27 // loop_body
        %s192 = smul.u32 %s187, 3
        %s193 = smul.addr %s192, 4
        %s194 = scalar_lea.vmem %s172, %s193
        %v195 = vld [vmem:[%s194] sm:$0xf]
        %v196 = vld [vmem:[%s194 + $0x4] sm:$0xf]
        %v197 = vld [vmem:[%s1] sm:$0xf]
        %v198 = vld [vmem:[%s1 + $0x4] sm:$0xf]
        %v199 = vld [vmem:[%s194 + $0x8] sm:$0x1]
        %s200 = scalar_lea.vmem %s1, 8
        %v201 = vld [vmem:[%s200] sm:$0xf]
        %v202 = vld [vmem:[%s200 + $0x4] sm:$0xf]
        %v206 = vunpack.c.l.b16 %v195
        %v207 = vunpack.c.l.b16 %v196
        %v208 = vunpack.c.l.b16 %v199
        %v209 = vpack.c.b16 %v207, %v206
        %v210 = vpack.c.b16 %v208, %v208
        %vm211 = vsmask.f32 7424
        %v213 = vshrl.u32 %v209, 16
        %v215 = vshll.u32 %v209, 16
        %v217 = vrot.slane %v215, 1
        %v218 = vor.u32 %v213, %v217
        %v220 = vshll.u32 %v210, 16
        %v222 = vrot.slane %v220, 1
        %v223 = vsel %vm211, %v218, %v222
        %v226 = vunpack.c.l.b16 %v201
        %v227 = vunpack.c.l.b16 %v202
        %v228 = vpack.c.b16 %v227, %v226
        %vm230 = vcmask 130048
        %v232 = vsel %vm230, %v223, 0
        %234 = vmatprep.subr.bf16.mxu0 0
        %235 = vmatpush1.bf16.msra.mxu0 0
        %236 = vmatprep.subr.bf16.mxu0 0
        %237 = vmatpush1.bf16.msra.mxu0 0
        %238 = vmatprep.subr.bf16.mxu0 0
        %239 = vmatpush1.bf16.msra.mxu0 0
        %240 = vmatprep.subr.bf16.mxu0 0
        %241 = vmatpush1.bf16.msra.mxu0 0
        %242 = vmatprep.subr.bf16.mxu0 0
        %243 = vmatpush1.bf16.msra.mxu0 0
        %244 = vmatprep.subr.bf16.mxu0 0
        %245 = vmatpush1.bf16.msra.mxu0 0
        %246 = vmatprep.subr.bf16.mxu0 0
        %247 = vmatpush1.bf16.msra.mxu0 0
        %248 = vmatprep.subr.bf16.mxu0 0
        %249 = vmatpush1.bf16.msra.mxu0 %v228
        %250 = vmatprep.subr.bf16.mxu0 0
        %251 = vmatpush2.bf16.msra.mxu0 0
        %252 = vmatprep.subr.bf16.mxu0 0
        %253 = vmatpush2.bf16.msra.mxu0 0
        %254 = vmatprep.subr.bf16.mxu0 0
        %255 = vmatpush2.bf16.msra.mxu0 0
        %256 = vmatprep.subr.bf16.mxu0 0
        %257 = vmatpush2.bf16.msra.mxu0 0
        %258 = vmatprep.subr.bf16.mxu0 0
        %259 = vmatpush2.bf16.msra.mxu0 0
        %260 = vmatprep.subr.bf16.mxu0 0
        %261 = vmatpush2.bf16.msra.mxu0 0
        %262 = vmatprep.subr.bf16.mxu0 0
        %263 = vmatpush2.bf16.msra.mxu0 0
        %264 = vmatprep.subr.bf16.mxu0 0
        %265 = vmatpush2.bf16.msra.mxu0 0
        %266 = vmatprep.mubr.bf16.mxu0 0
        %267 = vmatmul.mubr.bf16.gmra.mxu0 %v232
        %v268 = vpop.f32.mrf.mxu0
        %v269 = vadd.f32 0.0, %v268
        %v270 = vpop.f32.mrf.mxu0
        %v271 = vpop.f32.mrf.mxu0
        %v272 = vadd.f32 0.0, %v271
        %v273 = vpop.f32.mrf.mxu0
        %274 = vdwg.mxu0
        %v277 = vunpack.c.l.b16 %v197
        %v278 = vunpack.c.l.b16 %v198
        %v279 = vpack.c.b16 %v278, %v277
        %v281 = vsel %vm230, %v209, 0
        %283 = vmatprep.subr.bf16.mxu0 0
        %284 = vmatpush1.bf16.msra.mxu0 0
        %285 = vmatprep.subr.bf16.mxu0 0
        %286 = vmatpush1.bf16.msra.mxu0 0
        %287 = vmatprep.subr.bf16.mxu0 0
        %288 = vmatpush1.bf16.msra.mxu0 0
        %289 = vmatprep.subr.bf16.mxu0 0
        %290 = vmatpush1.bf16.msra.mxu0 0
        %291 = vmatprep.subr.bf16.mxu0 0
        %292 = vmatpush1.bf16.msra.mxu0 0
        %293 = vmatprep.subr.bf16.mxu0 0
        %294 = vmatpush1.bf16.msra.mxu0 0
        %295 = vmatprep.subr.bf16.mxu0 0
        %296 = vmatpush1.bf16.msra.mxu0 0
        %297 = vmatprep.subr.bf16.mxu0 0
        %298 = vmatpush1.bf16.msra.mxu0 %v279
        %299 = vmatprep.subr.bf16.mxu0 0
        %300 = vmatpush2.bf16.msra.mxu0 0
        %301 = vmatprep.subr.bf16.mxu0 0
        %302 = vmatpush2.bf16.msra.mxu0 0
        %303 = vmatprep.subr.bf16.mxu0 0
        %304 = vmatpush2.bf16.msra.mxu0 0
        %305 = vmatprep.subr.bf16.mxu0 0
        %306 = vmatpush2.bf16.msra.mxu0 0
        %307 = vmatprep.subr.bf16.mxu0 0
        %308 = vmatpush2.bf16.msra.mxu0 0
        %309 = vmatprep.subr.bf16.mxu0 0
        %310 = vmatpush2.bf16.msra.mxu0 0
        %311 = vmatprep.subr.bf16.mxu0 0
        %312 = vmatpush2.bf16.msra.mxu0 0
        %313 = vmatprep.subr.bf16.mxu0 0
        %314 = vmatpush2.bf16.msra.mxu0 0
        %315 = vmatprep.mubr.bf16.mxu0 0
        %316 = vmatmul.mubr.bf16.gmra.mxu0 %v281
        %v317 = vpop.f32.mrf.mxu0
        %v318 = vadd.f32 %v269, %v317
        %v319 = vpop.f32.mrf.mxu0
        %v320 = vpop.f32.mrf.mxu0
        %v321 = vadd.f32 %v272, %v320
        %v322 = vpop.f32.mrf.mxu0
        %323 = vdwg.mxu0
        %s324 = sadd.s32 %s187, 1
        %s325 = smul.u32 %s324, 3
        %s326 = smul.addr %s325, 4
        %s327 = scalar_lea.vmem %s172, %s326
        %v328 = vld [vmem:[%s327] sm:$0xf]
        %v329 = vld [vmem:[%s327 + $0x4] sm:$0xf]
        %s330 = scalar_lea.vmem %s1, 16
        %v331 = vld [vmem:[%s330] sm:$0xf]
        %v332 = vld [vmem:[%s330 + $0x4] sm:$0xf]
        %v335 = vunpack.c.l.b16 %v328
        %v336 = vunpack.c.l.b16 %v329
        %v337 = vpack.c.b16 %v336, %v335
        %v340 = vunpack.c.l.b16 %v331
        %v341 = vunpack.c.l.b16 %v332
        %v342 = vpack.c.b16 %v341, %v340
        %v345 = vsel %vm230, %v337, 0
        %347 = vmatprep.subr.bf16.mxu0 0
        %348 = vmatpush1.bf16.msra.mxu0 0
        %349 = vmatprep.subr.bf16.mxu0 0
        %350 = vmatpush1.bf16.msra.mxu0 0
        %351 = vmatprep.subr.bf16.mxu0 0
        %352 = vmatpush1.bf16.msra.mxu0 0
        %353 = vmatprep.subr.bf16.mxu0 0
        %354 = vmatpush1.bf16.msra.mxu0 0
        %355 = vmatprep.subr.bf16.mxu0 0
        %356 = vmatpush1.bf16.msra.mxu0 0
        %357 = vmatprep.subr.bf16.mxu0 0
        %358 = vmatpush1.bf16.msra.mxu0 0
        %359 = vmatprep.subr.bf16.mxu0 0
        %360 = vmatpush1.bf16.msra.mxu0 0
        %361 = vmatprep.subr.bf16.mxu0 0
        %362 = vmatpush1.bf16.msra.mxu0 %v342
        %363 = vmatprep.subr.bf16.mxu0 0
        %364 = vmatpush2.bf16.msra.mxu0 0
        %365 = vmatprep.subr.bf16.mxu0 0
        %366 = vmatpush2.bf16.msra.mxu0 0
        %367 = vmatprep.subr.bf16.mxu0 0
        %368 = vmatpush2.bf16.msra.mxu0 0
        %369 = vmatprep.subr.bf16.mxu0 0
        %370 = vmatpush2.bf16.msra.mxu0 0
        %371 = vmatprep.subr.bf16.mxu0 0
        %372 = vmatpush2.bf16.msra.mxu0 0
        %373 = vmatprep.subr.bf16.mxu0 0
        %374 = vmatpush2.bf16.msra.mxu0 0
        %375 = vmatprep.subr.bf16.mxu0 0
        %376 = vmatpush2.bf16.msra.mxu0 0
        %377 = vmatprep.subr.bf16.mxu0 0
        %378 = vmatpush2.bf16.msra.mxu0 0
        %379 = vmatprep.mubr.bf16.mxu0 0
        %380 = vmatmul.mubr.bf16.gmra.mxu0 %v345
        %v381 = vpop.f32.mrf.mxu0
        %v382 = vadd.f32 0.0, %v381
        %v383 = vpop.f32.mrf.mxu0
        %v384 = vpop.f32.mrf.mxu0
        %v385 = vadd.f32 0.0, %v384
        %v386 = vpop.f32.mrf.mxu0
        %387 = vdwg.mxu0
        %v388 = vadd.f32 %v318, %v382
        %v389 = vadd.f32 %v321, %v385
        %v390 = vld [vmem:[%s327] sm:$0xf]
        %v391 = vld [vmem:[%s327 + $0x4] sm:$0xf]
        %v392 = vld [vmem:[%s327 + $0x8] sm:$0x1]
        %s393 = scalar_lea.vmem %s1, 24
        %v394 = vld [vmem:[%s393] sm:$0xf]
        %v395 = vld [vmem:[%s393 + $0x4] sm:$0xf]
        %v399 = vunpack.c.l.b16 %v390
        %v400 = vunpack.c.l.b16 %v391
        %v401 = vunpack.c.l.b16 %v392
        %v402 = vpack.c.b16 %v400, %v399
        %v403 = vpack.c.b16 %v401, %v401
        %v405 = vshrl.u32 %v402, 16
        %v407 = vshll.u32 %v402, 16
        %v409 = vrot.slane %v407, 1
        %v410 = vor.u32 %v405, %v409
        %v412 = vshll.u32 %v403, 16
        %v414 = vrot.slane %v412, 1
        %v415 = vsel %vm211, %v410, %v414
        %v418 = vunpack.c.l.b16 %v394
        %v419 = vunpack.c.l.b16 %v395
        %v420 = vpack.c.b16 %v419, %v418
        %v423 = vsel %vm230, %v415, 0
        %425 = vmatprep.subr.bf16.mxu0 0
        %426 = vmatpush1.bf16.msra.mxu0 0
        %427 = vmatprep.subr.bf16.mxu0 0
        %428 = vmatpush1.bf16.msra.mxu0 0
        %429 = vmatprep.subr.bf16.mxu0 0
        %430 = vmatpush1.bf16.msra.mxu0 0
        %431 = vmatprep.subr.bf16.mxu0 0
        %432 = vmatpush1.bf16.msra.mxu0 0
        %433 = vmatprep.subr.bf16.mxu0 0
        %434 = vmatpush1.bf16.msra.mxu0 0
        %435 = vmatprep.subr.bf16.mxu0 0
        %436 = vmatpush1.bf16.msra.mxu0 0
        %437 = vmatprep.subr.bf16.mxu0 0
        %438 = vmatpush1.bf16.msra.mxu0 0
        %439 = vmatprep.subr.bf16.mxu0 0
        %440 = vmatpush1.bf16.msra.mxu0 %v420
        %441 = vmatprep.subr.bf16.mxu0 0
        %442 = vmatpush2.bf16.msra.mxu0 0
        %443 = vmatprep.subr.bf16.mxu0 0
        %444 = vmatpush2.bf16.msra.mxu0 0
        %445 = vmatprep.subr.bf16.mxu0 0
        %446 = vmatpush2.bf16.msra.mxu0 0
        %447 = vmatprep.subr.bf16.mxu0 0
        %448 = vmatpush2.bf16.msra.mxu0 0
        %449 = vmatprep.subr.bf16.mxu0 0
        %450 = vmatpush2.bf16.msra.mxu0 0
        %451 = vmatprep.subr.bf16.mxu0 0
        %452 = vmatpush2.bf16.msra.mxu0 0
        %453 = vmatprep.subr.bf16.mxu0 0
        %454 = vmatpush2.bf16.msra.mxu0 0
        %455 = vmatprep.subr.bf16.mxu0 0
        %456 = vmatpush2.bf16.msra.mxu0 0
        %457 = vmatprep.mubr.bf16.mxu0 0
        %458 = vmatmul.mubr.bf16.gmra.mxu0 %v423
        %v459 = vpop.f32.mrf.mxu0
        %v460 = vadd.f32 0.0, %v459
        %v461 = vpop.f32.mrf.mxu0
        %v462 = vpop.f32.mrf.mxu0
        %v463 = vadd.f32 0.0, %v462
        %v464 = vpop.f32.mrf.mxu0
        %465 = vdwg.mxu0
        %v466 = vadd.f32 %v388, %v460
        %v467 = vadd.f32 %v389, %v463
        %v468 = vld [vmem:[#allocation2] sm:$0x1]
        %vm469 = vcmask 64512
        %v470 = vsel %vm469, %v466, 0.0
        %v471 = vsel %vm469, %v467, 0.0
        %v472 = vadd.f32 %v470, %v471
        %v473 = vrot.slane %v472, 4
        %v474 = vadd.f32 %v472, %v473
        %v475 = vrot.slane %v474, 2
        %v476 = vadd.f32 %v474, %v475
        %v477 = vrot.slane %v476, 1
        %v478 = vadd.f32 %v476, %v477
        %v479 = vadd.f32 %v468, %v478
        %480 = vst.msk [vmem:[#allocation2] sm:$0x1] %vm183, %v479
        %v481 = vld [vmem:[#allocation3] sm:$0x1]
        %v482 = vmul.f32 %v466, %v466
        %v483 = vmul.f32 %v467, %v467
        %v484 = vsel %vm469, %v482, 0.0
        %v485 = vsel %vm469, %v483, 0.0
        %v486 = vadd.f32 %v484, %v485
        %v487 = vrot.slane %v486, 4
        %v488 = vadd.f32 %v486, %v487
        %v489 = vrot.slane %v488, 2
        %v490 = vadd.f32 %v488, %v489
        %v491 = vrot.slane %v490, 1
        %v492 = vadd.f32 %v490, %v491
        %v493 = vadd.f32 %v481, %v492
        %494 = vst.msk [vmem:[#allocation3] sm:$0x1] %vm183, %v493
        %v495 = vpack.c.bf16 %v467, %v466
        %v497 = vunpack.c.l.b16 %v495
        %v498 = vunpack.c.h.b16 %v495
        %v499 = vpack.c.b16 %v497, %v497
        %v500 = vpack.c.b16 %v498, %v498
        %s503 = smul.u32 %s187, 4
        %s504 = smul.addr %s503, 4
        %s505 = scalar_lea.vmem %s177, %s504
        %vm506 = vcmask 60416
        %507 = vst.msk [vmem:[%s505] sm:$0xf] %vm506, %v499
        %508 = vst.msk [vmem:[%s505 + $0x4] sm:$0xf] %vm506, %v500
        %v509 = vld [vmem:[%s194] sm:$0xf]
        %v510 = vld [vmem:[%s194 + $0x4] sm:$0xf]
        %v511 = vld [vmem:[%s194 + $0x8] sm:$0x1]
        %s512 = scalar_lea.vmem %s1, 32
        %v513 = vld [vmem:[%s512] sm:$0xf]
        %v514 = vld [vmem:[%s512 + $0x4] sm:$0xf]
        %v515 = vld [vmem:[%s194] sm:$0xe]
        %s516 = scalar_lea.vmem %s1, 40
        %v517 = vld [vmem:[%s516] sm:$0xf]
        %v518 = vld [vmem:[%s516 + $0x4] sm:$0xf]
        %v522 = vunpack.c.l.b16 %v515
        %v523 = vunpack.c.l.b16 %v510
        %v524 = vunpack.c.l.b16 %v511
        %v525 = vpack.c.b16 %v523, %v522
        %v526 = vpack.c.b16 %v524, %v524
        %vm527 = vcmask 1046528
        %v528 = vrot.slane %v525, 1
        %v529 = vrot.slane %v526, 1
        %v530 = vsel %vm527, %v528, %v529
        %v533 = vunpack.c.l.b16 %v517
        %v534 = vunpack.c.l.b16 %v518
        %v535 = vpack.c.b16 %v534, %v533
        %v538 = vsel %vm230, %v530, 0
        %540 = vmatprep.subr.bf16.mxu0 0
        %541 = vmatpush1.bf16.msra.mxu0 0
        %542 = vmatprep.subr.bf16.mxu0 0
        %543 = vmatpush1.bf16.msra.mxu0 0
        %544 = vmatprep.subr.bf16.mxu0 0
        %545 = vmatpush1.bf16.msra.mxu0 0
        %546 = vmatprep.subr.bf16.mxu0 0
        %547 = vmatpush1.bf16.msra.mxu0 0
        %548 = vmatprep.subr.bf16.mxu0 0
        %549 = vmatpush1.bf16.msra.mxu0 0
        %550 = vmatprep.subr.bf16.mxu0 0
        %551 = vmatpush1.bf16.msra.mxu0 0
        %552 = vmatprep.subr.bf16.mxu0 0
        %553 = vmatpush1.bf16.msra.mxu0 0
        %554 = vmatprep.subr.bf16.mxu0 0
        %555 = vmatpush1.bf16.msra.mxu0 %v535
        %556 = vmatprep.subr.bf16.mxu0 0
        %557 = vmatpush2.bf16.msra.mxu0 0
        %558 = vmatprep.subr.bf16.mxu0 0
        %559 = vmatpush2.bf16.msra.mxu0 0
        %560 = vmatprep.subr.bf16.mxu0 0
        %561 = vmatpush2.bf16.msra.mxu0 0
        %562 = vmatprep.subr.bf16.mxu0 0
        %563 = vmatpush2.bf16.msra.mxu0 0
        %564 = vmatprep.subr.bf16.mxu0 0
        %565 = vmatpush2.bf16.msra.mxu0 0
        %566 = vmatprep.subr.bf16.mxu0 0
        %567 = vmatpush2.bf16.msra.mxu0 0
        %568 = vmatprep.subr.bf16.mxu0 0
        %569 = vmatpush2.bf16.msra.mxu0 0
        %570 = vmatprep.subr.bf16.mxu0 0
        %571 = vmatpush2.bf16.msra.mxu0 0
        %572 = vmatprep.mubr.bf16.mxu0 0
        %573 = vmatmul.mubr.bf16.gmra.mxu0 %v538
        %v574 = vpop.f32.mrf.mxu0
        %v575 = vadd.f32 0.0, %v574
        %v576 = vpop.f32.mrf.mxu0
        %v577 = vpop.f32.mrf.mxu0
        %v578 = vadd.f32 0.0, %v577
        %v579 = vpop.f32.mrf.mxu0
        %580 = vdwg.mxu0
        %v582 = vunpack.c.l.b16 %v509
        %v583 = vpack.c.b16 %v523, %v582
        %v585 = vshrl.u32 %v583, 16
        %v587 = vshll.u32 %v583, 16
        %v589 = vrot.slane %v587, 1
        %v590 = vor.u32 %v585, %v589
        %v592 = vshll.u32 %v526, 16
        %v594 = vrot.slane %v592, 1
        %v595 = vsel %vm211, %v590, %v594
        %v598 = vunpack.c.l.b16 %v513
        %v599 = vunpack.c.l.b16 %v514
        %v600 = vpack.c.b16 %v599, %v598
        %v603 = vsel %vm230, %v595, 0
        %605 = vmatprep.subr.bf16.mxu0 0
        %606 = vmatpush1.bf16.msra.mxu0 0
        %607 = vmatprep.subr.bf16.mxu0 0
        %608 = vmatpush1.bf16.msra.mxu0 0
        %609 = vmatprep.subr.bf16.mxu0 0
        %610 = vmatpush1.bf16.msra.mxu0 0
        %611 = vmatprep.subr.bf16.mxu0 0
        %612 = vmatpush1.bf16.msra.mxu0 0
        %613 = vmatprep.subr.bf16.mxu0 0
        %614 = vmatpush1.bf16.msra.mxu0 0
        %615 = vmatprep.subr.bf16.mxu0 0
        %616 = vmatpush1.bf16.msra.mxu0 0
        %617 = vmatprep.subr.bf16.mxu0 0
        %618 = vmatpush1.bf16.msra.mxu0 0
        %619 = vmatprep.subr.bf16.mxu0 0
        %620 = vmatpush1.bf16.msra.mxu0 %v600
        %621 = vmatprep.subr.bf16.mxu0 0
        %622 = vmatpush2.bf16.msra.mxu0 0
        %623 = vmatprep.subr.bf16.mxu0 0
        %624 = vmatpush2.bf16.msra.mxu0 0
        %625 = vmatprep.subr.bf16.mxu0 0
        %626 = vmatpush2.bf16.msra.mxu0 0
        %627 = vmatprep.subr.bf16.mxu0 0
        %628 = vmatpush2.bf16.msra.mxu0 0
        %629 = vmatprep.subr.bf16.mxu0 0
        %630 = vmatpush2.bf16.msra.mxu0 0
        %631 = vmatprep.subr.bf16.mxu0 0
        %632 = vmatpush2.bf16.msra.mxu0 0
        %633 = vmatprep.subr.bf16.mxu0 0
        %634 = vmatpush2.bf16.msra.mxu0 0
        %635 = vmatprep.subr.bf16.mxu0 0
        %636 = vmatpush2.bf16.msra.mxu0 0
        %637 = vmatprep.mubr.bf16.mxu0 0
        %638 = vmatmul.mubr.bf16.gmra.mxu0 %v603
        %v639 = vpop.f32.mrf.mxu0
        %v640 = vadd.f32 %v575, %v639
        %v641 = vpop.f32.mrf.mxu0
        %v642 = vpop.f32.mrf.mxu0
        %v643 = vadd.f32 %v578, %v642
        %v644 = vpop.f32.mrf.mxu0
        %645 = vdwg.mxu0
        %v646 = vld [vmem:[%s327] sm:$0xf]
        %v647 = vld [vmem:[%s327 + $0x4] sm:$0xf]
        %v648 = vld [vmem:[%s327 + $0x8] sm:$0x1]
        %s649 = scalar_lea.vmem %s1, 48
        %v650 = vld [vmem:[%s649] sm:$0xf]
        %v651 = vld [vmem:[%s649 + $0x4] sm:$0xf]
        %v655 = vunpack.c.l.b16 %v646
        %v656 = vunpack.c.l.b16 %v647
        %v657 = vunpack.c.l.b16 %v648
        %v658 = vpack.c.b16 %v656, %v655
        %v659 = vpack.c.b16 %v657, %v657
        %v661 = vshrl.u32 %v658, 16
        %v663 = vshll.u32 %v658, 16
        %v665 = vrot.slane %v663, 1
        %v666 = vor.u32 %v661, %v665
        %v668 = vshll.u32 %v659, 16
        %v670 = vrot.slane %v668, 1
        %v671 = vsel %vm211, %v666, %v670
        %v674 = vunpack.c.l.b16 %v650
        %v675 = vunpack.c.l.b16 %v651
        %v676 = vpack.c.b16 %v675, %v674
        %v679 = vsel %vm230, %v671, 0
        %681 = vmatprep.subr.bf16.mxu0 0
        %682 = vmatpush1.bf16.msra.mxu0 0
        %683 = vmatprep.subr.bf16.mxu0 0
        %684 = vmatpush1.bf16.msra.mxu0 0
        %685 = vmatprep.subr.bf16.mxu0 0
        %686 = vmatpush1.bf16.msra.mxu0 0
        %687 = vmatprep.subr.bf16.mxu0 0
        %688 = vmatpush1.bf16.msra.mxu0 0
        %689 = vmatprep.subr.bf16.mxu0 0
        %690 = vmatpush1.bf16.msra.mxu0 0
        %691 = vmatprep.subr.bf16.mxu0 0
        %692 = vmatpush1.bf16.msra.mxu0 0
        %693 = vmatprep.subr.bf16.mxu0 0
        %694 = vmatpush1.bf16.msra.mxu0 0
        %695 = vmatprep.subr.bf16.mxu0 0
        %696 = vmatpush1.bf16.msra.mxu0 %v676
        %697 = vmatprep.subr.bf16.mxu0 0
        %698 = vmatpush2.bf16.msra.mxu0 0
        %699 = vmatprep.subr.bf16.mxu0 0
        %700 = vmatpush2.bf16.msra.mxu0 0
        %701 = vmatprep.subr.bf16.mxu0 0
        %702 = vmatpush2.bf16.msra.mxu0 0
        %703 = vmatprep.subr.bf16.mxu0 0
        %704 = vmatpush2.bf16.msra.mxu0 0
        %705 = vmatprep.subr.bf16.mxu0 0
        %706 = vmatpush2.bf16.msra.mxu0 0
        %707 = vmatprep.subr.bf16.mxu0 0
        %708 = vmatpush2.bf16.msra.mxu0 0
        %709 = vmatprep.subr.bf16.mxu0 0
        %710 = vmatpush2.bf16.msra.mxu0 0
        %711 = vmatprep.subr.bf16.mxu0 0
        %712 = vmatpush2.bf16.msra.mxu0 0
        %713 = vmatprep.mubr.bf16.mxu0 0
        %714 = vmatmul.mubr.bf16.gmra.mxu0 %v679
        %v715 = vpop.f32.mrf.mxu0
        %v716 = vadd.f32 0.0, %v715
        %v717 = vpop.f32.mrf.mxu0
        %v718 = vpop.f32.mrf.mxu0
        %v719 = vadd.f32 0.0, %v718
        %v720 = vpop.f32.mrf.mxu0
        %721 = vdwg.mxu0
        %v722 = vadd.f32 %v640, %v716
        %v723 = vadd.f32 %v643, %v719
        %v724 = vld [vmem:[%s327] sm:$0xe]
        %s725 = scalar_lea.vmem %s1, 56
        %v726 = vld [vmem:[%s725] sm:$0xf]
        %v727 = vld [vmem:[%s725 + $0x4] sm:$0xf]
        %v729 = vunpack.c.l.b16 %v724
        %v730 = vpack.c.b16 %v656, %v729
        %v731 = vrot.slane %v730, 1
        %v732 = vrot.slane %v659, 1
        %v733 = vsel %vm527, %v731, %v732
        %v736 = vunpack.c.l.b16 %v726
        %v737 = vunpack.c.l.b16 %v727
        %v738 = vpack.c.b16 %v737, %v736
        %v741 = vsel %vm230, %v733, 0
        %743 = vmatprep.subr.bf16.mxu0 0
        %744 = vmatpush1.bf16.msra.mxu0 0
        %745 = vmatprep.subr.bf16.mxu0 0
        %746 = vmatpush1.bf16.msra.mxu0 0
        %747 = vmatprep.subr.bf16.mxu0 0
        %748 = vmatpush1.bf16.msra.mxu0 0
        %749 = vmatprep.subr.bf16.mxu0 0
        %750 = vmatpush1.bf16.msra.mxu0 0
        %751 = vmatprep.subr.bf16.mxu0 0
        %752 = vmatpush1.bf16.msra.mxu0 0
        %753 = vmatprep.subr.bf16.mxu0 0
        %754 = vmatpush1.bf16.msra.mxu0 0
        %755 = vmatprep.subr.bf16.mxu0 0
        %756 = vmatpush1.bf16.msra.mxu0 0
        %757 = vmatprep.subr.bf16.mxu0 0
        %758 = vmatpush1.bf16.msra.mxu0 %v738
        %759 = vmatprep.subr.bf16.mxu0 0
        %760 = vmatpush2.bf16.msra.mxu0 0
        %761 = vmatprep.subr.bf16.mxu0 0
        %762 = vmatpush2.bf16.msra.mxu0 0
        %763 = vmatprep.subr.bf16.mxu0 0
        %764 = vmatpush2.bf16.msra.mxu0 0
        %765 = vmatprep.subr.bf16.mxu0 0
        %766 = vmatpush2.bf16.msra.mxu0 0
        %767 = vmatprep.subr.bf16.mxu0 0
        %768 = vmatpush2.bf16.msra.mxu0 0
        %769 = vmatprep.subr.bf16.mxu0 0
        %770 = vmatpush2.bf16.msra.mxu0 0
        %771 = vmatprep.subr.bf16.mxu0 0
        %772 = vmatpush2.bf16.msra.mxu0 0
        %773 = vmatprep.subr.bf16.mxu0 0
        %774 = vmatpush2.bf16.msra.mxu0 0
        %775 = vmatprep.mubr.bf16.mxu0 0
        %776 = vmatmul.mubr.bf16.gmra.mxu0 %v741
        %v777 = vpop.f32.mrf.mxu0
        %v778 = vadd.f32 0.0, %v777
        %v779 = vpop.f32.mrf.mxu0
        %v780 = vpop.f32.mrf.mxu0
        %v781 = vadd.f32 0.0, %v780
        %v782 = vpop.f32.mrf.mxu0
        %783 = vdwg.mxu0
        %v784 = vadd.f32 %v722, %v778
        %v785 = vadd.f32 %v723, %v781
        %v786 = vld [vmem:[#allocation2] sm:$0x1]
        %v787 = vsel %vm469, %v784, 0.0
        %v788 = vsel %vm469, %v785, 0.0
        %v789 = vadd.f32 %v787, %v788
        %v790 = vrot.slane %v789, 4
        %v791 = vadd.f32 %v789, %v790
        %v792 = vrot.slane %v791, 2
        %v793 = vadd.f32 %v791, %v792
        %v794 = vrot.slane %v793, 1
        %v795 = vadd.f32 %v793, %v794
        %v796 = vadd.f32 %v786, %v795
        %797 = vst.msk [vmem:[#allocation2] sm:$0x1] %vm183, %v796
        %v798 = vld [vmem:[#allocation3] sm:$0x1]
        %v799 = vmul.f32 %v784, %v784
        %v800 = vmul.f32 %v785, %v785
        %v801 = vsel %vm469, %v799, 0.0
        %v802 = vsel %vm469, %v800, 0.0
        %v803 = vadd.f32 %v801, %v802
        %v804 = vrot.slane %v803, 4
        %v805 = vadd.f32 %v803, %v804
        %v806 = vrot.slane %v805, 2
        %v807 = vadd.f32 %v805, %v806
        %v808 = vrot.slane %v807, 1
        %v809 = vadd.f32 %v807, %v808
        %v810 = vadd.f32 %v798, %v809
        %811 = vst.msk [vmem:[#allocation3] sm:$0x1] %vm183, %v810
        %v812 = vpack.c.bf16 %v785, %v784
        %v814 = vunpack.c.l.b16 %v812
        %v815 = vunpack.c.h.b16 %v812
        %v816 = vpack.c.b16 %v814, %v814
        %v817 = vpack.c.b16 %v815, %v815
        %818 = vrot.lane.b32.xlu0 %v816, 8
        %v819 = vpop.permute.xlu0 %818
        %820 = vrot.lane.b32.xlu0 %v817, 8
        %v821 = vpop.permute.xlu0 %820
        %vm824 = vcmask 126016
        %825 = vst.msk [vmem:[%s505] sm:$0xf] %vm824, %v819
        %826 = vst.msk [vmem:[%s505 + $0x4] sm:$0xf] %vm824, %v821
        %v827 = vld [vmem:[%s327] sm:$0xf]
        %v828 = vld [vmem:[%s327 + $0x4] sm:$0xf]
        %s829 = scalar_lea.vmem %s1, 64
        %v830 = vld [vmem:[%s829] sm:$0xf]
        %v831 = vld [vmem:[%s829 + $0x4] sm:$0xf]
        %v832 = vld [vmem:[%s327 + $0x8] sm:$0x1]
        %s833 = scalar_lea.vmem %s1, 72
        %v834 = vld [vmem:[%s833] sm:$0xf]
        %v835 = vld [vmem:[%s833 + $0x4] sm:$0xf]
        %v839 = vunpack.c.l.b16 %v827
        %v840 = vunpack.c.l.b16 %v828
        %v841 = vunpack.c.l.b16 %v832
        %v842 = vpack.c.b16 %v840, %v839
        %v843 = vpack.c.b16 %v841, %v841
        %v845 = vshrl.u32 %v842, 16
        %v847 = vshll.u32 %v842, 16
        %v849 = vrot.slane %v847, 1
        %v850 = vor.u32 %v845, %v849
        %v852 = vshll.u32 %v843, 16
        %v854 = vrot.slane %v852, 1
        %v855 = vsel %vm211, %v850, %v854
        %v858 = vunpack.c.l.b16 %v834
        %v859 = vunpack.c.l.b16 %v835
        %v860 = vpack.c.b16 %v859, %v858
        %v863 = vsel %vm230, %v855, 0
        %865 = vmatprep.subr.bf16.mxu0 0
        %866 = vmatpush1.bf16.msra.mxu0 0
        %867 = vmatprep.subr.bf16.mxu0 0
        %868 = vmatpush1.bf16.msra.mxu0 0
        %869 = vmatprep.subr.bf16.mxu0 0
        %870 = vmatpush1.bf16.msra.mxu0 0
        %871 = vmatprep.subr.bf16.mxu0 0
        %872 = vmatpush1.bf16.msra.mxu0 0
        %873 = vmatprep.subr.bf16.mxu0 0
        %874 = vmatpush1.bf16.msra.mxu0 0
        %875 = vmatprep.subr.bf16.mxu0 0
        %876 = vmatpush1.bf16.msra.mxu0 0
        %877 = vmatprep.subr.bf16.mxu0 0
        %878 = vmatpush1.bf16.msra.mxu0 0
        %879 = vmatprep.subr.bf16.mxu0 0
        %880 = vmatpush1.bf16.msra.mxu0 %v860
        %881 = vmatprep.subr.bf16.mxu0 0
        %882 = vmatpush2.bf16.msra.mxu0 0
        %883 = vmatprep.subr.bf16.mxu0 0
        %884 = vmatpush2.bf16.msra.mxu0 0
        %885 = vmatprep.subr.bf16.mxu0 0
        %886 = vmatpush2.bf16.msra.mxu0 0
        %887 = vmatprep.subr.bf16.mxu0 0
        %888 = vmatpush2.bf16.msra.mxu0 0
        %889 = vmatprep.subr.bf16.mxu0 0
        %890 = vmatpush2.bf16.msra.mxu0 0
        %891 = vmatprep.subr.bf16.mxu0 0
        %892 = vmatpush2.bf16.msra.mxu0 0
        %893 = vmatprep.subr.bf16.mxu0 0
        %894 = vmatpush2.bf16.msra.mxu0 0
        %895 = vmatprep.subr.bf16.mxu0 0
        %896 = vmatpush2.bf16.msra.mxu0 0
        %897 = vmatprep.mubr.bf16.mxu0 0
        %898 = vmatmul.mubr.bf16.gmra.mxu0 %v863
        %v899 = vpop.f32.mrf.mxu0
        %v900 = vadd.f32 0.0, %v899
        %v901 = vpop.f32.mrf.mxu0
        %v902 = vpop.f32.mrf.mxu0
        %v903 = vadd.f32 0.0, %v902
        %v904 = vpop.f32.mrf.mxu0
        %905 = vdwg.mxu0
        %v908 = vunpack.c.l.b16 %v830
        %v909 = vunpack.c.l.b16 %v831
        %v910 = vpack.c.b16 %v909, %v908
        %v912 = vsel %vm230, %v842, 0
        %914 = vmatprep.subr.bf16.mxu0 0
        %915 = vmatpush1.bf16.msra.mxu0 0
        %916 = vmatprep.subr.bf16.mxu0 0
        %917 = vmatpush1.bf16.msra.mxu0 0
        %918 = vmatprep.subr.bf16.mxu0 0
        %919 = vmatpush1.bf16.msra.mxu0 0
        %920 = vmatprep.subr.bf16.mxu0 0
        %921 = vmatpush1.bf16.msra.mxu0 0
        %922 = vmatprep.subr.bf16.mxu0 0
        %923 = vmatpush1.bf16.msra.mxu0 0
        %924 = vmatprep.subr.bf16.mxu0 0
        %925 = vmatpush1.bf16.msra.mxu0 0
        %926 = vmatprep.subr.bf16.mxu0 0
        %927 = vmatpush1.bf16.msra.mxu0 0
        %928 = vmatprep.subr.bf16.mxu0 0
        %929 = vmatpush1.bf16.msra.mxu0 %v910
        %930 = vmatprep.subr.bf16.mxu0 0
        %931 = vmatpush2.bf16.msra.mxu0 0
        %932 = vmatprep.subr.bf16.mxu0 0
        %933 = vmatpush2.bf16.msra.mxu0 0
        %934 = vmatprep.subr.bf16.mxu0 0
        %935 = vmatpush2.bf16.msra.mxu0 0
        %936 = vmatprep.subr.bf16.mxu0 0
        %937 = vmatpush2.bf16.msra.mxu0 0
        %938 = vmatprep.subr.bf16.mxu0 0
        %939 = vmatpush2.bf16.msra.mxu0 0
        %940 = vmatprep.subr.bf16.mxu0 0
        %941 = vmatpush2.bf16.msra.mxu0 0
        %942 = vmatprep.subr.bf16.mxu0 0
        %943 = vmatpush2.bf16.msra.mxu0 0
        %944 = vmatprep.subr.bf16.mxu0 0
        %945 = vmatpush2.bf16.msra.mxu0 0
        %946 = vmatprep.mubr.bf16.mxu0 0
        %947 = vmatmul.mubr.bf16.gmra.mxu0 %v912
        %v948 = vpop.f32.mrf.mxu0
        %v949 = vadd.f32 %v900, %v948
        %v950 = vpop.f32.mrf.mxu0
        %v951 = vpop.f32.mrf.mxu0
        %v952 = vadd.f32 %v903, %v951
        %v953 = vpop.f32.mrf.mxu0
        %954 = vdwg.mxu0
        %s955 = sadd.s32 %s187, 2
        %s956 = smul.u32 %s955, 3
        %s957 = smul.addr %s956, 4
        %s958 = scalar_lea.vmem %s172, %s957
        %v959 = vld [vmem:[%s958] sm:$0xf]
        %v960 = vld [vmem:[%s958 + $0x4] sm:$0xf]
        %s961 = scalar_lea.vmem %s1, 80
        %v962 = vld [vmem:[%s961] sm:$0xf]
        %v963 = vld [vmem:[%s961 + $0x4] sm:$0xf]
        %v966 = vunpack.c.l.b16 %v959
        %v967 = vunpack.c.l.b16 %v960
        %v968 = vpack.c.b16 %v967, %v966
        %v971 = vunpack.c.l.b16 %v962
        %v972 = vunpack.c.l.b16 %v963
        %v973 = vpack.c.b16 %v972, %v971
        %v976 = vsel %vm230, %v968, 0
        %978 = vmatprep.subr.bf16.mxu0 0
        %979 = vmatpush1.bf16.msra.mxu0 0
        %980 = vmatprep.subr.bf16.mxu0 0
        %981 = vmatpush1.bf16.msra.mxu0 0
        %982 = vmatprep.subr.bf16.mxu0 0
        %983 = vmatpush1.bf16.msra.mxu0 0
        %984 = vmatprep.subr.bf16.mxu0 0
        %985 = vmatpush1.bf16.msra.mxu0 0
        %986 = vmatprep.subr.bf16.mxu0 0
        %987 = vmatpush1.bf16.msra.mxu0 0
        %988 = vmatprep.subr.bf16.mxu0 0
        %989 = vmatpush1.bf16.msra.mxu0 0
        %990 = vmatprep.subr.bf16.mxu0 0
        %991 = vmatpush1.bf16.msra.mxu0 0
        %992 = vmatprep.subr.bf16.mxu0 0
        %993 = vmatpush1.bf16.msra.mxu0 %v973
        %994 = vmatprep.subr.bf16.mxu0 0
        %995 = vmatpush2.bf16.msra.mxu0 0
        %996 = vmatprep.subr.bf16.mxu0 0
        %997 = vmatpush2.bf16.msra.mxu0 0
        %998 = vmatprep.subr.bf16.mxu0 0
        %999 = vmatpush2.bf16.msra.mxu0 0
        %1000 = vmatprep.subr.bf16.mxu0 0
        %1001 = vmatpush2.bf16.msra.mxu0 0
        %1002 = vmatprep.subr.bf16.mxu0 0
        %1003 = vmatpush2.bf16.msra.mxu0 0
        %1004 = vmatprep.subr.bf16.mxu0 0
        %1005 = vmatpush2.bf16.msra.mxu0 0
        %1006 = vmatprep.subr.bf16.mxu0 0
        %1007 = vmatpush2.bf16.msra.mxu0 0
        %1008 = vmatprep.subr.bf16.mxu0 0
        %1009 = vmatpush2.bf16.msra.mxu0 0
        %1010 = vmatprep.mubr.bf16.mxu0 0
        %1011 = vmatmul.mubr.bf16.gmra.mxu0 %v976
        %v1012 = vpop.f32.mrf.mxu0
        %v1013 = vadd.f32 0.0, %v1012
        %v1014 = vpop.f32.mrf.mxu0
        %v1015 = vpop.f32.mrf.mxu0
        %v1016 = vadd.f32 0.0, %v1015
        %v1017 = vpop.f32.mrf.mxu0
        %1018 = vdwg.mxu0
        %v1019 = vadd.f32 %v949, %v1013
        %v1020 = vadd.f32 %v952, %v1016
        %v1021 = vld [vmem:[%s958] sm:$0xf]
        %v1022 = vld [vmem:[%s958 + $0x4] sm:$0xf]
        %v1023 = vld [vmem:[%s958 + $0x8] sm:$0x1]
        %s1024 = scalar_lea.vmem %s1, 88
        %v1025 = vld [vmem:[%s1024] sm:$0xf]
        %v1026 = vld [vmem:[%s1024 + $0x4] sm:$0xf]
        %v1030 = vunpack.c.l.b16 %v1021
        %v1031 = vunpack.c.l.b16 %v1022
        %v1032 = vunpack.c.l.b16 %v1023
        %v1033 = vpack.c.b16 %v1031, %v1030
        %v1034 = vpack.c.b16 %v1032, %v1032
        %v1036 = vshrl.u32 %v1033, 16
        %v1038 = vshll.u32 %v1033, 16
        %v1040 = vrot.slane %v1038, 1
        %v1041 = vor.u32 %v1036, %v1040
        %v1043 = vshll.u32 %v1034, 16
        %v1045 = vrot.slane %v1043, 1
        %v1046 = vsel %vm211, %v1041, %v1045
        %v1049 = vunpack.c.l.b16 %v1025
        %v1050 = vunpack.c.l.b16 %v1026
        %v1051 = vpack.c.b16 %v1050, %v1049
        %v1054 = vsel %vm230, %v1046, 0
        %1056 = vmatprep.subr.bf16.mxu0 0
        %1057 = vmatpush1.bf16.msra.mxu0 0
        %1058 = vmatprep.subr.bf16.mxu0 0
        %1059 = vmatpush1.bf16.msra.mxu0 0
        %1060 = vmatprep.subr.bf16.mxu0 0
        %1061 = vmatpush1.bf16.msra.mxu0 0
        %1062 = vmatprep.subr.bf16.mxu0 0
        %1063 = vmatpush1.bf16.msra.mxu0 0
        %1064 = vmatprep.subr.bf16.mxu0 0
        %1065 = vmatpush1.bf16.msra.mxu0 0
        %1066 = vmatprep.subr.bf16.mxu0 0
        %1067 = vmatpush1.bf16.msra.mxu0 0
        %1068 = vmatprep.subr.bf16.mxu0 0
        %1069 = vmatpush1.bf16.msra.mxu0 0
        %1070 = vmatprep.subr.bf16.mxu0 0
        %1071 = vmatpush1.bf16.msra.mxu0 %v1051
        %1072 = vmatprep.subr.bf16.mxu0 0
        %1073 = vmatpush2.bf16.msra.mxu0 0
        %1074 = vmatprep.subr.bf16.mxu0 0
        %1075 = vmatpush2.bf16.msra.mxu0 0
        %1076 = vmatprep.subr.bf16.mxu0 0
        %1077 = vmatpush2.bf16.msra.mxu0 0
        %1078 = vmatprep.subr.bf16.mxu0 0
        %1079 = vmatpush2.bf16.msra.mxu0 0
        %1080 = vmatprep.subr.bf16.mxu0 0
        %1081 = vmatpush2.bf16.msra.mxu0 0
        %1082 = vmatprep.subr.bf16.mxu0 0
        %1083 = vmatpush2.bf16.msra.mxu0 0
        %1084 = vmatprep.subr.bf16.mxu0 0
        %1085 = vmatpush2.bf16.msra.mxu0 0
        %1086 = vmatprep.subr.bf16.mxu0 0
        %1087 = vmatpush2.bf16.msra.mxu0 0
        %1088 = vmatprep.mubr.bf16.mxu0 0
        %1089 = vmatmul.mubr.bf16.gmra.mxu0 %v1054
        %v1090 = vpop.f32.mrf.mxu0
        %v1091 = vadd.f32 0.0, %v1090
        %v1092 = vpop.f32.mrf.mxu0
        %v1093 = vpop.f32.mrf.mxu0
        %v1094 = vadd.f32 0.0, %v1093
        %v1095 = vpop.f32.mrf.mxu0
        %1096 = vdwg.mxu0
        %v1097 = vadd.f32 %v1019, %v1091
        %v1098 = vadd.f32 %v1020, %v1094
        %v1099 = vld [vmem:[#allocation2] sm:$0x1]
        %v1100 = vsel %vm469, %v1097, 0.0
        %v1101 = vsel %vm469, %v1098, 0.0
        %v1102 = vadd.f32 %v1100, %v1101
        %v1103 = vrot.slane %v1102, 4
        %v1104 = vadd.f32 %v1102, %v1103
        %v1105 = vrot.slane %v1104, 2
        %v1106 = vadd.f32 %v1104, %v1105
        %v1107 = vrot.slane %v1106, 1
        %v1108 = vadd.f32 %v1106, %v1107
        %v1109 = vadd.f32 %v1099, %v1108
        %1110 = vst.msk [vmem:[#allocation2] sm:$0x1] %vm183, %v1109
        %v1111 = vld [vmem:[#allocation3] sm:$0x1]
        %v1112 = vmul.f32 %v1097, %v1097
        %v1113 = vmul.f32 %v1098, %v1098
        %v1114 = vsel %vm469, %v1112, 0.0
        %v1115 = vsel %vm469, %v1113, 0.0
        %v1116 = vadd.f32 %v1114, %v1115
        %v1117 = vrot.slane %v1116, 4
        %v1118 = vadd.f32 %v1116, %v1117
        %v1119 = vrot.slane %v1118, 2
        %v1120 = vadd.f32 %v1118, %v1119
        %v1121 = vrot.slane %v1120, 1
        %v1122 = vadd.f32 %v1120, %v1121
        %v1123 = vadd.f32 %v1111, %v1122
        %1124 = vst.msk [vmem:[#allocation3] sm:$0x1] %vm183, %v1123
        %v1125 = vpack.c.bf16 %v1098, %v1097
        %v1127 = vunpack.c.l.b16 %v1125
        %v1128 = vunpack.c.h.b16 %v1125
        %v1129 = vpack.c.b16 %v1127, %v1127
        %v1130 = vpack.c.b16 %v1128, %v1128
        %s1133 = sadd.s32 2, %s503
        %s1134 = smul.addr %s1133, 4
        %s1135 = scalar_lea.vmem %s177, %s1134
        %1136 = vst.msk [vmem:[%s1135] sm:$0xf] %vm506, %v1129
        %1137 = vst.msk [vmem:[%s1135 + $0x4] sm:$0xf] %vm506, %v1130
        %v1138 = vld [vmem:[%s327] sm:$0xf]
        %v1139 = vld [vmem:[%s327 + $0x4] sm:$0xf]
        %v1140 = vld [vmem:[%s327 + $0x8] sm:$0x1]
        %s1141 = scalar_lea.vmem %s1, 96
        %v1142 = vld [vmem:[%s1141] sm:$0xf]
        %v1143 = vld [vmem:[%s1141 + $0x4] sm:$0xf]
        %v1144 = vld [vmem:[%s327] sm:$0xe]
        %s1145 = scalar_lea.vmem %s1, 104
        %v1146 = vld [vmem:[%s1145] sm:$0xf]
        %v1147 = vld [vmem:[%s1145 + $0x4] sm:$0xf]
        %v1151 = vunpack.c.l.b16 %v1144
        %v1152 = vunpack.c.l.b16 %v1139
        %v1153 = vunpack.c.l.b16 %v1140
        %v1154 = vpack.c.b16 %v1152, %v1151
        %v1155 = vpack.c.b16 %v1153, %v1153
        %v1156 = vrot.slane %v1154, 1
        %v1157 = vrot.slane %v1155, 1
        %v1158 = vsel %vm527, %v1156, %v1157
        %v1161 = vunpack.c.l.b16 %v1146
        %v1162 = vunpack.c.l.b16 %v1147
        %v1163 = vpack.c.b16 %v1162, %v1161
        %v1166 = vsel %vm230, %v1158, 0
        %1168 = vmatprep.subr.bf16.mxu0 0
        %1169 = vmatpush1.bf16.msra.mxu0 0
        %1170 = vmatprep.subr.bf16.mxu0 0
        %1171 = vmatpush1.bf16.msra.mxu0 0
        %1172 = vmatprep.subr.bf16.mxu0 0
        %1173 = vmatpush1.bf16.msra.mxu0 0
        %1174 = vmatprep.subr.bf16.mxu0 0
        %1175 = vmatpush1.bf16.msra.mxu0 0
        %1176 = vmatprep.subr.bf16.mxu0 0
        %1177 = vmatpush1.bf16.msra.mxu0 0
        %1178 = vmatprep.subr.bf16.mxu0 0
        %1179 = vmatpush1.bf16.msra.mxu0 0
        %1180 = vmatprep.subr.bf16.mxu0 0
        %1181 = vmatpush1.bf16.msra.mxu0 0
        %1182 = vmatprep.subr.bf16.mxu0 0
        %1183 = vmatpush1.bf16.msra.mxu0 %v1163
        %1184 = vmatprep.subr.bf16.mxu0 0
        %1185 = vmatpush2.bf16.msra.mxu0 0
        %1186 = vmatprep.subr.bf16.mxu0 0
        %1187 = vmatpush2.bf16.msra.mxu0 0
        %1188 = vmatprep.subr.bf16.mxu0 0
        %1189 = vmatpush2.bf16.msra.mxu0 0
        %1190 = vmatprep.subr.bf16.mxu0 0
        %1191 = vmatpush2.bf16.msra.mxu0 0
        %1192 = vmatprep.subr.bf16.mxu0 0
        %1193 = vmatpush2.bf16.msra.mxu0 0
        %1194 = vmatprep.subr.bf16.mxu0 0
        %1195 = vmatpush2.bf16.msra.mxu0 0
        %1196 = vmatprep.subr.bf16.mxu0 0
        %1197 = vmatpush2.bf16.msra.mxu0 0
        %1198 = vmatprep.subr.bf16.mxu0 0
        %1199 = vmatpush2.bf16.msra.mxu0 0
        %1200 = vmatprep.mubr.bf16.mxu0 0
        %1201 = vmatmul.mubr.bf16.gmra.mxu0 %v1166
        %v1202 = vpop.f32.mrf.mxu0
        %v1203 = vadd.f32 0.0, %v1202
        %v1204 = vpop.f32.mrf.mxu0
        %v1205 = vpop.f32.mrf.mxu0
        %v1206 = vadd.f32 0.0, %v1205
        %v1207 = vpop.f32.mrf.mxu0
        %1208 = vdwg.mxu0
        %v1210 = vunpack.c.l.b16 %v1138
        %v1211 = vpack.c.b16 %v1152, %v1210
        %v1213 = vshrl.u32 %v1211, 16
        %v1215 = vshll.u32 %v1211, 16
        %v1217 = vrot.slane %v1215, 1
        %v1218 = vor.u32 %v1213, %v1217
        %v1220 = vshll.u32 %v1155, 16
        %v1222 = vrot.slane %v1220, 1
        %v1223 = vsel %vm211, %v1218, %v1222
        %v1226 = vunpack.c.l.b16 %v1142
        %v1227 = vunpack.c.l.b16 %v1143
        %v1228 = vpack.c.b16 %v1227, %v1226
        %v1231 = vsel %vm230, %v1223, 0
        %1233 = vmatprep.subr.bf16.mxu0 0
        %1234 = vmatpush1.bf16.msra.mxu0 0
        %1235 = vmatprep.subr.bf16.mxu0 0
        %1236 = vmatpush1.bf16.msra.mxu0 0
        %1237 = vmatprep.subr.bf16.mxu0 0
        %1238 = vmatpush1.bf16.msra.mxu0 0
        %1239 = vmatprep.subr.bf16.mxu0 0
        %1240 = vmatpush1.bf16.msra.mxu0 0
        %1241 = vmatprep.subr.bf16.mxu0 0
        %1242 = vmatpush1.bf16.msra.mxu0 0
        %1243 = vmatprep.subr.bf16.mxu0 0
        %1244 = vmatpush1.bf16.msra.mxu0 0
        %1245 = vmatprep.subr.bf16.mxu0 0
        %1246 = vmatpush1.bf16.msra.mxu0 0
        %1247 = vmatprep.subr.bf16.mxu0 0
        %1248 = vmatpush1.bf16.msra.mxu0 %v1228
        %1249 = vmatprep.subr.bf16.mxu0 0
        %1250 = vmatpush2.bf16.msra.mxu0 0
        %1251 = vmatprep.subr.bf16.mxu0 0
        %1252 = vmatpush2.bf16.msra.mxu0 0
        %1253 = vmatprep.subr.bf16.mxu0 0
        %1254 = vmatpush2.bf16.msra.mxu0 0
        %1255 = vmatprep.subr.bf16.mxu0 0
        %1256 = vmatpush2.bf16.msra.mxu0 0
        %1257 = vmatprep.subr.bf16.mxu0 0
        %1258 = vmatpush2.bf16.msra.mxu0 0
        %1259 = vmatprep.subr.bf16.mxu0 0
        %1260 = vmatpush2.bf16.msra.mxu0 0
        %1261 = vmatprep.subr.bf16.mxu0 0
        %1262 = vmatpush2.bf16.msra.mxu0 0
        %1263 = vmatprep.subr.bf16.mxu0 0
        %1264 = vmatpush2.bf16.msra.mxu0 0
        %1265 = vmatprep.mubr.bf16.mxu0 0
        %1266 = vmatmul.mubr.bf16.gmra.mxu0 %v1231
        %v1267 = vpop.f32.mrf.mxu0
        %v1268 = vadd.f32 %v1203, %v1267
        %v1269 = vpop.f32.mrf.mxu0
        %v1270 = vpop.f32.mrf.mxu0
        %v1271 = vadd.f32 %v1206, %v1270
        %v1272 = vpop.f32.mrf.mxu0
        %1273 = vdwg.mxu0
        %v1274 = vld [vmem:[%s958] sm:$0xf]
        %v1275 = vld [vmem:[%s958 + $0x4] sm:$0xf]
        %v1276 = vld [vmem:[%s958 + $0x8] sm:$0x1]
        %s1277 = scalar_lea.vmem %s1, 112
        %v1278 = vld [vmem:[%s1277] sm:$0xf]
        %v1279 = vld [vmem:[%s1277 + $0x4] sm:$0xf]
        %v1283 = vunpack.c.l.b16 %v1274
        %v1284 = vunpack.c.l.b16 %v1275
        %v1285 = vunpack.c.l.b16 %v1276
        %v1286 = vpack.c.b16 %v1284, %v1283
        %v1287 = vpack.c.b16 %v1285, %v1285
        %v1289 = vshrl.u32 %v1286, 16
        %v1291 = vshll.u32 %v1286, 16
        %v1293 = vrot.slane %v1291, 1
        %v1294 = vor.u32 %v1289, %v1293
        %v1296 = vshll.u32 %v1287, 16
        %v1298 = vrot.slane %v1296, 1
        %v1299 = vsel %vm211, %v1294, %v1298
        %v1302 = vunpack.c.l.b16 %v1278
        %v1303 = vunpack.c.l.b16 %v1279
        %v1304 = vpack.c.b16 %v1303, %v1302
        %v1307 = vsel %vm230, %v1299, 0
        %1309 = vmatprep.subr.bf16.mxu0 0
        %1310 = vmatpush1.bf16.msra.mxu0 0
        %1311 = vmatprep.subr.bf16.mxu0 0
        %1312 = vmatpush1.bf16.msra.mxu0 0
        %1313 = vmatprep.subr.bf16.mxu0 0
        %1314 = vmatpush1.bf16.msra.mxu0 0
        %1315 = vmatprep.subr.bf16.mxu0 0
        %1316 = vmatpush1.bf16.msra.mxu0 0
        %1317 = vmatprep.subr.bf16.mxu0 0
        %1318 = vmatpush1.bf16.msra.mxu0 0
        %1319 = vmatprep.subr.bf16.mxu0 0
        %1320 = vmatpush1.bf16.msra.mxu0 0
        %1321 = vmatprep.subr.bf16.mxu0 0
        %1322 = vmatpush1.bf16.msra.mxu0 0
        %1323 = vmatprep.subr.bf16.mxu0 0
        %1324 = vmatpush1.bf16.msra.mxu0 %v1304
        %1325 = vmatprep.subr.bf16.mxu0 0
        %1326 = vmatpush2.bf16.msra.mxu0 0
        %1327 = vmatprep.subr.bf16.mxu0 0
        %1328 = vmatpush2.bf16.msra.mxu0 0
        %1329 = vmatprep.subr.bf16.mxu0 0
        %1330 = vmatpush2.bf16.msra.mxu0 0
        %1331 = vmatprep.subr.bf16.mxu0 0
        %1332 = vmatpush2.bf16.msra.mxu0 0
        %1333 = vmatprep.subr.bf16.mxu0 0
        %1334 = vmatpush2.bf16.msra.mxu0 0
        %1335 = vmatprep.subr.bf16.mxu0 0
        %1336 = vmatpush2.bf16.msra.mxu0 0
        %1337 = vmatprep.subr.bf16.mxu0 0
        %1338 = vmatpush2.bf16.msra.mxu0 0
        %1339 = vmatprep.subr.bf16.mxu0 0
        %1340 = vmatpush2.bf16.msra.mxu0 0
        %1341 = vmatprep.mubr.bf16.mxu0 0
        %1342 = vmatmul.mubr.bf16.gmra.mxu0 %v1307
        %v1343 = vpop.f32.mrf.mxu0
        %v1344 = vadd.f32 0.0, %v1343
        %v1345 = vpop.f32.mrf.mxu0
        %v1346 = vpop.f32.mrf.mxu0
        %v1347 = vadd.f32 0.0, %v1346
        %v1348 = vpop.f32.mrf.mxu0
        %1349 = vdwg.mxu0
        %v1350 = vadd.f32 %v1268, %v1344
        %v1351 = vadd.f32 %v1271, %v1347
        %v1352 = vld [vmem:[%s958] sm:$0xe]
        %s1353 = scalar_lea.vmem %s1, 120
        %v1354 = vld [vmem:[%s1353] sm:$0xf]
        %v1355 = vld [vmem:[%s1353 + $0x4] sm:$0xf]
        %v1357 = vunpack.c.l.b16 %v1352
        %v1358 = vpack.c.b16 %v1284, %v1357
        %v1359 = vrot.slane %v1358, 1
        %v1360 = vrot.slane %v1287, 1
        %v1361 = vsel %vm527, %v1359, %v1360
        %v1364 = vunpack.c.l.b16 %v1354
        %v1365 = vunpack.c.l.b16 %v1355
        %v1366 = vpack.c.b16 %v1365, %v1364
        %v1369 = vsel %vm230, %v1361, 0
        %1371 = vmatprep.subr.bf16.mxu0 0
        %1372 = vmatpush1.bf16.msra.mxu0 0
        %1373 = vmatprep.subr.bf16.mxu0 0
        %1374 = vmatpush1.bf16.msra.mxu0 0
        %1375 = vmatprep.subr.bf16.mxu0 0
        %1376 = vmatpush1.bf16.msra.mxu0 0
        %1377 = vmatprep.subr.bf16.mxu0 0
        %1378 = vmatpush1.bf16.msra.mxu0 0
        %1379 = vmatprep.subr.bf16.mxu0 0
        %1380 = vmatpush1.bf16.msra.mxu0 0
        %1381 = vmatprep.subr.bf16.mxu0 0
        %1382 = vmatpush1.bf16.msra.mxu0 0
        %1383 = vmatprep.subr.bf16.mxu0 0
        %1384 = vmatpush1.bf16.msra.mxu0 0
        %1385 = vmatprep.subr.bf16.mxu0 0
        %1386 = vmatpush1.bf16.msra.mxu0 %v1366
        %1387 = vmatprep.subr.bf16.mxu0 0
        %1388 = vmatpush2.bf16.msra.mxu0 0
        %1389 = vmatprep.subr.bf16.mxu0 0
        %1390 = vmatpush2.bf16.msra.mxu0 0
        %1391 = vmatprep.subr.bf16.mxu0 0
        %1392 = vmatpush2.bf16.msra.mxu0 0
        %1393 = vmatprep.subr.bf16.mxu0 0
        %1394 = vmatpush2.bf16.msra.mxu0 0
        %1395 = vmatprep.subr.bf16.mxu0 0
        %1396 = vmatpush2.bf16.msra.mxu0 0
        %1397 = vmatprep.subr.bf16.mxu0 0
        %1398 = vmatpush2.bf16.msra.mxu0 0
        %1399 = vmatprep.subr.bf16.mxu0 0
        %1400 = vmatpush2.bf16.msra.mxu0 0
        %1401 = vmatprep.subr.bf16.mxu0 0
        %1402 = vmatpush2.bf16.msra.mxu0 0
        %1403 = vmatprep.mubr.bf16.mxu0 0
        %1404 = vmatmul.mubr.bf16.gmra.mxu0 %v1369
        %v1405 = vpop.f32.mrf.mxu0
        %v1406 = vadd.f32 0.0, %v1405
        %v1407 = vpop.f32.mrf.mxu0
        %v1408 = vpop.f32.mrf.mxu0
        %v1409 = vadd.f32 0.0, %v1408
        %v1410 = vpop.f32.mrf.mxu0
        %1411 = vdwg.mxu0
        %v1412 = vadd.f32 %v1350, %v1406
        %v1413 = vadd.f32 %v1351, %v1409
        %v1414 = vld [vmem:[#allocation2] sm:$0x1]
        %v1415 = vsel %vm469, %v1412, 0.0
        %v1416 = vsel %vm469, %v1413, 0.0
        %v1417 = vadd.f32 %v1415, %v1416
        %v1418 = vrot.slane %v1417, 4
        %v1419 = vadd.f32 %v1417, %v1418
        %v1420 = vrot.slane %v1419, 2
        %v1421 = vadd.f32 %v1419, %v1420
        %v1422 = vrot.slane %v1421, 1
        %v1423 = vadd.f32 %v1421, %v1422
        %v1424 = vadd.f32 %v1414, %v1423
        %1425 = vst.msk [vmem:[#allocation2] sm:$0x1] %vm183, %v1424
        %v1426 = vld [vmem:[#allocation3] sm:$0x1]
        %v1427 = vmul.f32 %v1412, %v1412
        %v1428 = vmul.f32 %v1413, %v1413
        %v1429 = vsel %vm469, %v1427, 0.0
        %v1430 = vsel %vm469, %v1428, 0.0
        %v1431 = vadd.f32 %v1429, %v1430
        %v1432 = vrot.slane %v1431, 4
        %v1433 = vadd.f32 %v1431, %v1432
        %v1434 = vrot.slane %v1433, 2
        %v1435 = vadd.f32 %v1433, %v1434
        %v1436 = vrot.slane %v1435, 1
        %v1437 = vadd.f32 %v1435, %v1436
        %v1438 = vadd.f32 %v1426, %v1437
        %1439 = vst.msk [vmem:[#allocation3] sm:$0x1] %vm183, %v1438
        %v1440 = vpack.c.bf16 %v1413, %v1412
        %v1442 = vunpack.c.l.b16 %v1440
        %v1443 = vunpack.c.h.b16 %v1440
        %v1444 = vpack.c.b16 %v1442, %v1442
        %v1445 = vpack.c.b16 %v1443, %v1443
        %1446 = vrot.lane.b32.xlu0 %v1444, 8
        %v1447 = vpop.permute.xlu0 %1446
        %1448 = vrot.lane.b32.xlu0 %v1445, 8
        %v1449 = vpop.permute.xlu0 %1448
        %1452 = vst.msk [vmem:[%s1135] sm:$0xf] %vm824, %v1447
        %1453 = vst.msk [vmem:[%s1135 + $0x4] sm:$0xf] %vm824, %v1449
      $region33: #{generator_forward.22} parent=27 // loop_footer
        %s191 = sadd.s32 1, %s187
      $region34: #{generator_forward.22} parent=27 // loop_footer_branch
        %186 = sbr.rel target = $region30
      $region35: #{generator_forward.22} parent=27 // loop_exit
        _
      %v1454 = vld [vmem:[#allocation2] sm:$0x1]
      %1455 = vst.msk [vmem:[%s181] sm:$0x1] %vm183, %v1454
      %v1456 = vld [vmem:[#allocation3] sm:$0x1]
      %1457 = vst.msk [vmem:[%s181 + $0x1] sm:$0x1] %vm183, %v1456
      %p1458 = scmp.lt.s32.totalorder %s15, 1
      %s1459 = scalar_select %p1458, %s15, 1
      %s1460 = smul.addr %s1459, 64
      %s1461 = smul.addr %s1460, 4
      %s1462 = scalar_lea.vmem %s2, %s1461
      %p1463 = scmp.lt.s32.totalorder %s15, 1
      %s1464 = scalar_select %p1463, %s15, 1
      %s1465 = smul.addr %s1464, 2
      %s1466 = scalar_lea.vmem %s3, %s1465
      // Predicated region
      $region36: #{generator_forward.22} parent=27 // pred_check
        %p1467 = pneg %p80
      $region37: #{generator_forward.22} parent=27 // pred_check_branch
        %1469 = sbr.rel (%p1467) target = $region39
      $region38: #{generator_forward.22} parent=27 // pred_region
        _
      $region39: #{generator_forward.22} parent=27 // pred_fallthru
        _
      // Predicated region
      $region40: #{generator_forward.22} parent=27 // pred_check
        %p1470 = pneg %p106
      $region41: #{generator_forward.22} parent=27 // pred_check_branch
        %1472 = sbr.rel (%p1470) target = $region43
      $region42: #{generator_forward.22} parent=27 // pred_region
        _
      $region43: #{generator_forward.22} parent=27 // pred_fallthru
        _
    $region28: #{generator_forward.22} parent=5 // pred_fallthru
      _
    %p1473 = scmp.le.s32.totalorder 2, %s10
    // Predicated region
    $region44: #{generator_forward.22} parent=5 // pred_check
      %p1474 = pneg %p1473
    $region45: #{generator_forward.22} parent=5 // pred_check_branch
      %1476 = sbr.rel (%p1474) target = $region47
    $region46: #{generator_forward.22} parent=5 // pred_region
      %s1477 = ssub.s32 %s10, 2
      // Predicated region
      $region48: #{generator_forward.22} parent=46 // pred_check
        %p1478 = pneg %p86
      $region49: #{generator_forward.22} parent=46 // pred_check_branch
        %1480 = sbr.rel (%p1478) target = $region51
      $region50: #{generator_forward.22} parent=46 // pred_region
        %p1481 = scmp.lt.s32.totalorder %s16, 1
        %s1482 = scalar_select %p1481, %s16, 1
        %s1483 = smul.addr %s1482, 64
        %s1484 = smul.addr %s1483, 4
        %s1485 = scalar_lea.vmem %s2, %s1484
      $region51: #{generator_forward.22} parent=46 // pred_fallthru
        _
      // Predicated region
      $region52: #{generator_forward.22} parent=46 // pred_check
        %p1486 = pneg %p112
      $region53: #{generator_forward.22} parent=46 // pred_check_branch
        %1488 = sbr.rel (%p1486) target = $region55
      $region54: #{generator_forward.22} parent=46 // pred_region
        %p1489 = scmp.lt.s32.totalorder %s16, 1
        %s1490 = scalar_select %p1489, %s16, 1
        %s1491 = smul.addr %s1490, 2
        %s1492 = scalar_lea.vmem %s3, %s1491
      $region55: #{generator_forward.22} parent=46 // pred_fallthru
        _
    $region47: #{generator_forward.22} parent=5 // pred_fallthru
      _
  $region6: #{generator_forward.22} parent=0 // loop_footer
    %s14 = sadd.s32 1, %s10
  $region7: #{generator_forward.22} parent=0 // loop_footer_branch
    %9 = sbr.rel target = $region3
  $region8: #{generator_forward.22} parent=0 // loop_exit
    _

// kernel: generator_forward.25
$region0: #{generator_forward.25}
  #allocation0 [shape = 'u32[]', space=smem, size = 0x4, offset = 0x4, fixed_abs, tag = 'smem constant byte address 0x4 - core index']
  #allocation1 [shape = 'u32[144,128]{1,0:T(1,128)}', space=vmem, size = 0x12000, scoped, tag = 'internal scratch']
  #allocation2 [shape = 'f32[1,3]{1,0:T(1,128)}', space=vmem, size = 0x200, scoped, tag = 'scratch operand']
  #allocation3 [shape = 'f32[1,3]{1,0:T(1,128)}', space=vmem, size = 0x200, scoped, tag = 'scratch operand']
  %s0 = inlined_call_operand.vmem [shape: bf16[2,34,34,8], index: 0, kind: input, shape index: {}]
  %s1 = inlined_call_operand.vmem [shape: bf16[16,8,3], index: 1, kind: input, shape index: {}]
  %s2 = inlined_call_operand.vmem [shape: f32[2,32,2,32,6], index: 2, kind: output, shape index: {0}]
  %s3 = inlined_call_operand.hbm [shape: f32[2,2,3], index: 3, kind: output, shape index: {1}]
  %4 = xla_tuple %s2, %s3
  %s5 = sld [smem:[#allocation0]]
  $region56: #{generator_forward.25} parent=0
    _
  %s7 = ssub.s32 1, %s5
  %s8 = scalar_select 0, %s7, %s5
  $region1: #{generator_forward.25} parent=0
    #allocation4 [shape = 'u8[2048]{0}', space=vmem, size = 0x800, scoped, tag = 'output window, operand 1']
    #allocation5 [shape = 's32[2]{0}', space=sflag, size = 0x8, scoped, tag = 'scoped memory for generator_forward.25']
    %9 = vsyncpa [#allocation5], 0
    %s10 = scalar_lea.sflag [#allocation5], 1
    %11 = vsyncpa %s10, 0
    loop: start=0, step=1, limit=4
    $region2: #{generator_forward.25} parent=1 // loop_pre_header
      _
    $region3: #{generator_forward.25} parent=1 // loop_header
      %s13 = sphi 0, %s17
      %p14 = scmp.ge.s32.totalorder %s13, 4
      %s23 = sphi 0, %s25
      %s26 = sphi 0, %s23
      %s27 = sphi 0, %s26
      %s43 = sphi 0, %s27
      %s47 = sphi 0, %s47
      %s49 = sphi 0, %s47
      %s50 = sphi 0, %s49
      %s64 = sphi 0, %s50
      %s70 = sphi 0, %s72
      %s73 = sphi 0, %s70
      %s74 = sphi 0, %s73
      %s90 = sphi 0, %s74
      %s96 = sphi 0, %s98
      %s99 = sphi 0, %s96
      %s100 = sphi 0, %s99
      %s116 = sphi 0, %s100
    $region4: #{generator_forward.25} parent=1 // loop_header_branch
      %16 = sbr.rel (%p14) target = $region8
    $region5: #{generator_forward.25} parent=1 // loop_body
      %s18 = ssub.s32 %s13, 1
      %s19 = ssub.s32 %s13, 2
      %s20 = sadd.s32 %s13, 1
      %s21 = ssub.s32 %s13, %s20
      %p22 = scmp.eq.s32.totalorder %s21, 0
      %s24 = sadd.s32 %s23, 1
      %s25 = scalar_select %p22, %s23, %s24
      %p28 = pneg %p22
      %p29 = scmp.eq.s32.totalorder %s13, 1
      %p30 = por %p28, %p29
      %p31 = scmp.ne.s32.totalorder %s23, %s26
      %p32 = scmp.eq.s32.totalorder %s13, 0
      %p33 = por %p31, %p32
      %p34 = scmp.ne.s32.totalorder %s23, %s26
      %p35 = scmp.eq.s32.totalorder %s18, 1
      %p36 = por %p34, %p35
      %p37 = scmp.ne.s32.totalorder %s26, %s27
      %p38 = scmp.eq.s32.totalorder %s18, 0
      %p39 = por %p37, %p38
      %p40 = scmp.ne.s32.totalorder %s26, %s27
      %p41 = scmp.eq.s32.totalorder %s19, 1
      %p42 = por %p40, %p41
      %p44 = scmp.ne.s32.totalorder %s27, %s43
      %p45 = scmp.eq.s32.totalorder %s19, 0
      %p46 = por %p44, %p45
      %s48 = sadd.s32 %s47, 1
      %p51 = scmp.eq.s32.totalorder %s13, 1
      %p52 = scmp.ne.s32.totalorder %s47, %s49
      %p53 = scmp.eq.s32.totalorder %s13, 0
      %p54 = por %p52, %p53
      %p55 = scmp.ne.s32.totalorder %s47, %s49
      %p56 = scmp.eq.s32.totalorder %s18, 1
      %p57 = por %p55, %p56
      %p58 = scmp.ne.s32.totalorder %s49, %s50
      %p59 = scmp.eq.s32.totalorder %s18, 0
      %p60 = por %p58, %p59
      %p61 = scmp.ne.s32.totalorder %s49, %s50
      %p62 = scmp.eq.s32.totalorder %s19, 1
      %p63 = por %p61, %p62
      %p65 = scmp.ne.s32.totalorder %s50, %s64
      %p66 = scmp.eq.s32.totalorder %s19, 0
      %p67 = por %p65, %p66
      %s68 = ssub.s32 %s13, %s20
      %p69 = scmp.eq.s32.totalorder %s68, 0
      %s71 = sadd.s32 %s70, 1
      %s72 = scalar_select %p69, %s70, %s71
      %p75 = pneg %p69
      %p76 = scmp.eq.s32.totalorder %s13, 1
      %p77 = por %p75, %p76
      %p78 = scmp.ne.s32.totalorder %s70, %s73
      %p79 = scmp.eq.s32.totalorder %s13, 0
      %p80 = por %p78, %p79
      %p81 = scmp.ne.s32.totalorder %s70, %s73
      %p82 = scmp.eq.s32.totalorder %s18, 1
      %p83 = por %p81, %p82
      %p84 = scmp.ne.s32.totalorder %s73, %s74
      %p85 = scmp.eq.s32.totalorder %s18, 0
      %p86 = por %p84, %p85
      %p87 = scmp.ne.s32.totalorder %s73, %s74
      %p88 = scmp.eq.s32.totalorder %s19, 1
      %p89 = por %p87, %p88
      %p91 = scmp.ne.s32.totalorder %s74, %s90
      %p92 = scmp.eq.s32.totalorder %s19, 0
      %p93 = por %p91, %p92
      %s94 = ssub.s32 %s13, %s20
      %p95 = scmp.eq.s32.totalorder %s94, 0
      %s97 = sadd.s32 %s96, 1
      %s98 = scalar_select %p95, %s96, %s97
      %p101 = pneg %p95
      %p102 = scmp.eq.s32.totalorder %s13, 1
      %p103 = por %p101, %p102
      %p104 = scmp.ne.s32.totalorder %s96, %s99
      %p105 = scmp.eq.s32.totalorder %s13, 0
      %p106 = por %p104, %p105
      %p107 = scmp.ne.s32.totalorder %s96, %s99
      %p108 = scmp.eq.s32.totalorder %s18, 1
      %p109 = por %p107, %p108
      %p110 = scmp.ne.s32.totalorder %s99, %s100
      %p111 = scmp.eq.s32.totalorder %s18, 0
      %p112 = por %p110, %p111
      %p113 = scmp.ne.s32.totalorder %s99, %s100
      %p114 = scmp.eq.s32.totalorder %s19, 1
      %p115 = por %p113, %p114
      %p117 = scmp.ne.s32.totalorder %s100, %s116
      %p118 = scmp.eq.s32.totalorder %s19, 0
      %p119 = por %p117, %p118
      %p120 = scmp.le.s32.totalorder 1, %s13
      %p121 = scmp.lt.s32.totalorder %s13, 3
      %p122 = pnand %p120, %p121
      %p123 = pneg %p122
      // Predicated region
      $region9: #{generator_forward.25} parent=5 // pred_check
        _
      $region10: #{generator_forward.25} parent=5 // pred_check_branch
        %125 = sbr.rel (%p122) target = $region12
      $region11: #{generator_forward.25} parent=5 // pred_region
        %s126 = ssub.s32 %s13, 1
        // Predicated region
        $region13: #{generator_forward.25} parent=11 // pred_check
          %p127 = pneg %p60
        $region14: #{generator_forward.25} parent=11 // pred_check_branch
          %129 = sbr.rel (%p127) target = $region16
        $region15: #{generator_forward.25} parent=11 // pred_region
          _
        $region16: #{generator_forward.25} parent=11 // pred_fallthru
          _
      $region12: #{generator_forward.25} parent=5 // pred_fallthru
        _
      %p130 = scmp.lt.s32.totalorder %s13, 2
      // Predicated region
      $region17: #{generator_forward.25} parent=5 // pred_check
        %p131 = pneg %p130
      $region18: #{generator_forward.25} parent=5 // pred_check_branch
        %133 = sbr.rel (%p131) target = $region20
      $region19: #{generator_forward.25} parent=5 // pred_region
        // Predicated region
        $region21: #{generator_forward.25} parent=19 // pred_check
          %p134 = pneg %p33
        $region22: #{generator_forward.25} parent=19 // pred_check_branch
          %136 = sbr.rel (%p134) target = $region24
        $region23: #{generator_forward.25} parent=19 // pred_region
          %p137 = scmp.lt.s32.totalorder %s13, 1
          %s138 = scalar_select %p137, %s13, 1
          %s139 = smul.addr %s138, 170
          %s140 = smul.addr %s139, 4
          %s141 = scalar_lea.vmem %s0, %s140
        $region24: #{generator_forward.25} parent=19 // pred_fallthru
          _
      $region20: #{generator_forward.25} parent=5 // pred_fallthru
        _
      %p142 = scmp.le.s32.totalorder 1, %s13
      %p143 = scmp.lt.s32.totalorder %s13, 3
      %p144 = pnand %p142, %p143
      %p145 = pneg %p144
      // Predicated region
      $region25: #{generator_forward.25} parent=5 // pred_check
        _
      $region26: #{generator_forward.25} parent=5 // pred_check_branch
        %147 = sbr.rel (%p144) target = $region28
      $region27: #{generator_forward.25} parent=5 // pred_region
        %s148 = ssub.s32 %s13, 1
        %p149 = scmp.lt.s32.totalorder %s18, 1
        %s150 = scalar_select %p149, %s18, 1
        %s151 = smul.addr %s150, 170
        %s152 = smul.addr %s151, 4
        %s153 = scalar_lea.vmem %s0, %s152
        %p154 = pneg %p39
        %p155 = pneg %p36
        %p156 = pneg %p60
        %p157 = pneg %p57
        %p158 = pneg %p86
        %p159 = pneg %p83
        %p160 = scmp.lt.s32.totalorder %s18, 1
        %s161 = scalar_select %p160, %s18, 1
        %s162 = smul.addr %s161, 256
        %s163 = smul.addr %s162, 8
        %s164 = scalar_lea.vmem %s2, %s163
        %p165 = pneg %p112
        %p166 = pneg %p109
        %s167 = sand.u32 %s99, 1
        %s168 = scalar_lea.sflag [#allocation5], %s167
        %s169 = sand.u32 %s99, 1
        %s170 = smul.addr %s169, 2
        %s171 = scalar_lea.vmem [#allocation4], %s170
        %p172 = scmp.lt.s32.totalorder %s18, 1
        %s173 = scalar_select %p172, %s18, 1
        %s174 = smul.addr %s173, 170
        %s175 = smul.addr %s174, 4
        %s176 = scalar_lea.vmem %s0, %s175
        %p177 = scmp.lt.s32.totalorder %s18, 1
        %s178 = scalar_select %p177, %s18, 1
        %s179 = smul.addr %s178, 256
        %s180 = smul.addr %s179, 8
        %s181 = scalar_lea.vmem %s2, %s180
        %vm183 = vcmask 16384
        %184 = vst.msk [vmem:[#allocation2] sm:$0x1] %vm183, 0.0
        %185 = vst.msk [vmem:[#allocation3] sm:$0x1] %vm183, 0.0
        loop: start=0, step=1, limit=32
        $region29: #{generator_forward.25} parent=27 // loop_pre_header
          _
        $region30: #{generator_forward.25} parent=27 // loop_header
          %s187 = sphi 0, %s191
          %p188 = scmp.ge.s32.totalorder %s187, 32
        $region31: #{generator_forward.25} parent=27 // loop_header_branch
          %190 = sbr.rel (%p188) target = $region35
        $region32: #{generator_forward.25} parent=27 // loop_body
          %s192 = smul.u32 %s187, 5
          %s193 = smul.addr %s192, 4
          %s194 = scalar_lea.vmem %s176, %s193
          %v195 = vld [vmem:[%s194] sm:$0xf]
          %v196 = vld [vmem:[%s194 + $0x4] sm:$0xf]
          %v197 = vld [vmem:[%s194 + $0x8] sm:$0xf]
          %v198 = vld [vmem:[%s194 + $0xc] sm:$0xf]
          %v199 = vld [vmem:[%s1] sm:$0xf]
          %v200 = vld [vmem:[%s194 + $0x10] sm:$0x1]
          %s201 = scalar_lea.vmem %s1, 4
          %v202 = vld [vmem:[%s201] sm:$0xf]
          %v208 = vunpack.c.l.b16 %v195
          %v209 = vunpack.c.l.b16 %v196
          %v210 = vunpack.c.l.b16 %v197
          %v211 = vunpack.c.l.b16 %v198
          %v212 = vunpack.c.l.b16 %v200
          %v213 = vpack.c.b16 %v209, %v208
          %v214 = vpack.c.b16 %v211, %v210
          %v215 = vpack.c.b16 %v212, %v212
          %vm216 = vsmask.f32 7424
          %v218 = vshrl.u32 %v213, 16
          %v220 = vshll.u32 %v213, 16
          %v222 = vrot.slane %v220, 1
          %v223 = vor.u32 %v218, %v222
          %v225 = vshll.u32 %v214, 16
          %v227 = vrot.slane %v225, 1
          %v228 = vsel %vm216, %v223, %v227
          %v229 = vshrl.u32 %v214, 16
          %v231 = vor.u32 %v229, %v227
          %v233 = vshll.u32 %v215, 16
          %v235 = vrot.slane %v233, 1
          %v236 = vsel %vm216, %v231, %v235
          %vm237 = vcmask 64512
          %v239 = vsel %vm237, %v228, 0
          %v242 = vsel %vm237, %v236, 0
          %vm244 = vcmask 1043456
          %v246 = vsel %vm244, %v202, 0
          %248 = vmatprep.subr.bf16.mxu0 0
          %249 = vmatpush1.bf16.msra.mxu0 0
          %250 = vmatprep.subr.bf16.mxu0 0
          %251 = vmatpush1.bf16.msra.mxu0 0
          %252 = vmatprep.subr.bf16.mxu0 0
          %253 = vmatpush1.bf16.msra.mxu0 0
          %254 = vmatprep.subr.bf16.mxu0 0
          %255 = vmatpush1.bf16.msra.mxu0 0
          %256 = vmatprep.subr.bf16.mxu0 0
          %257 = vmatpush1.bf16.msra.mxu0 0
          %258 = vmatprep.subr.bf16.mxu0 0
          %259 = vmatpush1.bf16.msra.mxu0 0
          %260 = vmatprep.subr.bf16.mxu0 0
          %261 = vmatpush1.bf16.msra.mxu0 0
          %262 = vmatprep.subr.bf16.mxu0 0
          %263 = vmatpush1.bf16.msra.mxu0 %v246
          %264 = vmatprep.subr.bf16.mxu0 0
          %265 = vmatpush2.bf16.msra.mxu0 0
          %266 = vmatprep.subr.bf16.mxu0 0
          %267 = vmatpush2.bf16.msra.mxu0 0
          %268 = vmatprep.subr.bf16.mxu0 0
          %269 = vmatpush2.bf16.msra.mxu0 0
          %270 = vmatprep.subr.bf16.mxu0 0
          %271 = vmatpush2.bf16.msra.mxu0 0
          %272 = vmatprep.subr.bf16.mxu0 0
          %273 = vmatpush2.bf16.msra.mxu0 0
          %274 = vmatprep.subr.bf16.mxu0 0
          %275 = vmatpush2.bf16.msra.mxu0 0
          %276 = vmatprep.subr.bf16.mxu0 0
          %277 = vmatpush2.bf16.msra.mxu0 0
          %278 = vmatprep.subr.bf16.mxu0 0
          %279 = vmatpush2.bf16.msra.mxu0 0
          %280 = vmatprep.mubr.bf16.mxu0 0
          %281 = vmatmul.mubr.bf16.gmra.mxu0 %v239
          %v282 = vpop.f32.mrf.mxu0
          %v283 = vadd.f32 0.0, %v282
          %v284 = vpop.f32.mrf.mxu0
          %v285 = vpop.f32.mrf.mxu0
          %v286 = vadd.f32 0.0, %v285
          %v287 = vpop.f32.mrf.mxu0
          %288 = vmatprep.mubr.bf16.mxu0 0
          %289 = vmatmul.mubr.bf16.gmra.mxu0 %v242
          %v290 = vpop.f32.mrf.mxu0
          %v291 = vadd.f32 0.0, %v290
          %v292 = vpop.f32.mrf.mxu0
          %v293 = vpop.f32.mrf.mxu0
          %v294 = vadd.f32 0.0, %v293
          %v295 = vpop.f32.mrf.mxu0
          %296 = vdwg.mxu0
          %v297 = vsel %vm237, %v213, 0
          %v299 = vsel %vm237, %v214, 0
          %v302 = vsel %vm244, %v199, 0
          %304 = vmatprep.subr.bf16.mxu0 0
          %305 = vmatpush1.bf16.msra.mxu0 0
          %306 = vmatprep.subr.bf16.mxu0 0
          %307 = vmatpush1.bf16.msra.mxu0 0
          %308 = vmatprep.subr.bf16.mxu0 0
          %309 = vmatpush1.bf16.msra.mxu0 0
          %310 = vmatprep.subr.bf16.mxu0 0
          %311 = vmatpush1.bf16.msra.mxu0 0
          %312 = vmatprep.subr.bf16.mxu0 0
          %313 = vmatpush1.bf16.msra.mxu0 0
          %314 = vmatprep.subr.bf16.mxu0 0
          %315 = vmatpush1.bf16.msra.mxu0 0
          %316 = vmatprep.subr.bf16.mxu0 0
          %317 = vmatpush1.bf16.msra.mxu0 0
          %318 = vmatprep.subr.bf16.mxu0 0
          %319 = vmatpush1.bf16.msra.mxu0 %v302
          %320 = vmatprep.subr.bf16.mxu0 0
          %321 = vmatpush2.bf16.msra.mxu0 0
          %322 = vmatprep.subr.bf16.mxu0 0
          %323 = vmatpush2.bf16.msra.mxu0 0
          %324 = vmatprep.subr.bf16.mxu0 0
          %325 = vmatpush2.bf16.msra.mxu0 0
          %326 = vmatprep.subr.bf16.mxu0 0
          %327 = vmatpush2.bf16.msra.mxu0 0
          %328 = vmatprep.subr.bf16.mxu0 0
          %329 = vmatpush2.bf16.msra.mxu0 0
          %330 = vmatprep.subr.bf16.mxu0 0
          %331 = vmatpush2.bf16.msra.mxu0 0
          %332 = vmatprep.subr.bf16.mxu0 0
          %333 = vmatpush2.bf16.msra.mxu0 0
          %334 = vmatprep.subr.bf16.mxu0 0
          %335 = vmatpush2.bf16.msra.mxu0 0
          %336 = vmatprep.mubr.bf16.mxu0 0
          %337 = vmatmul.mubr.bf16.gmra.mxu0 %v297
          %v338 = vpop.f32.mrf.mxu0
          %v339 = vadd.f32 %v283, %v338
          %v340 = vpop.f32.mrf.mxu0
          %v341 = vpop.f32.mrf.mxu0
          %v342 = vadd.f32 %v286, %v341
          %v343 = vpop.f32.mrf.mxu0
          %344 = vmatprep.mubr.bf16.mxu0 0
          %345 = vmatmul.mubr.bf16.gmra.mxu0 %v299
          %v346 = vpop.f32.mrf.mxu0
          %v347 = vadd.f32 %v291, %v346
          %v348 = vpop.f32.mrf.mxu0
          %v349 = vpop.f32.mrf.mxu0
          %v350 = vadd.f32 %v294, %v349
          %v351 = vpop.f32.mrf.mxu0
          %352 = vdwg.mxu0
          %s353 = sadd.s32 %s187, 1
          %s354 = smul.u32 %s353, 5
          %s355 = smul.addr %s354, 4
          %s356 = scalar_lea.vmem %s176, %s355
          %v357 = vld [vmem:[%s356] sm:$0xf]
          %v358 = vld [vmem:[%s356 + $0x4] sm:$0xf]
          %v359 = vld [vmem:[%s356 + $0x8] sm:$0xf]
          %v360 = vld [vmem:[%s356 + $0xc] sm:$0xf]
          %s361 = scalar_lea.vmem %s1, 8
          %v362 = vld [vmem:[%s361] sm:$0xf]
          %v367 = vunpack.c.l.b16 %v357
          %v368 = vunpack.c.l.b16 %v358
          %v369 = vunpack.c.l.b16 %v359
          %v370 = vunpack.c.l.b16 %v360
          %v371 = vpack.c.b16 %v368, %v367
          %v372 = vpack.c.b16 %v370, %v369
          %v374 = vsel %vm237, %v371, 0
          %v377 = vsel %vm237, %v372, 0
          %v380 = vsel %vm244, %v362, 0
          %382 = vmatprep.subr.bf16.mxu0 0
          %383 = vmatpush1.bf16.msra.mxu0 0
          %384 = vmatprep.subr.bf16.mxu0 0
          %385 = vmatpush1.bf16.msra.mxu0 0
          %386 = vmatprep.subr.bf16.mxu0 0
          %387 = vmatpush1.bf16.msra.mxu0 0
          %388 = vmatprep.subr.bf16.mxu0 0
          %389 = vmatpush1.bf16.msra.mxu0 0
          %390 = vmatprep.subr.bf16.mxu0 0
          %391 = vmatpush1.bf16.msra.mxu0 0
          %392 = vmatprep.subr.bf16.mxu0 0
          %393 = vmatpush1.bf16.msra.mxu0 0
          %394 = vmatprep.subr.bf16.mxu0 0
          %395 = vmatpush1.bf16.msra.mxu0 0
          %396 = vmatprep.subr.bf16.mxu0 0
          %397 = vmatpush1.bf16.msra.mxu0 %v380
          %398 = vmatprep.subr.bf16.mxu0 0
          %399 = vmatpush2.bf16.msra.mxu0 0
          %400 = vmatprep.subr.bf16.mxu0 0
          %401 = vmatpush2.bf16.msra.mxu0 0
          %402 = vmatprep.subr.bf16.mxu0 0
          %403 = vmatpush2.bf16.msra.mxu0 0
          %404 = vmatprep.subr.bf16.mxu0 0
          %405 = vmatpush2.bf16.msra.mxu0 0
          %406 = vmatprep.subr.bf16.mxu0 0
          %407 = vmatpush2.bf16.msra.mxu0 0
          %408 = vmatprep.subr.bf16.mxu0 0
          %409 = vmatpush2.bf16.msra.mxu0 0
          %410 = vmatprep.subr.bf16.mxu0 0
          %411 = vmatpush2.bf16.msra.mxu0 0
          %412 = vmatprep.subr.bf16.mxu0 0
          %413 = vmatpush2.bf16.msra.mxu0 0
          %414 = vmatprep.mubr.bf16.mxu0 0
          %415 = vmatmul.mubr.bf16.gmra.mxu0 %v374
          %v416 = vpop.f32.mrf.mxu0
          %v417 = vadd.f32 0.0, %v416
          %v418 = vpop.f32.mrf.mxu0
          %v419 = vpop.f32.mrf.mxu0
          %v420 = vadd.f32 0.0, %v419
          %v421 = vpop.f32.mrf.mxu0
          %422 = vmatprep.mubr.bf16.mxu0 0
          %423 = vmatmul.mubr.bf16.gmra.mxu0 %v377
          %v424 = vpop.f32.mrf.mxu0
          %v425 = vadd.f32 0.0, %v424
          %v426 = vpop.f32.mrf.mxu0
          %v427 = vpop.f32.mrf.mxu0
          %v428 = vadd.f32 0.0, %v427
          %v429 = vpop.f32.mrf.mxu0
          %430 = vdwg.mxu0
          %v431 = vadd.f32 %v339, %v417
          %v432 = vadd.f32 %v342, %v420
          %v433 = vadd.f32 %v347, %v425
          %v434 = vadd.f32 %v350, %v428
          %v435 = vld [vmem:[%s356] sm:$0xf]
          %v436 = vld [vmem:[%s356 + $0x4] sm:$0xf]
          %v437 = vld [vmem:[%s356 + $0x8] sm:$0xf]
          %v438 = vld [vmem:[%s356 + $0xc] sm:$0xf]
          %v439 = vld [vmem:[%s356 + $0x10] sm:$0x1]
          %s440 = scalar_lea.vmem %s1, 12
          %v441 = vld [vmem:[%s440] sm:$0xf]
          %v447 = vunpack.c.l.b16 %v435
          %v448 = vunpack.c.l.b16 %v436
          %v449 = vunpack.c.l.b16 %v437
          %v450 = vunpack.c.l.b16 %v438
          %v451 = vunpack.c.l.b16 %v439
          %v452 = vpack.c.b16 %v448, %v447
          %v453 = vpack.c.b16 %v450, %v449
          %v454 = vpack.c.b16 %v451, %v451
          %v456 = vshrl.u32 %v452, 16
          %v458 = vshll.u32 %v452, 16
          %v460 = vrot.slane %v458, 1
          %v461 = vor.u32 %v456, %v460
          %v463 = vshll.u32 %v453, 16
          %v465 = vrot.slane %v463, 1
          %v466 = vsel %vm216, %v461, %v465
          %v467 = vshrl.u32 %v453, 16
          %v469 = vor.u32 %v467, %v465
          %v471 = vshll.u32 %v454, 16
          %v473 = vrot.slane %v471, 1
          %v474 = vsel %vm216, %v469, %v473
          %v476 = vsel %vm237, %v466, 0
          %v479 = vsel %vm237, %v474, 0
          %v482 = vsel %vm244, %v441, 0
          %484 = vmatprep.subr.bf16.mxu0 0
          %485 = vmatpush1.bf16.msra.mxu0 0
          %486 = vmatprep.subr.bf16.mxu0 0
          %487 = vmatpush1.bf16.msra.mxu0 0
          %488 = vmatprep.subr.bf16.mxu0 0
          %489 = vmatpush1.bf16.msra.mxu0 0
          %490 = vmatprep.subr.bf16.mxu0 0
          %491 = vmatpush1.bf16.msra.mxu0 0
          %492 = vmatprep.subr.bf16.mxu0 0
          %493 = vmatpush1.bf16.msra.mxu0 0
          %494 = vmatprep.subr.bf16.mxu0 0
          %495 = vmatpush1.bf16.msra.mxu0 0
          %496 = vmatprep.subr.bf16.mxu0 0
          %497 = vmatpush1.bf16.msra.mxu0 0
          %498 = vmatprep.subr.bf16.mxu0 0
          %499 = vmatpush1.bf16.msra.mxu0 %v482
          %500 = vmatprep.subr.bf16.mxu0 0
          %501 = vmatpush2.bf16.msra.mxu0 0
          %502 = vmatprep.subr.bf16.mxu0 0
          %503 = vmatpush2.bf16.msra.mxu0 0
          %504 = vmatprep.subr.bf16.mxu0 0
          %505 = vmatpush2.bf16.msra.mxu0 0
          %506 = vmatprep.subr.bf16.mxu0 0
          %507 = vmatpush2.bf16.msra.mxu0 0
          %508 = vmatprep.subr.bf16.mxu0 0
          %509 = vmatpush2.bf16.msra.mxu0 0
          %510 = vmatprep.subr.bf16.mxu0 0
          %511 = vmatpush2.bf16.msra.mxu0 0
          %512 = vmatprep.subr.bf16.mxu0 0
          %513 = vmatpush2.bf16.msra.mxu0 0
          %514 = vmatprep.subr.bf16.mxu0 0
          %515 = vmatpush2.bf16.msra.mxu0 0
          %516 = vmatprep.mubr.bf16.mxu0 0
          %517 = vmatmul.mubr.bf16.gmra.mxu0 %v476
          %v518 = vpop.f32.mrf.mxu0
          %v519 = vadd.f32 0.0, %v518
          %v520 = vpop.f32.mrf.mxu0
          %v521 = vpop.f32.mrf.mxu0
          %v522 = vadd.f32 0.0, %v521
          %v523 = vpop.f32.mrf.mxu0
          %524 = vmatprep.mubr.bf16.mxu0 0
          %525 = vmatmul.mubr.bf16.gmra.mxu0 %v479
          %v526 = vpop.f32.mrf.mxu0
          %v527 = vadd.f32 0.0, %v526
          %v528 = vpop.f32.mrf.mxu0
          %v529 = vpop.f32.mrf.mxu0
          %v530 = vadd.f32 0.0, %v529
          %v531 = vpop.f32.mrf.mxu0
          %532 = vdwg.mxu0
          %v533 = vadd.f32 %v431, %v519
          %v534 = vadd.f32 %v432, %v522
          %v535 = vadd.f32 %v433, %v527
          %v536 = vadd.f32 %v434, %v530
          %v537 = vld [vmem:[#allocation2] sm:$0x1]
          %vm538 = vcmask 23552
          %v539 = vsel %vm538, %v533, 0.0
          %v540 = vsel %vm538, %v534, 0.0
          %v541 = vadd.f32 %v539, %v540
          %v542 = vsel %vm538, %v535, 0.0
          %v543 = vadd.f32 %v541, %v542
          %v544 = vsel %vm538, %v536, 0.0
          %v545 = vadd.f32 %v543, %v544
          %v546 = vrot.slane %v545, 4
          %v547 = vadd.f32 %v545, %v546
          %v548 = vrot.slane %v547, 2
          %v549 = vadd.f32 %v547, %v548
          %v550 = vrot.slane %v549, 1
          %v551 = vadd.f32 %v549, %v550
          %v552 = vadd.f32 %v537, %v551
          %553 = vst.msk [vmem:[#allocation2] sm:$0x1] %vm183, %v552
          %v554 = vld [vmem:[#allocation3] sm:$0x1]
          %v555 = vmul.f32 %v533, %v533
          %v556 = vmul.f32 %v534, %v534
          %v557 = vmul.f32 %v535, %v535
          %v558 = vmul.f32 %v536, %v536
          %v559 = vsel %vm538, %v555, 0.0
          %v560 = vsel %vm538, %v556, 0.0
          %v561 = vadd.f32 %v559, %v560
          %v562 = vsel %vm538, %v557, 0.0
          %v563 = vadd.f32 %v561, %v562
          %v564 = vsel %vm538, %v558, 0.0
          %v565 = vadd.f32 %v563, %v564
          %v566 = vrot.slane %v565, 4
          %v567 = vadd.f32 %v565, %v566
          %v568 = vrot.slane %v567, 2
          %v569 = vadd.f32 %v567, %v568
          %v570 = vrot.slane %v569, 1
          %v571 = vadd.f32 %v569, %v570
          %v572 = vadd.f32 %v554, %v571
          %573 = vst.msk [vmem:[#allocation3] sm:$0x1] %vm183, %v572
          %v574 = vtanh.pop %v533
          %v575 = vtanh.pop %v534
          %v576 = vtanh.pop %v535
          %v577 = vtanh.pop %v536
          %s578 = smul.u32 %s187, 64
          %s579 = scalar_lea.vmem %s181, %s578
          %580 = vst.msk [vmem:[%s579] sm:$0xff] %vm538, %v574
          %581 = vst.msk [vmem:[%s579 + $0x8] sm:$0xff] %vm538, %v575
          %582 = vst.msk [vmem:[%s579 + $0x10] sm:$0xff] %vm538, %v576
          %583 = vst.msk [vmem:[%s579 + $0x18] sm:$0xff] %vm538, %v577
          %v584 = vld [vmem:[%s194] sm:$0xf]
          %v585 = vld [vmem:[%s194 + $0x4] sm:$0xf]
          %v586 = vld [vmem:[%s194 + $0x8] sm:$0xf]
          %v587 = vld [vmem:[%s194 + $0xc] sm:$0xf]
          %v588 = vld [vmem:[%s194 + $0x10] sm:$0x1]
          %s589 = scalar_lea.vmem %s1, 16
          %v590 = vld [vmem:[%s589] sm:$0xf]
          %v591 = vld [vmem:[%s194] sm:$0xe]
          %s592 = scalar_lea.vmem %s1, 20
          %v593 = vld [vmem:[%s592] sm:$0xf]
          %v599 = vunpack.c.l.b16 %v591
          %v600 = vunpack.c.l.b16 %v585
          %v601 = vunpack.c.l.b16 %v586
          %v602 = vunpack.c.l.b16 %v587
          %v603 = vunpack.c.l.b16 %v588
          %v604 = vpack.c.b16 %v600, %v599
          %v605 = vpack.c.b16 %v602, %v601
          %v606 = vpack.c.b16 %v603, %v603
          %vm607 = vcmask 1046528
          %v608 = vrot.slane %v604, 1
          %v609 = vrot.slane %v605, 1
          %v610 = vsel %vm607, %v608, %v609
          %v611 = vrot.slane %v606, 1
          %v612 = vsel %vm607, %v609, %v611
          %v614 = vsel %vm237, %v610, 0
          %v617 = vsel %vm237, %v612, 0
          %v620 = vsel %vm244, %v593, 0
          %622 = vmatprep.subr.bf16.mxu0 0
          %623 = vmatpush1.bf16.msra.mxu0 0
          %624 = vmatprep.subr.bf16.mxu0 0
          %625 = vmatpush1.bf16.msra.mxu0 0
          %626 = vmatprep.subr.bf16.mxu0 0
          %627 = vmatpush1.bf16.msra.mxu0 0
          %628 = vmatprep.subr.bf16.mxu0 0
          %629 = vmatpush1.bf16.msra.mxu0 0
          %630 = vmatprep.subr.bf16.mxu0 0
          %631 = vmatpush1.bf16.msra.mxu0 0
          %632 = vmatprep.subr.bf16.mxu0 0
          %633 = vmatpush1.bf16.msra.mxu0 0
          %634 = vmatprep.subr.bf16.mxu0 0
          %635 = vmatpush1.bf16.msra.mxu0 0
          %636 = vmatprep.subr.bf16.mxu0 0
          %637 = vmatpush1.bf16.msra.mxu0 %v620
          %638 = vmatprep.subr.bf16.mxu0 0
          %639 = vmatpush2.bf16.msra.mxu0 0
          %640 = vmatprep.subr.bf16.mxu0 0
          %641 = vmatpush2.bf16.msra.mxu0 0
          %642 = vmatprep.subr.bf16.mxu0 0
          %643 = vmatpush2.bf16.msra.mxu0 0
          %644 = vmatprep.subr.bf16.mxu0 0
          %645 = vmatpush2.bf16.msra.mxu0 0
          %646 = vmatprep.subr.bf16.mxu0 0
          %647 = vmatpush2.bf16.msra.mxu0 0
          %648 = vmatprep.subr.bf16.mxu0 0
          %649 = vmatpush2.bf16.msra.mxu0 0
          %650 = vmatprep.subr.bf16.mxu0 0
          %651 = vmatpush2.bf16.msra.mxu0 0
          %652 = vmatprep.subr.bf16.mxu0 0
          %653 = vmatpush2.bf16.msra.mxu0 0
          %654 = vmatprep.mubr.bf16.mxu0 0
          %655 = vmatmul.mubr.bf16.gmra.mxu0 %v614
          %v656 = vpop.f32.mrf.mxu0
          %v657 = vadd.f32 0.0, %v656
          %v658 = vpop.f32.mrf.mxu0
          %v659 = vpop.f32.mrf.mxu0
          %v660 = vadd.f32 0.0, %v659
          %v661 = vpop.f32.mrf.mxu0
          %662 = vmatprep.mubr.bf16.mxu0 0
          %663 = vmatmul.mubr.bf16.gmra.mxu0 %v617
          %v664 = vpop.f32.mrf.mxu0
          %v665 = vadd.f32 0.0, %v664
          %v666 = vpop.f32.mrf.mxu0
          %v667 = vpop.f32.mrf.mxu0
          %v668 = vadd.f32 0.0, %v667
          %v669 = vpop.f32.mrf.mxu0
          %670 = vdwg.mxu0
          %v672 = vunpack.c.l.b16 %v584
          %v673 = vpack.c.b16 %v600, %v672
          %v675 = vshrl.u32 %v673, 16
          %v677 = vshll.u32 %v673, 16
          %v679 = vrot.slane %v677, 1
          %v680 = vor.u32 %v675, %v679
          %v682 = vshll.u32 %v605, 16
          %v684 = vrot.slane %v682, 1
          %v685 = vsel %vm216, %v680, %v684
          %v686 = vshrl.u32 %v605, 16
          %v688 = vor.u32 %v686, %v684
          %v690 = vshll.u32 %v606, 16
          %v692 = vrot.slane %v690, 1
          %v693 = vsel %vm216, %v688, %v692
          %v695 = vsel %vm237, %v685, 0
          %v698 = vsel %vm237, %v693, 0
          %v701 = vsel %vm244, %v590, 0
          %703 = vmatprep.subr.bf16.mxu0 0
          %704 = vmatpush1.bf16.msra.mxu0 0
          %705 = vmatprep.subr.bf16.mxu0 0
          %706 = vmatpush1.bf16.msra.mxu0 0
          %707 = vmatprep.subr.bf16.mxu0 0
          %708 = vmatpush1.bf16.msra.mxu0 0
          %709 = vmatprep.subr.bf16.mxu0 0
          %710 = vmatpush1.bf16.msra.mxu0 0
          %711 = vmatprep.subr.bf16.mxu0 0
          %712 = vmatpush1.bf16.msra.mxu0 0
          %713 = vmatprep.subr.bf16.mxu0 0
          %714 = vmatpush1.bf16.msra.mxu0 0
          %715 = vmatprep.subr.bf16.mxu0 0
          %716 = vmatpush1.bf16.msra.mxu0 0
          %717 = vmatprep.subr.bf16.mxu0 0
          %718 = vmatpush1.bf16.msra.mxu0 %v701
          %719 = vmatprep.subr.bf16.mxu0 0
          %720 = vmatpush2.bf16.msra.mxu0 0
          %721 = vmatprep.subr.bf16.mxu0 0
          %722 = vmatpush2.bf16.msra.mxu0 0
          %723 = vmatprep.subr.bf16.mxu0 0
          %724 = vmatpush2.bf16.msra.mxu0 0
          %725 = vmatprep.subr.bf16.mxu0 0
          %726 = vmatpush2.bf16.msra.mxu0 0
          %727 = vmatprep.subr.bf16.mxu0 0
          %728 = vmatpush2.bf16.msra.mxu0 0
          %729 = vmatprep.subr.bf16.mxu0 0
          %730 = vmatpush2.bf16.msra.mxu0 0
          %731 = vmatprep.subr.bf16.mxu0 0
          %732 = vmatpush2.bf16.msra.mxu0 0
          %733 = vmatprep.subr.bf16.mxu0 0
          %734 = vmatpush2.bf16.msra.mxu0 0
          %735 = vmatprep.mubr.bf16.mxu0 0
          %736 = vmatmul.mubr.bf16.gmra.mxu0 %v695
          %v737 = vpop.f32.mrf.mxu0
          %v738 = vadd.f32 %v657, %v737
          %v739 = vpop.f32.mrf.mxu0
          %v740 = vpop.f32.mrf.mxu0
          %v741 = vadd.f32 %v660, %v740
          %v742 = vpop.f32.mrf.mxu0
          %743 = vmatprep.mubr.bf16.mxu0 0
          %744 = vmatmul.mubr.bf16.gmra.mxu0 %v698
          %v745 = vpop.f32.mrf.mxu0
          %v746 = vadd.f32 %v665, %v745
          %v747 = vpop.f32.mrf.mxu0
          %v748 = vpop.f32.mrf.mxu0
          %v749 = vadd.f32 %v668, %v748
          %v750 = vpop.f32.mrf.mxu0
          %751 = vdwg.mxu0
          %v752 = vld [vmem:[%s356] sm:$0xf]
          %v753 = vld [vmem:[%s356 + $0x4] sm:$0xf]
          %v754 = vld [vmem:[%s356 + $0x8] sm:$0xf]
          %v755 = vld [vmem:[%s356 + $0xc] sm:$0xf]
          %v756 = vld [vmem:[%s356 + $0x10] sm:$0x1]
          %s757 = scalar_lea.vmem %s1, 24
          %v758 = vld [vmem:[%s757] sm:$0xf]
          %v764 = vunpack.c.l.b16 %v752
          %v765 = vunpack.c.l.b16 %v753
          %v766 = vunpack.c.l.b16 %v754
          %v767 = vunpack.c.l.b16 %v755
          %v768 = vunpack.c.l.b16 %v756
          %v769 = vpack.c.b16 %v765, %v764
          %v770 = vpack.c.b16 %v767, %v766
          %v771 = vpack.c.b16 %v768, %v768
          %v773 = vshrl.u32 %v769, 16
          %v775 = vshll.u32 %v769, 16
          %v777 = vrot.slane %v775, 1
          %v778 = vor.u32 %v773, %v777
          %v780 = vshll.u32 %v770, 16
          %v782 = vrot.slane %v780, 1
          %v783 = vsel %vm216, %v778, %v782
          %v784 = vshrl.u32 %v770, 16
          %v786 = vor.u32 %v784, %v782
          %v788 = vshll.u32 %v771, 16
          %v790 = vrot.slane %v788, 1
          %v791 = vsel %vm216, %v786, %v790
          %v793 = vsel %vm237, %v783, 0
          %v796 = vsel %vm237, %v791, 0
          %v799 = vsel %vm244, %v758, 0
          %801 = vmatprep.subr.bf16.mxu0 0
          %802 = vmatpush1.bf16.msra.mxu0 0
          %803 = vmatprep.subr.bf16.mxu0 0
          %804 = vmatpush1.bf16.msra.mxu0 0
          %805 = vmatprep.subr.bf16.mxu0 0
          %806 = vmatpush1.bf16.msra.mxu0 0
          %807 = vmatprep.subr.bf16.mxu0 0
          %808 = vmatpush1.bf16.msra.mxu0 0
          %809 = vmatprep.subr.bf16.mxu0 0
          %810 = vmatpush1.bf16.msra.mxu0 0
          %811 = vmatprep.subr.bf16.mxu0 0
          %812 = vmatpush1.bf16.msra.mxu0 0
          %813 = vmatprep.subr.bf16.mxu0 0
          %814 = vmatpush1.bf16.msra.mxu0 0
          %815 = vmatprep.subr.bf16.mxu0 0
          %816 = vmatpush1.bf16.msra.mxu0 %v799
          %817 = vmatprep.subr.bf16.mxu0 0
          %818 = vmatpush2.bf16.msra.mxu0 0
          %819 = vmatprep.subr.bf16.mxu0 0
          %820 = vmatpush2.bf16.msra.mxu0 0
          %821 = vmatprep.subr.bf16.mxu0 0
          %822 = vmatpush2.bf16.msra.mxu0 0
          %823 = vmatprep.subr.bf16.mxu0 0
          %824 = vmatpush2.bf16.msra.mxu0 0
          %825 = vmatprep.subr.bf16.mxu0 0
          %826 = vmatpush2.bf16.msra.mxu0 0
          %827 = vmatprep.subr.bf16.mxu0 0
          %828 = vmatpush2.bf16.msra.mxu0 0
          %829 = vmatprep.subr.bf16.mxu0 0
          %830 = vmatpush2.bf16.msra.mxu0 0
          %831 = vmatprep.subr.bf16.mxu0 0
          %832 = vmatpush2.bf16.msra.mxu0 0
          %833 = vmatprep.mubr.bf16.mxu0 0
          %834 = vmatmul.mubr.bf16.gmra.mxu0 %v793
          %v835 = vpop.f32.mrf.mxu0
          %v836 = vadd.f32 0.0, %v835
          %v837 = vpop.f32.mrf.mxu0
          %v838 = vpop.f32.mrf.mxu0
          %v839 = vadd.f32 0.0, %v838
          %v840 = vpop.f32.mrf.mxu0
          %841 = vmatprep.mubr.bf16.mxu0 0
          %842 = vmatmul.mubr.bf16.gmra.mxu0 %v796
          %v843 = vpop.f32.mrf.mxu0
          %v844 = vadd.f32 0.0, %v843
          %v845 = vpop.f32.mrf.mxu0
          %v846 = vpop.f32.mrf.mxu0
          %v847 = vadd.f32 0.0, %v846
          %v848 = vpop.f32.mrf.mxu0
          %849 = vdwg.mxu0
          %v850 = vadd.f32 %v738, %v836
          %v851 = vadd.f32 %v741, %v839
          %v852 = vadd.f32 %v746, %v844
          %v853 = vadd.f32 %v749, %v847
          %v854 = vld [vmem:[%s356] sm:$0xe]
          %s855 = scalar_lea.vmem %s1, 28
          %v856 = vld [vmem:[%s855] sm:$0xf]
          %v858 = vunpack.c.l.b16 %v854
          %v859 = vpack.c.b16 %v765, %v858
          %v860 = vrot.slane %v859, 1
          %v861 = vrot.slane %v770, 1
          %v862 = vsel %vm607, %v860, %v861
          %v863 = vrot.slane %v771, 1
          %v864 = vsel %vm607, %v861, %v863
          %v866 = vsel %vm237, %v862, 0
          %v869 = vsel %vm237, %v864, 0
          %v872 = vsel %vm244, %v856, 0
          %874 = vmatprep.subr.bf16.mxu0 0
          %875 = vmatpush1.bf16.msra.mxu0 0
          %876 = vmatprep.subr.bf16.mxu0 0
          %877 = vmatpush1.bf16.msra.mxu0 0
          %878 = vmatprep.subr.bf16.mxu0 0
          %879 = vmatpush1.bf16.msra.mxu0 0
          %880 = vmatprep.subr.bf16.mxu0 0
          %881 = vmatpush1.bf16.msra.mxu0 0
          %882 = vmatprep.subr.bf16.mxu0 0
          %883 = vmatpush1.bf16.msra.mxu0 0
          %884 = vmatprep.subr.bf16.mxu0 0
          %885 = vmatpush1.bf16.msra.mxu0 0
          %886 = vmatprep.subr.bf16.mxu0 0
          %887 = vmatpush1.bf16.msra.mxu0 0
          %888 = vmatprep.subr.bf16.mxu0 0
          %889 = vmatpush1.bf16.msra.mxu0 %v872
          %890 = vmatprep.subr.bf16.mxu0 0
          %891 = vmatpush2.bf16.msra.mxu0 0
          %892 = vmatprep.subr.bf16.mxu0 0
          %893 = vmatpush2.bf16.msra.mxu0 0
          %894 = vmatprep.subr.bf16.mxu0 0
          %895 = vmatpush2.bf16.msra.mxu0 0
          %896 = vmatprep.subr.bf16.mxu0 0
          %897 = vmatpush2.bf16.msra.mxu0 0
          %898 = vmatprep.subr.bf16.mxu0 0
          %899 = vmatpush2.bf16.msra.mxu0 0
          %900 = vmatprep.subr.bf16.mxu0 0
          %901 = vmatpush2.bf16.msra.mxu0 0
          %902 = vmatprep.subr.bf16.mxu0 0
          %903 = vmatpush2.bf16.msra.mxu0 0
          %904 = vmatprep.subr.bf16.mxu0 0
          %905 = vmatpush2.bf16.msra.mxu0 0
          %906 = vmatprep.mubr.bf16.mxu0 0
          %907 = vmatmul.mubr.bf16.gmra.mxu0 %v866
          %v908 = vpop.f32.mrf.mxu0
          %v909 = vadd.f32 0.0, %v908
          %v910 = vpop.f32.mrf.mxu0
          %v911 = vpop.f32.mrf.mxu0
          %v912 = vadd.f32 0.0, %v911
          %v913 = vpop.f32.mrf.mxu0
          %914 = vmatprep.mubr.bf16.mxu0 0
          %915 = vmatmul.mubr.bf16.gmra.mxu0 %v869
          %v916 = vpop.f32.mrf.mxu0
          %v917 = vadd.f32 0.0, %v916
          %v918 = vpop.f32.mrf.mxu0
          %v919 = vpop.f32.mrf.mxu0
          %v920 = vadd.f32 0.0, %v919
          %v921 = vpop.f32.mrf.mxu0
          %922 = vdwg.mxu0
          %v923 = vadd.f32 %v850, %v909
          %v924 = vadd.f32 %v851, %v912
          %v925 = vadd.f32 %v852, %v917
          %v926 = vadd.f32 %v853, %v920
          %v927 = vld [vmem:[#allocation2] sm:$0x1]
          %v928 = vsel %vm538, %v923, 0.0
          %v929 = vsel %vm538, %v924, 0.0
          %v930 = vadd.f32 %v928, %v929
          %v931 = vsel %vm538, %v925, 0.0
          %v932 = vadd.f32 %v930, %v931
          %v933 = vsel %vm538, %v926, 0.0
          %v934 = vadd.f32 %v932, %v933
          %v935 = vrot.slane %v934, 4
          %v936 = vadd.f32 %v934, %v935
          %v937 = vrot.slane %v936, 2
          %v938 = vadd.f32 %v936, %v937
          %v939 = vrot.slane %v938, 1
          %v940 = vadd.f32 %v938, %v939
          %v941 = vadd.f32 %v927, %v940
          %942 = vst.msk [vmem:[#allocation2] sm:$0x1] %vm183, %v941
          %v943 = vld [vmem:[#allocation3] sm:$0x1]
          %v944 = vmul.f32 %v923, %v923
          %v945 = vmul.f32 %v924, %v924
          %v946 = vmul.f32 %v925, %v925
          %v947 = vmul.f32 %v926, %v926
          %v948 = vsel %vm538, %v944, 0.0
          %v949 = vsel %vm538, %v945, 0.0
          %v950 = vadd.f32 %v948, %v949
          %v951 = vsel %vm538, %v946, 0.0
          %v952 = vadd.f32 %v950, %v951
          %v953 = vsel %vm538, %v947, 0.0
          %v954 = vadd.f32 %v952, %v953
          %v955 = vrot.slane %v954, 4
          %v956 = vadd.f32 %v954, %v955
          %v957 = vrot.slane %v956, 2
          %v958 = vadd.f32 %v956, %v957
          %v959 = vrot.slane %v958, 1
          %v960 = vadd.f32 %v958, %v959
          %v961 = vadd.f32 %v943, %v960
          %962 = vst.msk [vmem:[#allocation3] sm:$0x1] %vm183, %v961
          %v963 = vtanh.pop %v923
          %v964 = vtanh.pop %v924
          %v965 = vtanh.pop %v925
          %v966 = vtanh.pop %v926
          %971 = vrot.lane.b32.xlu0 %v963, 3
          %v972 = vpop.permute.xlu0 %971
          %973 = vrot.lane.b32.xlu0 %v964, 3
          %v974 = vpop.permute.xlu0 %973
          %975 = vrot.lane.b32.xlu0 %v965, 3
          %v976 = vpop.permute.xlu0 %975
          %977 = vrot.lane.b32.xlu0 %v966, 3
          %v978 = vpop.permute.xlu0 %977
          %vm983 = vcmask 48152
          %984 = vst.msk [vmem:[%s579] sm:$0xff] %vm983, %v972
          %985 = vst.msk [vmem:[%s579 + $0x8] sm:$0xff] %vm983, %v974
          %986 = vst.msk [vmem:[%s579 + $0x10] sm:$0xff] %vm983, %v976
          %987 = vst.msk [vmem:[%s579 + $0x18] sm:$0xff] %vm983, %v978
          %v988 = vld [vmem:[%s356] sm:$0xf]
          %v989 = vld [vmem:[%s356 + $0x4] sm:$0xf]
          %v990 = vld [vmem:[%s356 + $0x8] sm:$0xf]
          %v991 = vld [vmem:[%s356 + $0xc] sm:$0xf]
          %s992 = scalar_lea.vmem %s1, 32
          %v993 = vld [vmem:[%s992] sm:$0xf]
          %v994 = vld [vmem:[%s356 + $0x10] sm:$0x1]
          %s995 = scalar_lea.vmem %s1, 36
          %v996 = vld [vmem:[%s995] sm:$0xf]
          %v1002 = vunpack.c.l.b16 %v988
          %v1003 = vunpack.c.l.b16 %v989
          %v1004 = vunpack.c.l.b16 %v990
          %v1005 = vunpack.c.l.b16 %v991
          %v1006 = vunpack.c.l.b16 %v994
          %v1007 = vpack.c.b16 %v1003, %v1002
          %v1008 = vpack.c.b16 %v1005, %v1004
          %v1009 = vpack.c.b16 %v1006, %v1006
          %v1011 = vshrl.u32 %v1007, 16
          %v1013 = vshll.u32 %v1007, 16
          %v1015 = vrot.slane %v1013, 1
          %v1016 = vor.u32 %v1011, %v1015
          %v1018 = vshll.u32 %v1008, 16
          %v1020 = vrot.slane %v1018, 1
          %v1021 = vsel %vm216, %v1016, %v1020
          %v1022 = vshrl.u32 %v1008, 16
          %v1024 = vor.u32 %v1022, %v1020
          %v1026 = vshll.u32 %v1009, 16
          %v1028 = vrot.slane %v1026, 1
          %v1029 = vsel %vm216, %v1024, %v1028
          %v1031 = vsel %vm237, %v1021, 0
          %v1034 = vsel %vm237, %v1029, 0
          %v1037 = vsel %vm244, %v996, 0
          %1039 = vmatprep.subr.bf16.mxu0 0
          %1040 = vmatpush1.bf16.msra.mxu0 0
          %1041 = vmatprep.subr.bf16.mxu0 0
          %1042 = vmatpush1.bf16.msra.mxu0 0
          %1043 = vmatprep.subr.bf16.mxu0 0
          %1044 = vmatpush1.bf16.msra.mxu0 0
          %1045 = vmatprep.subr.bf16.mxu0 0
          %1046 = vmatpush1.bf16.msra.mxu0 0
          %1047 = vmatprep.subr.bf16.mxu0 0
          %1048 = vmatpush1.bf16.msra.mxu0 0
          %1049 = vmatprep.subr.bf16.mxu0 0
          %1050 = vmatpush1.bf16.msra.mxu0 0
          %1051 = vmatprep.subr.bf16.mxu0 0
          %1052 = vmatpush1.bf16.msra.mxu0 0
          %1053 = vmatprep.subr.bf16.mxu0 0
          %1054 = vmatpush1.bf16.msra.mxu0 %v1037
          %1055 = vmatprep.subr.bf16.mxu0 0
          %1056 = vmatpush2.bf16.msra.mxu0 0
          %1057 = vmatprep.subr.bf16.mxu0 0
          %1058 = vmatpush2.bf16.msra.mxu0 0
          %1059 = vmatprep.subr.bf16.mxu0 0
          %1060 = vmatpush2.bf16.msra.mxu0 0
          %1061 = vmatprep.subr.bf16.mxu0 0
          %1062 = vmatpush2.bf16.msra.mxu0 0
          %1063 = vmatprep.subr.bf16.mxu0 0
          %1064 = vmatpush2.bf16.msra.mxu0 0
          %1065 = vmatprep.subr.bf16.mxu0 0
          %1066 = vmatpush2.bf16.msra.mxu0 0
          %1067 = vmatprep.subr.bf16.mxu0 0
          %1068 = vmatpush2.bf16.msra.mxu0 0
          %1069 = vmatprep.subr.bf16.mxu0 0
          %1070 = vmatpush2.bf16.msra.mxu0 0
          %1071 = vmatprep.mubr.bf16.mxu0 0
          %1072 = vmatmul.mubr.bf16.gmra.mxu0 %v1031
          %v1073 = vpop.f32.mrf.mxu0
          %v1074 = vadd.f32 0.0, %v1073
          %v1075 = vpop.f32.mrf.mxu0
          %v1076 = vpop.f32.mrf.mxu0
          %v1077 = vadd.f32 0.0, %v1076
          %v1078 = vpop.f32.mrf.mxu0
          %1079 = vmatprep.mubr.bf16.mxu0 0
          %1080 = vmatmul.mubr.bf16.gmra.mxu0 %v1034
          %v1081 = vpop.f32.mrf.mxu0
          %v1082 = vadd.f32 0.0, %v1081
          %v1083 = vpop.f32.mrf.mxu0
          %v1084 = vpop.f32.mrf.mxu0
          %v1085 = vadd.f32 0.0, %v1084
          %v1086 = vpop.f32.mrf.mxu0
          %1087 = vdwg.mxu0
          %v1088 = vsel %vm237, %v1007, 0
          %v1090 = vsel %vm237, %v1008, 0
          %v1093 = vsel %vm244, %v993, 0
          %1095 = vmatprep.subr.bf16.mxu0 0
          %1096 = vmatpush1.bf16.msra.mxu0 0
          %1097 = vmatprep.subr.bf16.mxu0 0
          %1098 = vmatpush1.bf16.msra.mxu0 0
          %1099 = vmatprep.subr.bf16.mxu0 0
          %1100 = vmatpush1.bf16.msra.mxu0 0
          %1101 = vmatprep.subr.bf16.mxu0 0
          %1102 = vmatpush1.bf16.msra.mxu0 0
          %1103 = vmatprep.subr.bf16.mxu0 0
          %1104 = vmatpush1.bf16.msra.mxu0 0
          %1105 = vmatprep.subr.bf16.mxu0 0
          %1106 = vmatpush1.bf16.msra.mxu0 0
          %1107 = vmatprep.subr.bf16.mxu0 0
          %1108 = vmatpush1.bf16.msra.mxu0 0
          %1109 = vmatprep.subr.bf16.mxu0 0
          %1110 = vmatpush1.bf16.msra.mxu0 %v1093
          %1111 = vmatprep.subr.bf16.mxu0 0
          %1112 = vmatpush2.bf16.msra.mxu0 0
          %1113 = vmatprep.subr.bf16.mxu0 0
          %1114 = vmatpush2.bf16.msra.mxu0 0
          %1115 = vmatprep.subr.bf16.mxu0 0
          %1116 = vmatpush2.bf16.msra.mxu0 0
          %1117 = vmatprep.subr.bf16.mxu0 0
          %1118 = vmatpush2.bf16.msra.mxu0 0
          %1119 = vmatprep.subr.bf16.mxu0 0
          %1120 = vmatpush2.bf16.msra.mxu0 0
          %1121 = vmatprep.subr.bf16.mxu0 0
          %1122 = vmatpush2.bf16.msra.mxu0 0
          %1123 = vmatprep.subr.bf16.mxu0 0
          %1124 = vmatpush2.bf16.msra.mxu0 0
          %1125 = vmatprep.subr.bf16.mxu0 0
          %1126 = vmatpush2.bf16.msra.mxu0 0
          %1127 = vmatprep.mubr.bf16.mxu0 0
          %1128 = vmatmul.mubr.bf16.gmra.mxu0 %v1088
          %v1129 = vpop.f32.mrf.mxu0
          %v1130 = vadd.f32 %v1074, %v1129
          %v1131 = vpop.f32.mrf.mxu0
          %v1132 = vpop.f32.mrf.mxu0
          %v1133 = vadd.f32 %v1077, %v1132
          %v1134 = vpop.f32.mrf.mxu0
          %1135 = vmatprep.mubr.bf16.mxu0 0
          %1136 = vmatmul.mubr.bf16.gmra.mxu0 %v1090
          %v1137 = vpop.f32.mrf.mxu0
          %v1138 = vadd.f32 %v1082, %v1137
          %v1139 = vpop.f32.mrf.mxu0
          %v1140 = vpop.f32.mrf.mxu0
          %v1141 = vadd.f32 %v1085, %v1140
          %v1142 = vpop.f32.mrf.mxu0
          %1143 = vdwg.mxu0
          %s1144 = sadd.s32 %s187, 2
          %s1145 = smul.u32 %s1144, 5
          %s1146 = smul.addr %s1145, 4
          %s1147 = scalar_lea.vmem %s176, %s1146
          %v1148 = vld [vmem:[%s1147] sm:$0xf]
          %v1149 = vld [vmem:[%s1147 + $0x4] sm:$0xf]
          %v1150 = vld [vmem:[%s1147 + $0x8] sm:$0xf]
          %v1151 = vld [vmem:[%s1147 + $0xc] sm:$0xf]
          %s1152 = scalar_lea.vmem %s1, 40
          %v1153 = vld [vmem:[%s1152] sm:$0xf]
          %v1158 = vunpack.c.l.b16 %v1148
          %v1159 = vunpack.c.l.b16 %v1149
          %v1160 = vunpack.c.l.b16 %v1150
          %v1161 = vunpack.c.l.b16 %v1151
          %v1162 = vpack.c.b16 %v1159, %v1158
          %v1163 = vpack.c.b16 %v1161, %v1160
          %v1165 = vsel %vm237, %v1162, 0
          %v1168 = vsel %vm237, %v1163, 0
          %v1171 = vsel %vm244, %v1153, 0
          %1173 = vmatprep.subr.bf16.mxu0 0
          %1174 = vmatpush1.bf16.msra.mxu0 0
          %1175 = vmatprep.subr.bf16.mxu0 0
          %1176 = vmatpush1.bf16.msra.mxu0 0
          %1177 = vmatprep.subr.bf16.mxu0 0
          %1178 = vmatpush1.bf16.msra.mxu0 0
          %1179 = vmatprep.subr.bf16.mxu0 0
          %1180 = vmatpush1.bf16.msra.mxu0 0
          %1181 = vmatprep.subr.bf16.mxu0 0
          %1182 = vmatpush1.bf16.msra.mxu0 0
          %1183 = vmatprep.subr.bf16.mxu0 0
          %1184 = vmatpush1.bf16.msra.mxu0 0
          %1185 = vmatprep.subr.bf16.mxu0 0
          %1186 = vmatpush1.bf16.msra.mxu0 0
          %1187 = vmatprep.subr.bf16.mxu0 0
          %1188 = vmatpush1.bf16.msra.mxu0 %v1171
          %1189 = vmatprep.subr.bf16.mxu0 0
          %1190 = vmatpush2.bf16.msra.mxu0 0
          %1191 = vmatprep.subr.bf16.mxu0 0
          %1192 = vmatpush2.bf16.msra.mxu0 0
          %1193 = vmatprep.subr.bf16.mxu0 0
          %1194 = vmatpush2.bf16.msra.mxu0 0
          %1195 = vmatprep.subr.bf16.mxu0 0
          %1196 = vmatpush2.bf16.msra.mxu0 0
          %1197 = vmatprep.subr.bf16.mxu0 0
          %1198 = vmatpush2.bf16.msra.mxu0 0
          %1199 = vmatprep.subr.bf16.mxu0 0
          %1200 = vmatpush2.bf16.msra.mxu0 0
          %1201 = vmatprep.subr.bf16.mxu0 0
          %1202 = vmatpush2.bf16.msra.mxu0 0
          %1203 = vmatprep.subr.bf16.mxu0 0
          %1204 = vmatpush2.bf16.msra.mxu0 0
          %1205 = vmatprep.mubr.bf16.mxu0 0
          %1206 = vmatmul.mubr.bf16.gmra.mxu0 %v1165
          %v1207 = vpop.f32.mrf.mxu0
          %v1208 = vadd.f32 0.0, %v1207
          %v1209 = vpop.f32.mrf.mxu0
          %v1210 = vpop.f32.mrf.mxu0
          %v1211 = vadd.f32 0.0, %v1210
          %v1212 = vpop.f32.mrf.mxu0
          %1213 = vmatprep.mubr.bf16.mxu0 0
          %1214 = vmatmul.mubr.bf16.gmra.mxu0 %v1168
          %v1215 = vpop.f32.mrf.mxu0
          %v1216 = vadd.f32 0.0, %v1215
          %v1217 = vpop.f32.mrf.mxu0
          %v1218 = vpop.f32.mrf.mxu0
          %v1219 = vadd.f32 0.0, %v1218
          %v1220 = vpop.f32.mrf.mxu0
          %1221 = vdwg.mxu0
          %v1222 = vadd.f32 %v1130, %v1208
          %v1223 = vadd.f32 %v1133, %v1211
          %v1224 = vadd.f32 %v1138, %v1216
          %v1225 = vadd.f32 %v1141, %v1219
          %v1226 = vld [vmem:[%s1147] sm:$0xf]
          %v1227 = vld [vmem:[%s1147 + $0x4] sm:$0xf]
          %v1228 = vld [vmem:[%s1147 + $0x8] sm:$0xf]
          %v1229 = vld [vmem:[%s1147 + $0xc] sm:$0xf]
          %v1230 = vld [vmem:[%s1147 + $0x10] sm:$0x1]
          %s1231 = scalar_lea.vmem %s1, 44
          %v1232 = vld [vmem:[%s1231] sm:$0xf]
          %v1238 = vunpack.c.l.b16 %v1226
          %v1239 = vunpack.c.l.b16 %v1227
          %v1240 = vunpack.c.l.b16 %v1228
          %v1241 = vunpack.c.l.b16 %v1229
          %v1242 = vunpack.c.l.b16 %v1230
          %v1243 = vpack.c.b16 %v1239, %v1238
          %v1244 = vpack.c.b16 %v1241, %v1240
          %v1245 = vpack.c.b16 %v1242, %v1242
          %v1247 = vshrl.u32 %v1243, 16
          %v1249 = vshll.u32 %v1243, 16
          %v1251 = vrot.slane %v1249, 1
          %v1252 = vor.u32 %v1247, %v1251
          %v1254 = vshll.u32 %v1244, 16
          %v1256 = vrot.slane %v1254, 1
          %v1257 = vsel %vm216, %v1252, %v1256
          %v1258 = vshrl.u32 %v1244, 16
          %v1260 = vor.u32 %v1258, %v1256
          %v1262 = vshll.u32 %v1245, 16
          %v1264 = vrot.slane %v1262, 1
          %v1265 = vsel %vm216, %v1260, %v1264
          %v1267 = vsel %vm237, %v1257, 0
          %v1270 = vsel %vm237, %v1265, 0
          %v1273 = vsel %vm244, %v1232, 0
          %1275 = vmatprep.subr.bf16.mxu0 0
          %1276 = vmatpush1.bf16.msra.mxu0 0
          %1277 = vmatprep.subr.bf16.mxu0 0
          %1278 = vmatpush1.bf16.msra.mxu0 0
          %1279 = vmatprep.subr.bf16.mxu0 0
          %1280 = vmatpush1.bf16.msra.mxu0 0
          %1281 = vmatprep.subr.bf16.mxu0 0
          %1282 = vmatpush1.bf16.msra.mxu0 0
          %1283 = vmatprep.subr.bf16.mxu0 0
          %1284 = vmatpush1.bf16.msra.mxu0 0
          %1285 = vmatprep.subr.bf16.mxu0 0
          %1286 = vmatpush1.bf16.msra.mxu0 0
          %1287 = vmatprep.subr.bf16.mxu0 0
          %1288 = vmatpush1.bf16.msra.mxu0 0
          %1289 = vmatprep.subr.bf16.mxu0 0
          %1290 = vmatpush1.bf16.msra.mxu0 %v1273
          %1291 = vmatprep.subr.bf16.mxu0 0
          %1292 = vmatpush2.bf16.msra.mxu0 0
          %1293 = vmatprep.subr.bf16.mxu0 0
          %1294 = vmatpush2.bf16.msra.mxu0 0
          %1295 = vmatprep.subr.bf16.mxu0 0
          %1296 = vmatpush2.bf16.msra.mxu0 0
          %1297 = vmatprep.subr.bf16.mxu0 0
          %1298 = vmatpush2.bf16.msra.mxu0 0
          %1299 = vmatprep.subr.bf16.mxu0 0
          %1300 = vmatpush2.bf16.msra.mxu0 0
          %1301 = vmatprep.subr.bf16.mxu0 0
          %1302 = vmatpush2.bf16.msra.mxu0 0
          %1303 = vmatprep.subr.bf16.mxu0 0
          %1304 = vmatpush2.bf16.msra.mxu0 0
          %1305 = vmatprep.subr.bf16.mxu0 0
          %1306 = vmatpush2.bf16.msra.mxu0 0
          %1307 = vmatprep.mubr.bf16.mxu0 0
          %1308 = vmatmul.mubr.bf16.gmra.mxu0 %v1267
          %v1309 = vpop.f32.mrf.mxu0
          %v1310 = vadd.f32 0.0, %v1309
          %v1311 = vpop.f32.mrf.mxu0
          %v1312 = vpop.f32.mrf.mxu0
          %v1313 = vadd.f32 0.0, %v1312
          %v1314 = vpop.f32.mrf.mxu0
          %1315 = vmatprep.mubr.bf16.mxu0 0
          %1316 = vmatmul.mubr.bf16.gmra.mxu0 %v1270
          %v1317 = vpop.f32.mrf.mxu0
          %v1318 = vadd.f32 0.0, %v1317
          %v1319 = vpop.f32.mrf.mxu0
          %v1320 = vpop.f32.mrf.mxu0
          %v1321 = vadd.f32 0.0, %v1320
          %v1322 = vpop.f32.mrf.mxu0
          %1323 = vdwg.mxu0
          %v1324 = vadd.f32 %v1222, %v1310
          %v1325 = vadd.f32 %v1223, %v1313
          %v1326 = vadd.f32 %v1224, %v1318
          %v1327 = vadd.f32 %v1225, %v1321
          %v1328 = vld [vmem:[#allocation2] sm:$0x1]
          %v1329 = vsel %vm538, %v1324, 0.0
          %v1330 = vsel %vm538, %v1325, 0.0
          %v1331 = vadd.f32 %v1329, %v1330
          %v1332 = vsel %vm538, %v1326, 0.0
          %v1333 = vadd.f32 %v1331, %v1332
          %v1334 = vsel %vm538, %v1327, 0.0
          %v1335 = vadd.f32 %v1333, %v1334
          %v1336 = vrot.slane %v1335, 4
          %v1337 = vadd.f32 %v1335, %v1336
          %v1338 = vrot.slane %v1337, 2
          %v1339 = vadd.f32 %v1337, %v1338
          %v1340 = vrot.slane %v1339, 1
          %v1341 = vadd.f32 %v1339, %v1340
          %v1342 = vadd.f32 %v1328, %v1341
          %1343 = vst.msk [vmem:[#allocation2] sm:$0x1] %vm183, %v1342
          %v1344 = vld [vmem:[#allocation3] sm:$0x1]
          %v1345 = vmul.f32 %v1324, %v1324
          %v1346 = vmul.f32 %v1325, %v1325
          %v1347 = vmul.f32 %v1326, %v1326
          %v1348 = vmul.f32 %v1327, %v1327
          %v1349 = vsel %vm538, %v1345, 0.0
          %v1350 = vsel %vm538, %v1346, 0.0
          %v1351 = vadd.f32 %v1349, %v1350
          %v1352 = vsel %vm538, %v1347, 0.0
          %v1353 = vadd.f32 %v1351, %v1352
          %v1354 = vsel %vm538, %v1348, 0.0
          %v1355 = vadd.f32 %v1353, %v1354
          %v1356 = vrot.slane %v1355, 4
          %v1357 = vadd.f32 %v1355, %v1356
          %v1358 = vrot.slane %v1357, 2
          %v1359 = vadd.f32 %v1357, %v1358
          %v1360 = vrot.slane %v1359, 1
          %v1361 = vadd.f32 %v1359, %v1360
          %v1362 = vadd.f32 %v1344, %v1361
          %1363 = vst.msk [vmem:[#allocation3] sm:$0x1] %vm183, %v1362
          %v1364 = vtanh.pop %v1324
          %v1365 = vtanh.pop %v1325
          %v1366 = vtanh.pop %v1326
          %v1367 = vtanh.pop %v1327
          %s1368 = sadd.s32 32, %s578
          %s1369 = scalar_lea.vmem %s181, %s1368
          %1370 = vst.msk [vmem:[%s1369] sm:$0xff] %vm538, %v1364
          %1371 = vst.msk [vmem:[%s1369 + $0x8] sm:$0xff] %vm538, %v1365
          %1372 = vst.msk [vmem:[%s1369 + $0x10] sm:$0xff] %vm538, %v1366
          %1373 = vst.msk [vmem:[%s1369 + $0x18] sm:$0xff] %vm538, %v1367
          %v1374 = vld [vmem:[%s356] sm:$0xf]
          %v1375 = vld [vmem:[%s356 + $0x4] sm:$0xf]
          %v1376 = vld [vmem:[%s356 + $0x8] sm:$0xf]
          %v1377 = vld [vmem:[%s356 + $0xc] sm:$0xf]
          %v1378 = vld [vmem:[%s356 + $0x10] sm:$0x1]
          %s1379 = scalar_lea.vmem %s1, 48
          %v1380 = vld [vmem:[%s1379] sm:$0xf]
          %v1381 = vld [vmem:[%s356] sm:$0xe]
          %s1382 = scalar_lea.vmem %s1, 52
          %v1383 = vld [vmem:[%s1382] sm:$0xf]
          %v1389 = vunpack.c.l.b16 %v1381
          %v1390 = vunpack.c.l.b16 %v1375
          %v1391 = vunpack.c.l.b16 %v1376
          %v1392 = vunpack.c.l.b16 %v1377
          %v1393 = vunpack.c.l.b16 %v1378
          %v1394 = vpack.c.b16 %v1390, %v1389
          %v1395 = vpack.c.b16 %v1392, %v1391
          %v1396 = vpack.c.b16 %v1393, %v1393
          %v1397 = vrot.slane %v1394, 1
          %v1398 = vrot.slane %v1395, 1
          %v1399 = vsel %vm607, %v1397, %v1398
          %v1400 = vrot.slane %v1396, 1
          %v1401 = vsel %vm607, %v1398, %v1400
          %v1403 = vsel %vm237, %v1399, 0
          %v1406 = vsel %vm237, %v1401, 0
          %v1409 = vsel %vm244, %v1383, 0
          %1411 = vmatprep.subr.bf16.mxu0 0
          %1412 = vmatpush1.bf16.msra.mxu0 0
          %1413 = vmatprep.subr.bf16.mxu0 0
          %1414 = vmatpush1.bf16.msra.mxu0 0
          %1415 = vmatprep.subr.bf16.mxu0 0
          %1416 = vmatpush1.bf16.msra.mxu0 0
          %1417 = vmatprep.subr.bf16.mxu0 0
          %1418 = vmatpush1.bf16.msra.mxu0 0
          %1419 = vmatprep.subr.bf16.mxu0 0
          %1420 = vmatpush1.bf16.msra.mxu0 0
          %1421 = vmatprep.subr.bf16.mxu0 0
          %1422 = vmatpush1.bf16.msra.mxu0 0
          %1423 = vmatprep.subr.bf16.mxu0 0
          %1424 = vmatpush1.bf16.msra.mxu0 0
          %1425 = vmatprep.subr.bf16.mxu0 0
          %1426 = vmatpush1.bf16.msra.mxu0 %v1409
          %1427 = vmatprep.subr.bf16.mxu0 0
          %1428 = vmatpush2.bf16.msra.mxu0 0
          %1429 = vmatprep.subr.bf16.mxu0 0
          %1430 = vmatpush2.bf16.msra.mxu0 0
          %1431 = vmatprep.subr.bf16.mxu0 0
          %1432 = vmatpush2.bf16.msra.mxu0 0
          %1433 = vmatprep.subr.bf16.mxu0 0
          %1434 = vmatpush2.bf16.msra.mxu0 0
          %1435 = vmatprep.subr.bf16.mxu0 0
          %1436 = vmatpush2.bf16.msra.mxu0 0
          %1437 = vmatprep.subr.bf16.mxu0 0
          %1438 = vmatpush2.bf16.msra.mxu0 0
          %1439 = vmatprep.subr.bf16.mxu0 0
          %1440 = vmatpush2.bf16.msra.mxu0 0
          %1441 = vmatprep.subr.bf16.mxu0 0
          %1442 = vmatpush2.bf16.msra.mxu0 0
          %1443 = vmatprep.mubr.bf16.mxu0 0
          %1444 = vmatmul.mubr.bf16.gmra.mxu0 %v1403
          %v1445 = vpop.f32.mrf.mxu0
          %v1446 = vadd.f32 0.0, %v1445
          %v1447 = vpop.f32.mrf.mxu0
          %v1448 = vpop.f32.mrf.mxu0
          %v1449 = vadd.f32 0.0, %v1448
          %v1450 = vpop.f32.mrf.mxu0
          %1451 = vmatprep.mubr.bf16.mxu0 0
          %1452 = vmatmul.mubr.bf16.gmra.mxu0 %v1406
          %v1453 = vpop.f32.mrf.mxu0
          %v1454 = vadd.f32 0.0, %v1453
          %v1455 = vpop.f32.mrf.mxu0
          %v1456 = vpop.f32.mrf.mxu0
          %v1457 = vadd.f32 0.0, %v1456
          %v1458 = vpop.f32.mrf.mxu0
          %1459 = vdwg.mxu0
          %v1461 = vunpack.c.l.b16 %v1374
          %v1462 = vpack.c.b16 %v1390, %v1461
          %v1464 = vshrl.u32 %v1462, 16
          %v1466 = vshll.u32 %v1462, 16
          %v1468 = vrot.slane %v1466, 1
          %v1469 = vor.u32 %v1464, %v1468
          %v1471 = vshll.u32 %v1395, 16
          %v1473 = vrot.slane %v1471, 1
          %v1474 = vsel %vm216, %v1469, %v1473
          %v1475 = vshrl.u32 %v1395, 16
          %v1477 = vor.u32 %v1475, %v1473
          %v1479 = vshll.u32 %v1396, 16
          %v1481 = vrot.slane %v1479, 1
          %v1482 = vsel %vm216, %v1477, %v1481
          %v1484 = vsel %vm237, %v1474, 0
          %v1487 = vsel %vm237, %v1482, 0
          %v1490 = vsel %vm244, %v1380, 0
          %1492 = vmatprep.subr.bf16.mxu0 0
          %1493 = vmatpush1.bf16.msra.mxu0 0
          %1494 = vmatprep.subr.bf16.mxu0 0
          %1495 = vmatpush1.bf16.msra.mxu0 0
          %1496 = vmatprep.subr.bf16.mxu0 0
          %1497 = vmatpush1.bf16.msra.mxu0 0
          %1498 = vmatprep.subr.bf16.mxu0 0
          %1499 = vmatpush1.bf16.msra.mxu0 0
          %1500 = vmatprep.subr.bf16.mxu0 0
          %1501 = vmatpush1.bf16.msra.mxu0 0
          %1502 = vmatprep.subr.bf16.mxu0 0
          %1503 = vmatpush1.bf16.msra.mxu0 0
          %1504 = vmatprep.subr.bf16.mxu0 0
          %1505 = vmatpush1.bf16.msra.mxu0 0
          %1506 = vmatprep.subr.bf16.mxu0 0
          %1507 = vmatpush1.bf16.msra.mxu0 %v1490
          %1508 = vmatprep.subr.bf16.mxu0 0
          %1509 = vmatpush2.bf16.msra.mxu0 0
          %1510 = vmatprep.subr.bf16.mxu0 0
          %1511 = vmatpush2.bf16.msra.mxu0 0
          %1512 = vmatprep.subr.bf16.mxu0 0
          %1513 = vmatpush2.bf16.msra.mxu0 0
          %1514 = vmatprep.subr.bf16.mxu0 0
          %1515 = vmatpush2.bf16.msra.mxu0 0
          %1516 = vmatprep.subr.bf16.mxu0 0
          %1517 = vmatpush2.bf16.msra.mxu0 0
          %1518 = vmatprep.subr.bf16.mxu0 0
          %1519 = vmatpush2.bf16.msra.mxu0 0
          %1520 = vmatprep.subr.bf16.mxu0 0
          %1521 = vmatpush2.bf16.msra.mxu0 0
          %1522 = vmatprep.subr.bf16.mxu0 0
          %1523 = vmatpush2.bf16.msra.mxu0 0
          %1524 = vmatprep.mubr.bf16.mxu0 0
          %1525 = vmatmul.mubr.bf16.gmra.mxu0 %v1484
          %v1526 = vpop.f32.mrf.mxu0
          %v1527 = vadd.f32 %v1446, %v1526
          %v1528 = vpop.f32.mrf.mxu0
          %v1529 = vpop.f32.mrf.mxu0
          %v1530 = vadd.f32 %v1449, %v1529
          %v1531 = vpop.f32.mrf.mxu0
          %1532 = vmatprep.mubr.bf16.mxu0 0
          %1533 = vmatmul.mubr.bf16.gmra.mxu0 %v1487
          %v1534 = vpop.f32.mrf.mxu0
          %v1535 = vadd.f32 %v1454, %v1534
          %v1536 = vpop.f32.mrf.mxu0
          %v1537 = vpop.f32.mrf.mxu0
          %v1538 = vadd.f32 %v1457, %v1537
          %v1539 = vpop.f32.mrf.mxu0
          %1540 = vdwg.mxu0
          %v1541 = vld [vmem:[%s1147] sm:$0xf]
          %v1542 = vld [vmem:[%s1147 + $0x4] sm:$0xf]
          %v1543 = vld [vmem:[%s1147 + $0x8] sm:$0xf]
          %v1544 = vld [vmem:[%s1147 + $0xc] sm:$0xf]
          %v1545 = vld [vmem:[%s1147 + $0x10] sm:$0x1]
          %s1546 = scalar_lea.vmem %s1, 56
          %v1547 = vld [vmem:[%s1546] sm:$0xf]
          %v1553 = vunpack.c.l.b16 %v1541
          %v1554 = vunpack.c.l.b16 %v1542
          %v1555 = vunpack.c.l.b16 %v1543
          %v1556 = vunpack.c.l.b16 %v1544
          %v1557 = vunpack.c.l.b16 %v1545
          %v1558 = vpack.c.b16 %v1554, %v1553
          %v1559 = vpack.c.b16 %v1556, %v1555
          %v1560 = vpack.c.b16 %v1557, %v1557
          %v1562 = vshrl.u32 %v1558, 16
          %v1564 = vshll.u32 %v1558, 16
          %v1566 = vrot.slane %v1564, 1
          %v1567 = vor.u32 %v1562, %v1566
          %v1569 = vshll.u32 %v1559, 16
          %v1571 = vrot.slane %v1569, 1
          %v1572 = vsel %vm216, %v1567, %v1571
          %v1573 = vshrl.u32 %v1559, 16
          %v1575 = vor.u32 %v1573, %v1571
          %v1577 = vshll.u32 %v1560, 16
          %v1579 = vrot.slane %v1577, 1
          %v1580 = vsel %vm216, %v1575, %v1579
          %v1582 = vsel %vm237, %v1572, 0
          %v1585 = vsel %vm237, %v1580, 0
          %v1588 = vsel %vm244, %v1547, 0
          %1590 = vmatprep.subr.bf16.mxu0 0
          %1591 = vmatpush1.bf16.msra.mxu0 0
          %1592 = vmatprep.subr.bf16.mxu0 0
          %1593 = vmatpush1.bf16.msra.mxu0 0
          %1594 = vmatprep.subr.bf16.mxu0 0
          %1595 = vmatpush1.bf16.msra.mxu0 0
          %1596 = vmatprep.subr.bf16.mxu0 0
          %1597 = vmatpush1.bf16.msra.mxu0 0
          %1598 = vmatprep.subr.bf16.mxu0 0
          %1599 = vmatpush1.bf16.msra.mxu0 0
          %1600 = vmatprep.subr.bf16.mxu0 0
          %1601 = vmatpush1.bf16.msra.mxu0 0
          %1602 = vmatprep.subr.bf16.mxu0 0
          %1603 = vmatpush1.bf16.msra.mxu0 0
          %1604 = vmatprep.subr.bf16.mxu0 0
          %1605 = vmatpush1.bf16.msra.mxu0 %v1588
          %1606 = vmatprep.subr.bf16.mxu0 0
          %1607 = vmatpush2.bf16.msra.mxu0 0
          %1608 = vmatprep.subr.bf16.mxu0 0
          %1609 = vmatpush2.bf16.msra.mxu0 0
          %1610 = vmatprep.subr.bf16.mxu0 0
          %1611 = vmatpush2.bf16.msra.mxu0 0
          %1612 = vmatprep.subr.bf16.mxu0 0
          %1613 = vmatpush2.bf16.msra.mxu0 0
          %1614 = vmatprep.subr.bf16.mxu0 0
          %1615 = vmatpush2.bf16.msra.mxu0 0
          %1616 = vmatprep.subr.bf16.mxu0 0
          %1617 = vmatpush2.bf16.msra.mxu0 0
          %1618 = vmatprep.subr.bf16.mxu0 0
          %1619 = vmatpush2.bf16.msra.mxu0 0
          %1620 = vmatprep.subr.bf16.mxu0 0
          %1621 = vmatpush2.bf16.msra.mxu0 0
          %1622 = vmatprep.mubr.bf16.mxu0 0
          %1623 = vmatmul.mubr.bf16.gmra.mxu0 %v1582
          %v1624 = vpop.f32.mrf.mxu0
          %v1625 = vadd.f32 0.0, %v1624
          %v1626 = vpop.f32.mrf.mxu0
          %v1627 = vpop.f32.mrf.mxu0
          %v1628 = vadd.f32 0.0, %v1627
          %v1629 = vpop.f32.mrf.mxu0
          %1630 = vmatprep.mubr.bf16.mxu0 0
          %1631 = vmatmul.mubr.bf16.gmra.mxu0 %v1585
          %v1632 = vpop.f32.mrf.mxu0
          %v1633 = vadd.f32 0.0, %v1632
          %v1634 = vpop.f32.mrf.mxu0
          %v1635 = vpop.f32.mrf.mxu0
          %v1636 = vadd.f32 0.0, %v1635
          %v1637 = vpop.f32.mrf.mxu0
          %1638 = vdwg.mxu0
          %v1639 = vadd.f32 %v1527, %v1625
          %v1640 = vadd.f32 %v1530, %v1628
          %v1641 = vadd.f32 %v1535, %v1633
          %v1642 = vadd.f32 %v1538, %v1636
          %v1643 = vld [vmem:[%s1147] sm:$0xe]
          %s1644 = scalar_lea.vmem %s1, 60
          %v1645 = vld [vmem:[%s1644] sm:$0xf]
          %v1647 = vunpack.c.l.b16 %v1643
          %v1648 = vpack.c.b16 %v1554, %v1647
          %v1649 = vrot.slane %v1648, 1
          %v1650 = vrot.slane %v1559, 1
          %v1651 = vsel %vm607, %v1649, %v1650
          %v1652 = vrot.slane %v1560, 1
          %v1653 = vsel %vm607, %v1650, %v1652
          %v1655 = vsel %vm237, %v1651, 0
          %v1658 = vsel %vm237, %v1653, 0
          %v1661 = vsel %vm244, %v1645, 0
          %1663 = vmatprep.subr.bf16.mxu0 0
          %1664 = vmatpush1.bf16.msra.mxu0 0
          %1665 = vmatprep.subr.bf16.mxu0 0
          %1666 = vmatpush1.bf16.msra.mxu0 0
          %1667 = vmatprep.subr.bf16.mxu0 0
          %1668 = vmatpush1.bf16.msra.mxu0 0
          %1669 = vmatprep.subr.bf16.mxu0 0
          %1670 = vmatpush1.bf16.msra.mxu0 0
          %1671 = vmatprep.subr.bf16.mxu0 0
          %1672 = vmatpush1.bf16.msra.mxu0 0
          %1673 = vmatprep.subr.bf16.mxu0 0
          %1674 = vmatpush1.bf16.msra.mxu0 0
          %1675 = vmatprep.subr.bf16.mxu0 0
          %1676 = vmatpush1.bf16.msra.mxu0 0
          %1677 = vmatprep.subr.bf16.mxu0 0
          %1678 = vmatpush1.bf16.msra.mxu0 %v1661
          %1679 = vmatprep.subr.bf16.mxu0 0
          %1680 = vmatpush2.bf16.msra.mxu0 0
          %1681 = vmatprep.subr.bf16.mxu0 0
          %1682 = vmatpush2.bf16.msra.mxu0 0
          %1683 = vmatprep.subr.bf16.mxu0 0
          %1684 = vmatpush2.bf16.msra.mxu0 0
          %1685 = vmatprep.subr.bf16.mxu0 0
          %1686 = vmatpush2.bf16.msra.mxu0 0
          %1687 = vmatprep.subr.bf16.mxu0 0
          %1688 = vmatpush2.bf16.msra.mxu0 0
          %1689 = vmatprep.subr.bf16.mxu0 0
          %1690 = vmatpush2.bf16.msra.mxu0 0
          %1691 = vmatprep.subr.bf16.mxu0 0
          %1692 = vmatpush2.bf16.msra.mxu0 0
          %1693 = vmatprep.subr.bf16.mxu0 0
          %1694 = vmatpush2.bf16.msra.mxu0 0
          %1695 = vmatprep.mubr.bf16.mxu0 0
          %1696 = vmatmul.mubr.bf16.gmra.mxu0 %v1655
          %v1697 = vpop.f32.mrf.mxu0
          %v1698 = vadd.f32 0.0, %v1697
          %v1699 = vpop.f32.mrf.mxu0
          %v1700 = vpop.f32.mrf.mxu0
          %v1701 = vadd.f32 0.0, %v1700
          %v1702 = vpop.f32.mrf.mxu0
          %1703 = vmatprep.mubr.bf16.mxu0 0
          %1704 = vmatmul.mubr.bf16.gmra.mxu0 %v1658
          %v1705 = vpop.f32.mrf.mxu0
          %v1706 = vadd.f32 0.0, %v1705
          %v1707 = vpop.f32.mrf.mxu0
          %v1708 = vpop.f32.mrf.mxu0
          %v1709 = vadd.f32 0.0, %v1708
          %v1710 = vpop.f32.mrf.mxu0
          %1711 = vdwg.mxu0
          %v1712 = vadd.f32 %v1639, %v1698
          %v1713 = vadd.f32 %v1640, %v1701
          %v1714 = vadd.f32 %v1641, %v1706
          %v1715 = vadd.f32 %v1642, %v1709
          %v1716 = vld [vmem:[#allocation2] sm:$0x1]
          %v1717 = vsel %vm538, %v1712, 0.0
          %v1718 = vsel %vm538, %v1713, 0.0
          %v1719 = vadd.f32 %v1717, %v1718
          %v1720 = vsel %vm538, %v1714, 0.0
          %v1721 = vadd.f32 %v1719, %v1720
          %v1722 = vsel %vm538, %v1715, 0.0
          %v1723 = vadd.f32 %v1721, %v1722
          %v1724 = vrot.slane %v1723, 4
          %v1725 = vadd.f32 %v1723, %v1724
          %v1726 = vrot.slane %v1725, 2
          %v1727 = vadd.f32 %v1725, %v1726
          %v1728 = vrot.slane %v1727, 1
          %v1729 = vadd.f32 %v1727, %v1728
          %v1730 = vadd.f32 %v1716, %v1729
          %1731 = vst.msk [vmem:[#allocation2] sm:$0x1] %vm183, %v1730
          %v1732 = vld [vmem:[#allocation3] sm:$0x1]
          %v1733 = vmul.f32 %v1712, %v1712
          %v1734 = vmul.f32 %v1713, %v1713
          %v1735 = vmul.f32 %v1714, %v1714
          %v1736 = vmul.f32 %v1715, %v1715
          %v1737 = vsel %vm538, %v1733, 0.0
          %v1738 = vsel %vm538, %v1734, 0.0
          %v1739 = vadd.f32 %v1737, %v1738
          %v1740 = vsel %vm538, %v1735, 0.0
          %v1741 = vadd.f32 %v1739, %v1740
          %v1742 = vsel %vm538, %v1736, 0.0
          %v1743 = vadd.f32 %v1741, %v1742
          %v1744 = vrot.slane %v1743, 4
          %v1745 = vadd.f32 %v1743, %v1744
          %v1746 = vrot.slane %v1745, 2
          %v1747 = vadd.f32 %v1745, %v1746
          %v1748 = vrot.slane %v1747, 1
          %v1749 = vadd.f32 %v1747, %v1748
          %v1750 = vadd.f32 %v1732, %v1749
          %1751 = vst.msk [vmem:[#allocation3] sm:$0x1] %vm183, %v1750
          %v1752 = vtanh.pop %v1712
          %v1753 = vtanh.pop %v1713
          %v1754 = vtanh.pop %v1714
          %v1755 = vtanh.pop %v1715
          %1760 = vrot.lane.b32.xlu0 %v1752, 3
          %v1761 = vpop.permute.xlu0 %1760
          %1762 = vrot.lane.b32.xlu0 %v1753, 3
          %v1763 = vpop.permute.xlu0 %1762
          %1764 = vrot.lane.b32.xlu0 %v1754, 3
          %v1765 = vpop.permute.xlu0 %1764
          %1766 = vrot.lane.b32.xlu0 %v1755, 3
          %v1767 = vpop.permute.xlu0 %1766
          %1772 = vst.msk [vmem:[%s1369] sm:$0xff] %vm983, %v1761
          %1773 = vst.msk [vmem:[%s1369 + $0x8] sm:$0xff] %vm983, %v1763
          %1774 = vst.msk [vmem:[%s1369 + $0x10] sm:$0xff] %vm983, %v1765
          %1775 = vst.msk [vmem:[%s1369 + $0x18] sm:$0xff] %vm983, %v1767
        $region33: #{generator_forward.25} parent=27 // loop_footer
          %s191 = sadd.s32 1, %s187
        $region34: #{generator_forward.25} parent=27 // loop_footer_branch
          %186 = sbr.rel target = $region30
        $region35: #{generator_forward.25} parent=27 // loop_exit
          _
        %v1776 = vld [vmem:[#allocation2] sm:$0x1]
        %1777 = vst.msk [vmem:[%s171] sm:$0x1] %vm183, %v1776
        %v1778 = vld [vmem:[#allocation3] sm:$0x1]
        %1779 = vst.msk [vmem:[%s171 + $0x1] sm:$0x1] %vm183, %v1778
        %p1780 = scmp.lt.s32.totalorder %s18, 1
        %s1781 = scalar_select %p1780, %s18, 1
        %s1782 = smul.addr %s1781, 256
        %s1783 = smul.addr %s1782, 8
        %s1784 = scalar_lea.vmem %s2, %s1783
        %s1785 = sand.u32 %s99, 1
        %s1786 = scalar_lea.sflag [#allocation5], %s1785
        %s1787 = sand.u32 %s99, 1
        %s1788 = smul.addr %s1787, 2
        %s1789 = scalar_lea.vmem [#allocation4], %s1788
        // Predicated region
        $region36: #{generator_forward.25} parent=27 // pred_check
          %p1790 = pneg %p83
        $region37: #{generator_forward.25} parent=27 // pred_check_branch
          %1792 = sbr.rel (%p1790) target = $region39
        $region38: #{generator_forward.25} parent=27 // pred_region
          _
        $region39: #{generator_forward.25} parent=27 // pred_fallthru
          _
        // Predicated region
        $region40: #{generator_forward.25} parent=27 // pred_check
          %p1793 = pneg %p109
        $region41: #{generator_forward.25} parent=27 // pred_check_branch
          %1795 = sbr.rel (%p1793) target = $region43
        $region42: #{generator_forward.25} parent=27 // pred_region
          %s1797 = ssub.s32 32, 32
          %1798 = vsyncadd %s1786, %s1797
          %s1799 = smul.addr %s18, 32
          %s1800 = scalar_lea.hbm %s3, %s1799
          %s1802 = sshll.u32 %s1789, 4
          %s1803 = int_to_ptr.vmem [resolvable:$true] %s1802
          %1805 = dma.vmem_to_hbm [thread:$0]  %s1803, 32, %s1800, %s1786
        $region43: #{generator_forward.25} parent=27 // pred_fallthru
          _
      $region28: #{generator_forward.25} parent=5 // pred_fallthru
        _
      %p1806 = scmp.le.s32.totalorder 2, %s13
      // Predicated region
      $region44: #{generator_forward.25} parent=5 // pred_check
        %p1807 = pneg %p1806
      $region45: #{generator_forward.25} parent=5 // pred_check_branch
        %1809 = sbr.rel (%p1807) target = $region47
      $region46: #{generator_forward.25} parent=5 // pred_region
        %s1810 = ssub.s32 %s13, 2
        // Predicated region
        $region48: #{generator_forward.25} parent=46 // pred_check
          %p1811 = pneg %p89
        $region49: #{generator_forward.25} parent=46 // pred_check_branch
          %1813 = sbr.rel (%p1811) target = $region51
        $region50: #{generator_forward.25} parent=46 // pred_region
          %p1814 = scmp.lt.s32.totalorder %s19, 1
          %s1815 = scalar_select %p1814, %s19, 1
          %s1816 = smul.addr %s1815, 256
          %s1817 = smul.addr %s1816, 8
          %s1818 = scalar_lea.vmem %s2, %s1817
        $region51: #{generator_forward.25} parent=46 // pred_fallthru
          _
        // Predicated region
        $region52: #{generator_forward.25} parent=46 // pred_check
          %p1819 = pneg %p115
        $region53: #{generator_forward.25} parent=46 // pred_check_branch
          %1821 = sbr.rel (%p1819) target = $region55
        $region54: #{generator_forward.25} parent=46 // pred_region
          %s1822 = sand.u32 %s100, 1
          %s1823 = scalar_lea.sflag [#allocation5], %s1822
          %s1824 = sand.u32 %s100, 1
          %s1825 = smul.addr %s1824, 2
          %s1826 = scalar_lea.vmem [#allocation4], %s1825
          %1827 = dma.done %s1823, 32
        $region55: #{generator_forward.25} parent=46 // pred_fallthru
          _
      $region47: #{generator_forward.25} parent=5 // pred_fallthru
        _
    $region6: #{generator_forward.25} parent=1 // loop_footer
      %s17 = sadd.s32 1, %s13
    $region7: #{generator_forward.25} parent=1 // loop_footer_branch
      %12 = sbr.rel target = $region3
    $region8: #{generator_forward.25} parent=1 // loop_exit
      _
    %1828 = vsyncpa [#allocation5], 1
    %s1829 = scalar_lea.sflag [#allocation5], 1
    %1830 = vsyncpa %s1829, 1

</llo_original>
